<compile_context>
chip_gen: v7x
topology: tpu7x:2x2x1
jax: 0.10.0
libtpu: 0.0.40
codegen_flags: <defaults>
</compile_context>

<pallas_src>
import functools

import jax
import jax.numpy as jnp
import numpy as np
from jax.experimental import pallas as pl
from jax.experimental.pallas import tpu as pltpu


# ----------------------------------------------------------------------------
# Fused kernel: the entire MFRF_En_Dila block for one batch element.
# ----------------------------------------------------------------------------
def _mfrf_en_dila_kernel(x_ref,                                   # (1, H, W, Cin)
                         w03_ref,                                 # (9*Cin, Cout)
                         w11_ref,                                 # (Cout, Cout)
                         w13_ref, w23a_ref, w23b_ref,             # (9*Cout, Cout)
                         w01a_ref, w01b_ref, w01c_ref,            # (Cout, Cout) slabs
                         aff_ref,                                 # (8, Cout) affine pack
                         m01_ref, out_ref,                        # (1, H, W, Cout) x2
                         xpad, p03, pt,                           # VMEM scratch (padded)
                         *, dil):
    _, H, W, Cin = x_ref.shape
    Cout = m01_ref.shape[3]
    pad = dil
    HW = H * W

    aff = aff_ref[...]                                  # (8, Cout) f32
    scale03, shift03 = aff[0:1], aff[1:2]               # BN03 scale / bias-folded shift
    b11, b13, b23a, b23b = aff[2:3], aff[3:4], aff[4:5], aff[5:6]
    scale01, shift01 = aff[6:7], aff[7:8]               # BN01 scale / bias-folded shift

    def dconv3x3(src, w9_ref):
        """Dilated 3x3 conv as ONE im2col matmul: (HW, 9C) @ (9C, Cout) -> f32."""
        C = src.shape[-1]
        cols = []
        for kh in range(3):
            for kw in range(3):
                tap = src[kh * dil:kh * dil + H, kw * dil:kw * dil + W, :]
                cols.append(tap.reshape(HW, C))
        col = jnp.concatenate(cols, axis=-1)            # (HW, 9*C), column order (kh,kw,c)
        return jnp.dot(col, w9_ref[...], preferred_element_type=jnp.float32)

    # ---- zero-pad the input tile in VMEM (no padded HBM tensor) ----
    xpad[...] = jnp.zeros_like(xpad)
    xpad[pad:pad + H, pad:pad + W, :] = x_ref[0]

    # ---- MFRF03 = ReLU(BN(dconv3x3(x)))  (conv bias folded into shift03) ----
    m03 = jnp.maximum(dconv3x3(xpad, w03_ref) * scale03 + shift03, 0.0)   # (HW, Cout)

    # Keep a padded copy of MFRF03 resident for the three downstream dilated convs.
    p03[...] = jnp.zeros_like(p03)
    p03[pad:pad + H, pad:pad + W, :] = m03.reshape(H, W, Cout)

    # ---- MFRF11 = ReLU(conv1x1(MFRF03)) ----
    m11 = jnp.maximum(
        jnp.dot(m03, w11_ref[...], preferred_element_type=jnp.float32) + b11, 0.0)

    # ---- MFRF13 = ReLU(dconv3x3(MFRF03)) ----
    m13 = jnp.maximum(dconv3x3(p03, w13_ref) + b13, 0.0)

    # ---- MFRF23 = DCR(DCR(MFRF03)) ----
    t23 = jnp.maximum(dconv3x3(p03, w23a_ref) + b23a, 0.0)
    pt[...] = jnp.zeros_like(pt)
    pt[pad:pad + H, pad:pad + W, :] = t23.reshape(H, W, Cout)
    m23 = jnp.maximum(dconv3x3(pt, w23b_ref) + b23b, 0.0)

    # ---- MFRF01 = ReLU(BN(conv1x1(cat))) — concat-free via pre-split W01 slabs ----
    acc = jnp.dot(m11, w01a_ref[...], preferred_element_type=jnp.float32)
    acc = acc + jnp.dot(m13, w01b_ref[...], preferred_element_type=jnp.float32)
    acc = acc + jnp.dot(m23, w01c_ref[...], preferred_element_type=jnp.float32)
    m01 = jnp.maximum(acc * scale01 + shift01, 0.0)

    m01_ref[...] = m01.reshape(1, H, W, Cout)
    out_ref[...] = (m01 + m03).reshape(1, H, W, Cout)


# ----------------------------------------------------------------------------
# Wrapper: host-side weight packing + pallas_call
# ----------------------------------------------------------------------------
def mfrf_en_dila_forward(x_nchw, params, dila_rate=2):
    p = params
    x = jnp.transpose(x_nchw, (0, 2, 3, 1)).astype(jnp.float32)   # NCHW -> NHWC
    B, H, W, Cin = x.shape
    Cout = p["w03"].shape[-1]
    pad = dila_rate
    Hp, Wp = H + 2 * pad, W + 2 * pad

    # HWIO (3,3,C,Cout) -> (9*C, Cout), matching the kernel's (kh, kw, c) im2col order.
    w03 = p["w03"].reshape(9 * Cin, Cout)
    w13 = p["w13"].reshape(9 * Cout, Cout)
    w23a = p["w23a"].reshape(9 * Cout, Cout)
    w23b = p["w23b"].reshape(9 * Cout, Cout)
    w11 = p["w11"]                                       # (Cout, Cout)
    w01a = p["w01"][0 * Cout:1 * Cout]                   # multiplies MFRF11
    w01b = p["w01"][1 * Cout:2 * Cout]                   # multiplies MFRF13
    w01c = p["w01"][2 * Cout:3 * Cout]                   # multiplies MFRF23

    # Per-channel affine vectors; conv biases folded into the shifts on host.
    aff = jnp.stack([
        p["scale03"],
        p["b03"] * p["scale03"] + p["shift03"],
        p["b11"], p["b13"], p["b23a"], p["b23b"],
        p["scale01"],
        p["b01"] * p["scale01"] + p["shift01"],
    ], axis=0).astype(jnp.float32)                       # (8, Cout)

    kern = functools.partial(_mfrf_en_dila_kernel, dil=dila_rate)
    full2d = lambda b: (0, 0)

    m01, out = pl.pallas_call(
        kern,
        out_shape=(jax.ShapeDtypeStruct((B, H, W, Cout), jnp.float32),
                   jax.ShapeDtypeStruct((B, H, W, Cout), jnp.float32)),
        grid=(B,),
        in_specs=[
            pl.BlockSpec((1, H, W, Cin), lambda b: (b, 0, 0, 0)),
            pl.BlockSpec((9 * Cin, Cout), full2d),
            pl.BlockSpec((Cout, Cout), full2d),
            pl.BlockSpec((9 * Cout, Cout), full2d),
            pl.BlockSpec((9 * Cout, Cout), full2d),
            pl.BlockSpec((9 * Cout, Cout), full2d),
            pl.BlockSpec((Cout, Cout), full2d),
            pl.BlockSpec((Cout, Cout), full2d),
            pl.BlockSpec((Cout, Cout), full2d),
            pl.BlockSpec((8, Cout), full2d),
        ],
        out_specs=(pl.BlockSpec((1, H, W, Cout), lambda b: (b, 0, 0, 0)),
                   pl.BlockSpec((1, H, W, Cout), lambda b: (b, 0, 0, 0))),
        scratch_shapes=[
            pltpu.VMEM((Hp, Wp, Cin), jnp.float32),      # padded input
            pltpu.VMEM((Hp, Wp, Cout), jnp.float32),     # padded MFRF03
            pltpu.VMEM((Hp, Wp, Cout), jnp.float32),     # padded DCR(MFRF03)
        ],
        compiler_params=pltpu.CompilerParams(
            dimension_semantics=("parallel",)),
    )(x, w03, w11, w13, w23a, w23b, w01a, w01b, w01c, aff)

    # NHWC -> NCHW, like the PyTorch module's outputs.
    return (jnp.transpose(m01, (0, 3, 1, 2)), jnp.transpose(out, (0, 3, 1, 2)))


# ----------------------------------------------------------------------------
# Parameter construction (deterministic, synthetic)
# ----------------------------------------------------------------------------
def make_params(key, c_in, c_out):
    keys = iter(jax.random.split(key, 24))   # 20 keys used; a few spare
    nxt = lambda: next(keys)

    def conv_w(kh, kw, ci, co):
        fan_in = kh * kw * ci
        return jax.random.normal(nxt(), (kh, kw, ci, co), jnp.float32) / np.sqrt(fan_in)

    def bias(co):
        return 0.05 * jax.random.normal(nxt(), (co,), jnp.float32)

    def bn_fold(co):
        gamma = 1.0 + 0.1 * jax.random.normal(nxt(), (co,), jnp.float32)
        beta = 0.1 * jax.random.normal(nxt(), (co,), jnp.float32)
        mean = 0.1 * jax.random.normal(nxt(), (co,), jnp.float32)
        var = jax.random.uniform(nxt(), (co,), jnp.float32, 0.5, 1.5)
        scale = gamma / jnp.sqrt(var + 1e-5)
        shift = beta - mean * scale
        return scale, shift

    p = {}
    p["w03"], p["b03"] = conv_w(3, 3, c_in, c_out), bias(c_out)
    p["scale03"], p["shift03"] = bn_fold(c_out)
    p["w11"], p["b11"] = conv_w(1, 1, c_out, c_out)[0, 0], bias(c_out)       # (Cout, Cout)
    p["w13"], p["b13"] = conv_w(3, 3, c_out, c_out), bias(c_out)
    p["w23a"], p["b23a"] = conv_w(3, 3, c_out, c_out), bias(c_out)
    p["w23b"], p["b23b"] = conv_w(3, 3, c_out, c_out), bias(c_out)
    p["w01"], p["b01"] = conv_w(1, 1, 3 * c_out, c_out)[0, 0], bias(c_out)   # (3*Cout, Cout)
    p["scale01"], p["shift01"] = bn_fold(c_out)
    return p


# ----------------------------------------------------------------------------
# Pure-JAX reference (lax convs) for correctness
# ----------------------------------------------------------------------------
def _ref_conv(x_nhwc, w_hwio, b, dil, pad):
    y = jax.lax.conv_general_dilated(
        x_nhwc, w_hwio, window_strides=(1, 1),
        padding=[(pad, pad), (pad, pad)],
        rhs_dilation=(dil, dil),
        dimension_numbers=("NHWC", "HWIO", "NHWC"))
    return y + b.reshape(1, 1, 1, -1)


def mfrf_en_dila_reference(x_nchw, p, dila_rate=2):
    x = jnp.transpose(x_nchw, (0, 2, 3, 1)).astype(jnp.float32)
    relu = lambda v: jnp.maximum(v, 0.0)
    c_out = p["w03"].shape[-1]

    m03 = relu(_ref_conv(x, p["w03"], p["b03"], dila_rate, dila_rate)
               * p["scale03"] + p["shift03"])
    m11 = relu(_ref_conv(m03, p["w11"].reshape(1, 1, c_out, c_out), p["b11"], 1, 0))
    m13 = relu(_ref_conv(m03, p["w13"], p["b13"], dila_rate, dila_rate))
    t = relu(_ref_conv(m03, p["w23a"], p["b23a"], dila_rate, dila_rate))
    m23 = relu(_ref_conv(t, p["w23b"], p["b23b"], dila_rate, dila_rate))
    cat = jnp.concatenate([m11, m13, m23], axis=-1)
    m01 = relu(_ref_conv(cat, p["w01"].reshape(1, 1, 3 * c_out, c_out), p["b01"], 1, 0)
               * p["scale01"] + p["shift01"])
    out = m01 + m03
    return (jnp.transpose(m01, (0, 3, 1, 2)), jnp.transpose(out, (0, 3, 1, 2)))


# ----------------------------------------------------------------------------
if __name__ == "__main__":
    B, C_IN, C_OUT, H, W, DILA = 2, 4, 8, 16, 16, 2

    key = jax.random.PRNGKey(0)
    kx, kp = jax.random.split(key)
    x = jax.random.normal(kx, (B, C_IN, H, W), jnp.float32)        # NCHW like PyTorch
    params = make_params(kp, C_IN, C_OUT)

    fwd = jax.jit(functools.partial(mfrf_en_dila_forward, dila_rate=DILA))
    m01_k, out_k = fwd(x, params)
    m01_k = jax.block_until_ready(m01_k)
    out_k = jax.block_until_ready(out_k)

    m01_r, out_r = mfrf_en_dila_reference(x, params, DILA)
    m01_r = jax.block_until_ready(m01_r)
    out_r = jax.block_until_ready(out_r)

    np.testing.assert_allclose(np.asarray(m01_k), np.asarray(m01_r), rtol=1e-4, atol=1e-4)
    np.testing.assert_allclose(np.asarray(out_k), np.asarray(out_r), rtol=1e-4, atol=1e-4)
    assert m01_k.shape == (B, C_OUT, H, W) and out_k.shape == (B, C_OUT, H, W)
    print("KERNEL_OK")
</pallas_src>

<mosaic_0001>
module attributes {stable_mosaic.version = 11 : i64} {
  func.func @_mfrf_en_dila_kernel(%arg0: i32, %arg1: memref<1x16x16x4xf32, #tpu.memory_space<vmem>>, %arg2: memref<36x8xf32, #tpu.memory_space<vmem>>, %arg3: memref<8x8xf32, #tpu.memory_space<vmem>>, %arg4: memref<72x8xf32, #tpu.memory_space<vmem>>, %arg5: memref<72x8xf32, #tpu.memory_space<vmem>>, %arg6: memref<72x8xf32, #tpu.memory_space<vmem>>, %arg7: memref<8x8xf32, #tpu.memory_space<vmem>>, %arg8: memref<8x8xf32, #tpu.memory_space<vmem>>, %arg9: memref<8x8xf32, #tpu.memory_space<vmem>>, %arg10: memref<8x8xf32, #tpu.memory_space<vmem>>, %arg11: memref<1x16x16x8xf32, #tpu.memory_space<vmem>>, %arg12: memref<1x16x16x8xf32, #tpu.memory_space<vmem>>, %arg13: memref<20x20x4xf32, #tpu.memory_space<vmem>>, %arg14: memref<20x20x8xf32, #tpu.memory_space<vmem>>, %arg15: memref<20x20x8xf32, #tpu.memory_space<vmem>>) attributes {dimension_semantics = [#tpu.dimension_semantics<parallel>], iteration_bounds = array<i64: 2>, scalar_prefetch = 0 : i64, scratch_operands = 3 : i64, tpu.core_type = #tpu.core_type<tc>, window_params = [{transform_indices = @transform_0, window_bounds = array<i64: 1, 16, 16, 4>}, {pipeline_mode = #tpu.pipeline_mode<synchronous>, transform_indices = @transform_1, window_bounds = array<i64: 36, 8>}, {pipeline_mode = #tpu.pipeline_mode<synchronous>, transform_indices = @transform_2, window_bounds = array<i64: 8, 8>}, {pipeline_mode = #tpu.pipeline_mode<synchronous>, transform_indices = @transform_3, window_bounds = array<i64: 72, 8>}, {pipeline_mode = #tpu.pipeline_mode<synchronous>, transform_indices = @transform_4, window_bounds = array<i64: 72, 8>}, {pipeline_mode = #tpu.pipeline_mode<synchronous>, transform_indices = @transform_5, window_bounds = array<i64: 72, 8>}, {pipeline_mode = #tpu.pipeline_mode<synchronous>, transform_indices = @transform_6, window_bounds = array<i64: 8, 8>}, {pipeline_mode = #tpu.pipeline_mode<synchronous>, transform_indices = @transform_7, window_bounds = array<i64: 8, 8>}, {pipeline_mode = #tpu.pipeline_mode<synchronous>, transform_indices = @transform_8, window_bounds = array<i64: 8, 8>}, {pipeline_mode = #tpu.pipeline_mode<synchronous>, transform_indices = @transform_9, window_bounds = array<i64: 8, 8>}, {transform_indices = @transform_10, window_bounds = array<i64: 1, 16, 16, 8>}, {transform_indices = @transform_11, window_bounds = array<i64: 1, 16, 16, 8>}]} {
    %c0 = arith.constant 0 : index
    %c0_0 = arith.constant 0 : index
    %0 = vector.load %arg10[%c0, %c0_0] : memref<8x8xf32, #tpu.memory_space<vmem>>, vector<8x8xf32>
    %1 = vector.extract_strided_slice %0 {offsets = [0, 0], sizes = [1, 8], strides = [1, 1]} : vector<8x8xf32> to vector<1x8xf32>
    %2 = vector.extract_strided_slice %0 {offsets = [1, 0], sizes = [1, 8], strides = [1, 1]} : vector<8x8xf32> to vector<1x8xf32>
    %3 = vector.extract_strided_slice %0 {offsets = [2, 0], sizes = [1, 8], strides = [1, 1]} : vector<8x8xf32> to vector<1x8xf32>
    %4 = vector.extract_strided_slice %0 {offsets = [3, 0], sizes = [1, 8], strides = [1, 1]} : vector<8x8xf32> to vector<1x8xf32>
    %5 = vector.extract_strided_slice %0 {offsets = [4, 0], sizes = [1, 8], strides = [1, 1]} : vector<8x8xf32> to vector<1x8xf32>
    %6 = vector.extract_strided_slice %0 {offsets = [5, 0], sizes = [1, 8], strides = [1, 1]} : vector<8x8xf32> to vector<1x8xf32>
    %7 = vector.extract_strided_slice %0 {offsets = [6, 0], sizes = [1, 8], strides = [1, 1]} : vector<8x8xf32> to vector<1x8xf32>
    %8 = vector.extract_strided_slice %0 {offsets = [7, 0], sizes = [1, 8], strides = [1, 1]} : vector<8x8xf32> to vector<1x8xf32>
    %cst = arith.constant 0.000000e+00 : f32
    %9 = vector.broadcast %cst : f32 to vector<20x20x4xf32>
    %c0_1 = arith.constant 0 : index
    %c0_2 = arith.constant 0 : index
    %c0_3 = arith.constant 0 : index
    %10 = vector.load %arg13[%c0_1, %c0_2, %c0_3] : memref<20x20x4xf32, #tpu.memory_space<vmem>>, vector<20x20x4xf32>
    tpu.vector_store %arg13[%c0_1, %c0_2, %c0_3], %9 {strides = array<i32>} : memref<20x20x4xf32, #tpu.memory_space<vmem>>, vector<20x20x4xf32>,
    %c0_4 = arith.constant 0 : index
    %c0_5 = arith.constant 0 : index
    %c0_6 = arith.constant 0 : index
    %c0_7 = arith.constant 0 : index
    %11 = vector.load %arg1[%c0_4, %c0_5, %c0_6, %c0_7] : memref<1x16x16x4xf32, #tpu.memory_space<vmem>>, vector<1x16x16x4xf32>
    %12 = vector.shape_cast %11 : vector<1x16x16x4xf32> to vector<16x16x4xf32>
    %c2 = arith.constant 2 : index
    %c2_8 = arith.constant 2 : index
    %c0_9 = arith.constant 0 : index
    %13 = vector.load %arg13[%c2, %c2_8, %c0_9] : memref<20x20x4xf32, #tpu.memory_space<vmem>>, vector<16x16x4xf32>
    tpu.vector_store %arg13[%c2, %c2_8, %c0_9], %12 {strides = array<i32>} : memref<20x20x4xf32, #tpu.memory_space<vmem>>, vector<16x16x4xf32>,
    %c0_10 = arith.constant 0 : index
    %c0_11 = arith.constant 0 : index
    %c0_12 = arith.constant 0 : index
    %14 = vector.load %arg13[%c0_10, %c0_11, %c0_12] : memref<20x20x4xf32, #tpu.memory_space<vmem>>, vector<16x16x4xf32>
    %15 = vector.shape_cast %14 : vector<16x16x4xf32> to vector<256x4xf32>
    %c0_13 = arith.constant 0 : index
    %c2_14 = arith.constant 2 : index
    %c0_15 = arith.constant 0 : index
    %16 = vector.load %arg13[%c0_13, %c2_14, %c0_15] : memref<20x20x4xf32, #tpu.memory_space<vmem>>, vector<16x16x4xf32>
    %17 = vector.shape_cast %16 : vector<16x16x4xf32> to vector<256x4xf32>
    %c0_16 = arith.constant 0 : index
    %c4 = arith.constant 4 : index
    %c0_17 = arith.constant 0 : index
    %18 = vector.load %arg13[%c0_16, %c4, %c0_17] : memref<20x20x4xf32, #tpu.memory_space<vmem>>, vector<16x16x4xf32>
    %19 = vector.shape_cast %18 : vector<16x16x4xf32> to vector<256x4xf32>
    %c2_18 = arith.constant 2 : index
    %c0_19 = arith.constant 0 : index
    %c0_20 = arith.constant 0 : index
    %20 = vector.load %arg13[%c2_18, %c0_19, %c0_20] : memref<20x20x4xf32, #tpu.memory_space<vmem>>, vector<16x16x4xf32>
    %21 = vector.shape_cast %20 : vector<16x16x4xf32> to vector<256x4xf32>
    %c2_21 = arith.constant 2 : index
    %c2_22 = arith.constant 2 : index
    %c0_23 = arith.constant 0 : index
    %22 = vector.load %arg13[%c2_21, %c2_22, %c0_23] : memref<20x20x4xf32, #tpu.memory_space<vmem>>, vector<16x16x4xf32>
    %23 = vector.shape_cast %22 : vector<16x16x4xf32> to vector<256x4xf32>
    %c2_24 = arith.constant 2 : index
    %c4_25 = arith.constant 4 : index
    %c0_26 = arith.constant 0 : index
    %24 = vector.load %arg13[%c2_24, %c4_25, %c0_26] : memref<20x20x4xf32, #tpu.memory_space<vmem>>, vector<16x16x4xf32>
    %25 = vector.shape_cast %24 : vector<16x16x4xf32> to vector<256x4xf32>
    %c4_27 = arith.constant 4 : index
    %c0_28 = arith.constant 0 : index
    %c0_29 = arith.constant 0 : index
    %26 = vector.load %arg13[%c4_27, %c0_28, %c0_29] : memref<20x20x4xf32, #tpu.memory_space<vmem>>, vector<16x16x4xf32>
    %27 = vector.shape_cast %26 : vector<16x16x4xf32> to vector<256x4xf32>
    %c4_30 = arith.constant 4 : index
    %c2_31 = arith.constant 2 : index
    %c0_32 = arith.constant 0 : index
    %28 = vector.load %arg13[%c4_30, %c2_31, %c0_32] : memref<20x20x4xf32, #tpu.memory_space<vmem>>, vector<16x16x4xf32>
    %29 = vector.shape_cast %28 : vector<16x16x4xf32> to vector<256x4xf32>
    %c4_33 = arith.constant 4 : index
    %c4_34 = arith.constant 4 : index
    %c0_35 = arith.constant 0 : index
    %30 = vector.load %arg13[%c4_33, %c4_34, %c0_35] : memref<20x20x4xf32, #tpu.memory_space<vmem>>, vector<16x16x4xf32>
    %31 = vector.shape_cast %30 : vector<16x16x4xf32> to vector<256x4xf32>
    %32 = tpu.concatenate %15, %17, %19, %21, %23, %25, %27, %29, %31 in 1 : vector<256x4xf32>, vector<256x4xf32>, vector<256x4xf32>, vector<256x4xf32>, vector<256x4xf32>, vector<256x4xf32>, vector<256x4xf32>, vector<256x4xf32>, vector<256x4xf32> -> vector<256x36xf32>
    %c0_36 = arith.constant 0 : index
    %c0_37 = arith.constant 0 : index
    %33 = vector.load %arg2[%c0_36, %c0_37] : memref<36x8xf32, #tpu.memory_space<vmem>>, vector<36x8xf32>
    %cst_38 = arith.constant dense<0.000000e+00> : vector<256x8xf32>
    %34 = tpu.matmul %32, %33, %cst_38 {dimension_numbers = #tpu.dot_dimension_numbers<[1], [0], [0], [1], [0, 0, 1, 1], [], []>} : vector<256x36xf32>, vector<36x8xf32>, vector<256x8xf32> -> vector<256x8xf32>
    %35 = vector.broadcast %1 : vector<1x8xf32> to vector<256x8xf32>
    %36 = arith.mulf %34, %35 : vector<256x8xf32>
    %37 = vector.broadcast %2 : vector<1x8xf32> to vector<256x8xf32>
    %38 = arith.addf %36, %37 : vector<256x8xf32>
    %cst_39 = arith.constant 0.000000e+00 : f32
    %39 = vector.broadcast %cst_39 : f32 to vector<256x8xf32>
    %40 = arith.maximumf %38, %39 : vector<256x8xf32>
    %cst_40 = arith.constant 0.000000e+00 : f32
    %41 = vector.broadcast %cst_40 : f32 to vector<20x20x8xf32>
    %c0_41 = arith.constant 0 : index
    %c0_42 = arith.constant 0 : index
    %c0_43 = arith.constant 0 : index
    %42 = vector.load %arg14[%c0_41, %c0_42, %c0_43] : memref<20x20x8xf32, #tpu.memory_space<vmem>>, vector<20x20x8xf32>
    tpu.vector_store %arg14[%c0_41, %c0_42, %c0_43], %41 {strides = array<i32>} : memref<20x20x8xf32, #tpu.memory_space<vmem>>, vector<20x20x8xf32>,
    %43 = vector.shape_cast %40 : vector<256x8xf32> to vector<16x16x8xf32>
    %c2_44 = arith.constant 2 : index
    %c2_45 = arith.constant 2 : index
    %c0_46 = arith.constant 0 : index
    %44 = vector.load %arg14[%c2_44, %c2_45, %c0_46] : memref<20x20x8xf32, #tpu.memory_space<vmem>>, vector<16x16x8xf32>
    tpu.vector_store %arg14[%c2_44, %c2_45, %c0_46], %43 {strides = array<i32>} : memref<20x20x8xf32, #tpu.memory_space<vmem>>, vector<16x16x8xf32>,
    %c0_47 = arith.constant 0 : index
    %c0_48 = arith.constant 0 : index
    %45 = vector.load %arg3[%c0_47, %c0_48] : memref<8x8xf32, #tpu.memory_space<vmem>>, vector<8x8xf32>
    %cst_49 = arith.constant dense<0.000000e+00> : vector<256x8xf32>
    %46 = tpu.matmul %40, %45, %cst_49 {dimension_numbers = #tpu.dot_dimension_numbers<[1], [0], [0], [1], [0, 0, 1, 1], [], []>} : vector<256x8xf32>, vector<8x8xf32>, vector<256x8xf32> -> vector<256x8xf32>
    %47 = vector.broadcast %3 : vector<1x8xf32> to vector<256x8xf32>
    %48 = arith.addf %46, %47 : vector<256x8xf32>
    %cst_50 = arith.constant 0.000000e+00 : f32
    %49 = vector.broadcast %cst_50 : f32 to vector<256x8xf32>
    %50 = arith.maximumf %48, %49 : vector<256x8xf32>
    %c0_51 = arith.constant 0 : index
    %c0_52 = arith.constant 0 : index
    %c0_53 = arith.constant 0 : index
    %51 = vector.load %arg14[%c0_51, %c0_52, %c0_53] : memref<20x20x8xf32, #tpu.memory_space<vmem>>, vector<16x16x8xf32>
    %52 = vector.shape_cast %51 : vector<16x16x8xf32> to vector<256x8xf32>
    %c0_54 = arith.constant 0 : index
    %c2_55 = arith.constant 2 : index
    %c0_56 = arith.constant 0 : index
    %53 = vector.load %arg14[%c0_54, %c2_55, %c0_56] : memref<20x20x8xf32, #tpu.memory_space<vmem>>, vector<16x16x8xf32>
    %54 = vector.shape_cast %53 : vector<16x16x8xf32> to vector<256x8xf32>
    %c0_57 = arith.constant 0 : index
    %c4_58 = arith.constant 4 : index
    %c0_59 = arith.constant 0 : index
    %55 = vector.load %arg14[%c0_57, %c4_58, %c0_59] : memref<20x20x8xf32, #tpu.memory_space<vmem>>, vector<16x16x8xf32>
    %56 = vector.shape_cast %55 : vector<16x16x8xf32> to vector<256x8xf32>
    %c2_60 = arith.constant 2 : index
    %c0_61 = arith.constant 0 : index
    %c0_62 = arith.constant 0 : index
    %57 = vector.load %arg14[%c2_60, %c0_61, %c0_62] : memref<20x20x8xf32, #tpu.memory_space<vmem>>, vector<16x16x8xf32>
    %58 = vector.shape_cast %57 : vector<16x16x8xf32> to vector<256x8xf32>
    %c2_63 = arith.constant 2 : index
    %c2_64 = arith.constant 2 : index
    %c0_65 = arith.constant 0 : index
    %59 = vector.load %arg14[%c2_63, %c2_64, %c0_65] : memref<20x20x8xf32, #tpu.memory_space<vmem>>, vector<16x16x8xf32>
    %60 = vector.shape_cast %59 : vector<16x16x8xf32> to vector<256x8xf32>
    %c2_66 = arith.constant 2 : index
    %c4_67 = arith.constant 4 : index
    %c0_68 = arith.constant 0 : index
    %61 = vector.load %arg14[%c2_66, %c4_67, %c0_68] : memref<20x20x8xf32, #tpu.memory_space<vmem>>, vector<16x16x8xf32>
    %62 = vector.shape_cast %61 : vector<16x16x8xf32> to vector<256x8xf32>
    %c4_69 = arith.constant 4 : index
    %c0_70 = arith.constant 0 : index
    %c0_71 = arith.constant 0 : index
    %63 = vector.load %arg14[%c4_69, %c0_70, %c0_71] : memref<20x20x8xf32, #tpu.memory_space<vmem>>, vector<16x16x8xf32>
    %64 = vector.shape_cast %63 : vector<16x16x8xf32> to vector<256x8xf32>
    %c4_72 = arith.constant 4 : index
    %c2_73 = arith.constant 2 : index
    %c0_74 = arith.constant 0 : index
    %65 = vector.load %arg14[%c4_72, %c2_73, %c0_74] : memref<20x20x8xf32, #tpu.memory_space<vmem>>, vector<16x16x8xf32>
    %66 = vector.shape_cast %65 : vector<16x16x8xf32> to vector<256x8xf32>
    %c4_75 = arith.constant 4 : index
    %c4_76 = arith.constant 4 : index
    %c0_77 = arith.constant 0 : index
    %67 = vector.load %arg14[%c4_75, %c4_76, %c0_77] : memref<20x20x8xf32, #tpu.memory_space<vmem>>, vector<16x16x8xf32>
    %68 = vector.shape_cast %67 : vector<16x16x8xf32> to vector<256x8xf32>
    %69 = tpu.concatenate %52, %54, %56, %58, %60, %62, %64, %66, %68 in 1 : vector<256x8xf32>, vector<256x8xf32>, vector<256x8xf32>, vector<256x8xf32>, vector<256x8xf32>, vector<256x8xf32>, vector<256x8xf32>, vector<256x8xf32>, vector<256x8xf32> -> vector<256x72xf32>
    %c0_78 = arith.constant 0 : index
    %c0_79 = arith.constant 0 : index
    %70 = vector.load %arg4[%c0_78, %c0_79] : memref<72x8xf32, #tpu.memory_space<vmem>>, vector<72x8xf32>
    %cst_80 = arith.constant dense<0.000000e+00> : vector<256x8xf32>
    %71 = tpu.matmul %69, %70, %cst_80 {dimension_numbers = #tpu.dot_dimension_numbers<[1], [0], [0], [1], [0, 0, 1, 1], [], []>} : vector<256x72xf32>, vector<72x8xf32>, vector<256x8xf32> -> vector<256x8xf32>
    %72 = vector.broadcast %4 : vector<1x8xf32> to vector<256x8xf32>
    %73 = arith.addf %71, %72 : vector<256x8xf32>
    %cst_81 = arith.constant 0.000000e+00 : f32
    %74 = vector.broadcast %cst_81 : f32 to vector<256x8xf32>
    %75 = arith.maximumf %73, %74 : vector<256x8xf32>
    %c0_82 = arith.constant 0 : index
    %c0_83 = arith.constant 0 : index
    %c0_84 = arith.constant 0 : index
    %76 = vector.load %arg14[%c0_82, %c0_83, %c0_84] : memref<20x20x8xf32, #tpu.memory_space<vmem>>, vector<16x16x8xf32>
    %77 = vector.shape_cast %76 : vector<16x16x8xf32> to vector<256x8xf32>
    %c0_85 = arith.constant 0 : index
    %c2_86 = arith.constant 2 : index
    %c0_87 = arith.constant 0 : index
    %78 = vector.load %arg14[%c0_85, %c2_86, %c0_87] : memref<20x20x8xf32, #tpu.memory_space<vmem>>, vector<16x16x8xf32>
    %79 = vector.shape_cast %78 : vector<16x16x8xf32> to vector<256x8xf32>
    %c0_88 = arith.constant 0 : index
    %c4_89 = arith.constant 4 : index
    %c0_90 = arith.constant 0 : index
    %80 = vector.load %arg14[%c0_88, %c4_89, %c0_90] : memref<20x20x8xf32, #tpu.memory_space<vmem>>, vector<16x16x8xf32>
    %81 = vector.shape_cast %80 : vector<16x16x8xf32> to vector<256x8xf32>
    %c2_91 = arith.constant 2 : index
    %c0_92 = arith.constant 0 : index
    %c0_93 = arith.constant 0 : index
    %82 = vector.load %arg14[%c2_91, %c0_92, %c0_93] : memref<20x20x8xf32, #tpu.memory_space<vmem>>, vector<16x16x8xf32>
    %83 = vector.shape_cast %82 : vector<16x16x8xf32> to vector<256x8xf32>
    %c2_94 = arith.constant 2 : index
    %c2_95 = arith.constant 2 : index
    %c0_96 = arith.constant 0 : index
    %84 = vector.load %arg14[%c2_94, %c2_95, %c0_96] : memref<20x20x8xf32, #tpu.memory_space<vmem>>, vector<16x16x8xf32>
    %85 = vector.shape_cast %84 : vector<16x16x8xf32> to vector<256x8xf32>
    %c2_97 = arith.constant 2 : index
    %c4_98 = arith.constant 4 : index
    %c0_99 = arith.constant 0 : index
    %86 = vector.load %arg14[%c2_97, %c4_98, %c0_99] : memref<20x20x8xf32, #tpu.memory_space<vmem>>, vector<16x16x8xf32>
    %87 = vector.shape_cast %86 : vector<16x16x8xf32> to vector<256x8xf32>
    %c4_100 = arith.constant 4 : index
    %c0_101 = arith.constant 0 : index
    %c0_102 = arith.constant 0 : index
    %88 = vector.load %arg14[%c4_100, %c0_101, %c0_102] : memref<20x20x8xf32, #tpu.memory_space<vmem>>, vector<16x16x8xf32>
    %89 = vector.shape_cast %88 : vector<16x16x8xf32> to vector<256x8xf32>
    %c4_103 = arith.constant 4 : index
    %c2_104 = arith.constant 2 : index
    %c0_105 = arith.constant 0 : index
    %90 = vector.load %arg14[%c4_103, %c2_104, %c0_105] : memref<20x20x8xf32, #tpu.memory_space<vmem>>, vector<16x16x8xf32>
    %91 = vector.shape_cast %90 : vector<16x16x8xf32> to vector<256x8xf32>
    %c4_106 = arith.constant 4 : index
    %c4_107 = arith.constant 4 : index
    %c0_108 = arith.constant 0 : index
    %92 = vector.load %arg14[%c4_106, %c4_107, %c0_108] : memref<20x20x8xf32, #tpu.memory_space<vmem>>, vector<16x16x8xf32>
    %93 = vector.shape_cast %92 : vector<16x16x8xf32> to vector<256x8xf32>
    %94 = tpu.concatenate %77, %79, %81, %83, %85, %87, %89, %91, %93 in 1 : vector<256x8xf32>, vector<256x8xf32>, vector<256x8xf32>, vector<256x8xf32>, vector<256x8xf32>, vector<256x8xf32>, vector<256x8xf32>, vector<256x8xf32>, vector<256x8xf32> -> vector<256x72xf32>
    %c0_109 = arith.constant 0 : index
    %c0_110 = arith.constant 0 : index
    %95 = vector.load %arg5[%c0_109, %c0_110] : memref<72x8xf32, #tpu.memory_space<vmem>>, vector<72x8xf32>
    %cst_111 = arith.constant dense<0.000000e+00> : vector<256x8xf32>
    %96 = tpu.matmul %94, %95, %cst_111 {dimension_numbers = #tpu.dot_dimension_numbers<[1], [0], [0], [1], [0, 0, 1, 1], [], []>} : vector<256x72xf32>, vector<72x8xf32>, vector<256x8xf32> -> vector<256x8xf32>
    %97 = vector.broadcast %5 : vector<1x8xf32> to vector<256x8xf32>
    %98 = arith.addf %96, %97 : vector<256x8xf32>
    %cst_112 = arith.constant 0.000000e+00 : f32
    %99 = vector.broadcast %cst_112 : f32 to vector<256x8xf32>
    %100 = arith.maximumf %98, %99 : vector<256x8xf32>
    %cst_113 = arith.constant 0.000000e+00 : f32
    %101 = vector.broadcast %cst_113 : f32 to vector<20x20x8xf32>
    %c0_114 = arith.constant 0 : index
    %c0_115 = arith.constant 0 : index
    %c0_116 = arith.constant 0 : index
    %102 = vector.load %arg15[%c0_114, %c0_115, %c0_116] : memref<20x20x8xf32, #tpu.memory_space<vmem>>, vector<20x20x8xf32>
    tpu.vector_store %arg15[%c0_114, %c0_115, %c0_116], %101 {strides = array<i32>} : memref<20x20x8xf32, #tpu.memory_space<vmem>>, vector<20x20x8xf32>,
    %103 = vector.shape_cast %100 : vector<256x8xf32> to vector<16x16x8xf32>
    %c2_117 = arith.constant 2 : index
    %c2_118 = arith.constant 2 : index
    %c0_119 = arith.constant 0 : index
    %104 = vector.load %arg15[%c2_117, %c2_118, %c0_119] : memref<20x20x8xf32, #tpu.memory_space<vmem>>, vector<16x16x8xf32>
    tpu.vector_store %arg15[%c2_117, %c2_118, %c0_119], %103 {strides = array<i32>} : memref<20x20x8xf32, #tpu.memory_space<vmem>>, vector<16x16x8xf32>,
    %c0_120 = arith.constant 0 : index
    %c0_121 = arith.constant 0 : index
    %c0_122 = arith.constant 0 : index
    %105 = vector.load %arg15[%c0_120, %c0_121, %c0_122] : memref<20x20x8xf32, #tpu.memory_space<vmem>>, vector<16x16x8xf32>
    %106 = vector.shape_cast %105 : vector<16x16x8xf32> to vector<256x8xf32>
    %c0_123 = arith.constant 0 : index
    %c2_124 = arith.constant 2 : index
    %c0_125 = arith.constant 0 : index
    %107 = vector.load %arg15[%c0_123, %c2_124, %c0_125] : memref<20x20x8xf32, #tpu.memory_space<vmem>>, vector<16x16x8xf32>
    %108 = vector.shape_cast %107 : vector<16x16x8xf32> to vector<256x8xf32>
    %c0_126 = arith.constant 0 : index
    %c4_127 = arith.constant 4 : index
    %c0_128 = arith.constant 0 : index
    %109 = vector.load %arg15[%c0_126, %c4_127, %c0_128] : memref<20x20x8xf32, #tpu.memory_space<vmem>>, vector<16x16x8xf32>
    %110 = vector.shape_cast %109 : vector<16x16x8xf32> to vector<256x8xf32>
    %c2_129 = arith.constant 2 : index
    %c0_130 = arith.constant 0 : index
    %c0_131 = arith.constant 0 : index
    %111 = vector.load %arg15[%c2_129, %c0_130, %c0_131] : memref<20x20x8xf32, #tpu.memory_space<vmem>>, vector<16x16x8xf32>
    %112 = vector.shape_cast %111 : vector<16x16x8xf32> to vector<256x8xf32>
    %c2_132 = arith.constant 2 : index
    %c2_133 = arith.constant 2 : index
    %c0_134 = arith.constant 0 : index
    %113 = vector.load %arg15[%c2_132, %c2_133, %c0_134] : memref<20x20x8xf32, #tpu.memory_space<vmem>>, vector<16x16x8xf32>
    %114 = vector.shape_cast %113 : vector<16x16x8xf32> to vector<256x8xf32>
    %c2_135 = arith.constant 2 : index
    %c4_136 = arith.constant 4 : index
    %c0_137 = arith.constant 0 : index
    %115 = vector.load %arg15[%c2_135, %c4_136, %c0_137] : memref<20x20x8xf32, #tpu.memory_space<vmem>>, vector<16x16x8xf32>
    %116 = vector.shape_cast %115 : vector<16x16x8xf32> to vector<256x8xf32>
    %c4_138 = arith.constant 4 : index
    %c0_139 = arith.constant 0 : index
    %c0_140 = arith.constant 0 : index
    %117 = vector.load %arg15[%c4_138, %c0_139, %c0_140] : memref<20x20x8xf32, #tpu.memory_space<vmem>>, vector<16x16x8xf32>
    %118 = vector.shape_cast %117 : vector<16x16x8xf32> to vector<256x8xf32>
    %c4_141 = arith.constant 4 : index
    %c2_142 = arith.constant 2 : index
    %c0_143 = arith.constant 0 : index
    %119 = vector.load %arg15[%c4_141, %c2_142, %c0_143] : memref<20x20x8xf32, #tpu.memory_space<vmem>>, vector<16x16x8xf32>
    %120 = vector.shape_cast %119 : vector<16x16x8xf32> to vector<256x8xf32>
    %c4_144 = arith.constant 4 : index
    %c4_145 = arith.constant 4 : index
    %c0_146 = arith.constant 0 : index
    %121 = vector.load %arg15[%c4_144, %c4_145, %c0_146] : memref<20x20x8xf32, #tpu.memory_space<vmem>>, vector<16x16x8xf32>
    %122 = vector.shape_cast %121 : vector<16x16x8xf32> to vector<256x8xf32>
    %123 = tpu.concatenate %106, %108, %110, %112, %114, %116, %118, %120, %122 in 1 : vector<256x8xf32>, vector<256x8xf32>, vector<256x8xf32>, vector<256x8xf32>, vector<256x8xf32>, vector<256x8xf32>, vector<256x8xf32>, vector<256x8xf32>, vector<256x8xf32> -> vector<256x72xf32>
    %c0_147 = arith.constant 0 : index
    %c0_148 = arith.constant 0 : index
    %124 = vector.load %arg6[%c0_147, %c0_148] : memref<72x8xf32, #tpu.memory_space<vmem>>, vector<72x8xf32>
    %cst_149 = arith.constant dense<0.000000e+00> : vector<256x8xf32>
    %125 = tpu.matmul %123, %124, %cst_149 {dimension_numbers = #tpu.dot_dimension_numbers<[1], [0], [0], [1], [0, 0, 1, 1], [], []>} : vector<256x72xf32>, vector<72x8xf32>, vector<256x8xf32> -> vector<256x8xf32>
    %126 = vector.broadcast %6 : vector<1x8xf32> to vector<256x8xf32>
    %127 = arith.addf %125, %126 : vector<256x8xf32>
    %cst_150 = arith.constant 0.000000e+00 : f32
    %128 = vector.broadcast %cst_150 : f32 to vector<256x8xf32>
    %129 = arith.maximumf %127, %128 : vector<256x8xf32>
    %c0_151 = arith.constant 0 : index
    %c0_152 = arith.constant 0 : index
    %130 = vector.load %arg7[%c0_151, %c0_152] : memref<8x8xf32, #tpu.memory_space<vmem>>, vector<8x8xf32>
    %cst_153 = arith.constant dense<0.000000e+00> : vector<256x8xf32>
    %131 = tpu.matmul %50, %130, %cst_153 {dimension_numbers = #tpu.dot_dimension_numbers<[1], [0], [0], [1], [0, 0, 1, 1], [], []>} : vector<256x8xf32>, vector<8x8xf32>, vector<256x8xf32> -> vector<256x8xf32>
    %c0_154 = arith.constant 0 : index
    %c0_155 = arith.constant 0 : index
    %132 = vector.load %arg8[%c0_154, %c0_155] : memref<8x8xf32, #tpu.memory_space<vmem>>, vector<8x8xf32>
    %cst_156 = arith.constant dense<0.000000e+00> : vector<256x8xf32>
    %133 = tpu.matmul %75, %132, %cst_156 {dimension_numbers = #tpu.dot_dimension_numbers<[1], [0], [0], [1], [0, 0, 1, 1], [], []>} : vector<256x8xf32>, vector<8x8xf32>, vector<256x8xf32> -> vector<256x8xf32>
    %134 = arith.addf %131, %133 : vector<256x8xf32>
    %c0_157 = arith.constant 0 : index
    %c0_158 = arith.constant 0 : index
    %135 = vector.load %arg9[%c0_157, %c0_158] : memref<8x8xf32, #tpu.memory_space<vmem>>, vector<8x8xf32>
    %cst_159 = arith.constant dense<0.000000e+00> : vector<256x8xf32>
    %136 = tpu.matmul %129, %135, %cst_159 {dimension_numbers = #tpu.dot_dimension_numbers<[1], [0], [0], [1], [0, 0, 1, 1], [], []>} : vector<256x8xf32>, vector<8x8xf32>, vector<256x8xf32> -> vector<256x8xf32>
    %137 = arith.addf %134, %136 : vector<256x8xf32>
    %138 = vector.broadcast %7 : vector<1x8xf32> to vector<256x8xf32>
    %139 = arith.mulf %137, %138 : vector<256x8xf32>
    %140 = vector.broadcast %8 : vector<1x8xf32> to vector<256x8xf32>
    %141 = arith.addf %139, %140 : vector<256x8xf32>
    %cst_160 = arith.constant 0.000000e+00 : f32
    %142 = vector.broadcast %cst_160 : f32 to vector<256x8xf32>
    %143 = arith.maximumf %141, %142 : vector<256x8xf32>
    %144 = vector.shape_cast %143 : vector<256x8xf32> to vector<1x16x16x8xf32>
    %c0_161 = arith.constant 0 : index
    %c0_162 = arith.constant 0 : index
    %c0_163 = arith.constant 0 : index
    %c0_164 = arith.constant 0 : index
    %145 = vector.load %arg11[%c0_161, %c0_162, %c0_163, %c0_164] : memref<1x16x16x8xf32, #tpu.memory_space<vmem>>, vector<1x16x16x8xf32>
    tpu.vector_store %arg11[%c0_161, %c0_162, %c0_163, %c0_164], %144 {strides = array<i32>} : memref<1x16x16x8xf32, #tpu.memory_space<vmem>>, vector<1x16x16x8xf32>,
    %146 = arith.addf %143, %40 : vector<256x8xf32>
    %147 = vector.shape_cast %146 : vector<256x8xf32> to vector<1x16x16x8xf32>
    %c0_165 = arith.constant 0 : index
    %c0_166 = arith.constant 0 : index
    %c0_167 = arith.constant 0 : index
    %c0_168 = arith.constant 0 : index
    %148 = vector.load %arg12[%c0_165, %c0_166, %c0_167, %c0_168] : memref<1x16x16x8xf32, #tpu.memory_space<vmem>>, vector<1x16x16x8xf32>
    tpu.vector_store %arg12[%c0_165, %c0_166, %c0_167, %c0_168], %147 {strides = array<i32>} : memref<1x16x16x8xf32, #tpu.memory_space<vmem>>, vector<1x16x16x8xf32>,
    return
  }
  func.func @transform_0(%arg0: i32) -> (i32, i32, i32, i32) {
    %c0_i32 = arith.constant 0 : i32
    %c0_i32_0 = arith.constant 0 : i32
    %c0_i32_1 = arith.constant 0 : i32
    %c0_i32_2 = arith.constant 0 : i32
    return %arg0, %c0_i32, %c0_i32_0, %c0_i32_1 : i32, i32, i32, i32
  }
  func.func @transform_1(%arg0: i32) -> (i32, i32) {
    %c0_i32 = arith.constant 0 : i32
    %c0_i32_0 = arith.constant 0 : i32
    %c0_i32_1 = arith.constant 0 : i32
    return %c0_i32, %c0_i32_0 : i32, i32
  }
  func.func @transform_2(%arg0: i32) -> (i32, i32) {
    %c0_i32 = arith.constant 0 : i32
    %c0_i32_0 = arith.constant 0 : i32
    %c0_i32_1 = arith.constant 0 : i32
    return %c0_i32, %c0_i32_0 : i32, i32
  }
  func.func @transform_3(%arg0: i32) -> (i32, i32) {
    %c0_i32 = arith.constant 0 : i32
    %c0_i32_0 = arith.constant 0 : i32
    %c0_i32_1 = arith.constant 0 : i32
    return %c0_i32, %c0_i32_0 : i32, i32
  }
  func.func @transform_4(%arg0: i32) -> (i32, i32) {
    %c0_i32 = arith.constant 0 : i32
    %c0_i32_0 = arith.constant 0 : i32
    %c0_i32_1 = arith.constant 0 : i32
    return %c0_i32, %c0_i32_0 : i32, i32
  }
  func.func @transform_5(%arg0: i32) -> (i32, i32) {
    %c0_i32 = arith.constant 0 : i32
    %c0_i32_0 = arith.constant 0 : i32
    %c0_i32_1 = arith.constant 0 : i32
    return %c0_i32, %c0_i32_0 : i32, i32
  }
  func.func @transform_6(%arg0: i32) -> (i32, i32) {
    %c0_i32 = arith.constant 0 : i32
    %c0_i32_0 = arith.constant 0 : i32
    %c0_i32_1 = arith.constant 0 : i32
    return %c0_i32, %c0_i32_0 : i32, i32
  }
  func.func @transform_7(%arg0: i32) -> (i32, i32) {
    %c0_i32 = arith.constant 0 : i32
    %c0_i32_0 = arith.constant 0 : i32
    %c0_i32_1 = arith.constant 0 : i32
    return %c0_i32, %c0_i32_0 : i32, i32
  }
  func.func @transform_8(%arg0: i32) -> (i32, i32) {
    %c0_i32 = arith.constant 0 : i32
    %c0_i32_0 = arith.constant 0 : i32
    %c0_i32_1 = arith.constant 0 : i32
    return %c0_i32, %c0_i32_0 : i32, i32
  }
  func.func @transform_9(%arg0: i32) -> (i32, i32) {
    %c0_i32 = arith.constant 0 : i32
    %c0_i32_0 = arith.constant 0 : i32
    %c0_i32_1 = arith.constant 0 : i32
    return %c0_i32, %c0_i32_0 : i32, i32
  }
  func.func @transform_10(%arg0: i32) -> (i32, i32, i32, i32) {
    %c0_i32 = arith.constant 0 : i32
    %c0_i32_0 = arith.constant 0 : i32
    %c0_i32_1 = arith.constant 0 : i32
    %c0_i32_2 = arith.constant 0 : i32
    return %arg0, %c0_i32, %c0_i32_0, %c0_i32_1 : i32, i32, i32, i32
  }
  func.func @transform_11(%arg0: i32) -> (i32, i32, i32, i32) {
    %c0_i32 = arith.constant 0 : i32
    %c0_i32_0 = arith.constant 0 : i32
    %c0_i32_1 = arith.constant 0 : i32
    %c0_i32_2 = arith.constant 0 : i32
    return %arg0, %c0_i32, %c0_i32_0, %c0_i32_1 : i32, i32, i32, i32
  }
}

</mosaic_0001>

<llo_original>
// kernel: mfrf_en_dila_forward.1
$region0: #{mfrf_en_dila_forward.1}
  #allocation0 [shape = 'u32[]', space=smem, size = 0x4, offset = 0x4, fixed_abs, tag = 'smem constant byte address 0x4 - core index']
  #allocation1 [shape = 'u32[144,128]{1,0:T(1,128)}', space=vmem, size = 0x12000, scoped, tag = 'internal scratch']
  #allocation2 [shape = 'f32[20,20,4]{2,1,0:T(8,128)}', space=vmem, size = 0x3c000, scoped, tag = 'scratch operand']
  #allocation3 [shape = 'f32[20,20,8]{2,1,0:T(8,128)}', space=vmem, size = 0x3c000, scoped, tag = 'scratch operand']
  #allocation4 [shape = 'f32[20,20,8]{2,1,0:T(8,128)}', space=vmem, size = 0x3c000, scoped, tag = 'scratch operand']
  %s0 = inlined_call_operand.vmem [shape: f32[2,16,16,4], index: 0, kind: input, shape index: {}]
  %s1 = inlined_call_operand.vmem [shape: f32[36,8], index: 1, kind: input, shape index: {}]
  %s2 = inlined_call_operand.vmem [shape: f32[8,8], index: 2, kind: input, shape index: {}]
  %s3 = inlined_call_operand.vmem [shape: f32[72,8], index: 3, kind: input, shape index: {}]
  %s4 = inlined_call_operand.vmem [shape: f32[72,8], index: 4, kind: input, shape index: {}]
  %s5 = inlined_call_operand.vmem [shape: f32[72,8], index: 5, kind: input, shape index: {}]
  %s6 = inlined_call_operand.vmem [shape: f32[8,8], index: 6, kind: input, shape index: {}]
  %s7 = inlined_call_operand.vmem [shape: f32[8,8], index: 7, kind: input, shape index: {}]
  %s8 = inlined_call_operand.vmem [shape: f32[8,8], index: 8, kind: input, shape index: {}]
  %s9 = inlined_call_operand.vmem [shape: f32[8,8], index: 9, kind: input, shape index: {}]
  %s10 = inlined_call_operand.vmem [shape: f32[2,16,16,8], index: 10, kind: output, shape index: {0}]
  %s11 = inlined_call_operand.vmem [shape: f32[2,16,16,8], index: 11, kind: output, shape index: {1}]
  %12 = xla_tuple %s10, %s11
  %s13 = sld [smem:[#allocation0]]
  $region81: #{mfrf_en_dila_forward.1} parent=0
    _
  %s15 = ssub.s32 1, %s13
  %s16 = scalar_select 0, %s15, %s13
  loop: start=0, step=1, limit=4
  $region2: #{mfrf_en_dila_forward.1} parent=0 // loop_pre_header
    _
  $region3: #{mfrf_en_dila_forward.1} parent=0 // loop_header
    %s18 = sphi 0, %s22
    %p19 = scmp.ge.s32.totalorder %s18, 4
    %s28 = sphi 0, %s30
    %s31 = sphi 0, %s28
    %s32 = sphi 0, %s31
    %s48 = sphi 0, %s32
    %s52 = sphi 0, %s52
    %s54 = sphi 0, %s52
    %s55 = sphi 0, %s54
    %s69 = sphi 0, %s55
    %s73 = sphi 0, %s73
    %s75 = sphi 0, %s73
    %s76 = sphi 0, %s75
    %s90 = sphi 0, %s76
    %s94 = sphi 0, %s94
    %s96 = sphi 0, %s94
    %s97 = sphi 0, %s96
    %s111 = sphi 0, %s97
    %s115 = sphi 0, %s115
    %s117 = sphi 0, %s115
    %s118 = sphi 0, %s117
    %s132 = sphi 0, %s118
    %s136 = sphi 0, %s136
    %s138 = sphi 0, %s136
    %s139 = sphi 0, %s138
    %s153 = sphi 0, %s139
    %s157 = sphi 0, %s157
    %s159 = sphi 0, %s157
    %s160 = sphi 0, %s159
    %s174 = sphi 0, %s160
    %s178 = sphi 0, %s178
    %s180 = sphi 0, %s178
    %s181 = sphi 0, %s180
    %s195 = sphi 0, %s181
    %s199 = sphi 0, %s199
    %s201 = sphi 0, %s199
    %s202 = sphi 0, %s201
    %s216 = sphi 0, %s202
    %s220 = sphi 0, %s220
    %s222 = sphi 0, %s220
    %s223 = sphi 0, %s222
    %s237 = sphi 0, %s223
    %s243 = sphi 0, %s245
    %s246 = sphi 0, %s243
    %s247 = sphi 0, %s246
    %s263 = sphi 0, %s247
    %s269 = sphi 0, %s271
    %s272 = sphi 0, %s269
    %s273 = sphi 0, %s272
    %s289 = sphi 0, %s273
  $region4: #{mfrf_en_dila_forward.1} parent=0 // loop_header_branch
    %21 = sbr.rel (%p19) target = $region8
  $region5: #{mfrf_en_dila_forward.1} parent=0 // loop_body
    %s23 = ssub.s32 %s18, 1
    %s24 = ssub.s32 %s18, 2
    %s25 = sadd.s32 %s18, 1
    %s26 = ssub.s32 %s18, %s25
    %p27 = scmp.eq.s32.totalorder %s26, 0
    %s29 = sadd.s32 %s28, 1
    %s30 = scalar_select %p27, %s28, %s29
    %p33 = pneg %p27
    %p34 = scmp.eq.s32.totalorder %s18, 1
    %p35 = por %p33, %p34
    %p36 = scmp.ne.s32.totalorder %s28, %s31
    %p37 = scmp.eq.s32.totalorder %s18, 0
    %p38 = por %p36, %p37
    %p39 = scmp.ne.s32.totalorder %s28, %s31
    %p40 = scmp.eq.s32.totalorder %s23, 1
    %p41 = por %p39, %p40
    %p42 = scmp.ne.s32.totalorder %s31, %s32
    %p43 = scmp.eq.s32.totalorder %s23, 0
    %p44 = por %p42, %p43
    %p45 = scmp.ne.s32.totalorder %s31, %s32
    %p46 = scmp.eq.s32.totalorder %s24, 1
    %p47 = por %p45, %p46
    %p49 = scmp.ne.s32.totalorder %s32, %s48
    %p50 = scmp.eq.s32.totalorder %s24, 0
    %p51 = por %p49, %p50
    %s53 = sadd.s32 %s52, 1
    %p56 = scmp.eq.s32.totalorder %s18, 1
    %p57 = scmp.ne.s32.totalorder %s52, %s54
    %p58 = scmp.eq.s32.totalorder %s18, 0
    %p59 = por %p57, %p58
    %p60 = scmp.ne.s32.totalorder %s52, %s54
    %p61 = scmp.eq.s32.totalorder %s23, 1
    %p62 = por %p60, %p61
    %p63 = scmp.ne.s32.totalorder %s54, %s55
    %p64 = scmp.eq.s32.totalorder %s23, 0
    %p65 = por %p63, %p64
    %p66 = scmp.ne.s32.totalorder %s54, %s55
    %p67 = scmp.eq.s32.totalorder %s24, 1
    %p68 = por %p66, %p67
    %p70 = scmp.ne.s32.totalorder %s55, %s69
    %p71 = scmp.eq.s32.totalorder %s24, 0
    %p72 = por %p70, %p71
    %s74 = sadd.s32 %s73, 1
    %p77 = scmp.eq.s32.totalorder %s18, 1
    %p78 = scmp.ne.s32.totalorder %s73, %s75
    %p79 = scmp.eq.s32.totalorder %s18, 0
    %p80 = por %p78, %p79
    %p81 = scmp.ne.s32.totalorder %s73, %s75
    %p82 = scmp.eq.s32.totalorder %s23, 1
    %p83 = por %p81, %p82
    %p84 = scmp.ne.s32.totalorder %s75, %s76
    %p85 = scmp.eq.s32.totalorder %s23, 0
    %p86 = por %p84, %p85
    %p87 = scmp.ne.s32.totalorder %s75, %s76
    %p88 = scmp.eq.s32.totalorder %s24, 1
    %p89 = por %p87, %p88
    %p91 = scmp.ne.s32.totalorder %s76, %s90
    %p92 = scmp.eq.s32.totalorder %s24, 0
    %p93 = por %p91, %p92
    %s95 = sadd.s32 %s94, 1
    %p98 = scmp.eq.s32.totalorder %s18, 1
    %p99 = scmp.ne.s32.totalorder %s94, %s96
    %p100 = scmp.eq.s32.totalorder %s18, 0
    %p101 = por %p99, %p100
    %p102 = scmp.ne.s32.totalorder %s94, %s96
    %p103 = scmp.eq.s32.totalorder %s23, 1
    %p104 = por %p102, %p103
    %p105 = scmp.ne.s32.totalorder %s96, %s97
    %p106 = scmp.eq.s32.totalorder %s23, 0
    %p107 = por %p105, %p106
    %p108 = scmp.ne.s32.totalorder %s96, %s97
    %p109 = scmp.eq.s32.totalorder %s24, 1
    %p110 = por %p108, %p109
    %p112 = scmp.ne.s32.totalorder %s97, %s111
    %p113 = scmp.eq.s32.totalorder %s24, 0
    %p114 = por %p112, %p113
    %s116 = sadd.s32 %s115, 1
    %p119 = scmp.eq.s32.totalorder %s18, 1
    %p120 = scmp.ne.s32.totalorder %s115, %s117
    %p121 = scmp.eq.s32.totalorder %s18, 0
    %p122 = por %p120, %p121
    %p123 = scmp.ne.s32.totalorder %s115, %s117
    %p124 = scmp.eq.s32.totalorder %s23, 1
    %p125 = por %p123, %p124
    %p126 = scmp.ne.s32.totalorder %s117, %s118
    %p127 = scmp.eq.s32.totalorder %s23, 0
    %p128 = por %p126, %p127
    %p129 = scmp.ne.s32.totalorder %s117, %s118
    %p130 = scmp.eq.s32.totalorder %s24, 1
    %p131 = por %p129, %p130
    %p133 = scmp.ne.s32.totalorder %s118, %s132
    %p134 = scmp.eq.s32.totalorder %s24, 0
    %p135 = por %p133, %p134
    %s137 = sadd.s32 %s136, 1
    %p140 = scmp.eq.s32.totalorder %s18, 1
    %p141 = scmp.ne.s32.totalorder %s136, %s138
    %p142 = scmp.eq.s32.totalorder %s18, 0
    %p143 = por %p141, %p142
    %p144 = scmp.ne.s32.totalorder %s136, %s138
    %p145 = scmp.eq.s32.totalorder %s23, 1
    %p146 = por %p144, %p145
    %p147 = scmp.ne.s32.totalorder %s138, %s139
    %p148 = scmp.eq.s32.totalorder %s23, 0
    %p149 = por %p147, %p148
    %p150 = scmp.ne.s32.totalorder %s138, %s139
    %p151 = scmp.eq.s32.totalorder %s24, 1
    %p152 = por %p150, %p151
    %p154 = scmp.ne.s32.totalorder %s139, %s153
    %p155 = scmp.eq.s32.totalorder %s24, 0
    %p156 = por %p154, %p155
    %s158 = sadd.s32 %s157, 1
    %p161 = scmp.eq.s32.totalorder %s18, 1
    %p162 = scmp.ne.s32.totalorder %s157, %s159
    %p163 = scmp.eq.s32.totalorder %s18, 0
    %p164 = por %p162, %p163
    %p165 = scmp.ne.s32.totalorder %s157, %s159
    %p166 = scmp.eq.s32.totalorder %s23, 1
    %p167 = por %p165, %p166
    %p168 = scmp.ne.s32.totalorder %s159, %s160
    %p169 = scmp.eq.s32.totalorder %s23, 0
    %p170 = por %p168, %p169
    %p171 = scmp.ne.s32.totalorder %s159, %s160
    %p172 = scmp.eq.s32.totalorder %s24, 1
    %p173 = por %p171, %p172
    %p175 = scmp.ne.s32.totalorder %s160, %s174
    %p176 = scmp.eq.s32.totalorder %s24, 0
    %p177 = por %p175, %p176
    %s179 = sadd.s32 %s178, 1
    %p182 = scmp.eq.s32.totalorder %s18, 1
    %p183 = scmp.ne.s32.totalorder %s178, %s180
    %p184 = scmp.eq.s32.totalorder %s18, 0
    %p185 = por %p183, %p184
    %p186 = scmp.ne.s32.totalorder %s178, %s180
    %p187 = scmp.eq.s32.totalorder %s23, 1
    %p188 = por %p186, %p187
    %p189 = scmp.ne.s32.totalorder %s180, %s181
    %p190 = scmp.eq.s32.totalorder %s23, 0
    %p191 = por %p189, %p190
    %p192 = scmp.ne.s32.totalorder %s180, %s181
    %p193 = scmp.eq.s32.totalorder %s24, 1
    %p194 = por %p192, %p193
    %p196 = scmp.ne.s32.totalorder %s181, %s195
    %p197 = scmp.eq.s32.totalorder %s24, 0
    %p198 = por %p196, %p197
    %s200 = sadd.s32 %s199, 1
    %p203 = scmp.eq.s32.totalorder %s18, 1
    %p204 = scmp.ne.s32.totalorder %s199, %s201
    %p205 = scmp.eq.s32.totalorder %s18, 0
    %p206 = por %p204, %p205
    %p207 = scmp.ne.s32.totalorder %s199, %s201
    %p208 = scmp.eq.s32.totalorder %s23, 1
    %p209 = por %p207, %p208
    %p210 = scmp.ne.s32.totalorder %s201, %s202
    %p211 = scmp.eq.s32.totalorder %s23, 0
    %p212 = por %p210, %p211
    %p213 = scmp.ne.s32.totalorder %s201, %s202
    %p214 = scmp.eq.s32.totalorder %s24, 1
    %p215 = por %p213, %p214
    %p217 = scmp.ne.s32.totalorder %s202, %s216
    %p218 = scmp.eq.s32.totalorder %s24, 0
    %p219 = por %p217, %p218
    %s221 = sadd.s32 %s220, 1
    %p224 = scmp.eq.s32.totalorder %s18, 1
    %p225 = scmp.ne.s32.totalorder %s220, %s222
    %p226 = scmp.eq.s32.totalorder %s18, 0
    %p227 = por %p225, %p226
    %p228 = scmp.ne.s32.totalorder %s220, %s222
    %p229 = scmp.eq.s32.totalorder %s23, 1
    %p230 = por %p228, %p229
    %p231 = scmp.ne.s32.totalorder %s222, %s223
    %p232 = scmp.eq.s32.totalorder %s23, 0
    %p233 = por %p231, %p232
    %p234 = scmp.ne.s32.totalorder %s222, %s223
    %p235 = scmp.eq.s32.totalorder %s24, 1
    %p236 = por %p234, %p235
    %p238 = scmp.ne.s32.totalorder %s223, %s237
    %p239 = scmp.eq.s32.totalorder %s24, 0
    %p240 = por %p238, %p239
    %s241 = ssub.s32 %s18, %s25
    %p242 = scmp.eq.s32.totalorder %s241, 0
    %s244 = sadd.s32 %s243, 1
    %s245 = scalar_select %p242, %s243, %s244
    %p248 = pneg %p242
    %p249 = scmp.eq.s32.totalorder %s18, 1
    %p250 = por %p248, %p249
    %p251 = scmp.ne.s32.totalorder %s243, %s246
    %p252 = scmp.eq.s32.totalorder %s18, 0
    %p253 = por %p251, %p252
    %p254 = scmp.ne.s32.totalorder %s243, %s246
    %p255 = scmp.eq.s32.totalorder %s23, 1
    %p256 = por %p254, %p255
    %p257 = scmp.ne.s32.totalorder %s246, %s247
    %p258 = scmp.eq.s32.totalorder %s23, 0
    %p259 = por %p257, %p258
    %p260 = scmp.ne.s32.totalorder %s246, %s247
    %p261 = scmp.eq.s32.totalorder %s24, 1
    %p262 = por %p260, %p261
    %p264 = scmp.ne.s32.totalorder %s247, %s263
    %p265 = scmp.eq.s32.totalorder %s24, 0
    %p266 = por %p264, %p265
    %s267 = ssub.s32 %s18, %s25
    %p268 = scmp.eq.s32.totalorder %s267, 0
    %s270 = sadd.s32 %s269, 1
    %s271 = scalar_select %p268, %s269, %s270
    %p274 = pneg %p268
    %p275 = scmp.eq.s32.totalorder %s18, 1
    %p276 = por %p274, %p275
    %p277 = scmp.ne.s32.totalorder %s269, %s272
    %p278 = scmp.eq.s32.totalorder %s18, 0
    %p279 = por %p277, %p278
    %p280 = scmp.ne.s32.totalorder %s269, %s272
    %p281 = scmp.eq.s32.totalorder %s23, 1
    %p282 = por %p280, %p281
    %p283 = scmp.ne.s32.totalorder %s272, %s273
    %p284 = scmp.eq.s32.totalorder %s23, 0
    %p285 = por %p283, %p284
    %p286 = scmp.ne.s32.totalorder %s272, %s273
    %p287 = scmp.eq.s32.totalorder %s24, 1
    %p288 = por %p286, %p287
    %p290 = scmp.ne.s32.totalorder %s273, %s289
    %p291 = scmp.eq.s32.totalorder %s24, 0
    %p292 = por %p290, %p291
    %p293 = scmp.le.s32.totalorder 1, %s18
    %p294 = scmp.lt.s32.totalorder %s18, 3
    %p295 = pnand %p293, %p294
    %p296 = pneg %p295
    // Predicated region
    $region9: #{mfrf_en_dila_forward.1} parent=5 // pred_check
      _
    $region10: #{mfrf_en_dila_forward.1} parent=5 // pred_check_branch
      %298 = sbr.rel (%p295) target = $region12
    $region11: #{mfrf_en_dila_forward.1} parent=5 // pred_region
      %s299 = ssub.s32 %s18, 1
      // Predicated region
      $region13: #{mfrf_en_dila_forward.1} parent=11 // pred_check
        %p300 = pneg %p65
      $region14: #{mfrf_en_dila_forward.1} parent=11 // pred_check_branch
        %302 = sbr.rel (%p300) target = $region16
      $region15: #{mfrf_en_dila_forward.1} parent=11 // pred_region
        _
      $region16: #{mfrf_en_dila_forward.1} parent=11 // pred_fallthru
        _
      // Predicated region
      $region17: #{mfrf_en_dila_forward.1} parent=11 // pred_check
        %p303 = pneg %p86
      $region18: #{mfrf_en_dila_forward.1} parent=11 // pred_check_branch
        %305 = sbr.rel (%p303) target = $region20
      $region19: #{mfrf_en_dila_forward.1} parent=11 // pred_region
        _
      $region20: #{mfrf_en_dila_forward.1} parent=11 // pred_fallthru
        _
      // Predicated region
      $region21: #{mfrf_en_dila_forward.1} parent=11 // pred_check
        %p306 = pneg %p107
      $region22: #{mfrf_en_dila_forward.1} parent=11 // pred_check_branch
        %308 = sbr.rel (%p306) target = $region24
      $region23: #{mfrf_en_dila_forward.1} parent=11 // pred_region
        _
      $region24: #{mfrf_en_dila_forward.1} parent=11 // pred_fallthru
        _
      // Predicated region
      $region25: #{mfrf_en_dila_forward.1} parent=11 // pred_check
        %p309 = pneg %p128
      $region26: #{mfrf_en_dila_forward.1} parent=11 // pred_check_branch
        %311 = sbr.rel (%p309) target = $region28
      $region27: #{mfrf_en_dila_forward.1} parent=11 // pred_region
        _
      $region28: #{mfrf_en_dila_forward.1} parent=11 // pred_fallthru
        _
      // Predicated region
      $region29: #{mfrf_en_dila_forward.1} parent=11 // pred_check
        %p312 = pneg %p149
      $region30: #{mfrf_en_dila_forward.1} parent=11 // pred_check_branch
        %314 = sbr.rel (%p312) target = $region32
      $region31: #{mfrf_en_dila_forward.1} parent=11 // pred_region
        _
      $region32: #{mfrf_en_dila_forward.1} parent=11 // pred_fallthru
        _
      // Predicated region
      $region33: #{mfrf_en_dila_forward.1} parent=11 // pred_check
        %p315 = pneg %p170
      $region34: #{mfrf_en_dila_forward.1} parent=11 // pred_check_branch
        %317 = sbr.rel (%p315) target = $region36
      $region35: #{mfrf_en_dila_forward.1} parent=11 // pred_region
        _
      $region36: #{mfrf_en_dila_forward.1} parent=11 // pred_fallthru
        _
      // Predicated region
      $region37: #{mfrf_en_dila_forward.1} parent=11 // pred_check
        %p318 = pneg %p191
      $region38: #{mfrf_en_dila_forward.1} parent=11 // pred_check_branch
        %320 = sbr.rel (%p318) target = $region40
      $region39: #{mfrf_en_dila_forward.1} parent=11 // pred_region
        _
      $region40: #{mfrf_en_dila_forward.1} parent=11 // pred_fallthru
        _
      // Predicated region
      $region41: #{mfrf_en_dila_forward.1} parent=11 // pred_check
        %p321 = pneg %p212
      $region42: #{mfrf_en_dila_forward.1} parent=11 // pred_check_branch
        %323 = sbr.rel (%p321) target = $region44
      $region43: #{mfrf_en_dila_forward.1} parent=11 // pred_region
        _
      $region44: #{mfrf_en_dila_forward.1} parent=11 // pred_fallthru
        _
      // Predicated region
      $region45: #{mfrf_en_dila_forward.1} parent=11 // pred_check
        %p324 = pneg %p233
      $region46: #{mfrf_en_dila_forward.1} parent=11 // pred_check_branch
        %326 = sbr.rel (%p324) target = $region48
      $region47: #{mfrf_en_dila_forward.1} parent=11 // pred_region
        _
      $region48: #{mfrf_en_dila_forward.1} parent=11 // pred_fallthru
        _
    $region12: #{mfrf_en_dila_forward.1} parent=5 // pred_fallthru
      _
    %p327 = scmp.lt.s32.totalorder %s18, 2
    // Predicated region
    $region49: #{mfrf_en_dila_forward.1} parent=5 // pred_check
      %p328 = pneg %p327
    $region50: #{mfrf_en_dila_forward.1} parent=5 // pred_check_branch
      %330 = sbr.rel (%p328) target = $region52
    $region51: #{mfrf_en_dila_forward.1} parent=5 // pred_region
      // Predicated region
      $region53: #{mfrf_en_dila_forward.1} parent=51 // pred_check
        %p331 = pneg %p38
      $region54: #{mfrf_en_dila_forward.1} parent=51 // pred_check_branch
        %333 = sbr.rel (%p331) target = $region56
      $region55: #{mfrf_en_dila_forward.1} parent=51 // pred_region
        %p334 = scmp.lt.s32.totalorder %s18, 1
        %s335 = scalar_select %p334, %s18, 1
        %s336 = smul.addr %s335, 32
        %s337 = smul.addr %s336, 8
        %s338 = scalar_lea.vmem %s0, %s337
      $region56: #{mfrf_en_dila_forward.1} parent=51 // pred_fallthru
        _
    $region52: #{mfrf_en_dila_forward.1} parent=5 // pred_fallthru
      _
    %p339 = scmp.le.s32.totalorder 1, %s18
    %p340 = scmp.lt.s32.totalorder %s18, 3
    %p341 = pnand %p339, %p340
    %p342 = pneg %p341
    // Predicated region
    $region57: #{mfrf_en_dila_forward.1} parent=5 // pred_check
      _
    $region58: #{mfrf_en_dila_forward.1} parent=5 // pred_check_branch
      %344 = sbr.rel (%p341) target = $region60
    $region59: #{mfrf_en_dila_forward.1} parent=5 // pred_region
      %s345 = ssub.s32 %s18, 1
      %p346 = scmp.lt.s32.totalorder %s23, 1
      %s347 = scalar_select %p346, %s23, 1
      %s348 = smul.addr %s347, 32
      %s349 = smul.addr %s348, 8
      %s350 = scalar_lea.vmem %s0, %s349
      %p351 = pneg %p44
      %p352 = pneg %p41
      %p353 = pneg %p65
      %p354 = pneg %p62
      %p355 = pneg %p86
      %p356 = pneg %p83
      %p357 = pneg %p107
      %p358 = pneg %p104
      %p359 = pneg %p128
      %p360 = pneg %p125
      %p361 = pneg %p149
      %p362 = pneg %p146
      %p363 = pneg %p170
      %p364 = pneg %p167
      %p365 = pneg %p191
      %p366 = pneg %p188
      %p367 = pneg %p212
      %p368 = pneg %p209
      %p369 = pneg %p233
      %p370 = pneg %p230
      %p371 = pneg %p259
      %p372 = pneg %p256
      %p373 = scmp.lt.s32.totalorder %s23, 1
      %s374 = scalar_select %p373, %s23, 1
      %s375 = smul.addr %s374, 32
      %s376 = smul.addr %s375, 8
      %s377 = scalar_lea.vmem %s10, %s376
      %p378 = pneg %p285
      %p379 = pneg %p282
      %p380 = scmp.lt.s32.totalorder %s23, 1
      %s381 = scalar_select %p380, %s23, 1
      %s382 = smul.addr %s381, 32
      %s383 = smul.addr %s382, 8
      %s384 = scalar_lea.vmem %s11, %s383
      %p385 = scmp.lt.s32.totalorder %s23, 1
      %s386 = scalar_select %p385, %s23, 1
      %s387 = smul.addr %s386, 32
      %s388 = smul.addr %s387, 8
      %s389 = scalar_lea.vmem %s0, %s388
      %p390 = scmp.lt.s32.totalorder %s23, 1
      %s391 = scalar_select %p390, %s23, 1
      %s392 = smul.addr %s391, 32
      %s393 = smul.addr %s392, 8
      %s394 = scalar_lea.vmem %s10, %s393
      %p395 = scmp.lt.s32.totalorder %s23, 1
      %s396 = scalar_select %p395, %s23, 1
      %s397 = smul.addr %s396, 32
      %s398 = smul.addr %s397, 8
      %s399 = scalar_lea.vmem %s11, %s398
      %v400 = vld [vmem:[%s9] sm:$0xff]
      %vm401 = vcmask 31744
      %402 = vst.msk [vmem:[#allocation2] sm:$0xff] %vm401, 0.0
      %403 = vst.msk [vmem:[#allocation2 + $0x8] sm:$0xff] %vm401, 0.0
      %vm404 = vcmask 27648
      %405 = vst.msk [vmem:[#allocation2 + $0x10] sm:$0xf] %vm404, 0.0
      %406 = vst.msk [vmem:[#allocation2 + $0x18] sm:$0xff] %vm401, 0.0
      %407 = vst.msk [vmem:[#allocation2 + $0x20] sm:$0xff] %vm401, 0.0
      %408 = vst.msk [vmem:[#allocation2 + $0x28] sm:$0xf] %vm404, 0.0
      %409 = vst.msk [vmem:[#allocation2 + $0x30] sm:$0xff] %vm401, 0.0
      %410 = vst.msk [vmem:[#allocation2 + $0x38] sm:$0xff] %vm401, 0.0
      %411 = vst.msk [vmem:[#allocation2 + $0x40] sm:$0xf] %vm404, 0.0
      %412 = vst.msk [vmem:[#allocation2 + $0x48] sm:$0xff] %vm401, 0.0
      %413 = vst.msk [vmem:[#allocation2 + $0x50] sm:$0xff] %vm401, 0.0
      %414 = vst.msk [vmem:[#allocation2 + $0x58] sm:$0xf] %vm404, 0.0
      %415 = vst.msk [vmem:[#allocation2 + $0x60] sm:$0xff] %vm401, 0.0
      %416 = vst.msk [vmem:[#allocation2 + $0x68] sm:$0xff] %vm401, 0.0
      %417 = vst.msk [vmem:[#allocation2 + $0x70] sm:$0xf] %vm404, 0.0
      %418 = vst.msk [vmem:[#allocation2 + $0x78] sm:$0xff] %vm401, 0.0
      %419 = vst.msk [vmem:[#allocation2 + $0x80] sm:$0xff] %vm401, 0.0
      %420 = vst.msk [vmem:[#allocation2 + $0x88] sm:$0xf] %vm404, 0.0
      %421 = vst.msk [vmem:[#allocation2 + $0x90] sm:$0xff] %vm401, 0.0
      %422 = vst.msk [vmem:[#allocation2 + $0x98] sm:$0xff] %vm401, 0.0
      %423 = vst.msk [vmem:[#allocation2 + $0xa0] sm:$0xf] %vm404, 0.0
      %424 = vst.msk [vmem:[#allocation2 + $0xa8] sm:$0xff] %vm401, 0.0
      %425 = vst.msk [vmem:[#allocation2 + $0xb0] sm:$0xff] %vm401, 0.0
      %426 = vst.msk [vmem:[#allocation2 + $0xb8] sm:$0xf] %vm404, 0.0
      %427 = vst.msk [vmem:[#allocation2 + $0xc0] sm:$0xff] %vm401, 0.0
      %428 = vst.msk [vmem:[#allocation2 + $0xc8] sm:$0xff] %vm401, 0.0
      %429 = vst.msk [vmem:[#allocation2 + $0xd0] sm:$0xf] %vm404, 0.0
      %430 = vst.msk [vmem:[#allocation2 + $0xd8] sm:$0xff] %vm401, 0.0
      %431 = vst.msk [vmem:[#allocation2 + $0xe0] sm:$0xff] %vm401, 0.0
      %432 = vst.msk [vmem:[#allocation2 + $0xe8] sm:$0xf] %vm404, 0.0
      %433 = vst.msk [vmem:[#allocation2 + $0xf0] sm:$0xff] %vm401, 0.0
      %434 = vst.msk [vmem:[#allocation2 + $0xf8] sm:$0xff] %vm401, 0.0
      %435 = vst.msk [vmem:[#allocation2 + $0x100] sm:$0xf] %vm404, 0.0
      %436 = vst.msk [vmem:[#allocation2 + $0x108] sm:$0xff] %vm401, 0.0
      %437 = vst.msk [vmem:[#allocation2 + $0x110] sm:$0xff] %vm401, 0.0
      %438 = vst.msk [vmem:[#allocation2 + $0x118] sm:$0xf] %vm404, 0.0
      %439 = vst.msk [vmem:[#allocation2 + $0x120] sm:$0xff] %vm401, 0.0
      %440 = vst.msk [vmem:[#allocation2 + $0x128] sm:$0xff] %vm401, 0.0
      %441 = vst.msk [vmem:[#allocation2 + $0x130] sm:$0xf] %vm404, 0.0
      %442 = vst.msk [vmem:[#allocation2 + $0x138] sm:$0xff] %vm401, 0.0
      %443 = vst.msk [vmem:[#allocation2 + $0x140] sm:$0xff] %vm401, 0.0
      %444 = vst.msk [vmem:[#allocation2 + $0x148] sm:$0xf] %vm404, 0.0
      %445 = vst.msk [vmem:[#allocation2 + $0x150] sm:$0xff] %vm401, 0.0
      %446 = vst.msk [vmem:[#allocation2 + $0x158] sm:$0xff] %vm401, 0.0
      %447 = vst.msk [vmem:[#allocation2 + $0x160] sm:$0xf] %vm404, 0.0
      %448 = vst.msk [vmem:[#allocation2 + $0x168] sm:$0xff] %vm401, 0.0
      %449 = vst.msk [vmem:[#allocation2 + $0x170] sm:$0xff] %vm401, 0.0
      %450 = vst.msk [vmem:[#allocation2 + $0x178] sm:$0xf] %vm404, 0.0
      %451 = vst.msk [vmem:[#allocation2 + $0x180] sm:$0xff] %vm401, 0.0
      %452 = vst.msk [vmem:[#allocation2 + $0x188] sm:$0xff] %vm401, 0.0
      %453 = vst.msk [vmem:[#allocation2 + $0x190] sm:$0xf] %vm404, 0.0
      %454 = vst.msk [vmem:[#allocation2 + $0x198] sm:$0xff] %vm401, 0.0
      %455 = vst.msk [vmem:[#allocation2 + $0x1a0] sm:$0xff] %vm401, 0.0
      %456 = vst.msk [vmem:[#allocation2 + $0x1a8] sm:$0xf] %vm404, 0.0
      %457 = vst.msk [vmem:[#allocation2 + $0x1b0] sm:$0xff] %vm401, 0.0
      %458 = vst.msk [vmem:[#allocation2 + $0x1b8] sm:$0xff] %vm401, 0.0
      %459 = vst.msk [vmem:[#allocation2 + $0x1c0] sm:$0xf] %vm404, 0.0
      %460 = vst.msk [vmem:[#allocation2 + $0x1c8] sm:$0xff] %vm401, 0.0
      %461 = vst.msk [vmem:[#allocation2 + $0x1d0] sm:$0xff] %vm401, 0.0
      %462 = vst.msk [vmem:[#allocation2 + $0x1d8] sm:$0xf] %vm404, 0.0
      %v463 = vld [vmem:[%s389] sm:$0xff]
      %v464 = vld [vmem:[%s389 + $0x8] sm:$0xff]
      %v465 = vld [vmem:[%s389 + $0x10] sm:$0xff]
      %v466 = vld [vmem:[%s389 + $0x18] sm:$0xff]
      %v467 = vld [vmem:[%s389 + $0x20] sm:$0xff]
      %v468 = vld [vmem:[%s389 + $0x28] sm:$0xff]
      %v469 = vld [vmem:[%s389 + $0x30] sm:$0xff]
      %v470 = vld [vmem:[%s389 + $0x38] sm:$0xff]
      %v471 = vld [vmem:[%s389 + $0x40] sm:$0xff]
      %v472 = vld [vmem:[%s389 + $0x48] sm:$0xff]
      %v473 = vld [vmem:[%s389 + $0x50] sm:$0xff]
      %v474 = vld [vmem:[%s389 + $0x58] sm:$0xff]
      %v475 = vld [vmem:[%s389 + $0x60] sm:$0xff]
      %v476 = vld [vmem:[%s389 + $0x68] sm:$0xff]
      %v477 = vld [vmem:[%s389 + $0x70] sm:$0xff]
      %v478 = vld [vmem:[%s389 + $0x78] sm:$0xff]
      %v479 = vld [vmem:[%s389 + $0x80] sm:$0xff]
      %v480 = vld [vmem:[%s389 + $0x88] sm:$0xff]
      %v481 = vld [vmem:[%s389 + $0x90] sm:$0xff]
      %v482 = vld [vmem:[%s389 + $0x98] sm:$0xff]
      %v483 = vld [vmem:[%s389 + $0xa0] sm:$0xff]
      %v484 = vld [vmem:[%s389 + $0xa8] sm:$0xff]
      %v485 = vld [vmem:[%s389 + $0xb0] sm:$0xff]
      %v486 = vld [vmem:[%s389 + $0xb8] sm:$0xff]
      %v487 = vld [vmem:[%s389 + $0xc0] sm:$0xff]
      %v488 = vld [vmem:[%s389 + $0xc8] sm:$0xff]
      %v489 = vld [vmem:[%s389 + $0xd0] sm:$0xff]
      %v490 = vld [vmem:[%s389 + $0xd8] sm:$0xff]
      %v491 = vld [vmem:[%s389 + $0xe0] sm:$0xff]
      %v492 = vld [vmem:[%s389 + $0xe8] sm:$0xff]
      %v493 = vld [vmem:[%s389 + $0xf0] sm:$0xff]
      %v494 = vld [vmem:[%s389 + $0xf8] sm:$0xff]
      %s495 = scalar_lea.vmem [#allocation2], 48
      %496 = vst.msk [vmem:[%s495 + $0x2] sm:$0xff] %vm401, %v463
      %497 = vst.msk [vmem:[%s495 + $0xa] sm:$0xff] %vm401, %v464
      %498 = vst.msk [vmem:[%s495 + $0x1a] sm:$0xff] %vm401, %v465
      %499 = vst.msk [vmem:[%s495 + $0x22] sm:$0xff] %vm401, %v466
      %500 = vst.msk [vmem:[%s495 + $0x32] sm:$0xff] %vm401, %v467
      %501 = vst.msk [vmem:[%s495 + $0x3a] sm:$0xff] %vm401, %v468
      %502 = vst.msk [vmem:[%s495 + $0x4a] sm:$0xff] %vm401, %v469
      %503 = vst.msk [vmem:[%s495 + $0x52] sm:$0xff] %vm401, %v470
      %504 = vst.msk [vmem:[%s495 + $0x62] sm:$0xff] %vm401, %v471
      %505 = vst.msk [vmem:[%s495 + $0x6a] sm:$0xff] %vm401, %v472
      %506 = vst.msk [vmem:[%s495 + $0x7a] sm:$0xff] %vm401, %v473
      %507 = vst.msk [vmem:[%s495 + $0x82] sm:$0xff] %vm401, %v474
      %508 = vst.msk [vmem:[%s495 + $0x92] sm:$0xff] %vm401, %v475
      %509 = vst.msk [vmem:[%s495 + $0x9a] sm:$0xff] %vm401, %v476
      %510 = vst.msk [vmem:[%s495 + $0xaa] sm:$0xff] %vm401, %v477
      %511 = vst.msk [vmem:[%s495 + $0xb2] sm:$0xff] %vm401, %v478
      %512 = vst.msk [vmem:[%s495 + $0xc2] sm:$0xff] %vm401, %v479
      %513 = vst.msk [vmem:[%s495 + $0xca] sm:$0xff] %vm401, %v480
      %514 = vst.msk [vmem:[%s495 + $0xda] sm:$0xff] %vm401, %v481
      %515 = vst.msk [vmem:[%s495 + $0xe2] sm:$0xff] %vm401, %v482
      %516 = vst.msk [vmem:[%s495 + $0xf2] sm:$0xff] %vm401, %v483
      %517 = vst.msk [vmem:[%s495 + $0xfa] sm:$0xff] %vm401, %v484
      %518 = vst.msk [vmem:[%s495 + $0x10a] sm:$0xff] %vm401, %v485
      %519 = vst.msk [vmem:[%s495 + $0x112] sm:$0xff] %vm401, %v486
      %520 = vst.msk [vmem:[%s495 + $0x122] sm:$0xff] %vm401, %v487
      %521 = vst.msk [vmem:[%s495 + $0x12a] sm:$0xff] %vm401, %v488
      %522 = vst.msk [vmem:[%s495 + $0x13a] sm:$0xff] %vm401, %v489
      %523 = vst.msk [vmem:[%s495 + $0x142] sm:$0xff] %vm401, %v490
      %524 = vst.msk [vmem:[%s495 + $0x152] sm:$0xff] %vm401, %v491
      %525 = vst.msk [vmem:[%s495 + $0x15a] sm:$0xff] %vm401, %v492
      %526 = vst.msk [vmem:[%s495 + $0x16a] sm:$0xff] %vm401, %v493
      %527 = vst.msk [vmem:[%s495 + $0x172] sm:$0xff] %vm401, %v494
      %v528 = vld [vmem:[#allocation2] sm:$0xff]
      %v529 = vld [vmem:[#allocation2 + $0x8] sm:$0xff]
      %v530 = vld [vmem:[#allocation2 + $0x18] sm:$0xff]
      %v531 = vld [vmem:[#allocation2 + $0x20] sm:$0xff]
      %v532 = vld [vmem:[#allocation2 + $0x30] sm:$0xff]
      %v533 = vld [vmem:[#allocation2 + $0x38] sm:$0xff]
      %v534 = vld [vmem:[#allocation2 + $0x48] sm:$0xff]
      %v535 = vld [vmem:[#allocation2 + $0x50] sm:$0xff]
      %v536 = vld [vmem:[#allocation2 + $0x60] sm:$0xff]
      %v537 = vld [vmem:[#allocation2 + $0x68] sm:$0xff]
      %v538 = vld [vmem:[#allocation2 + $0x78] sm:$0xff]
      %v539 = vld [vmem:[#allocation2 + $0x80] sm:$0xff]
      %v540 = vld [vmem:[#allocation2 + $0x90] sm:$0xff]
      %v541 = vld [vmem:[#allocation2 + $0x98] sm:$0xff]
      %v542 = vld [vmem:[#allocation2 + $0xa8] sm:$0xff]
      %v543 = vld [vmem:[#allocation2 + $0xb0] sm:$0xff]
      %v544 = vld [vmem:[#allocation2 + $0xc0] sm:$0xff]
      %v545 = vld [vmem:[#allocation2 + $0xc8] sm:$0xff]
      %v546 = vld [vmem:[#allocation2 + $0xd8] sm:$0xff]
      %v547 = vld [vmem:[#allocation2 + $0xe0] sm:$0xff]
      %v548 = vld [vmem:[#allocation2 + $0xf0] sm:$0xff]
      %v549 = vld [vmem:[#allocation2 + $0xf8] sm:$0xff]
      %v550 = vld [vmem:[#allocation2 + $0x108] sm:$0xff]
      %v551 = vld [vmem:[#allocation2 + $0x110] sm:$0xff]
      %v552 = vld [vmem:[#allocation2 + $0x120] sm:$0xff]
      %v553 = vld [vmem:[#allocation2 + $0x128] sm:$0xff]
      %v554 = vld [vmem:[#allocation2 + $0x138] sm:$0xff]
      %v555 = vld [vmem:[#allocation2 + $0x140] sm:$0xff]
      %v556 = vld [vmem:[#allocation2 + $0x150] sm:$0xff]
      %v557 = vld [vmem:[#allocation2 + $0x158] sm:$0xff]
      %v558 = vld [vmem:[#allocation2 + $0x168] sm:$0xff]
      %v559 = vld [vmem:[#allocation2 + $0x170] sm:$0xff]
      %v560 = vld [vmem:[#allocation2 + $0x2] sm:$0xff]
      %v561 = vld [vmem:[#allocation2 + $0xa] sm:$0xff]
      %v562 = vld [vmem:[#allocation2 + $0x1a] sm:$0xff]
      %v563 = vld [vmem:[#allocation2 + $0x22] sm:$0xff]
      %v564 = vld [vmem:[#allocation2 + $0x32] sm:$0xff]
      %v565 = vld [vmem:[#allocation2 + $0x3a] sm:$0xff]
      %v566 = vld [vmem:[#allocation2 + $0x4a] sm:$0xff]
      %v567 = vld [vmem:[#allocation2 + $0x52] sm:$0xff]
      %v568 = vld [vmem:[#allocation2 + $0x62] sm:$0xff]
      %v569 = vld [vmem:[#allocation2 + $0x6a] sm:$0xff]
      %v570 = vld [vmem:[#allocation2 + $0x7a] sm:$0xff]
      %v571 = vld [vmem:[#allocation2 + $0x82] sm:$0xff]
      %v572 = vld [vmem:[#allocation2 + $0x92] sm:$0xff]
      %v573 = vld [vmem:[#allocation2 + $0x9a] sm:$0xff]
      %v574 = vld [vmem:[#allocation2 + $0xaa] sm:$0xff]
      %v575 = vld [vmem:[#allocation2 + $0xb2] sm:$0xff]
      %v576 = vld [vmem:[#allocation2 + $0xc2] sm:$0xff]
      %v577 = vld [vmem:[#allocation2 + $0xca] sm:$0xff]
      %v578 = vld [vmem:[#allocation2 + $0xda] sm:$0xff]
      %v579 = vld [vmem:[#allocation2 + $0xe2] sm:$0xff]
      %v580 = vld [vmem:[#allocation2 + $0xf2] sm:$0xff]
      %v581 = vld [vmem:[#allocation2 + $0xfa] sm:$0xff]
      %v582 = vld [vmem:[#allocation2 + $0x10a] sm:$0xff]
      %v583 = vld [vmem:[#allocation2 + $0x112] sm:$0xff]
      %v584 = vld [vmem:[#allocation2 + $0x122] sm:$0xff]
      %v585 = vld [vmem:[#allocation2 + $0x12a] sm:$0xff]
      %v586 = vld [vmem:[#allocation2 + $0x13a] sm:$0xff]
      %v587 = vld [vmem:[#allocation2 + $0x142] sm:$0xff]
      %v588 = vld [vmem:[#allocation2 + $0x152] sm:$0xff]
      %v589 = vld [vmem:[#allocation2 + $0x15a] sm:$0xff]
      %v590 = vld [vmem:[#allocation2 + $0x16a] sm:$0xff]
      %v591 = vld [vmem:[#allocation2 + $0x172] sm:$0xff]
      %v592 = vld [vmem:[#allocation2 + $0x4] sm:$0xff]
      %v593 = vld [vmem:[#allocation2 + $0xc] sm:$0xff]
      %v594 = vld [vmem:[#allocation2 + $0x1c] sm:$0xff]
      %v595 = vld [vmem:[#allocation2 + $0x24] sm:$0xff]
      %v596 = vld [vmem:[#allocation2 + $0x34] sm:$0xff]
      %v597 = vld [vmem:[#allocation2 + $0x3c] sm:$0xff]
      %v598 = vld [vmem:[#allocation2 + $0x4c] sm:$0xff]
      %v599 = vld [vmem:[#allocation2 + $0x54] sm:$0xff]
      %v600 = vld [vmem:[#allocation2 + $0x64] sm:$0xff]
      %v601 = vld [vmem:[#allocation2 + $0x6c] sm:$0xff]
      %v602 = vld [vmem:[#allocation2 + $0x7c] sm:$0xff]
      %v603 = vld [vmem:[#allocation2 + $0x84] sm:$0xff]
      %v604 = vld [vmem:[#allocation2 + $0x94] sm:$0xff]
      %v605 = vld [vmem:[#allocation2 + $0x9c] sm:$0xff]
      %v606 = vld [vmem:[#allocation2 + $0xac] sm:$0xff]
      %v607 = vld [vmem:[#allocation2 + $0xb4] sm:$0xff]
      %v608 = vld [vmem:[#allocation2 + $0xc4] sm:$0xff]
      %v609 = vld [vmem:[#allocation2 + $0xcc] sm:$0xff]
      %v610 = vld [vmem:[#allocation2 + $0xdc] sm:$0xff]
      %v611 = vld [vmem:[#allocation2 + $0xe4] sm:$0xff]
      %v612 = vld [vmem:[#allocation2 + $0xf4] sm:$0xff]
      %v613 = vld [vmem:[#allocation2 + $0xfc] sm:$0xff]
      %v614 = vld [vmem:[#allocation2 + $0x10c] sm:$0xff]
      %v615 = vld [vmem:[#allocation2 + $0x114] sm:$0xff]
      %v616 = vld [vmem:[#allocation2 + $0x124] sm:$0xff]
      %v617 = vld [vmem:[#allocation2 + $0x12c] sm:$0xff]
      %v618 = vld [vmem:[#allocation2 + $0x13c] sm:$0xff]
      %v619 = vld [vmem:[#allocation2 + $0x144] sm:$0xff]
      %v620 = vld [vmem:[#allocation2 + $0x154] sm:$0xff]
      %v621 = vld [vmem:[#allocation2 + $0x15c] sm:$0xff]
      %v622 = vld [vmem:[#allocation2 + $0x16c] sm:$0xff]
      %v623 = vld [vmem:[#allocation2 + $0x174] sm:$0xff]
      %v624 = vld [vmem:[%s495] sm:$0xff]
      %v625 = vld [vmem:[%s495 + $0x8] sm:$0xff]
      %v626 = vld [vmem:[%s495 + $0x18] sm:$0xff]
      %v627 = vld [vmem:[%s495 + $0x20] sm:$0xff]
      %v628 = vld [vmem:[%s495 + $0x30] sm:$0xff]
      %v629 = vld [vmem:[%s495 + $0x38] sm:$0xff]
      %v630 = vld [vmem:[%s495 + $0x48] sm:$0xff]
      %v631 = vld [vmem:[%s495 + $0x50] sm:$0xff]
      %v632 = vld [vmem:[%s495 + $0x60] sm:$0xff]
      %v633 = vld [vmem:[%s495 + $0x68] sm:$0xff]
      %v634 = vld [vmem:[%s495 + $0x78] sm:$0xff]
      %v635 = vld [vmem:[%s495 + $0x80] sm:$0xff]
      %v636 = vld [vmem:[%s495 + $0x90] sm:$0xff]
      %v637 = vld [vmem:[%s495 + $0x98] sm:$0xff]
      %v638 = vld [vmem:[%s495 + $0xa8] sm:$0xff]
      %v639 = vld [vmem:[%s495 + $0xb0] sm:$0xff]
      %v640 = vld [vmem:[%s495 + $0xc0] sm:$0xff]
      %v641 = vld [vmem:[%s495 + $0xc8] sm:$0xff]
      %v642 = vld [vmem:[%s495 + $0xd8] sm:$0xff]
      %v643 = vld [vmem:[%s495 + $0xe0] sm:$0xff]
      %v644 = vld [vmem:[%s495 + $0xf0] sm:$0xff]
      %v645 = vld [vmem:[%s495 + $0xf8] sm:$0xff]
      %v646 = vld [vmem:[%s495 + $0x108] sm:$0xff]
      %v647 = vld [vmem:[%s495 + $0x110] sm:$0xff]
      %v648 = vld [vmem:[%s495 + $0x120] sm:$0xff]
      %v649 = vld [vmem:[%s495 + $0x128] sm:$0xff]
      %v650 = vld [vmem:[%s495 + $0x138] sm:$0xff]
      %v651 = vld [vmem:[%s495 + $0x140] sm:$0xff]
      %v652 = vld [vmem:[%s495 + $0x150] sm:$0xff]
      %v653 = vld [vmem:[%s495 + $0x158] sm:$0xff]
      %v654 = vld [vmem:[%s495 + $0x168] sm:$0xff]
      %v655 = vld [vmem:[%s495 + $0x170] sm:$0xff]
      %v656 = vld [vmem:[%s495 + $0x2] sm:$0xff]
      %v657 = vld [vmem:[%s495 + $0xa] sm:$0xff]
      %v658 = vld [vmem:[%s495 + $0x1a] sm:$0xff]
      %v659 = vld [vmem:[%s495 + $0x22] sm:$0xff]
      %v660 = vld [vmem:[%s495 + $0x32] sm:$0xff]
      %v661 = vld [vmem:[%s495 + $0x3a] sm:$0xff]
      %v662 = vld [vmem:[%s495 + $0x4a] sm:$0xff]
      %v663 = vld [vmem:[%s495 + $0x52] sm:$0xff]
      %v664 = vld [vmem:[%s495 + $0x62] sm:$0xff]
      %v665 = vld [vmem:[%s495 + $0x6a] sm:$0xff]
      %v666 = vld [vmem:[%s495 + $0x7a] sm:$0xff]
      %v667 = vld [vmem:[%s495 + $0x82] sm:$0xff]
      %v668 = vld [vmem:[%s495 + $0x92] sm:$0xff]
      %v669 = vld [vmem:[%s495 + $0x9a] sm:$0xff]
      %v670 = vld [vmem:[%s495 + $0xaa] sm:$0xff]
      %v671 = vld [vmem:[%s495 + $0xb2] sm:$0xff]
      %v672 = vld [vmem:[%s495 + $0xc2] sm:$0xff]
      %v673 = vld [vmem:[%s495 + $0xca] sm:$0xff]
      %v674 = vld [vmem:[%s495 + $0xda] sm:$0xff]
      %v675 = vld [vmem:[%s495 + $0xe2] sm:$0xff]
      %v676 = vld [vmem:[%s495 + $0xf2] sm:$0xff]
      %v677 = vld [vmem:[%s495 + $0xfa] sm:$0xff]
      %v678 = vld [vmem:[%s495 + $0x10a] sm:$0xff]
      %v679 = vld [vmem:[%s495 + $0x112] sm:$0xff]
      %v680 = vld [vmem:[%s495 + $0x122] sm:$0xff]
      %v681 = vld [vmem:[%s495 + $0x12a] sm:$0xff]
      %v682 = vld [vmem:[%s495 + $0x13a] sm:$0xff]
      %v683 = vld [vmem:[%s495 + $0x142] sm:$0xff]
      %v684 = vld [vmem:[%s495 + $0x152] sm:$0xff]
      %v685 = vld [vmem:[%s495 + $0x15a] sm:$0xff]
      %v686 = vld [vmem:[%s495 + $0x16a] sm:$0xff]
      %v687 = vld [vmem:[%s495 + $0x172] sm:$0xff]
      %v688 = vld [vmem:[%s495 + $0x4] sm:$0xff]
      %v689 = vld [vmem:[%s495 + $0xc] sm:$0xff]
      %v690 = vld [vmem:[%s495 + $0x1c] sm:$0xff]
      %v691 = vld [vmem:[%s495 + $0x24] sm:$0xff]
      %v692 = vld [vmem:[%s495 + $0x34] sm:$0xff]
      %v693 = vld [vmem:[%s495 + $0x3c] sm:$0xff]
      %v694 = vld [vmem:[%s495 + $0x4c] sm:$0xff]
      %v695 = vld [vmem:[%s495 + $0x54] sm:$0xff]
      %v696 = vld [vmem:[%s495 + $0x64] sm:$0xff]
      %v697 = vld [vmem:[%s495 + $0x6c] sm:$0xff]
      %v698 = vld [vmem:[%s495 + $0x7c] sm:$0xff]
      %v699 = vld [vmem:[%s495 + $0x84] sm:$0xff]
      %v700 = vld [vmem:[%s495 + $0x94] sm:$0xff]
      %v701 = vld [vmem:[%s495 + $0x9c] sm:$0xff]
      %v702 = vld [vmem:[%s495 + $0xac] sm:$0xff]
      %v703 = vld [vmem:[%s495 + $0xb4] sm:$0xff]
      %v704 = vld [vmem:[%s495 + $0xc4] sm:$0xff]
      %v705 = vld [vmem:[%s495 + $0xcc] sm:$0xff]
      %v706 = vld [vmem:[%s495 + $0xdc] sm:$0xff]
      %v707 = vld [vmem:[%s495 + $0xe4] sm:$0xff]
      %v708 = vld [vmem:[%s495 + $0xf4] sm:$0xff]
      %v709 = vld [vmem:[%s495 + $0xfc] sm:$0xff]
      %v710 = vld [vmem:[%s495 + $0x10c] sm:$0xff]
      %v711 = vld [vmem:[%s495 + $0x114] sm:$0xff]
      %v712 = vld [vmem:[%s495 + $0x124] sm:$0xff]
      %v713 = vld [vmem:[%s495 + $0x12c] sm:$0xff]
      %v714 = vld [vmem:[%s495 + $0x13c] sm:$0xff]
      %v715 = vld [vmem:[%s495 + $0x144] sm:$0xff]
      %v716 = vld [vmem:[%s495 + $0x154] sm:$0xff]
      %v717 = vld [vmem:[%s495 + $0x15c] sm:$0xff]
      %v718 = vld [vmem:[%s495 + $0x16c] sm:$0xff]
      %v719 = vld [vmem:[%s495 + $0x174] sm:$0xff]
      %s720 = scalar_lea.vmem [#allocation2], 96
      %v721 = vld [vmem:[%s720] sm:$0xff]
      %v722 = vld [vmem:[%s720 + $0x8] sm:$0xff]
      %v723 = vld [vmem:[%s720 + $0x18] sm:$0xff]
      %v724 = vld [vmem:[%s720 + $0x20] sm:$0xff]
      %v725 = vld [vmem:[%s720 + $0x30] sm:$0xff]
      %v726 = vld [vmem:[%s720 + $0x38] sm:$0xff]
      %v727 = vld [vmem:[%s720 + $0x48] sm:$0xff]
      %v728 = vld [vmem:[%s720 + $0x50] sm:$0xff]
      %v729 = vld [vmem:[%s720 + $0x60] sm:$0xff]
      %v730 = vld [vmem:[%s720 + $0x68] sm:$0xff]
      %v731 = vld [vmem:[%s720 + $0x78] sm:$0xff]
      %v732 = vld [vmem:[%s720 + $0x80] sm:$0xff]
      %v733 = vld [vmem:[%s720 + $0x90] sm:$0xff]
      %v734 = vld [vmem:[%s720 + $0x98] sm:$0xff]
      %v735 = vld [vmem:[%s720 + $0xa8] sm:$0xff]
      %v736 = vld [vmem:[%s720 + $0xb0] sm:$0xff]
      %v737 = vld [vmem:[%s720 + $0xc0] sm:$0xff]
      %v738 = vld [vmem:[%s720 + $0xc8] sm:$0xff]
      %v739 = vld [vmem:[%s720 + $0xd8] sm:$0xff]
      %v740 = vld [vmem:[%s720 + $0xe0] sm:$0xff]
      %v741 = vld [vmem:[%s720 + $0xf0] sm:$0xff]
      %v742 = vld [vmem:[%s720 + $0xf8] sm:$0xff]
      %v743 = vld [vmem:[%s720 + $0x108] sm:$0xff]
      %v744 = vld [vmem:[%s720 + $0x110] sm:$0xff]
      %v745 = vld [vmem:[%s720 + $0x120] sm:$0xff]
      %v746 = vld [vmem:[%s720 + $0x128] sm:$0xff]
      %v747 = vld [vmem:[%s720 + $0x138] sm:$0xff]
      %v748 = vld [vmem:[%s720 + $0x140] sm:$0xff]
      %v749 = vld [vmem:[%s720 + $0x150] sm:$0xff]
      %v750 = vld [vmem:[%s720 + $0x158] sm:$0xff]
      %v751 = vld [vmem:[%s720 + $0x168] sm:$0xff]
      %v752 = vld [vmem:[%s720 + $0x170] sm:$0xff]
      %v753 = vld [vmem:[%s720 + $0x2] sm:$0xff]
      %v754 = vld [vmem:[%s720 + $0xa] sm:$0xff]
      %v755 = vld [vmem:[%s720 + $0x1a] sm:$0xff]
      %v756 = vld [vmem:[%s720 + $0x22] sm:$0xff]
      %v757 = vld [vmem:[%s720 + $0x32] sm:$0xff]
      %v758 = vld [vmem:[%s720 + $0x3a] sm:$0xff]
      %v759 = vld [vmem:[%s720 + $0x4a] sm:$0xff]
      %v760 = vld [vmem:[%s720 + $0x52] sm:$0xff]
      %v761 = vld [vmem:[%s720 + $0x62] sm:$0xff]
      %v762 = vld [vmem:[%s720 + $0x6a] sm:$0xff]
      %v763 = vld [vmem:[%s720 + $0x7a] sm:$0xff]
      %v764 = vld [vmem:[%s720 + $0x82] sm:$0xff]
      %v765 = vld [vmem:[%s720 + $0x92] sm:$0xff]
      %v766 = vld [vmem:[%s720 + $0x9a] sm:$0xff]
      %v767 = vld [vmem:[%s720 + $0xaa] sm:$0xff]
      %v768 = vld [vmem:[%s720 + $0xb2] sm:$0xff]
      %v769 = vld [vmem:[%s720 + $0xc2] sm:$0xff]
      %v770 = vld [vmem:[%s720 + $0xca] sm:$0xff]
      %v771 = vld [vmem:[%s720 + $0xda] sm:$0xff]
      %v772 = vld [vmem:[%s720 + $0xe2] sm:$0xff]
      %v773 = vld [vmem:[%s720 + $0xf2] sm:$0xff]
      %v774 = vld [vmem:[%s720 + $0xfa] sm:$0xff]
      %v775 = vld [vmem:[%s720 + $0x10a] sm:$0xff]
      %v776 = vld [vmem:[%s720 + $0x112] sm:$0xff]
      %v777 = vld [vmem:[%s720 + $0x122] sm:$0xff]
      %v778 = vld [vmem:[%s720 + $0x12a] sm:$0xff]
      %v779 = vld [vmem:[%s720 + $0x13a] sm:$0xff]
      %v780 = vld [vmem:[%s720 + $0x142] sm:$0xff]
      %v781 = vld [vmem:[%s720 + $0x152] sm:$0xff]
      %v782 = vld [vmem:[%s720 + $0x15a] sm:$0xff]
      %v783 = vld [vmem:[%s720 + $0x16a] sm:$0xff]
      %v784 = vld [vmem:[%s720 + $0x172] sm:$0xff]
      %v785 = vld [vmem:[%s720 + $0x4] sm:$0xff]
      %v786 = vld [vmem:[%s720 + $0xc] sm:$0xff]
      %v787 = vld [vmem:[%s720 + $0x1c] sm:$0xff]
      %v788 = vld [vmem:[%s720 + $0x24] sm:$0xff]
      %v789 = vld [vmem:[%s720 + $0x34] sm:$0xff]
      %v790 = vld [vmem:[%s720 + $0x3c] sm:$0xff]
      %v791 = vld [vmem:[%s720 + $0x4c] sm:$0xff]
      %v792 = vld [vmem:[%s720 + $0x54] sm:$0xff]
      %v793 = vld [vmem:[%s720 + $0x64] sm:$0xff]
      %v794 = vld [vmem:[%s720 + $0x6c] sm:$0xff]
      %v795 = vld [vmem:[%s720 + $0x7c] sm:$0xff]
      %v796 = vld [vmem:[%s720 + $0x84] sm:$0xff]
      %v797 = vld [vmem:[%s720 + $0x94] sm:$0xff]
      %v798 = vld [vmem:[%s720 + $0x9c] sm:$0xff]
      %v799 = vld [vmem:[%s720 + $0xac] sm:$0xff]
      %v800 = vld [vmem:[%s720 + $0xb4] sm:$0xff]
      %v801 = vld [vmem:[%s720 + $0xc4] sm:$0xff]
      %v802 = vld [vmem:[%s720 + $0xcc] sm:$0xff]
      %v803 = vld [vmem:[%s720 + $0xdc] sm:$0xff]
      %v804 = vld [vmem:[%s720 + $0xe4] sm:$0xff]
      %v805 = vld [vmem:[%s720 + $0xf4] sm:$0xff]
      %v806 = vld [vmem:[%s720 + $0xfc] sm:$0xff]
      %v807 = vld [vmem:[%s720 + $0x10c] sm:$0xff]
      %v808 = vld [vmem:[%s720 + $0x114] sm:$0xff]
      %v809 = vld [vmem:[%s720 + $0x124] sm:$0xff]
      %v810 = vld [vmem:[%s720 + $0x12c] sm:$0xff]
      %v811 = vld [vmem:[%s720 + $0x13c] sm:$0xff]
      %v812 = vld [vmem:[%s720 + $0x144] sm:$0xff]
      %v813 = vld [vmem:[%s720 + $0x154] sm:$0xff]
      %v814 = vld [vmem:[%s720 + $0x15c] sm:$0xff]
      %v815 = vld [vmem:[%s720 + $0x16c] sm:$0xff]
      %v816 = vld [vmem:[%s720 + $0x174] sm:$0xff]
      %849 = vrot.lane.b32.xlu0 %v560, 4
      %v850 = vpop.permute.xlu0 %849
      %851 = vrot.lane.b32.xlu0 %v561, 4
      %v852 = vpop.permute.xlu0 %851
      %853 = vrot.lane.b32.xlu0 %v562, 4
      %v854 = vpop.permute.xlu0 %853
      %855 = vrot.lane.b32.xlu0 %v563, 4
      %v856 = vpop.permute.xlu0 %855
      %857 = vrot.lane.b32.xlu0 %v564, 4
      %v858 = vpop.permute.xlu0 %857
      %859 = vrot.lane.b32.xlu0 %v565, 4
      %v860 = vpop.permute.xlu0 %859
      %861 = vrot.lane.b32.xlu0 %v566, 4
      %v862 = vpop.permute.xlu0 %861
      %863 = vrot.lane.b32.xlu0 %v567, 4
      %v864 = vpop.permute.xlu0 %863
      %865 = vrot.lane.b32.xlu0 %v568, 4
      %v866 = vpop.permute.xlu0 %865
      %867 = vrot.lane.b32.xlu0 %v569, 4
      %v868 = vpop.permute.xlu0 %867
      %869 = vrot.lane.b32.xlu0 %v570, 4
      %v870 = vpop.permute.xlu0 %869
      %871 = vrot.lane.b32.xlu0 %v571, 4
      %v872 = vpop.permute.xlu0 %871
      %873 = vrot.lane.b32.xlu0 %v572, 4
      %v874 = vpop.permute.xlu0 %873
      %875 = vrot.lane.b32.xlu0 %v573, 4
      %v876 = vpop.permute.xlu0 %875
      %877 = vrot.lane.b32.xlu0 %v574, 4
      %v878 = vpop.permute.xlu0 %877
      %879 = vrot.lane.b32.xlu0 %v575, 4
      %v880 = vpop.permute.xlu0 %879
      %881 = vrot.lane.b32.xlu0 %v576, 4
      %v882 = vpop.permute.xlu0 %881
      %883 = vrot.lane.b32.xlu0 %v577, 4
      %v884 = vpop.permute.xlu0 %883
      %885 = vrot.lane.b32.xlu0 %v578, 4
      %v886 = vpop.permute.xlu0 %885
      %887 = vrot.lane.b32.xlu0 %v579, 4
      %v888 = vpop.permute.xlu0 %887
      %889 = vrot.lane.b32.xlu0 %v580, 4
      %v890 = vpop.permute.xlu0 %889
      %891 = vrot.lane.b32.xlu0 %v581, 4
      %v892 = vpop.permute.xlu0 %891
      %893 = vrot.lane.b32.xlu0 %v582, 4
      %v894 = vpop.permute.xlu0 %893
      %895 = vrot.lane.b32.xlu0 %v583, 4
      %v896 = vpop.permute.xlu0 %895
      %897 = vrot.lane.b32.xlu0 %v584, 4
      %v898 = vpop.permute.xlu0 %897
      %899 = vrot.lane.b32.xlu0 %v585, 4
      %v900 = vpop.permute.xlu0 %899
      %901 = vrot.lane.b32.xlu0 %v586, 4
      %v902 = vpop.permute.xlu0 %901
      %903 = vrot.lane.b32.xlu0 %v587, 4
      %v904 = vpop.permute.xlu0 %903
      %905 = vrot.lane.b32.xlu0 %v588, 4
      %v906 = vpop.permute.xlu0 %905
      %907 = vrot.lane.b32.xlu0 %v589, 4
      %v908 = vpop.permute.xlu0 %907
      %909 = vrot.lane.b32.xlu0 %v590, 4
      %v910 = vpop.permute.xlu0 %909
      %911 = vrot.lane.b32.xlu0 %v591, 4
      %v912 = vpop.permute.xlu0 %911
      %977 = vrot.lane.b32.xlu0 %v592, 8
      %v978 = vpop.permute.xlu0 %977
      %979 = vrot.lane.b32.xlu0 %v593, 8
      %v980 = vpop.permute.xlu0 %979
      %981 = vrot.lane.b32.xlu0 %v594, 8
      %v982 = vpop.permute.xlu0 %981
      %983 = vrot.lane.b32.xlu0 %v595, 8
      %v984 = vpop.permute.xlu0 %983
      %985 = vrot.lane.b32.xlu0 %v596, 8
      %v986 = vpop.permute.xlu0 %985
      %987 = vrot.lane.b32.xlu0 %v597, 8
      %v988 = vpop.permute.xlu0 %987
      %989 = vrot.lane.b32.xlu0 %v598, 8
      %v990 = vpop.permute.xlu0 %989
      %991 = vrot.lane.b32.xlu0 %v599, 8
      %v992 = vpop.permute.xlu0 %991
      %993 = vrot.lane.b32.xlu0 %v600, 8
      %v994 = vpop.permute.xlu0 %993
      %995 = vrot.lane.b32.xlu0 %v601, 8
      %v996 = vpop.permute.xlu0 %995
      %997 = vrot.lane.b32.xlu0 %v602, 8
      %v998 = vpop.permute.xlu0 %997
      %999 = vrot.lane.b32.xlu0 %v603, 8
      %v1000 = vpop.permute.xlu0 %999
      %1001 = vrot.lane.b32.xlu0 %v604, 8
      %v1002 = vpop.permute.xlu0 %1001
      %1003 = vrot.lane.b32.xlu0 %v605, 8
      %v1004 = vpop.permute.xlu0 %1003
      %1005 = vrot.lane.b32.xlu0 %v606, 8
      %v1006 = vpop.permute.xlu0 %1005
      %1007 = vrot.lane.b32.xlu0 %v607, 8
      %v1008 = vpop.permute.xlu0 %1007
      %1009 = vrot.lane.b32.xlu0 %v608, 8
      %v1010 = vpop.permute.xlu0 %1009
      %1011 = vrot.lane.b32.xlu0 %v609, 8
      %v1012 = vpop.permute.xlu0 %1011
      %1013 = vrot.lane.b32.xlu0 %v610, 8
      %v1014 = vpop.permute.xlu0 %1013
      %1015 = vrot.lane.b32.xlu0 %v611, 8
      %v1016 = vpop.permute.xlu0 %1015
      %1017 = vrot.lane.b32.xlu0 %v612, 8
      %v1018 = vpop.permute.xlu0 %1017
      %1019 = vrot.lane.b32.xlu0 %v613, 8
      %v1020 = vpop.permute.xlu0 %1019
      %1021 = vrot.lane.b32.xlu0 %v614, 8
      %v1022 = vpop.permute.xlu0 %1021
      %1023 = vrot.lane.b32.xlu0 %v615, 8
      %v1024 = vpop.permute.xlu0 %1023
      %1025 = vrot.lane.b32.xlu0 %v616, 8
      %v1026 = vpop.permute.xlu0 %1025
      %1027 = vrot.lane.b32.xlu0 %v617, 8
      %v1028 = vpop.permute.xlu0 %1027
      %1029 = vrot.lane.b32.xlu0 %v618, 8
      %v1030 = vpop.permute.xlu0 %1029
      %1031 = vrot.lane.b32.xlu0 %v619, 8
      %v1032 = vpop.permute.xlu0 %1031
      %1033 = vrot.lane.b32.xlu0 %v620, 8
      %v1034 = vpop.permute.xlu0 %1033
      %1035 = vrot.lane.b32.xlu0 %v621, 8
      %v1036 = vpop.permute.xlu0 %1035
      %1037 = vrot.lane.b32.xlu0 %v622, 8
      %v1038 = vpop.permute.xlu0 %1037
      %1039 = vrot.lane.b32.xlu0 %v623, 8
      %v1040 = vpop.permute.xlu0 %1039
      %1105 = vrot.lane.b32.xlu0 %v624, 12
      %v1106 = vpop.permute.xlu0 %1105
      %1107 = vrot.lane.b32.xlu0 %v625, 12
      %v1108 = vpop.permute.xlu0 %1107
      %1109 = vrot.lane.b32.xlu0 %v626, 12
      %v1110 = vpop.permute.xlu0 %1109
      %1111 = vrot.lane.b32.xlu0 %v627, 12
      %v1112 = vpop.permute.xlu0 %1111
      %1113 = vrot.lane.b32.xlu0 %v628, 12
      %v1114 = vpop.permute.xlu0 %1113
      %1115 = vrot.lane.b32.xlu0 %v629, 12
      %v1116 = vpop.permute.xlu0 %1115
      %1117 = vrot.lane.b32.xlu0 %v630, 12
      %v1118 = vpop.permute.xlu0 %1117
      %1119 = vrot.lane.b32.xlu0 %v631, 12
      %v1120 = vpop.permute.xlu0 %1119
      %1121 = vrot.lane.b32.xlu0 %v632, 12
      %v1122 = vpop.permute.xlu0 %1121
      %1123 = vrot.lane.b32.xlu0 %v633, 12
      %v1124 = vpop.permute.xlu0 %1123
      %1125 = vrot.lane.b32.xlu0 %v634, 12
      %v1126 = vpop.permute.xlu0 %1125
      %1127 = vrot.lane.b32.xlu0 %v635, 12
      %v1128 = vpop.permute.xlu0 %1127
      %1129 = vrot.lane.b32.xlu0 %v636, 12
      %v1130 = vpop.permute.xlu0 %1129
      %1131 = vrot.lane.b32.xlu0 %v637, 12
      %v1132 = vpop.permute.xlu0 %1131
      %1133 = vrot.lane.b32.xlu0 %v638, 12
      %v1134 = vpop.permute.xlu0 %1133
      %1135 = vrot.lane.b32.xlu0 %v639, 12
      %v1136 = vpop.permute.xlu0 %1135
      %1137 = vrot.lane.b32.xlu0 %v640, 12
      %v1138 = vpop.permute.xlu0 %1137
      %1139 = vrot.lane.b32.xlu0 %v641, 12
      %v1140 = vpop.permute.xlu0 %1139
      %1141 = vrot.lane.b32.xlu0 %v642, 12
      %v1142 = vpop.permute.xlu0 %1141
      %1143 = vrot.lane.b32.xlu0 %v643, 12
      %v1144 = vpop.permute.xlu0 %1143
      %1145 = vrot.lane.b32.xlu0 %v644, 12
      %v1146 = vpop.permute.xlu0 %1145
      %1147 = vrot.lane.b32.xlu0 %v645, 12
      %v1148 = vpop.permute.xlu0 %1147
      %1149 = vrot.lane.b32.xlu0 %v646, 12
      %v1150 = vpop.permute.xlu0 %1149
      %1151 = vrot.lane.b32.xlu0 %v647, 12
      %v1152 = vpop.permute.xlu0 %1151
      %1153 = vrot.lane.b32.xlu0 %v648, 12
      %v1154 = vpop.permute.xlu0 %1153
      %1155 = vrot.lane.b32.xlu0 %v649, 12
      %v1156 = vpop.permute.xlu0 %1155
      %1157 = vrot.lane.b32.xlu0 %v650, 12
      %v1158 = vpop.permute.xlu0 %1157
      %1159 = vrot.lane.b32.xlu0 %v651, 12
      %v1160 = vpop.permute.xlu0 %1159
      %1161 = vrot.lane.b32.xlu0 %v652, 12
      %v1162 = vpop.permute.xlu0 %1161
      %1163 = vrot.lane.b32.xlu0 %v653, 12
      %v1164 = vpop.permute.xlu0 %1163
      %1165 = vrot.lane.b32.xlu0 %v654, 12
      %v1166 = vpop.permute.xlu0 %1165
      %1167 = vrot.lane.b32.xlu0 %v655, 12
      %v1168 = vpop.permute.xlu0 %1167
      %1233 = vrot.lane.b32.xlu0 %v656, 16
      %v1234 = vpop.permute.xlu0 %1233
      %1235 = vrot.lane.b32.xlu0 %v657, 16
      %v1236 = vpop.permute.xlu0 %1235
      %1237 = vrot.lane.b32.xlu0 %v658, 16
      %v1238 = vpop.permute.xlu0 %1237
      %1239 = vrot.lane.b32.xlu0 %v659, 16
      %v1240 = vpop.permute.xlu0 %1239
      %1241 = vrot.lane.b32.xlu0 %v660, 16
      %v1242 = vpop.permute.xlu0 %1241
      %1243 = vrot.lane.b32.xlu0 %v661, 16
      %v1244 = vpop.permute.xlu0 %1243
      %1245 = vrot.lane.b32.xlu0 %v662, 16
      %v1246 = vpop.permute.xlu0 %1245
      %1247 = vrot.lane.b32.xlu0 %v663, 16
      %v1248 = vpop.permute.xlu0 %1247
      %1249 = vrot.lane.b32.xlu0 %v664, 16
      %v1250 = vpop.permute.xlu0 %1249
      %1251 = vrot.lane.b32.xlu0 %v665, 16
      %v1252 = vpop.permute.xlu0 %1251
      %1253 = vrot.lane.b32.xlu0 %v666, 16
      %v1254 = vpop.permute.xlu0 %1253
      %1255 = vrot.lane.b32.xlu0 %v667, 16
      %v1256 = vpop.permute.xlu0 %1255
      %1257 = vrot.lane.b32.xlu0 %v668, 16
      %v1258 = vpop.permute.xlu0 %1257
      %1259 = vrot.lane.b32.xlu0 %v669, 16
      %v1260 = vpop.permute.xlu0 %1259
      %1261 = vrot.lane.b32.xlu0 %v670, 16
      %v1262 = vpop.permute.xlu0 %1261
      %1263 = vrot.lane.b32.xlu0 %v671, 16
      %v1264 = vpop.permute.xlu0 %1263
      %1265 = vrot.lane.b32.xlu0 %v672, 16
      %v1266 = vpop.permute.xlu0 %1265
      %1267 = vrot.lane.b32.xlu0 %v673, 16
      %v1268 = vpop.permute.xlu0 %1267
      %1269 = vrot.lane.b32.xlu0 %v674, 16
      %v1270 = vpop.permute.xlu0 %1269
      %1271 = vrot.lane.b32.xlu0 %v675, 16
      %v1272 = vpop.permute.xlu0 %1271
      %1273 = vrot.lane.b32.xlu0 %v676, 16
      %v1274 = vpop.permute.xlu0 %1273
      %1275 = vrot.lane.b32.xlu0 %v677, 16
      %v1276 = vpop.permute.xlu0 %1275
      %1277 = vrot.lane.b32.xlu0 %v678, 16
      %v1278 = vpop.permute.xlu0 %1277
      %1279 = vrot.lane.b32.xlu0 %v679, 16
      %v1280 = vpop.permute.xlu0 %1279
      %1281 = vrot.lane.b32.xlu0 %v680, 16
      %v1282 = vpop.permute.xlu0 %1281
      %1283 = vrot.lane.b32.xlu0 %v681, 16
      %v1284 = vpop.permute.xlu0 %1283
      %1285 = vrot.lane.b32.xlu0 %v682, 16
      %v1286 = vpop.permute.xlu0 %1285
      %1287 = vrot.lane.b32.xlu0 %v683, 16
      %v1288 = vpop.permute.xlu0 %1287
      %1289 = vrot.lane.b32.xlu0 %v684, 16
      %v1290 = vpop.permute.xlu0 %1289
      %1291 = vrot.lane.b32.xlu0 %v685, 16
      %v1292 = vpop.permute.xlu0 %1291
      %1293 = vrot.lane.b32.xlu0 %v686, 16
      %v1294 = vpop.permute.xlu0 %1293
      %1295 = vrot.lane.b32.xlu0 %v687, 16
      %v1296 = vpop.permute.xlu0 %1295
      %1361 = vrot.lane.b32.xlu0 %v688, 20
      %v1362 = vpop.permute.xlu0 %1361
      %1363 = vrot.lane.b32.xlu0 %v689, 20
      %v1364 = vpop.permute.xlu0 %1363
      %1365 = vrot.lane.b32.xlu0 %v690, 20
      %v1366 = vpop.permute.xlu0 %1365
      %1367 = vrot.lane.b32.xlu0 %v691, 20
      %v1368 = vpop.permute.xlu0 %1367
      %1369 = vrot.lane.b32.xlu0 %v692, 20
      %v1370 = vpop.permute.xlu0 %1369
      %1371 = vrot.lane.b32.xlu0 %v693, 20
      %v1372 = vpop.permute.xlu0 %1371
      %1373 = vrot.lane.b32.xlu0 %v694, 20
      %v1374 = vpop.permute.xlu0 %1373
      %1375 = vrot.lane.b32.xlu0 %v695, 20
      %v1376 = vpop.permute.xlu0 %1375
      %1377 = vrot.lane.b32.xlu0 %v696, 20
      %v1378 = vpop.permute.xlu0 %1377
      %1379 = vrot.lane.b32.xlu0 %v697, 20
      %v1380 = vpop.permute.xlu0 %1379
      %1381 = vrot.lane.b32.xlu0 %v698, 20
      %v1382 = vpop.permute.xlu0 %1381
      %1383 = vrot.lane.b32.xlu0 %v699, 20
      %v1384 = vpop.permute.xlu0 %1383
      %1385 = vrot.lane.b32.xlu0 %v700, 20
      %v1386 = vpop.permute.xlu0 %1385
      %1387 = vrot.lane.b32.xlu0 %v701, 20
      %v1388 = vpop.permute.xlu0 %1387
      %1389 = vrot.lane.b32.xlu0 %v702, 20
      %v1390 = vpop.permute.xlu0 %1389
      %1391 = vrot.lane.b32.xlu0 %v703, 20
      %v1392 = vpop.permute.xlu0 %1391
      %1393 = vrot.lane.b32.xlu0 %v704, 20
      %v1394 = vpop.permute.xlu0 %1393
      %1395 = vrot.lane.b32.xlu0 %v705, 20
      %v1396 = vpop.permute.xlu0 %1395
      %1397 = vrot.lane.b32.xlu0 %v706, 20
      %v1398 = vpop.permute.xlu0 %1397
      %1399 = vrot.lane.b32.xlu0 %v707, 20
      %v1400 = vpop.permute.xlu0 %1399
      %1401 = vrot.lane.b32.xlu0 %v708, 20
      %v1402 = vpop.permute.xlu0 %1401
      %1403 = vrot.lane.b32.xlu0 %v709, 20
      %v1404 = vpop.permute.xlu0 %1403
      %1405 = vrot.lane.b32.xlu0 %v710, 20
      %v1406 = vpop.permute.xlu0 %1405
      %1407 = vrot.lane.b32.xlu0 %v711, 20
      %v1408 = vpop.permute.xlu0 %1407
      %1409 = vrot.lane.b32.xlu0 %v712, 20
      %v1410 = vpop.permute.xlu0 %1409
      %1411 = vrot.lane.b32.xlu0 %v713, 20
      %v1412 = vpop.permute.xlu0 %1411
      %1413 = vrot.lane.b32.xlu0 %v714, 20
      %v1414 = vpop.permute.xlu0 %1413
      %1415 = vrot.lane.b32.xlu0 %v715, 20
      %v1416 = vpop.permute.xlu0 %1415
      %1417 = vrot.lane.b32.xlu0 %v716, 20
      %v1418 = vpop.permute.xlu0 %1417
      %1419 = vrot.lane.b32.xlu0 %v717, 20
      %v1420 = vpop.permute.xlu0 %1419
      %1421 = vrot.lane.b32.xlu0 %v718, 20
      %v1422 = vpop.permute.xlu0 %1421
      %1423 = vrot.lane.b32.xlu0 %v719, 20
      %v1424 = vpop.permute.xlu0 %1423
      %1489 = vrot.lane.b32.xlu0 %v721, 24
      %v1490 = vpop.permute.xlu0 %1489
      %1491 = vrot.lane.b32.xlu0 %v722, 24
      %v1492 = vpop.permute.xlu0 %1491
      %1493 = vrot.lane.b32.xlu0 %v723, 24
      %v1494 = vpop.permute.xlu0 %1493
      %1495 = vrot.lane.b32.xlu0 %v724, 24
      %v1496 = vpop.permute.xlu0 %1495
      %1497 = vrot.lane.b32.xlu0 %v725, 24
      %v1498 = vpop.permute.xlu0 %1497
      %1499 = vrot.lane.b32.xlu0 %v726, 24
      %v1500 = vpop.permute.xlu0 %1499
      %1501 = vrot.lane.b32.xlu0 %v727, 24
      %v1502 = vpop.permute.xlu0 %1501
      %1503 = vrot.lane.b32.xlu0 %v728, 24
      %v1504 = vpop.permute.xlu0 %1503
      %1505 = vrot.lane.b32.xlu0 %v729, 24
      %v1506 = vpop.permute.xlu0 %1505
      %1507 = vrot.lane.b32.xlu0 %v730, 24
      %v1508 = vpop.permute.xlu0 %1507
      %1509 = vrot.lane.b32.xlu0 %v731, 24
      %v1510 = vpop.permute.xlu0 %1509
      %1511 = vrot.lane.b32.xlu0 %v732, 24
      %v1512 = vpop.permute.xlu0 %1511
      %1513 = vrot.lane.b32.xlu0 %v733, 24
      %v1514 = vpop.permute.xlu0 %1513
      %1515 = vrot.lane.b32.xlu0 %v734, 24
      %v1516 = vpop.permute.xlu0 %1515
      %1517 = vrot.lane.b32.xlu0 %v735, 24
      %v1518 = vpop.permute.xlu0 %1517
      %1519 = vrot.lane.b32.xlu0 %v736, 24
      %v1520 = vpop.permute.xlu0 %1519
      %1521 = vrot.lane.b32.xlu0 %v737, 24
      %v1522 = vpop.permute.xlu0 %1521
      %1523 = vrot.lane.b32.xlu0 %v738, 24
      %v1524 = vpop.permute.xlu0 %1523
      %1525 = vrot.lane.b32.xlu0 %v739, 24
      %v1526 = vpop.permute.xlu0 %1525
      %1527 = vrot.lane.b32.xlu0 %v740, 24
      %v1528 = vpop.permute.xlu0 %1527
      %1529 = vrot.lane.b32.xlu0 %v741, 24
      %v1530 = vpop.permute.xlu0 %1529
      %1531 = vrot.lane.b32.xlu0 %v742, 24
      %v1532 = vpop.permute.xlu0 %1531
      %1533 = vrot.lane.b32.xlu0 %v743, 24
      %v1534 = vpop.permute.xlu0 %1533
      %1535 = vrot.lane.b32.xlu0 %v744, 24
      %v1536 = vpop.permute.xlu0 %1535
      %1537 = vrot.lane.b32.xlu0 %v745, 24
      %v1538 = vpop.permute.xlu0 %1537
      %1539 = vrot.lane.b32.xlu0 %v746, 24
      %v1540 = vpop.permute.xlu0 %1539
      %1541 = vrot.lane.b32.xlu0 %v747, 24
      %v1542 = vpop.permute.xlu0 %1541
      %1543 = vrot.lane.b32.xlu0 %v748, 24
      %v1544 = vpop.permute.xlu0 %1543
      %1545 = vrot.lane.b32.xlu0 %v749, 24
      %v1546 = vpop.permute.xlu0 %1545
      %1547 = vrot.lane.b32.xlu0 %v750, 24
      %v1548 = vpop.permute.xlu0 %1547
      %1549 = vrot.lane.b32.xlu0 %v751, 24
      %v1550 = vpop.permute.xlu0 %1549
      %1551 = vrot.lane.b32.xlu0 %v752, 24
      %v1552 = vpop.permute.xlu0 %1551
      %1617 = vrot.lane.b32.xlu0 %v753, 28
      %v1618 = vpop.permute.xlu0 %1617
      %1619 = vrot.lane.b32.xlu0 %v754, 28
      %v1620 = vpop.permute.xlu0 %1619
      %1621 = vrot.lane.b32.xlu0 %v755, 28
      %v1622 = vpop.permute.xlu0 %1621
      %1623 = vrot.lane.b32.xlu0 %v756, 28
      %v1624 = vpop.permute.xlu0 %1623
      %1625 = vrot.lane.b32.xlu0 %v757, 28
      %v1626 = vpop.permute.xlu0 %1625
      %1627 = vrot.lane.b32.xlu0 %v758, 28
      %v1628 = vpop.permute.xlu0 %1627
      %1629 = vrot.lane.b32.xlu0 %v759, 28
      %v1630 = vpop.permute.xlu0 %1629
      %1631 = vrot.lane.b32.xlu0 %v760, 28
      %v1632 = vpop.permute.xlu0 %1631
      %1633 = vrot.lane.b32.xlu0 %v761, 28
      %v1634 = vpop.permute.xlu0 %1633
      %1635 = vrot.lane.b32.xlu0 %v762, 28
      %v1636 = vpop.permute.xlu0 %1635
      %1637 = vrot.lane.b32.xlu0 %v763, 28
      %v1638 = vpop.permute.xlu0 %1637
      %1639 = vrot.lane.b32.xlu0 %v764, 28
      %v1640 = vpop.permute.xlu0 %1639
      %1641 = vrot.lane.b32.xlu0 %v765, 28
      %v1642 = vpop.permute.xlu0 %1641
      %1643 = vrot.lane.b32.xlu0 %v766, 28
      %v1644 = vpop.permute.xlu0 %1643
      %1645 = vrot.lane.b32.xlu0 %v767, 28
      %v1646 = vpop.permute.xlu0 %1645
      %1647 = vrot.lane.b32.xlu0 %v768, 28
      %v1648 = vpop.permute.xlu0 %1647
      %1649 = vrot.lane.b32.xlu0 %v769, 28
      %v1650 = vpop.permute.xlu0 %1649
      %1651 = vrot.lane.b32.xlu0 %v770, 28
      %v1652 = vpop.permute.xlu0 %1651
      %1653 = vrot.lane.b32.xlu0 %v771, 28
      %v1654 = vpop.permute.xlu0 %1653
      %1655 = vrot.lane.b32.xlu0 %v772, 28
      %v1656 = vpop.permute.xlu0 %1655
      %1657 = vrot.lane.b32.xlu0 %v773, 28
      %v1658 = vpop.permute.xlu0 %1657
      %1659 = vrot.lane.b32.xlu0 %v774, 28
      %v1660 = vpop.permute.xlu0 %1659
      %1661 = vrot.lane.b32.xlu0 %v775, 28
      %v1662 = vpop.permute.xlu0 %1661
      %1663 = vrot.lane.b32.xlu0 %v776, 28
      %v1664 = vpop.permute.xlu0 %1663
      %1665 = vrot.lane.b32.xlu0 %v777, 28
      %v1666 = vpop.permute.xlu0 %1665
      %1667 = vrot.lane.b32.xlu0 %v778, 28
      %v1668 = vpop.permute.xlu0 %1667
      %1669 = vrot.lane.b32.xlu0 %v779, 28
      %v1670 = vpop.permute.xlu0 %1669
      %1671 = vrot.lane.b32.xlu0 %v780, 28
      %v1672 = vpop.permute.xlu0 %1671
      %1673 = vrot.lane.b32.xlu0 %v781, 28
      %v1674 = vpop.permute.xlu0 %1673
      %1675 = vrot.lane.b32.xlu0 %v782, 28
      %v1676 = vpop.permute.xlu0 %1675
      %1677 = vrot.lane.b32.xlu0 %v783, 28
      %v1678 = vpop.permute.xlu0 %1677
      %1679 = vrot.lane.b32.xlu0 %v784, 28
      %v1680 = vpop.permute.xlu0 %1679
      %1745 = vrot.lane.b32.xlu0 %v785, 32
      %v1746 = vpop.permute.xlu0 %1745
      %1747 = vrot.lane.b32.xlu0 %v786, 32
      %v1748 = vpop.permute.xlu0 %1747
      %1749 = vrot.lane.b32.xlu0 %v787, 32
      %v1750 = vpop.permute.xlu0 %1749
      %1751 = vrot.lane.b32.xlu0 %v788, 32
      %v1752 = vpop.permute.xlu0 %1751
      %1753 = vrot.lane.b32.xlu0 %v789, 32
      %v1754 = vpop.permute.xlu0 %1753
      %1755 = vrot.lane.b32.xlu0 %v790, 32
      %v1756 = vpop.permute.xlu0 %1755
      %1757 = vrot.lane.b32.xlu0 %v791, 32
      %v1758 = vpop.permute.xlu0 %1757
      %1759 = vrot.lane.b32.xlu0 %v792, 32
      %v1760 = vpop.permute.xlu0 %1759
      %1761 = vrot.lane.b32.xlu0 %v793, 32
      %v1762 = vpop.permute.xlu0 %1761
      %1763 = vrot.lane.b32.xlu0 %v794, 32
      %v1764 = vpop.permute.xlu0 %1763
      %1765 = vrot.lane.b32.xlu0 %v795, 32
      %v1766 = vpop.permute.xlu0 %1765
      %1767 = vrot.lane.b32.xlu0 %v796, 32
      %v1768 = vpop.permute.xlu0 %1767
      %1769 = vrot.lane.b32.xlu0 %v797, 32
      %v1770 = vpop.permute.xlu0 %1769
      %1771 = vrot.lane.b32.xlu0 %v798, 32
      %v1772 = vpop.permute.xlu0 %1771
      %1773 = vrot.lane.b32.xlu0 %v799, 32
      %v1774 = vpop.permute.xlu0 %1773
      %1775 = vrot.lane.b32.xlu0 %v800, 32
      %v1776 = vpop.permute.xlu0 %1775
      %1777 = vrot.lane.b32.xlu0 %v801, 32
      %v1778 = vpop.permute.xlu0 %1777
      %1779 = vrot.lane.b32.xlu0 %v802, 32
      %v1780 = vpop.permute.xlu0 %1779
      %1781 = vrot.lane.b32.xlu0 %v803, 32
      %v1782 = vpop.permute.xlu0 %1781
      %1783 = vrot.lane.b32.xlu0 %v804, 32
      %v1784 = vpop.permute.xlu0 %1783
      %1785 = vrot.lane.b32.xlu0 %v805, 32
      %v1786 = vpop.permute.xlu0 %1785
      %1787 = vrot.lane.b32.xlu0 %v806, 32
      %v1788 = vpop.permute.xlu0 %1787
      %1789 = vrot.lane.b32.xlu0 %v807, 32
      %v1790 = vpop.permute.xlu0 %1789
      %1791 = vrot.lane.b32.xlu0 %v808, 32
      %v1792 = vpop.permute.xlu0 %1791
      %1793 = vrot.lane.b32.xlu0 %v809, 32
      %v1794 = vpop.permute.xlu0 %1793
      %1795 = vrot.lane.b32.xlu0 %v810, 32
      %v1796 = vpop.permute.xlu0 %1795
      %1797 = vrot.lane.b32.xlu0 %v811, 32
      %v1798 = vpop.permute.xlu0 %1797
      %1799 = vrot.lane.b32.xlu0 %v812, 32
      %v1800 = vpop.permute.xlu0 %1799
      %1801 = vrot.lane.b32.xlu0 %v813, 32
      %v1802 = vpop.permute.xlu0 %1801
      %1803 = vrot.lane.b32.xlu0 %v814, 32
      %v1804 = vpop.permute.xlu0 %1803
      %1805 = vrot.lane.b32.xlu0 %v815, 32
      %v1806 = vpop.permute.xlu0 %1805
      %1807 = vrot.lane.b32.xlu0 %v816, 32
      %v1808 = vpop.permute.xlu0 %1807
      %v1841 = vsel %vm401, %v528, %v850
      %v1842 = vsel %vm401, %v529, %v852
      %v1843 = vsel %vm401, %v530, %v854
      %v1844 = vsel %vm401, %v531, %v856
      %v1845 = vsel %vm401, %v532, %v858
      %v1846 = vsel %vm401, %v533, %v860
      %v1847 = vsel %vm401, %v534, %v862
      %v1848 = vsel %vm401, %v535, %v864
      %v1849 = vsel %vm401, %v536, %v866
      %v1850 = vsel %vm401, %v537, %v868
      %v1851 = vsel %vm401, %v538, %v870
      %v1852 = vsel %vm401, %v539, %v872
      %v1853 = vsel %vm401, %v540, %v874
      %v1854 = vsel %vm401, %v541, %v876
      %v1855 = vsel %vm401, %v542, %v878
      %v1856 = vsel %vm401, %v543, %v880
      %v1857 = vsel %vm401, %v544, %v882
      %v1858 = vsel %vm401, %v545, %v884
      %v1859 = vsel %vm401, %v546, %v886
      %v1860 = vsel %vm401, %v547, %v888
      %v1861 = vsel %vm401, %v548, %v890
      %v1862 = vsel %vm401, %v549, %v892
      %v1863 = vsel %vm401, %v550, %v894
      %v1864 = vsel %vm401, %v551, %v896
      %v1865 = vsel %vm401, %v552, %v898
      %v1866 = vsel %vm401, %v553, %v900
      %v1867 = vsel %vm401, %v554, %v902
      %v1868 = vsel %vm401, %v555, %v904
      %v1869 = vsel %vm401, %v556, %v906
      %v1870 = vsel %vm401, %v557, %v908
      %v1871 = vsel %vm401, %v558, %v910
      %v1872 = vsel %vm401, %v559, %v912
      %vm1873 = vcmask 64512
      %v1874 = vsel %vm1873, %v1841, %v978
      %v1875 = vsel %vm1873, %v1842, %v980
      %v1876 = vsel %vm1873, %v1843, %v982
      %v1877 = vsel %vm1873, %v1844, %v984
      %v1878 = vsel %vm1873, %v1845, %v986
      %v1879 = vsel %vm1873, %v1846, %v988
      %v1880 = vsel %vm1873, %v1847, %v990
      %v1881 = vsel %vm1873, %v1848, %v992
      %v1882 = vsel %vm1873, %v1849, %v994
      %v1883 = vsel %vm1873, %v1850, %v996
      %v1884 = vsel %vm1873, %v1851, %v998
      %v1885 = vsel %vm1873, %v1852, %v1000
      %v1886 = vsel %vm1873, %v1853, %v1002
      %v1887 = vsel %vm1873, %v1854, %v1004
      %v1888 = vsel %vm1873, %v1855, %v1006
      %v1889 = vsel %vm1873, %v1856, %v1008
      %v1890 = vsel %vm1873, %v1857, %v1010
      %v1891 = vsel %vm1873, %v1858, %v1012
      %v1892 = vsel %vm1873, %v1859, %v1014
      %v1893 = vsel %vm1873, %v1860, %v1016
      %v1894 = vsel %vm1873, %v1861, %v1018
      %v1895 = vsel %vm1873, %v1862, %v1020
      %v1896 = vsel %vm1873, %v1863, %v1022
      %v1897 = vsel %vm1873, %v1864, %v1024
      %v1898 = vsel %vm1873, %v1865, %v1026
      %v1899 = vsel %vm1873, %v1866, %v1028
      %v1900 = vsel %vm1873, %v1867, %v1030
      %v1901 = vsel %vm1873, %v1868, %v1032
      %v1902 = vsel %vm1873, %v1869, %v1034
      %v1903 = vsel %vm1873, %v1870, %v1036
      %v1904 = vsel %vm1873, %v1871, %v1038
      %v1905 = vsel %vm1873, %v1872, %v1040
      %vm1906 = vcmask 97280
      %v1907 = vsel %vm1906, %v1874, %v1106
      %v1908 = vsel %vm1906, %v1875, %v1108
      %v1909 = vsel %vm1906, %v1876, %v1110
      %v1910 = vsel %vm1906, %v1877, %v1112
      %v1911 = vsel %vm1906, %v1878, %v1114
      %v1912 = vsel %vm1906, %v1879, %v1116
      %v1913 = vsel %vm1906, %v1880, %v1118
      %v1914 = vsel %vm1906, %v1881, %v1120
      %v1915 = vsel %vm1906, %v1882, %v1122
      %v1916 = vsel %vm1906, %v1883, %v1124
      %v1917 = vsel %vm1906, %v1884, %v1126
      %v1918 = vsel %vm1906, %v1885, %v1128
      %v1919 = vsel %vm1906, %v1886, %v1130
      %v1920 = vsel %vm1906, %v1887, %v1132
      %v1921 = vsel %vm1906, %v1888, %v1134
      %v1922 = vsel %vm1906, %v1889, %v1136
      %v1923 = vsel %vm1906, %v1890, %v1138
      %v1924 = vsel %vm1906, %v1891, %v1140
      %v1925 = vsel %vm1906, %v1892, %v1142
      %v1926 = vsel %vm1906, %v1893, %v1144
      %v1927 = vsel %vm1906, %v1894, %v1146
      %v1928 = vsel %vm1906, %v1895, %v1148
      %v1929 = vsel %vm1906, %v1896, %v1150
      %v1930 = vsel %vm1906, %v1897, %v1152
      %v1931 = vsel %vm1906, %v1898, %v1154
      %v1932 = vsel %vm1906, %v1899, %v1156
      %v1933 = vsel %vm1906, %v1900, %v1158
      %v1934 = vsel %vm1906, %v1901, %v1160
      %v1935 = vsel %vm1906, %v1902, %v1162
      %v1936 = vsel %vm1906, %v1903, %v1164
      %v1937 = vsel %vm1906, %v1904, %v1166
      %v1938 = vsel %vm1906, %v1905, %v1168
      %vm1939 = vcmask 130048
      %v1940 = vsel %vm1939, %v1907, %v1234
      %v1941 = vsel %vm1939, %v1908, %v1236
      %v1942 = vsel %vm1939, %v1909, %v1238
      %v1943 = vsel %vm1939, %v1910, %v1240
      %v1944 = vsel %vm1939, %v1911, %v1242
      %v1945 = vsel %vm1939, %v1912, %v1244
      %v1946 = vsel %vm1939, %v1913, %v1246
      %v1947 = vsel %vm1939, %v1914, %v1248
      %v1948 = vsel %vm1939, %v1915, %v1250
      %v1949 = vsel %vm1939, %v1916, %v1252
      %v1950 = vsel %vm1939, %v1917, %v1254
      %v1951 = vsel %vm1939, %v1918, %v1256
      %v1952 = vsel %vm1939, %v1919, %v1258
      %v1953 = vsel %vm1939, %v1920, %v1260
      %v1954 = vsel %vm1939, %v1921, %v1262
      %v1955 = vsel %vm1939, %v1922, %v1264
      %v1956 = vsel %vm1939, %v1923, %v1266
      %v1957 = vsel %vm1939, %v1924, %v1268
      %v1958 = vsel %vm1939, %v1925, %v1270
      %v1959 = vsel %vm1939, %v1926, %v1272
      %v1960 = vsel %vm1939, %v1927, %v1274
      %v1961 = vsel %vm1939, %v1928, %v1276
      %v1962 = vsel %vm1939, %v1929, %v1278
      %v1963 = vsel %vm1939, %v1930, %v1280
      %v1964 = vsel %vm1939, %v1931, %v1282
      %v1965 = vsel %vm1939, %v1932, %v1284
      %v1966 = vsel %vm1939, %v1933, %v1286
      %v1967 = vsel %vm1939, %v1934, %v1288
      %v1968 = vsel %vm1939, %v1935, %v1290
      %v1969 = vsel %vm1939, %v1936, %v1292
      %v1970 = vsel %vm1939, %v1937, %v1294
      %v1971 = vsel %vm1939, %v1938, %v1296
      %vm1972 = vcmask 162816
      %v1973 = vsel %vm1972, %v1940, %v1362
      %v1974 = vsel %vm1972, %v1941, %v1364
      %v1975 = vsel %vm1972, %v1942, %v1366
      %v1976 = vsel %vm1972, %v1943, %v1368
      %v1977 = vsel %vm1972, %v1944, %v1370
      %v1978 = vsel %vm1972, %v1945, %v1372
      %v1979 = vsel %vm1972, %v1946, %v1374
      %v1980 = vsel %vm1972, %v1947, %v1376
      %v1981 = vsel %vm1972, %v1948, %v1378
      %v1982 = vsel %vm1972, %v1949, %v1380
      %v1983 = vsel %vm1972, %v1950, %v1382
      %v1984 = vsel %vm1972, %v1951, %v1384
      %v1985 = vsel %vm1972, %v1952, %v1386
      %v1986 = vsel %vm1972, %v1953, %v1388
      %v1987 = vsel %vm1972, %v1954, %v1390
      %v1988 = vsel %vm1972, %v1955, %v1392
      %v1989 = vsel %vm1972, %v1956, %v1394
      %v1990 = vsel %vm1972, %v1957, %v1396
      %v1991 = vsel %vm1972, %v1958, %v1398
      %v1992 = vsel %vm1972, %v1959, %v1400
      %v1993 = vsel %vm1972, %v1960, %v1402
      %v1994 = vsel %vm1972, %v1961, %v1404
      %v1995 = vsel %vm1972, %v1962, %v1406
      %v1996 = vsel %vm1972, %v1963, %v1408
      %v1997 = vsel %vm1972, %v1964, %v1410
      %v1998 = vsel %vm1972, %v1965, %v1412
      %v1999 = vsel %vm1972, %v1966, %v1414
      %v2000 = vsel %vm1972, %v1967, %v1416
      %v2001 = vsel %vm1972, %v1968, %v1418
      %v2002 = vsel %vm1972, %v1969, %v1420
      %v2003 = vsel %vm1972, %v1970, %v1422
      %v2004 = vsel %vm1972, %v1971, %v1424
      %vm2005 = vcmask 195584
      %v2006 = vsel %vm2005, %v1973, %v1490
      %v2007 = vsel %vm2005, %v1974, %v1492
      %v2008 = vsel %vm2005, %v1975, %v1494
      %v2009 = vsel %vm2005, %v1976, %v1496
      %v2010 = vsel %vm2005, %v1977, %v1498
      %v2011 = vsel %vm2005, %v1978, %v1500
      %v2012 = vsel %vm2005, %v1979, %v1502
      %v2013 = vsel %vm2005, %v1980, %v1504
      %v2014 = vsel %vm2005, %v1981, %v1506
      %v2015 = vsel %vm2005, %v1982, %v1508
      %v2016 = vsel %vm2005, %v1983, %v1510
      %v2017 = vsel %vm2005, %v1984, %v1512
      %v2018 = vsel %vm2005, %v1985, %v1514
      %v2019 = vsel %vm2005, %v1986, %v1516
      %v2020 = vsel %vm2005, %v1987, %v1518
      %v2021 = vsel %vm2005, %v1988, %v1520
      %v2022 = vsel %vm2005, %v1989, %v1522
      %v2023 = vsel %vm2005, %v1990, %v1524
      %v2024 = vsel %vm2005, %v1991, %v1526
      %v2025 = vsel %vm2005, %v1992, %v1528
      %v2026 = vsel %vm2005, %v1993, %v1530
      %v2027 = vsel %vm2005, %v1994, %v1532
      %v2028 = vsel %vm2005, %v1995, %v1534
      %v2029 = vsel %vm2005, %v1996, %v1536
      %v2030 = vsel %vm2005, %v1997, %v1538
      %v2031 = vsel %vm2005, %v1998, %v1540
      %v2032 = vsel %vm2005, %v1999, %v1542
      %v2033 = vsel %vm2005, %v2000, %v1544
      %v2034 = vsel %vm2005, %v2001, %v1546
      %v2035 = vsel %vm2005, %v2002, %v1548
      %v2036 = vsel %vm2005, %v2003, %v1550
      %v2037 = vsel %vm2005, %v2004, %v1552
      %vm2038 = vcmask 228352
      %v2039 = vsel %vm2038, %v2006, %v1618
      %v2040 = vsel %vm2038, %v2007, %v1620
      %v2041 = vsel %vm2038, %v2008, %v1622
      %v2042 = vsel %vm2038, %v2009, %v1624
      %v2043 = vsel %vm2038, %v2010, %v1626
      %v2044 = vsel %vm2038, %v2011, %v1628
      %v2045 = vsel %vm2038, %v2012, %v1630
      %v2046 = vsel %vm2038, %v2013, %v1632
      %v2047 = vsel %vm2038, %v2014, %v1634
      %v2048 = vsel %vm2038, %v2015, %v1636
      %v2049 = vsel %vm2038, %v2016, %v1638
      %v2050 = vsel %vm2038, %v2017, %v1640
      %v2051 = vsel %vm2038, %v2018, %v1642
      %v2052 = vsel %vm2038, %v2019, %v1644
      %v2053 = vsel %vm2038, %v2020, %v1646
      %v2054 = vsel %vm2038, %v2021, %v1648
      %v2055 = vsel %vm2038, %v2022, %v1650
      %v2056 = vsel %vm2038, %v2023, %v1652
      %v2057 = vsel %vm2038, %v2024, %v1654
      %v2058 = vsel %vm2038, %v2025, %v1656
      %v2059 = vsel %vm2038, %v2026, %v1658
      %v2060 = vsel %vm2038, %v2027, %v1660
      %v2061 = vsel %vm2038, %v2028, %v1662
      %v2062 = vsel %vm2038, %v2029, %v1664
      %v2063 = vsel %vm2038, %v2030, %v1666
      %v2064 = vsel %vm2038, %v2031, %v1668
      %v2065 = vsel %vm2038, %v2032, %v1670
      %v2066 = vsel %vm2038, %v2033, %v1672
      %v2067 = vsel %vm2038, %v2034, %v1674
      %v2068 = vsel %vm2038, %v2035, %v1676
      %v2069 = vsel %vm2038, %v2036, %v1678
      %v2070 = vsel %vm2038, %v2037, %v1680
      %vm2071 = vcmask 261120
      %v2072 = vsel %vm2071, %v2039, %v1746
      %v2073 = vsel %vm2071, %v2040, %v1748
      %v2074 = vsel %vm2071, %v2041, %v1750
      %v2075 = vsel %vm2071, %v2042, %v1752
      %v2076 = vsel %vm2071, %v2043, %v1754
      %v2077 = vsel %vm2071, %v2044, %v1756
      %v2078 = vsel %vm2071, %v2045, %v1758
      %v2079 = vsel %vm2071, %v2046, %v1760
      %v2080 = vsel %vm2071, %v2047, %v1762
      %v2081 = vsel %vm2071, %v2048, %v1764
      %v2082 = vsel %vm2071, %v2049, %v1766
      %v2083 = vsel %vm2071, %v2050, %v1768
      %v2084 = vsel %vm2071, %v2051, %v1770
      %v2085 = vsel %vm2071, %v2052, %v1772
      %v2086 = vsel %vm2071, %v2053, %v1774
      %v2087 = vsel %vm2071, %v2054, %v1776
      %v2088 = vsel %vm2071, %v2055, %v1778
      %v2089 = vsel %vm2071, %v2056, %v1780
      %v2090 = vsel %vm2071, %v2057, %v1782
      %v2091 = vsel %vm2071, %v2058, %v1784
      %v2092 = vsel %vm2071, %v2059, %v1786
      %v2093 = vsel %vm2071, %v2060, %v1788
      %v2094 = vsel %vm2071, %v2061, %v1790
      %v2095 = vsel %vm2071, %v2062, %v1792
      %v2096 = vsel %vm2071, %v2063, %v1794
      %v2097 = vsel %vm2071, %v2064, %v1796
      %v2098 = vsel %vm2071, %v2065, %v1798
      %v2099 = vsel %vm2071, %v2066, %v1800
      %v2100 = vsel %vm2071, %v2067, %v1802
      %v2101 = vsel %vm2071, %v2068, %v1804
      %v2102 = vsel %vm2071, %v2069, %v1806
      %v2103 = vsel %vm2071, %v2070, %v1808
      %v2104 = vld [vmem:[%s1] sm:$0xff]
      %v2105 = vld [vmem:[%s1 + $0x8] sm:$0xff]
      %v2106 = vld [vmem:[%s1 + $0x10] sm:$0xff]
      %v2107 = vld [vmem:[%s1 + $0x18] sm:$0xff]
      %v2108 = vld [vmem:[%s1 + $0x20] sm:$0xf]
      %vm2109 = vcmask 293888
      %v2111 = vsel %vm2109, %v2072, 0
      %v2114 = vsel %vm2109, %v2073, 0
      %v2117 = vsel %vm2109, %v2074, 0
      %v2120 = vsel %vm2109, %v2075, 0
      %v2123 = vsel %vm2109, %v2076, 0
      %v2126 = vsel %vm2109, %v2077, 0
      %v2129 = vsel %vm2109, %v2078, 0
      %v2132 = vsel %vm2109, %v2079, 0
      %v2135 = vsel %vm2109, %v2080, 0
      %v2138 = vsel %vm2109, %v2081, 0
      %v2141 = vsel %vm2109, %v2082, 0
      %v2144 = vsel %vm2109, %v2083, 0
      %v2147 = vsel %vm2109, %v2084, 0
      %v2150 = vsel %vm2109, %v2085, 0
      %v2153 = vsel %vm2109, %v2086, 0
      %v2156 = vsel %vm2109, %v2087, 0
      %v2159 = vsel %vm2109, %v2088, 0
      %v2162 = vsel %vm2109, %v2089, 0
      %v2165 = vsel %vm2109, %v2090, 0
      %v2168 = vsel %vm2109, %v2091, 0
      %v2171 = vsel %vm2109, %v2092, 0
      %v2174 = vsel %vm2109, %v2093, 0
      %v2177 = vsel %vm2109, %v2094, 0
      %v2180 = vsel %vm2109, %v2095, 0
      %v2183 = vsel %vm2109, %v2096, 0
      %v2186 = vsel %vm2109, %v2097, 0
      %v2189 = vsel %vm2109, %v2098, 0
      %v2192 = vsel %vm2109, %v2099, 0
      %v2195 = vsel %vm2109, %v2100, 0
      %v2198 = vsel %vm2109, %v2101, 0
      %v2201 = vsel %vm2109, %v2102, 0
      %v2204 = vsel %vm2109, %v2103, 0
      %vm2206 = vcmask 1043456
      %v2208 = vsel %vm2206, %v2108, 0
      %2210 = vmatprep.subr.mxu0 0.0
      %2211 = vmatpush1.msra.mxu0 %v2104
      %2212 = vmatprep.subr.mxu0 0.0
      %2213 = vmatpush1.msra.mxu0 %v2105
      %2214 = vmatprep.subr.mxu0 0.0
      %2215 = vmatpush1.msra.mxu0 %v2106
      %2216 = vmatprep.subr.mxu0 0.0
      %2217 = vmatpush1.msra.mxu0 %v2107
      %2218 = vmatprep.subr.mxu0 0.0
      %2219 = vmatpush1.msra.mxu0 %v2208
      %2220 = vmatprep.subr.mxu0 0.0
      %2221 = vmatpush1.msra.mxu0 0.0
      %2222 = vmatprep.subr.mxu0 0.0
      %2223 = vmatpush1.msra.mxu0 0.0
      %2224 = vmatprep.subr.mxu0 0.0
      %2225 = vmatpush1.msra.mxu0 0.0
      %2226 = vmatprep.subr.mxu0 0.0
      %2227 = vmatpush1.msra.mxu0 0.0
      %2228 = vmatprep.subr.mxu0 0.0
      %2229 = vmatpush1.msra.mxu0 0.0
      %2230 = vmatprep.subr.mxu0 0.0
      %2231 = vmatpush1.msra.mxu0 0.0
      %2232 = vmatprep.subr.mxu0 0.0
      %2233 = vmatpush1.msra.mxu0 0.0
      %2234 = vmatprep.subr.mxu0 0.0
      %2235 = vmatpush1.msra.mxu0 0.0
      %2236 = vmatprep.subr.mxu0 0.0
      %2237 = vmatpush1.msra.mxu0 0.0
      %2238 = vmatprep.subr.mxu0 0.0
      %2239 = vmatpush1.msra.mxu0 0.0
      %2240 = vmatprep.subr.mxu0 0.0
      %2241 = vmatpush1.msra.mxu0 0.0
      %2242 = vmatprep.subr.mxu0 0.0
      %2243 = vmatpush1.msra.mxu0 0.0
      %2244 = vmatprep.subr.mxu0 0.0
      %2245 = vmatpush1.msra.mxu0 0.0
      %2246 = vmatprep.subr.mxu0 0.0
      %2247 = vmatpush1.msra.mxu0 0.0
      %2248 = vmatprep.subr.mxu0 0.0
      %2249 = vmatpush1.msra.mxu0 0.0
      %2250 = vmatprep.subr.mxu0 0.0
      %2251 = vmatpush1.msra.mxu0 0.0
      %2252 = vmatprep.subr.mxu0 0.0
      %2253 = vmatpush1.msra.mxu0 0.0
      %2254 = vmatprep.subr.mxu0 0.0
      %2255 = vmatpush1.msra.mxu0 0.0
      %2256 = vmatprep.subr.mxu0 0.0
      %2257 = vmatpush1.msra.mxu0 0.0
      %2258 = vmatprep.subr.mxu0 0.0
      %2259 = vmatpush1.msra.mxu0 0.0
      %2260 = vmatprep.subr.mxu0 0.0
      %2261 = vmatpush1.msra.mxu0 0.0
      %2262 = vmatprep.subr.mxu0 0.0
      %2263 = vmatpush1.msra.mxu0 0.0
      %2264 = vmatprep.subr.mxu0 0.0
      %2265 = vmatpush1.msra.mxu0 0.0
      %2266 = vmatprep.subr.mxu0 0.0
      %2267 = vmatpush1.msra.mxu0 0.0
      %2268 = vmatprep.subr.mxu0 0.0
      %2269 = vmatpush1.msra.mxu0 0.0
      %2270 = vmatprep.subr.mxu0 0.0
      %2271 = vmatpush1.msra.mxu0 0.0
      %2272 = vmatprep.subr.mxu0 0.0
      %2273 = vmatpush1.msra.mxu0 0.0
      %2274 = vmatprep.mubr.f32.mxu0 0.0
      %2275 = vmatmul.mubr.f32.gmra.mrb[0].mxu0 %v2111
      %v2276 = vpop.f32.mrb[0].mxu0
      %v2277 = vadd.f32 0.0, %v2276
      %v2278 = vpop.f32.mrb[0].mxu0
      %2279 = vmatprep.mubr.f32.mxu0 0.0
      %2280 = vmatmul.mubr.f32.gmra.mrb[0].mxu0 %v2114
      %v2281 = vpop.f32.mrb[0].mxu0
      %v2282 = vadd.f32 0.0, %v2281
      %v2283 = vpop.f32.mrb[0].mxu0
      %2284 = vmatprep.mubr.f32.mxu0 0.0
      %2285 = vmatmul.mubr.f32.gmra.mrb[0].mxu0 %v2117
      %v2286 = vpop.f32.mrb[0].mxu0
      %v2287 = vadd.f32 0.0, %v2286
      %v2288 = vpop.f32.mrb[0].mxu0
      %2289 = vmatprep.mubr.f32.mxu0 0.0
      %2290 = vmatmul.mubr.f32.gmra.mrb[0].mxu0 %v2120
      %v2291 = vpop.f32.mrb[0].mxu0
      %v2292 = vadd.f32 0.0, %v2291
      %v2293 = vpop.f32.mrb[0].mxu0
      %2294 = vmatprep.mubr.f32.mxu0 0.0
      %2295 = vmatmul.mubr.f32.gmra.mrb[0].mxu0 %v2123
      %v2296 = vpop.f32.mrb[0].mxu0
      %v2297 = vadd.f32 0.0, %v2296
      %v2298 = vpop.f32.mrb[0].mxu0
      %2299 = vmatprep.mubr.f32.mxu0 0.0
      %2300 = vmatmul.mubr.f32.gmra.mrb[0].mxu0 %v2126
      %v2301 = vpop.f32.mrb[0].mxu0
      %v2302 = vadd.f32 0.0, %v2301
      %v2303 = vpop.f32.mrb[0].mxu0
      %2304 = vmatprep.mubr.f32.mxu0 0.0
      %2305 = vmatmul.mubr.f32.gmra.mrb[0].mxu0 %v2129
      %v2306 = vpop.f32.mrb[0].mxu0
      %v2307 = vadd.f32 0.0, %v2306
      %v2308 = vpop.f32.mrb[0].mxu0
      %2309 = vmatprep.mubr.f32.mxu0 0.0
      %2310 = vmatmul.mubr.f32.gmra.mrb[0].mxu0 %v2132
      %v2311 = vpop.f32.mrb[0].mxu0
      %v2312 = vadd.f32 0.0, %v2311
      %v2313 = vpop.f32.mrb[0].mxu0
      %2314 = vmatprep.mubr.f32.mxu0 0.0
      %2315 = vmatmul.mubr.f32.gmra.mrb[0].mxu0 %v2135
      %v2316 = vpop.f32.mrb[0].mxu0
      %v2317 = vadd.f32 0.0, %v2316
      %v2318 = vpop.f32.mrb[0].mxu0
      %2319 = vmatprep.mubr.f32.mxu0 0.0
      %2320 = vmatmul.mubr.f32.gmra.mrb[0].mxu0 %v2138
      %v2321 = vpop.f32.mrb[0].mxu0
      %v2322 = vadd.f32 0.0, %v2321
      %v2323 = vpop.f32.mrb[0].mxu0
      %2324 = vmatprep.mubr.f32.mxu0 0.0
      %2325 = vmatmul.mubr.f32.gmra.mrb[0].mxu0 %v2141
      %v2326 = vpop.f32.mrb[0].mxu0
      %v2327 = vadd.f32 0.0, %v2326
      %v2328 = vpop.f32.mrb[0].mxu0
      %2329 = vmatprep.mubr.f32.mxu0 0.0
      %2330 = vmatmul.mubr.f32.gmra.mrb[0].mxu0 %v2144
      %v2331 = vpop.f32.mrb[0].mxu0
      %v2332 = vadd.f32 0.0, %v2331
      %v2333 = vpop.f32.mrb[0].mxu0
      %2334 = vmatprep.mubr.f32.mxu0 0.0
      %2335 = vmatmul.mubr.f32.gmra.mrb[0].mxu0 %v2147
      %v2336 = vpop.f32.mrb[0].mxu0
      %v2337 = vadd.f32 0.0, %v2336
      %v2338 = vpop.f32.mrb[0].mxu0
      %2339 = vmatprep.mubr.f32.mxu0 0.0
      %2340 = vmatmul.mubr.f32.gmra.mrb[0].mxu0 %v2150
      %v2341 = vpop.f32.mrb[0].mxu0
      %v2342 = vadd.f32 0.0, %v2341
      %v2343 = vpop.f32.mrb[0].mxu0
      %2344 = vmatprep.mubr.f32.mxu0 0.0
      %2345 = vmatmul.mubr.f32.gmra.mrb[0].mxu0 %v2153
      %v2346 = vpop.f32.mrb[0].mxu0
      %v2347 = vadd.f32 0.0, %v2346
      %v2348 = vpop.f32.mrb[0].mxu0
      %2349 = vmatprep.mubr.f32.mxu0 0.0
      %2350 = vmatmul.mubr.f32.gmra.mrb[0].mxu0 %v2156
      %v2351 = vpop.f32.mrb[0].mxu0
      %v2352 = vadd.f32 0.0, %v2351
      %v2353 = vpop.f32.mrb[0].mxu0
      %2354 = vmatprep.mubr.f32.mxu0 0.0
      %2355 = vmatmul.mubr.f32.gmra.mrb[0].mxu0 %v2159
      %v2356 = vpop.f32.mrb[0].mxu0
      %v2357 = vadd.f32 0.0, %v2356
      %v2358 = vpop.f32.mrb[0].mxu0
      %2359 = vmatprep.mubr.f32.mxu0 0.0
      %2360 = vmatmul.mubr.f32.gmra.mrb[0].mxu0 %v2162
      %v2361 = vpop.f32.mrb[0].mxu0
      %v2362 = vadd.f32 0.0, %v2361
      %v2363 = vpop.f32.mrb[0].mxu0
      %2364 = vmatprep.mubr.f32.mxu0 0.0
      %2365 = vmatmul.mubr.f32.gmra.mrb[0].mxu0 %v2165
      %v2366 = vpop.f32.mrb[0].mxu0
      %v2367 = vadd.f32 0.0, %v2366
      %v2368 = vpop.f32.mrb[0].mxu0
      %2369 = vmatprep.mubr.f32.mxu0 0.0
      %2370 = vmatmul.mubr.f32.gmra.mrb[0].mxu0 %v2168
      %v2371 = vpop.f32.mrb[0].mxu0
      %v2372 = vadd.f32 0.0, %v2371
      %v2373 = vpop.f32.mrb[0].mxu0
      %2374 = vmatprep.mubr.f32.mxu0 0.0
      %2375 = vmatmul.mubr.f32.gmra.mrb[0].mxu0 %v2171
      %v2376 = vpop.f32.mrb[0].mxu0
      %v2377 = vadd.f32 0.0, %v2376
      %v2378 = vpop.f32.mrb[0].mxu0
      %2379 = vmatprep.mubr.f32.mxu0 0.0
      %2380 = vmatmul.mubr.f32.gmra.mrb[0].mxu0 %v2174
      %v2381 = vpop.f32.mrb[0].mxu0
      %v2382 = vadd.f32 0.0, %v2381
      %v2383 = vpop.f32.mrb[0].mxu0
      %2384 = vmatprep.mubr.f32.mxu0 0.0
      %2385 = vmatmul.mubr.f32.gmra.mrb[0].mxu0 %v2177
      %v2386 = vpop.f32.mrb[0].mxu0
      %v2387 = vadd.f32 0.0, %v2386
      %v2388 = vpop.f32.mrb[0].mxu0
      %2389 = vmatprep.mubr.f32.mxu0 0.0
      %2390 = vmatmul.mubr.f32.gmra.mrb[0].mxu0 %v2180
      %v2391 = vpop.f32.mrb[0].mxu0
      %v2392 = vadd.f32 0.0, %v2391
      %v2393 = vpop.f32.mrb[0].mxu0
      %2394 = vmatprep.mubr.f32.mxu0 0.0
      %2395 = vmatmul.mubr.f32.gmra.mrb[0].mxu0 %v2183
      %v2396 = vpop.f32.mrb[0].mxu0
      %v2397 = vadd.f32 0.0, %v2396
      %v2398 = vpop.f32.mrb[0].mxu0
      %2399 = vmatprep.mubr.f32.mxu0 0.0
      %2400 = vmatmul.mubr.f32.gmra.mrb[0].mxu0 %v2186
      %v2401 = vpop.f32.mrb[0].mxu0
      %v2402 = vadd.f32 0.0, %v2401
      %v2403 = vpop.f32.mrb[0].mxu0
      %2404 = vmatprep.mubr.f32.mxu0 0.0
      %2405 = vmatmul.mubr.f32.gmra.mrb[0].mxu0 %v2189
      %v2406 = vpop.f32.mrb[0].mxu0
      %v2407 = vadd.f32 0.0, %v2406
      %v2408 = vpop.f32.mrb[0].mxu0
      %2409 = vmatprep.mubr.f32.mxu0 0.0
      %2410 = vmatmul.mubr.f32.gmra.mrb[0].mxu0 %v2192
      %v2411 = vpop.f32.mrb[0].mxu0
      %v2412 = vadd.f32 0.0, %v2411
      %v2413 = vpop.f32.mrb[0].mxu0
      %2414 = vmatprep.mubr.f32.mxu0 0.0
      %2415 = vmatmul.mubr.f32.gmra.mrb[0].mxu0 %v2195
      %v2416 = vpop.f32.mrb[0].mxu0
      %v2417 = vadd.f32 0.0, %v2416
      %v2418 = vpop.f32.mrb[0].mxu0
      %2419 = vmatprep.mubr.f32.mxu0 0.0
      %2420 = vmatmul.mubr.f32.gmra.mrb[0].mxu0 %v2198
      %v2421 = vpop.f32.mrb[0].mxu0
      %v2422 = vadd.f32 0.0, %v2421
      %v2423 = vpop.f32.mrb[0].mxu0
      %2424 = vmatprep.mubr.f32.mxu0 0.0
      %2425 = vmatmul.mubr.f32.gmra.mrb[0].mxu0 %v2201
      %v2426 = vpop.f32.mrb[0].mxu0
      %v2427 = vadd.f32 0.0, %v2426
      %v2428 = vpop.f32.mrb[0].mxu0
      %2429 = vmatprep.mubr.f32.mxu0 0.0
      %2430 = vmatmul.mubr.f32.gmra.mrb[0].mxu0 %v2204
      %v2431 = vpop.f32.mrb[0].mxu0
      %v2432 = vadd.f32 0.0, %v2431
      %v2433 = vpop.f32.mrb[0].mxu0
      %2434 = vdwg.mxu0
      %v2435 = vlaneseq
      %v2436 = vshrl.u32 %v2435, 7
      %v2437 = vsub.s32 0, %v2436
      %v2438 = vrot.slane %v400, %v2437
      %v2439 = vmul.f32 %v2277, %v2438
      %v2440 = vmul.f32 %v2282, %v2438
      %v2441 = vmul.f32 %v2287, %v2438
      %v2442 = vmul.f32 %v2292, %v2438
      %v2443 = vmul.f32 %v2297, %v2438
      %v2444 = vmul.f32 %v2302, %v2438
      %v2445 = vmul.f32 %v2307, %v2438
      %v2446 = vmul.f32 %v2312, %v2438
      %v2447 = vmul.f32 %v2317, %v2438
      %v2448 = vmul.f32 %v2322, %v2438
      %v2449 = vmul.f32 %v2327, %v2438
      %v2450 = vmul.f32 %v2332, %v2438
      %v2451 = vmul.f32 %v2337, %v2438
      %v2452 = vmul.f32 %v2342, %v2438
      %v2453 = vmul.f32 %v2347, %v2438
      %v2454 = vmul.f32 %v2352, %v2438
      %v2455 = vmul.f32 %v2357, %v2438
      %v2456 = vmul.f32 %v2362, %v2438
      %v2457 = vmul.f32 %v2367, %v2438
      %v2458 = vmul.f32 %v2372, %v2438
      %v2459 = vmul.f32 %v2377, %v2438
      %v2460 = vmul.f32 %v2382, %v2438
      %v2461 = vmul.f32 %v2387, %v2438
      %v2462 = vmul.f32 %v2392, %v2438
      %v2463 = vmul.f32 %v2397, %v2438
      %v2464 = vmul.f32 %v2402, %v2438
      %v2465 = vmul.f32 %v2407, %v2438
      %v2466 = vmul.f32 %v2412, %v2438
      %v2467 = vmul.f32 %v2417, %v2438
      %v2468 = vmul.f32 %v2422, %v2438
      %v2469 = vmul.f32 %v2427, %v2438
      %v2470 = vmul.f32 %v2432, %v2438
      %v2471 = vlaneseq
      %v2472 = vshrl.u32 %v2471, 7
      %v2473 = vsub.s32 1, %v2472
      %v2474 = vrot.slane %v400, %v2473
      %v2475 = vadd.f32 %v2439, %v2474
      %v2476 = vadd.f32 %v2440, %v2474
      %v2477 = vadd.f32 %v2441, %v2474
      %v2478 = vadd.f32 %v2442, %v2474
      %v2479 = vadd.f32 %v2443, %v2474
      %v2480 = vadd.f32 %v2444, %v2474
      %v2481 = vadd.f32 %v2445, %v2474
      %v2482 = vadd.f32 %v2446, %v2474
      %v2483 = vadd.f32 %v2447, %v2474
      %v2484 = vadd.f32 %v2448, %v2474
      %v2485 = vadd.f32 %v2449, %v2474
      %v2486 = vadd.f32 %v2450, %v2474
      %v2487 = vadd.f32 %v2451, %v2474
      %v2488 = vadd.f32 %v2452, %v2474
      %v2489 = vadd.f32 %v2453, %v2474
      %v2490 = vadd.f32 %v2454, %v2474
      %v2491 = vadd.f32 %v2455, %v2474
      %v2492 = vadd.f32 %v2456, %v2474
      %v2493 = vadd.f32 %v2457, %v2474
      %v2494 = vadd.f32 %v2458, %v2474
      %v2495 = vadd.f32 %v2459, %v2474
      %v2496 = vadd.f32 %v2460, %v2474
      %v2497 = vadd.f32 %v2461, %v2474
      %v2498 = vadd.f32 %v2462, %v2474
      %v2499 = vadd.f32 %v2463, %v2474
      %v2500 = vadd.f32 %v2464, %v2474
      %v2501 = vadd.f32 %v2465, %v2474
      %v2502 = vadd.f32 %v2466, %v2474
      %v2503 = vadd.f32 %v2467, %v2474
      %v2504 = vadd.f32 %v2468, %v2474
      %v2505 = vadd.f32 %v2469, %v2474
      %v2506 = vadd.f32 %v2470, %v2474
      %v2507 = vmax.f32 %v2475, 0.0
      %v2508 = vmax.f32 %v2476, 0.0
      %v2509 = vmax.f32 %v2477, 0.0
      %v2510 = vmax.f32 %v2478, 0.0
      %v2511 = vmax.f32 %v2479, 0.0
      %v2512 = vmax.f32 %v2480, 0.0
      %v2513 = vmax.f32 %v2481, 0.0
      %v2514 = vmax.f32 %v2482, 0.0
      %v2515 = vmax.f32 %v2483, 0.0
      %v2516 = vmax.f32 %v2484, 0.0
      %v2517 = vmax.f32 %v2485, 0.0
      %v2518 = vmax.f32 %v2486, 0.0
      %v2519 = vmax.f32 %v2487, 0.0
      %v2520 = vmax.f32 %v2488, 0.0
      %v2521 = vmax.f32 %v2489, 0.0
      %v2522 = vmax.f32 %v2490, 0.0
      %v2523 = vmax.f32 %v2491, 0.0
      %v2524 = vmax.f32 %v2492, 0.0
      %v2525 = vmax.f32 %v2493, 0.0
      %v2526 = vmax.f32 %v2494, 0.0
      %v2527 = vmax.f32 %v2495, 0.0
      %v2528 = vmax.f32 %v2496, 0.0
      %v2529 = vmax.f32 %v2497, 0.0
      %v2530 = vmax.f32 %v2498, 0.0
      %v2531 = vmax.f32 %v2499, 0.0
      %v2532 = vmax.f32 %v2500, 0.0
      %v2533 = vmax.f32 %v2501, 0.0
      %v2534 = vmax.f32 %v2502, 0.0
      %v2535 = vmax.f32 %v2503, 0.0
      %v2536 = vmax.f32 %v2504, 0.0
      %v2537 = vmax.f32 %v2505, 0.0
      %v2538 = vmax.f32 %v2506, 0.0
      %2539 = vst.msk [vmem:[#allocation3] sm:$0xff] %vm1873, 0.0
      %2540 = vst.msk [vmem:[#allocation3 + $0x8] sm:$0xff] %vm1873, 0.0
      %vm2541 = vcmask 60416
      %2542 = vst.msk [vmem:[#allocation3 + $0x10] sm:$0xf] %vm2541, 0.0
      %2543 = vst.msk [vmem:[#allocation3 + $0x18] sm:$0xff] %vm1873, 0.0
      %2544 = vst.msk [vmem:[#allocation3 + $0x20] sm:$0xff] %vm1873, 0.0
      %2545 = vst.msk [vmem:[#allocation3 + $0x28] sm:$0xf] %vm2541, 0.0
      %2546 = vst.msk [vmem:[#allocation3 + $0x30] sm:$0xff] %vm1873, 0.0
      %2547 = vst.msk [vmem:[#allocation3 + $0x38] sm:$0xff] %vm1873, 0.0
      %2548 = vst.msk [vmem:[#allocation3 + $0x40] sm:$0xf] %vm2541, 0.0
      %2549 = vst.msk [vmem:[#allocation3 + $0x48] sm:$0xff] %vm1873, 0.0
      %2550 = vst.msk [vmem:[#allocation3 + $0x50] sm:$0xff] %vm1873, 0.0
      %2551 = vst.msk [vmem:[#allocation3 + $0x58] sm:$0xf] %vm2541, 0.0
      %2552 = vst.msk [vmem:[#allocation3 + $0x60] sm:$0xff] %vm1873, 0.0
      %2553 = vst.msk [vmem:[#allocation3 + $0x68] sm:$0xff] %vm1873, 0.0
      %2554 = vst.msk [vmem:[#allocation3 + $0x70] sm:$0xf] %vm2541, 0.0
      %2555 = vst.msk [vmem:[#allocation3 + $0x78] sm:$0xff] %vm1873, 0.0
      %2556 = vst.msk [vmem:[#allocation3 + $0x80] sm:$0xff] %vm1873, 0.0
      %2557 = vst.msk [vmem:[#allocation3 + $0x88] sm:$0xf] %vm2541, 0.0
      %2558 = vst.msk [vmem:[#allocation3 + $0x90] sm:$0xff] %vm1873, 0.0
      %2559 = vst.msk [vmem:[#allocation3 + $0x98] sm:$0xff] %vm1873, 0.0
      %2560 = vst.msk [vmem:[#allocation3 + $0xa0] sm:$0xf] %vm2541, 0.0
      %2561 = vst.msk [vmem:[#allocation3 + $0xa8] sm:$0xff] %vm1873, 0.0
      %2562 = vst.msk [vmem:[#allocation3 + $0xb0] sm:$0xff] %vm1873, 0.0
      %2563 = vst.msk [vmem:[#allocation3 + $0xb8] sm:$0xf] %vm2541, 0.0
      %2564 = vst.msk [vmem:[#allocation3 + $0xc0] sm:$0xff] %vm1873, 0.0
      %2565 = vst.msk [vmem:[#allocation3 + $0xc8] sm:$0xff] %vm1873, 0.0
      %2566 = vst.msk [vmem:[#allocation3 + $0xd0] sm:$0xf] %vm2541, 0.0
      %2567 = vst.msk [vmem:[#allocation3 + $0xd8] sm:$0xff] %vm1873, 0.0
      %2568 = vst.msk [vmem:[#allocation3 + $0xe0] sm:$0xff] %vm1873, 0.0
      %2569 = vst.msk [vmem:[#allocation3 + $0xe8] sm:$0xf] %vm2541, 0.0
      %2570 = vst.msk [vmem:[#allocation3 + $0xf0] sm:$0xff] %vm1873, 0.0
      %2571 = vst.msk [vmem:[#allocation3 + $0xf8] sm:$0xff] %vm1873, 0.0
      %2572 = vst.msk [vmem:[#allocation3 + $0x100] sm:$0xf] %vm2541, 0.0
      %2573 = vst.msk [vmem:[#allocation3 + $0x108] sm:$0xff] %vm1873, 0.0
      %2574 = vst.msk [vmem:[#allocation3 + $0x110] sm:$0xff] %vm1873, 0.0
      %2575 = vst.msk [vmem:[#allocation3 + $0x118] sm:$0xf] %vm2541, 0.0
      %2576 = vst.msk [vmem:[#allocation3 + $0x120] sm:$0xff] %vm1873, 0.0
      %2577 = vst.msk [vmem:[#allocation3 + $0x128] sm:$0xff] %vm1873, 0.0
      %2578 = vst.msk [vmem:[#allocation3 + $0x130] sm:$0xf] %vm2541, 0.0
      %2579 = vst.msk [vmem:[#allocation3 + $0x138] sm:$0xff] %vm1873, 0.0
      %2580 = vst.msk [vmem:[#allocation3 + $0x140] sm:$0xff] %vm1873, 0.0
      %2581 = vst.msk [vmem:[#allocation3 + $0x148] sm:$0xf] %vm2541, 0.0
      %2582 = vst.msk [vmem:[#allocation3 + $0x150] sm:$0xff] %vm1873, 0.0
      %2583 = vst.msk [vmem:[#allocation3 + $0x158] sm:$0xff] %vm1873, 0.0
      %2584 = vst.msk [vmem:[#allocation3 + $0x160] sm:$0xf] %vm2541, 0.0
      %2585 = vst.msk [vmem:[#allocation3 + $0x168] sm:$0xff] %vm1873, 0.0
      %2586 = vst.msk [vmem:[#allocation3 + $0x170] sm:$0xff] %vm1873, 0.0
      %2587 = vst.msk [vmem:[#allocation3 + $0x178] sm:$0xf] %vm2541, 0.0
      %2588 = vst.msk [vmem:[#allocation3 + $0x180] sm:$0xff] %vm1873, 0.0
      %2589 = vst.msk [vmem:[#allocation3 + $0x188] sm:$0xff] %vm1873, 0.0
      %2590 = vst.msk [vmem:[#allocation3 + $0x190] sm:$0xf] %vm2541, 0.0
      %2591 = vst.msk [vmem:[#allocation3 + $0x198] sm:$0xff] %vm1873, 0.0
      %2592 = vst.msk [vmem:[#allocation3 + $0x1a0] sm:$0xff] %vm1873, 0.0
      %2593 = vst.msk [vmem:[#allocation3 + $0x1a8] sm:$0xf] %vm2541, 0.0
      %2594 = vst.msk [vmem:[#allocation3 + $0x1b0] sm:$0xff] %vm1873, 0.0
      %2595 = vst.msk [vmem:[#allocation3 + $0x1b8] sm:$0xff] %vm1873, 0.0
      %2596 = vst.msk [vmem:[#allocation3 + $0x1c0] sm:$0xf] %vm2541, 0.0
      %2597 = vst.msk [vmem:[#allocation3 + $0x1c8] sm:$0xff] %vm1873, 0.0
      %2598 = vst.msk [vmem:[#allocation3 + $0x1d0] sm:$0xff] %vm1873, 0.0
      %2599 = vst.msk [vmem:[#allocation3 + $0x1d8] sm:$0xf] %vm2541, 0.0
      %s2600 = scalar_lea.vmem [#allocation3], 48
      %2601 = vst.msk [vmem:[%s2600 + $0x2] sm:$0xff] %vm1873, %v2507
      %2602 = vst.msk [vmem:[%s2600 + $0xa] sm:$0xff] %vm1873, %v2508
      %2603 = vst.msk [vmem:[%s2600 + $0x1a] sm:$0xff] %vm1873, %v2509
      %2604 = vst.msk [vmem:[%s2600 + $0x22] sm:$0xff] %vm1873, %v2510
      %2605 = vst.msk [vmem:[%s2600 + $0x32] sm:$0xff] %vm1873, %v2511
      %2606 = vst.msk [vmem:[%s2600 + $0x3a] sm:$0xff] %vm1873, %v2512
      %2607 = vst.msk [vmem:[%s2600 + $0x4a] sm:$0xff] %vm1873, %v2513
      %2608 = vst.msk [vmem:[%s2600 + $0x52] sm:$0xff] %vm1873, %v2514
      %2609 = vst.msk [vmem:[%s2600 + $0x62] sm:$0xff] %vm1873, %v2515
      %2610 = vst.msk [vmem:[%s2600 + $0x6a] sm:$0xff] %vm1873, %v2516
      %2611 = vst.msk [vmem:[%s2600 + $0x7a] sm:$0xff] %vm1873, %v2517
      %2612 = vst.msk [vmem:[%s2600 + $0x82] sm:$0xff] %vm1873, %v2518
      %2613 = vst.msk [vmem:[%s2600 + $0x92] sm:$0xff] %vm1873, %v2519
      %2614 = vst.msk [vmem:[%s2600 + $0x9a] sm:$0xff] %vm1873, %v2520
      %2615 = vst.msk [vmem:[%s2600 + $0xaa] sm:$0xff] %vm1873, %v2521
      %2616 = vst.msk [vmem:[%s2600 + $0xb2] sm:$0xff] %vm1873, %v2522
      %2617 = vst.msk [vmem:[%s2600 + $0xc2] sm:$0xff] %vm1873, %v2523
      %2618 = vst.msk [vmem:[%s2600 + $0xca] sm:$0xff] %vm1873, %v2524
      %2619 = vst.msk [vmem:[%s2600 + $0xda] sm:$0xff] %vm1873, %v2525
      %2620 = vst.msk [vmem:[%s2600 + $0xe2] sm:$0xff] %vm1873, %v2526
      %2621 = vst.msk [vmem:[%s2600 + $0xf2] sm:$0xff] %vm1873, %v2527
      %2622 = vst.msk [vmem:[%s2600 + $0xfa] sm:$0xff] %vm1873, %v2528
      %2623 = vst.msk [vmem:[%s2600 + $0x10a] sm:$0xff] %vm1873, %v2529
      %2624 = vst.msk [vmem:[%s2600 + $0x112] sm:$0xff] %vm1873, %v2530
      %2625 = vst.msk [vmem:[%s2600 + $0x122] sm:$0xff] %vm1873, %v2531
      %2626 = vst.msk [vmem:[%s2600 + $0x12a] sm:$0xff] %vm1873, %v2532
      %2627 = vst.msk [vmem:[%s2600 + $0x13a] sm:$0xff] %vm1873, %v2533
      %2628 = vst.msk [vmem:[%s2600 + $0x142] sm:$0xff] %vm1873, %v2534
      %2629 = vst.msk [vmem:[%s2600 + $0x152] sm:$0xff] %vm1873, %v2535
      %2630 = vst.msk [vmem:[%s2600 + $0x15a] sm:$0xff] %vm1873, %v2536
      %2631 = vst.msk [vmem:[%s2600 + $0x16a] sm:$0xff] %vm1873, %v2537
      %2632 = vst.msk [vmem:[%s2600 + $0x172] sm:$0xff] %vm1873, %v2538
      %v2633 = vld [vmem:[%s2] sm:$0xff]
      %v2634 = vlaneseq
      %v2635 = vshrl.u32 %v2634, 7
      %v2636 = vsub.s32 2, %v2635
      %v2637 = vrot.slane %v400, %v2636
      %v2639 = vsel %vm1873, %v2507, 0
      %v2642 = vsel %vm1873, %v2508, 0
      %v2645 = vsel %vm1873, %v2509, 0
      %v2648 = vsel %vm1873, %v2510, 0
      %v2651 = vsel %vm1873, %v2511, 0
      %v2654 = vsel %vm1873, %v2512, 0
      %v2657 = vsel %vm1873, %v2513, 0
      %v2660 = vsel %vm1873, %v2514, 0
      %v2663 = vsel %vm1873, %v2515, 0
      %v2666 = vsel %vm1873, %v2516, 0
      %v2669 = vsel %vm1873, %v2517, 0
      %v2672 = vsel %vm1873, %v2518, 0
      %v2675 = vsel %vm1873, %v2519, 0
      %v2678 = vsel %vm1873, %v2520, 0
      %v2681 = vsel %vm1873, %v2521, 0
      %v2684 = vsel %vm1873, %v2522, 0
      %v2687 = vsel %vm1873, %v2523, 0
      %v2690 = vsel %vm1873, %v2524, 0
      %v2693 = vsel %vm1873, %v2525, 0
      %v2696 = vsel %vm1873, %v2526, 0
      %v2699 = vsel %vm1873, %v2527, 0
      %v2702 = vsel %vm1873, %v2528, 0
      %v2705 = vsel %vm1873, %v2529, 0
      %v2708 = vsel %vm1873, %v2530, 0
      %v2711 = vsel %vm1873, %v2531, 0
      %v2714 = vsel %vm1873, %v2532, 0
      %v2717 = vsel %vm1873, %v2533, 0
      %v2720 = vsel %vm1873, %v2534, 0
      %v2723 = vsel %vm1873, %v2535, 0
      %v2726 = vsel %vm1873, %v2536, 0
      %v2729 = vsel %vm1873, %v2537, 0
      %v2732 = vsel %vm1873, %v2538, 0
      %2734 = vmatprep.subr.mxu0 0.0
      %2735 = vmatpush1.msra.mxu0 %v2633
      %2736 = vmatprep.subr.mxu0 0.0
      %2737 = vmatpush1.msra.mxu0 0.0
      %2738 = vmatprep.subr.mxu0 0.0
      %2739 = vmatpush1.msra.mxu0 0.0
      %2740 = vmatprep.subr.mxu0 0.0
      %2741 = vmatpush1.msra.mxu0 0.0
      %2742 = vmatprep.subr.mxu0 0.0
      %2743 = vmatpush1.msra.mxu0 0.0
      %2744 = vmatprep.subr.mxu0 0.0
      %2745 = vmatpush1.msra.mxu0 0.0
      %2746 = vmatprep.subr.mxu0 0.0
      %2747 = vmatpush1.msra.mxu0 0.0
      %2748 = vmatprep.subr.mxu0 0.0
      %2749 = vmatpush1.msra.mxu0 0.0
      %2750 = vmatprep.subr.mxu0 0.0
      %2751 = vmatpush1.msra.mxu0 0.0
      %2752 = vmatprep.subr.mxu0 0.0
      %2753 = vmatpush1.msra.mxu0 0.0
      %2754 = vmatprep.subr.mxu0 0.0
      %2755 = vmatpush1.msra.mxu0 0.0
      %2756 = vmatprep.subr.mxu0 0.0
      %2757 = vmatpush1.msra.mxu0 0.0
      %2758 = vmatprep.subr.mxu0 0.0
      %2759 = vmatpush1.msra.mxu0 0.0
      %2760 = vmatprep.subr.mxu0 0.0
      %2761 = vmatpush1.msra.mxu0 0.0
      %2762 = vmatprep.subr.mxu0 0.0
      %2763 = vmatpush1.msra.mxu0 0.0
      %2764 = vmatprep.subr.mxu0 0.0
      %2765 = vmatpush1.msra.mxu0 0.0
      %2766 = vmatprep.subr.mxu0 0.0
      %2767 = vmatpush1.msra.mxu0 0.0
      %2768 = vmatprep.subr.mxu0 0.0
      %2769 = vmatpush1.msra.mxu0 0.0
      %2770 = vmatprep.subr.mxu0 0.0
      %2771 = vmatpush1.msra.mxu0 0.0
      %2772 = vmatprep.subr.mxu0 0.0
      %2773 = vmatpush1.msra.mxu0 0.0
      %2774 = vmatprep.subr.mxu0 0.0
      %2775 = vmatpush1.msra.mxu0 0.0
      %2776 = vmatprep.subr.mxu0 0.0
      %2777 = vmatpush1.msra.mxu0 0.0
      %2778 = vmatprep.subr.mxu0 0.0
      %2779 = vmatpush1.msra.mxu0 0.0
      %2780 = vmatprep.subr.mxu0 0.0
      %2781 = vmatpush1.msra.mxu0 0.0
      %2782 = vmatprep.subr.mxu0 0.0
      %2783 = vmatpush1.msra.mxu0 0.0
      %2784 = vmatprep.subr.mxu0 0.0
      %2785 = vmatpush1.msra.mxu0 0.0
      %2786 = vmatprep.subr.mxu0 0.0
      %2787 = vmatpush1.msra.mxu0 0.0
      %2788 = vmatprep.subr.mxu0 0.0
      %2789 = vmatpush1.msra.mxu0 0.0
      %2790 = vmatprep.subr.mxu0 0.0
      %2791 = vmatpush1.msra.mxu0 0.0
      %2792 = vmatprep.subr.mxu0 0.0
      %2793 = vmatpush1.msra.mxu0 0.0
      %2794 = vmatprep.subr.mxu0 0.0
      %2795 = vmatpush1.msra.mxu0 0.0
      %2796 = vmatprep.subr.mxu0 0.0
      %2797 = vmatpush1.msra.mxu0 0.0
      %2798 = vmatprep.mubr.f32.mxu0 0.0
      %2799 = vmatmul.mubr.f32.gmra.mrb[0].mxu0 %v2639
      %v2800 = vpop.f32.mrb[0].mxu0
      %v2801 = vadd.f32 %v2637, %v2800
      %v2802 = vpop.f32.mrb[0].mxu0
      %2803 = vmatprep.mubr.f32.mxu0 0.0
      %2804 = vmatmul.mubr.f32.gmra.mrb[0].mxu0 %v2642
      %v2805 = vpop.f32.mrb[0].mxu0
      %v2806 = vadd.f32 %v2637, %v2805
      %v2807 = vpop.f32.mrb[0].mxu0
      %2808 = vmatprep.mubr.f32.mxu0 0.0
      %2809 = vmatmul.mubr.f32.gmra.mrb[0].mxu0 %v2645
      %v2810 = vpop.f32.mrb[0].mxu0
      %v2811 = vadd.f32 %v2637, %v2810
      %v2812 = vpop.f32.mrb[0].mxu0
      %2813 = vmatprep.mubr.f32.mxu0 0.0
      %2814 = vmatmul.mubr.f32.gmra.mrb[0].mxu0 %v2648
      %v2815 = vpop.f32.mrb[0].mxu0
      %v2816 = vadd.f32 %v2637, %v2815
      %v2817 = vpop.f32.mrb[0].mxu0
      %2818 = vmatprep.mubr.f32.mxu0 0.0
      %2819 = vmatmul.mubr.f32.gmra.mrb[0].mxu0 %v2651
      %v2820 = vpop.f32.mrb[0].mxu0
      %v2821 = vadd.f32 %v2637, %v2820
      %v2822 = vpop.f32.mrb[0].mxu0
      %2823 = vmatprep.mubr.f32.mxu0 0.0
      %2824 = vmatmul.mubr.f32.gmra.mrb[0].mxu0 %v2654
      %v2825 = vpop.f32.mrb[0].mxu0
      %v2826 = vadd.f32 %v2637, %v2825
      %v2827 = vpop.f32.mrb[0].mxu0
      %2828 = vmatprep.mubr.f32.mxu0 0.0
      %2829 = vmatmul.mubr.f32.gmra.mrb[0].mxu0 %v2657
      %v2830 = vpop.f32.mrb[0].mxu0
      %v2831 = vadd.f32 %v2637, %v2830
      %v2832 = vpop.f32.mrb[0].mxu0
      %2833 = vmatprep.mubr.f32.mxu0 0.0
      %2834 = vmatmul.mubr.f32.gmra.mrb[0].mxu0 %v2660
      %v2835 = vpop.f32.mrb[0].mxu0
      %v2836 = vadd.f32 %v2637, %v2835
      %v2837 = vpop.f32.mrb[0].mxu0
      %2838 = vmatprep.mubr.f32.mxu0 0.0
      %2839 = vmatmul.mubr.f32.gmra.mrb[0].mxu0 %v2663
      %v2840 = vpop.f32.mrb[0].mxu0
      %v2841 = vadd.f32 %v2637, %v2840
      %v2842 = vpop.f32.mrb[0].mxu0
      %2843 = vmatprep.mubr.f32.mxu0 0.0
      %2844 = vmatmul.mubr.f32.gmra.mrb[0].mxu0 %v2666
      %v2845 = vpop.f32.mrb[0].mxu0
      %v2846 = vadd.f32 %v2637, %v2845
      %v2847 = vpop.f32.mrb[0].mxu0
      %2848 = vmatprep.mubr.f32.mxu0 0.0
      %2849 = vmatmul.mubr.f32.gmra.mrb[0].mxu0 %v2669
      %v2850 = vpop.f32.mrb[0].mxu0
      %v2851 = vadd.f32 %v2637, %v2850
      %v2852 = vpop.f32.mrb[0].mxu0
      %2853 = vmatprep.mubr.f32.mxu0 0.0
      %2854 = vmatmul.mubr.f32.gmra.mrb[0].mxu0 %v2672
      %v2855 = vpop.f32.mrb[0].mxu0
      %v2856 = vadd.f32 %v2637, %v2855
      %v2857 = vpop.f32.mrb[0].mxu0
      %2858 = vmatprep.mubr.f32.mxu0 0.0
      %2859 = vmatmul.mubr.f32.gmra.mrb[0].mxu0 %v2675
      %v2860 = vpop.f32.mrb[0].mxu0
      %v2861 = vadd.f32 %v2637, %v2860
      %v2862 = vpop.f32.mrb[0].mxu0
      %2863 = vmatprep.mubr.f32.mxu0 0.0
      %2864 = vmatmul.mubr.f32.gmra.mrb[0].mxu0 %v2678
      %v2865 = vpop.f32.mrb[0].mxu0
      %v2866 = vadd.f32 %v2637, %v2865
      %v2867 = vpop.f32.mrb[0].mxu0
      %2868 = vmatprep.mubr.f32.mxu0 0.0
      %2869 = vmatmul.mubr.f32.gmra.mrb[0].mxu0 %v2681
      %v2870 = vpop.f32.mrb[0].mxu0
      %v2871 = vadd.f32 %v2637, %v2870
      %v2872 = vpop.f32.mrb[0].mxu0
      %2873 = vmatprep.mubr.f32.mxu0 0.0
      %2874 = vmatmul.mubr.f32.gmra.mrb[0].mxu0 %v2684
      %v2875 = vpop.f32.mrb[0].mxu0
      %v2876 = vadd.f32 %v2637, %v2875
      %v2877 = vpop.f32.mrb[0].mxu0
      %2878 = vmatprep.mubr.f32.mxu0 0.0
      %2879 = vmatmul.mubr.f32.gmra.mrb[0].mxu0 %v2687
      %v2880 = vpop.f32.mrb[0].mxu0
      %v2881 = vadd.f32 %v2637, %v2880
      %v2882 = vpop.f32.mrb[0].mxu0
      %2883 = vmatprep.mubr.f32.mxu0 0.0
      %2884 = vmatmul.mubr.f32.gmra.mrb[0].mxu0 %v2690
      %v2885 = vpop.f32.mrb[0].mxu0
      %v2886 = vadd.f32 %v2637, %v2885
      %v2887 = vpop.f32.mrb[0].mxu0
      %2888 = vmatprep.mubr.f32.mxu0 0.0
      %2889 = vmatmul.mubr.f32.gmra.mrb[0].mxu0 %v2693
      %v2890 = vpop.f32.mrb[0].mxu0
      %v2891 = vadd.f32 %v2637, %v2890
      %v2892 = vpop.f32.mrb[0].mxu0
      %2893 = vmatprep.mubr.f32.mxu0 0.0
      %2894 = vmatmul.mubr.f32.gmra.mrb[0].mxu0 %v2696
      %v2895 = vpop.f32.mrb[0].mxu0
      %v2896 = vadd.f32 %v2637, %v2895
      %v2897 = vpop.f32.mrb[0].mxu0
      %2898 = vmatprep.mubr.f32.mxu0 0.0
      %2899 = vmatmul.mubr.f32.gmra.mrb[0].mxu0 %v2699
      %v2900 = vpop.f32.mrb[0].mxu0
      %v2901 = vadd.f32 %v2637, %v2900
      %v2902 = vpop.f32.mrb[0].mxu0
      %2903 = vmatprep.mubr.f32.mxu0 0.0
      %2904 = vmatmul.mubr.f32.gmra.mrb[0].mxu0 %v2702
      %v2905 = vpop.f32.mrb[0].mxu0
      %v2906 = vadd.f32 %v2637, %v2905
      %v2907 = vpop.f32.mrb[0].mxu0
      %2908 = vmatprep.mubr.f32.mxu0 0.0
      %2909 = vmatmul.mubr.f32.gmra.mrb[0].mxu0 %v2705
      %v2910 = vpop.f32.mrb[0].mxu0
      %v2911 = vadd.f32 %v2637, %v2910
      %v2912 = vpop.f32.mrb[0].mxu0
      %2913 = vmatprep.mubr.f32.mxu0 0.0
      %2914 = vmatmul.mubr.f32.gmra.mrb[0].mxu0 %v2708
      %v2915 = vpop.f32.mrb[0].mxu0
      %v2916 = vadd.f32 %v2637, %v2915
      %v2917 = vpop.f32.mrb[0].mxu0
      %2918 = vmatprep.mubr.f32.mxu0 0.0
      %2919 = vmatmul.mubr.f32.gmra.mrb[0].mxu0 %v2711
      %v2920 = vpop.f32.mrb[0].mxu0
      %v2921 = vadd.f32 %v2637, %v2920
      %v2922 = vpop.f32.mrb[0].mxu0
      %2923 = vmatprep.mubr.f32.mxu0 0.0
      %2924 = vmatmul.mubr.f32.gmra.mrb[0].mxu0 %v2714
      %v2925 = vpop.f32.mrb[0].mxu0
      %v2926 = vadd.f32 %v2637, %v2925
      %v2927 = vpop.f32.mrb[0].mxu0
      %2928 = vmatprep.mubr.f32.mxu0 0.0
      %2929 = vmatmul.mubr.f32.gmra.mrb[0].mxu0 %v2717
      %v2930 = vpop.f32.mrb[0].mxu0
      %v2931 = vadd.f32 %v2637, %v2930
      %v2932 = vpop.f32.mrb[0].mxu0
      %2933 = vmatprep.mubr.f32.mxu0 0.0
      %2934 = vmatmul.mubr.f32.gmra.mrb[0].mxu0 %v2720
      %v2935 = vpop.f32.mrb[0].mxu0
      %v2936 = vadd.f32 %v2637, %v2935
      %v2937 = vpop.f32.mrb[0].mxu0
      %2938 = vmatprep.mubr.f32.mxu0 0.0
      %2939 = vmatmul.mubr.f32.gmra.mrb[0].mxu0 %v2723
      %v2940 = vpop.f32.mrb[0].mxu0
      %v2941 = vadd.f32 %v2637, %v2940
      %v2942 = vpop.f32.mrb[0].mxu0
      %2943 = vmatprep.mubr.f32.mxu0 0.0
      %2944 = vmatmul.mubr.f32.gmra.mrb[0].mxu0 %v2726
      %v2945 = vpop.f32.mrb[0].mxu0
      %v2946 = vadd.f32 %v2637, %v2945
      %v2947 = vpop.f32.mrb[0].mxu0
      %2948 = vmatprep.mubr.f32.mxu0 0.0
      %2949 = vmatmul.mubr.f32.gmra.mrb[0].mxu0 %v2729
      %v2950 = vpop.f32.mrb[0].mxu0
      %v2951 = vadd.f32 %v2637, %v2950
      %v2952 = vpop.f32.mrb[0].mxu0
      %2953 = vmatprep.mubr.f32.mxu0 0.0
      %2954 = vmatmul.mubr.f32.gmra.mrb[0].mxu0 %v2732
      %v2955 = vpop.f32.mrb[0].mxu0
      %v2956 = vadd.f32 %v2637, %v2955
      %v2957 = vpop.f32.mrb[0].mxu0
      %2958 = vdwg.mxu0
      %v2959 = vmax.f32 %v2801, 0.0
      %v2960 = vmax.f32 %v2806, 0.0
      %v2961 = vmax.f32 %v2811, 0.0
      %v2962 = vmax.f32 %v2816, 0.0
      %v2963 = vmax.f32 %v2821, 0.0
      %v2964 = vmax.f32 %v2826, 0.0
      %v2965 = vmax.f32 %v2831, 0.0
      %v2966 = vmax.f32 %v2836, 0.0
      %v2967 = vmax.f32 %v2841, 0.0
      %v2968 = vmax.f32 %v2846, 0.0
      %v2969 = vmax.f32 %v2851, 0.0
      %v2970 = vmax.f32 %v2856, 0.0
      %v2971 = vmax.f32 %v2861, 0.0
      %v2972 = vmax.f32 %v2866, 0.0
      %v2973 = vmax.f32 %v2871, 0.0
      %v2974 = vmax.f32 %v2876, 0.0
      %v2975 = vmax.f32 %v2881, 0.0
      %v2976 = vmax.f32 %v2886, 0.0
      %v2977 = vmax.f32 %v2891, 0.0
      %v2978 = vmax.f32 %v2896, 0.0
      %v2979 = vmax.f32 %v2901, 0.0
      %v2980 = vmax.f32 %v2906, 0.0
      %v2981 = vmax.f32 %v2911, 0.0
      %v2982 = vmax.f32 %v2916, 0.0
      %v2983 = vmax.f32 %v2921, 0.0
      %v2984 = vmax.f32 %v2926, 0.0
      %v2985 = vmax.f32 %v2931, 0.0
      %v2986 = vmax.f32 %v2936, 0.0
      %v2987 = vmax.f32 %v2941, 0.0
      %v2988 = vmax.f32 %v2946, 0.0
      %v2989 = vmax.f32 %v2951, 0.0
      %v2990 = vmax.f32 %v2956, 0.0
      %v2991 = vld [vmem:[#allocation3] sm:$0xff]
      %v2992 = vld [vmem:[#allocation3 + $0x8] sm:$0xff]
      %v2993 = vld [vmem:[#allocation3 + $0x18] sm:$0xff]
      %v2994 = vld [vmem:[#allocation3 + $0x20] sm:$0xff]
      %v2995 = vld [vmem:[#allocation3 + $0x30] sm:$0xff]
      %v2996 = vld [vmem:[#allocation3 + $0x38] sm:$0xff]
      %v2997 = vld [vmem:[#allocation3 + $0x48] sm:$0xff]
      %v2998 = vld [vmem:[#allocation3 + $0x50] sm:$0xff]
      %v2999 = vld [vmem:[#allocation3 + $0x60] sm:$0xff]
      %v3000 = vld [vmem:[#allocation3 + $0x68] sm:$0xff]
      %v3001 = vld [vmem:[#allocation3 + $0x78] sm:$0xff]
      %v3002 = vld [vmem:[#allocation3 + $0x80] sm:$0xff]
      %v3003 = vld [vmem:[#allocation3 + $0x90] sm:$0xff]
      %v3004 = vld [vmem:[#allocation3 + $0x98] sm:$0xff]
      %v3005 = vld [vmem:[#allocation3 + $0xa8] sm:$0xff]
      %v3006 = vld [vmem:[#allocation3 + $0xb0] sm:$0xff]
      %v3007 = vld [vmem:[#allocation3 + $0xc0] sm:$0xff]
      %v3008 = vld [vmem:[#allocation3 + $0xc8] sm:$0xff]
      %v3009 = vld [vmem:[#allocation3 + $0xd8] sm:$0xff]
      %v3010 = vld [vmem:[#allocation3 + $0xe0] sm:$0xff]
      %v3011 = vld [vmem:[#allocation3 + $0xf0] sm:$0xff]
      %v3012 = vld [vmem:[#allocation3 + $0xf8] sm:$0xff]
      %v3013 = vld [vmem:[#allocation3 + $0x108] sm:$0xff]
      %v3014 = vld [vmem:[#allocation3 + $0x110] sm:$0xff]
      %v3015 = vld [vmem:[#allocation3 + $0x120] sm:$0xff]
      %v3016 = vld [vmem:[#allocation3 + $0x128] sm:$0xff]
      %v3017 = vld [vmem:[#allocation3 + $0x138] sm:$0xff]
      %v3018 = vld [vmem:[#allocation3 + $0x140] sm:$0xff]
      %v3019 = vld [vmem:[#allocation3 + $0x150] sm:$0xff]
      %v3020 = vld [vmem:[#allocation3 + $0x158] sm:$0xff]
      %v3021 = vld [vmem:[#allocation3 + $0x168] sm:$0xff]
      %v3022 = vld [vmem:[#allocation3 + $0x170] sm:$0xff]
      %v3023 = vld [vmem:[#allocation3 + $0x2] sm:$0xff]
      %v3024 = vld [vmem:[#allocation3 + $0xa] sm:$0xff]
      %v3025 = vld [vmem:[#allocation3 + $0x1a] sm:$0xff]
      %v3026 = vld [vmem:[#allocation3 + $0x22] sm:$0xff]
      %v3027 = vld [vmem:[#allocation3 + $0x32] sm:$0xff]
      %v3028 = vld [vmem:[#allocation3 + $0x3a] sm:$0xff]
      %v3029 = vld [vmem:[#allocation3 + $0x4a] sm:$0xff]
      %v3030 = vld [vmem:[#allocation3 + $0x52] sm:$0xff]
      %v3031 = vld [vmem:[#allocation3 + $0x62] sm:$0xff]
      %v3032 = vld [vmem:[#allocation3 + $0x6a] sm:$0xff]
      %v3033 = vld [vmem:[#allocation3 + $0x7a] sm:$0xff]
      %v3034 = vld [vmem:[#allocation3 + $0x82] sm:$0xff]
      %v3035 = vld [vmem:[#allocation3 + $0x92] sm:$0xff]
      %v3036 = vld [vmem:[#allocation3 + $0x9a] sm:$0xff]
      %v3037 = vld [vmem:[#allocation3 + $0xaa] sm:$0xff]
      %v3038 = vld [vmem:[#allocation3 + $0xb2] sm:$0xff]
      %v3039 = vld [vmem:[#allocation3 + $0xc2] sm:$0xff]
      %v3040 = vld [vmem:[#allocation3 + $0xca] sm:$0xff]
      %v3041 = vld [vmem:[#allocation3 + $0xda] sm:$0xff]
      %v3042 = vld [vmem:[#allocation3 + $0xe2] sm:$0xff]
      %v3043 = vld [vmem:[#allocation3 + $0xf2] sm:$0xff]
      %v3044 = vld [vmem:[#allocation3 + $0xfa] sm:$0xff]
      %v3045 = vld [vmem:[#allocation3 + $0x10a] sm:$0xff]
      %v3046 = vld [vmem:[#allocation3 + $0x112] sm:$0xff]
      %v3047 = vld [vmem:[#allocation3 + $0x122] sm:$0xff]
      %v3048 = vld [vmem:[#allocation3 + $0x12a] sm:$0xff]
      %v3049 = vld [vmem:[#allocation3 + $0x13a] sm:$0xff]
      %v3050 = vld [vmem:[#allocation3 + $0x142] sm:$0xff]
      %v3051 = vld [vmem:[#allocation3 + $0x152] sm:$0xff]
      %v3052 = vld [vmem:[#allocation3 + $0x15a] sm:$0xff]
      %v3053 = vld [vmem:[#allocation3 + $0x16a] sm:$0xff]
      %v3054 = vld [vmem:[#allocation3 + $0x172] sm:$0xff]
      %v3055 = vld [vmem:[#allocation3 + $0x4] sm:$0xff]
      %v3056 = vld [vmem:[#allocation3 + $0xc] sm:$0xff]
      %v3057 = vld [vmem:[#allocation3 + $0x1c] sm:$0xff]
      %v3058 = vld [vmem:[#allocation3 + $0x24] sm:$0xff]
      %v3059 = vld [vmem:[#allocation3 + $0x34] sm:$0xff]
      %v3060 = vld [vmem:[#allocation3 + $0x3c] sm:$0xff]
      %v3061 = vld [vmem:[#allocation3 + $0x4c] sm:$0xff]
      %v3062 = vld [vmem:[#allocation3 + $0x54] sm:$0xff]
      %v3063 = vld [vmem:[#allocation3 + $0x64] sm:$0xff]
      %v3064 = vld [vmem:[#allocation3 + $0x6c] sm:$0xff]
      %v3065 = vld [vmem:[#allocation3 + $0x7c] sm:$0xff]
      %v3066 = vld [vmem:[#allocation3 + $0x84] sm:$0xff]
      %v3067 = vld [vmem:[#allocation3 + $0x94] sm:$0xff]
      %v3068 = vld [vmem:[#allocation3 + $0x9c] sm:$0xff]
      %v3069 = vld [vmem:[#allocation3 + $0xac] sm:$0xff]
      %v3070 = vld [vmem:[#allocation3 + $0xb4] sm:$0xff]
      %v3071 = vld [vmem:[#allocation3 + $0xc4] sm:$0xff]
      %v3072 = vld [vmem:[#allocation3 + $0xcc] sm:$0xff]
      %v3073 = vld [vmem:[#allocation3 + $0xdc] sm:$0xff]
      %v3074 = vld [vmem:[#allocation3 + $0xe4] sm:$0xff]
      %v3075 = vld [vmem:[#allocation3 + $0xf4] sm:$0xff]
      %v3076 = vld [vmem:[#allocation3 + $0xfc] sm:$0xff]
      %v3077 = vld [vmem:[#allocation3 + $0x10c] sm:$0xff]
      %v3078 = vld [vmem:[#allocation3 + $0x114] sm:$0xff]
      %v3079 = vld [vmem:[#allocation3 + $0x124] sm:$0xff]
      %v3080 = vld [vmem:[#allocation3 + $0x12c] sm:$0xff]
      %v3081 = vld [vmem:[#allocation3 + $0x13c] sm:$0xff]
      %v3082 = vld [vmem:[#allocation3 + $0x144] sm:$0xff]
      %v3083 = vld [vmem:[#allocation3 + $0x154] sm:$0xff]
      %v3084 = vld [vmem:[#allocation3 + $0x15c] sm:$0xff]
      %v3085 = vld [vmem:[#allocation3 + $0x16c] sm:$0xff]
      %v3086 = vld [vmem:[#allocation3 + $0x174] sm:$0xff]
      %v3087 = vld [vmem:[%s2600] sm:$0xff]
      %v3088 = vld [vmem:[%s2600 + $0x8] sm:$0xff]
      %v3089 = vld [vmem:[%s2600 + $0x18] sm:$0xff]
      %v3090 = vld [vmem:[%s2600 + $0x20] sm:$0xff]
      %v3091 = vld [vmem:[%s2600 + $0x30] sm:$0xff]
      %v3092 = vld [vmem:[%s2600 + $0x38] sm:$0xff]
      %v3093 = vld [vmem:[%s2600 + $0x48] sm:$0xff]
      %v3094 = vld [vmem:[%s2600 + $0x50] sm:$0xff]
      %v3095 = vld [vmem:[%s2600 + $0x60] sm:$0xff]
      %v3096 = vld [vmem:[%s2600 + $0x68] sm:$0xff]
      %v3097 = vld [vmem:[%s2600 + $0x78] sm:$0xff]
      %v3098 = vld [vmem:[%s2600 + $0x80] sm:$0xff]
      %v3099 = vld [vmem:[%s2600 + $0x90] sm:$0xff]
      %v3100 = vld [vmem:[%s2600 + $0x98] sm:$0xff]
      %v3101 = vld [vmem:[%s2600 + $0xa8] sm:$0xff]
      %v3102 = vld [vmem:[%s2600 + $0xb0] sm:$0xff]
      %v3103 = vld [vmem:[%s2600 + $0xc0] sm:$0xff]
      %v3104 = vld [vmem:[%s2600 + $0xc8] sm:$0xff]
      %v3105 = vld [vmem:[%s2600 + $0xd8] sm:$0xff]
      %v3106 = vld [vmem:[%s2600 + $0xe0] sm:$0xff]
      %v3107 = vld [vmem:[%s2600 + $0xf0] sm:$0xff]
      %v3108 = vld [vmem:[%s2600 + $0xf8] sm:$0xff]
      %v3109 = vld [vmem:[%s2600 + $0x108] sm:$0xff]
      %v3110 = vld [vmem:[%s2600 + $0x110] sm:$0xff]
      %v3111 = vld [vmem:[%s2600 + $0x120] sm:$0xff]
      %v3112 = vld [vmem:[%s2600 + $0x128] sm:$0xff]
      %v3113 = vld [vmem:[%s2600 + $0x138] sm:$0xff]
      %v3114 = vld [vmem:[%s2600 + $0x140] sm:$0xff]
      %v3115 = vld [vmem:[%s2600 + $0x150] sm:$0xff]
      %v3116 = vld [vmem:[%s2600 + $0x158] sm:$0xff]
      %v3117 = vld [vmem:[%s2600 + $0x168] sm:$0xff]
      %v3118 = vld [vmem:[%s2600 + $0x170] sm:$0xff]
      %v3119 = vld [vmem:[%s2600 + $0x2] sm:$0xff]
      %v3120 = vld [vmem:[%s2600 + $0xa] sm:$0xff]
      %v3121 = vld [vmem:[%s2600 + $0x1a] sm:$0xff]
      %v3122 = vld [vmem:[%s2600 + $0x22] sm:$0xff]
      %v3123 = vld [vmem:[%s2600 + $0x32] sm:$0xff]
      %v3124 = vld [vmem:[%s2600 + $0x3a] sm:$0xff]
      %v3125 = vld [vmem:[%s2600 + $0x4a] sm:$0xff]
      %v3126 = vld [vmem:[%s2600 + $0x52] sm:$0xff]
      %v3127 = vld [vmem:[%s2600 + $0x62] sm:$0xff]
      %v3128 = vld [vmem:[%s2600 + $0x6a] sm:$0xff]
      %v3129 = vld [vmem:[%s2600 + $0x7a] sm:$0xff]
      %v3130 = vld [vmem:[%s2600 + $0x82] sm:$0xff]
      %v3131 = vld [vmem:[%s2600 + $0x92] sm:$0xff]
      %v3132 = vld [vmem:[%s2600 + $0x9a] sm:$0xff]
      %v3133 = vld [vmem:[%s2600 + $0xaa] sm:$0xff]
      %v3134 = vld [vmem:[%s2600 + $0xb2] sm:$0xff]
      %v3135 = vld [vmem:[%s2600 + $0xc2] sm:$0xff]
      %v3136 = vld [vmem:[%s2600 + $0xca] sm:$0xff]
      %v3137 = vld [vmem:[%s2600 + $0xda] sm:$0xff]
      %v3138 = vld [vmem:[%s2600 + $0xe2] sm:$0xff]
      %v3139 = vld [vmem:[%s2600 + $0xf2] sm:$0xff]
      %v3140 = vld [vmem:[%s2600 + $0xfa] sm:$0xff]
      %v3141 = vld [vmem:[%s2600 + $0x10a] sm:$0xff]
      %v3142 = vld [vmem:[%s2600 + $0x112] sm:$0xff]
      %v3143 = vld [vmem:[%s2600 + $0x122] sm:$0xff]
      %v3144 = vld [vmem:[%s2600 + $0x12a] sm:$0xff]
      %v3145 = vld [vmem:[%s2600 + $0x13a] sm:$0xff]
      %v3146 = vld [vmem:[%s2600 + $0x142] sm:$0xff]
      %v3147 = vld [vmem:[%s2600 + $0x152] sm:$0xff]
      %v3148 = vld [vmem:[%s2600 + $0x15a] sm:$0xff]
      %v3149 = vld [vmem:[%s2600 + $0x16a] sm:$0xff]
      %v3150 = vld [vmem:[%s2600 + $0x172] sm:$0xff]
      %v3151 = vld [vmem:[%s2600 + $0x4] sm:$0xff]
      %v3152 = vld [vmem:[%s2600 + $0xc] sm:$0xff]
      %v3153 = vld [vmem:[%s2600 + $0x1c] sm:$0xff]
      %v3154 = vld [vmem:[%s2600 + $0x24] sm:$0xff]
      %v3155 = vld [vmem:[%s2600 + $0x34] sm:$0xff]
      %v3156 = vld [vmem:[%s2600 + $0x3c] sm:$0xff]
      %v3157 = vld [vmem:[%s2600 + $0x4c] sm:$0xff]
      %v3158 = vld [vmem:[%s2600 + $0x54] sm:$0xff]
      %v3159 = vld [vmem:[%s2600 + $0x64] sm:$0xff]
      %v3160 = vld [vmem:[%s2600 + $0x6c] sm:$0xff]
      %v3161 = vld [vmem:[%s2600 + $0x7c] sm:$0xff]
      %v3162 = vld [vmem:[%s2600 + $0x84] sm:$0xff]
      %v3163 = vld [vmem:[%s2600 + $0x94] sm:$0xff]
      %v3164 = vld [vmem:[%s2600 + $0x9c] sm:$0xff]
      %v3165 = vld [vmem:[%s2600 + $0xac] sm:$0xff]
      %v3166 = vld [vmem:[%s2600 + $0xb4] sm:$0xff]
      %v3167 = vld [vmem:[%s2600 + $0xc4] sm:$0xff]
      %v3168 = vld [vmem:[%s2600 + $0xcc] sm:$0xff]
      %v3169 = vld [vmem:[%s2600 + $0xdc] sm:$0xff]
      %v3170 = vld [vmem:[%s2600 + $0xe4] sm:$0xff]
      %v3171 = vld [vmem:[%s2600 + $0xf4] sm:$0xff]
      %v3172 = vld [vmem:[%s2600 + $0xfc] sm:$0xff]
      %v3173 = vld [vmem:[%s2600 + $0x10c] sm:$0xff]
      %v3174 = vld [vmem:[%s2600 + $0x114] sm:$0xff]
      %v3175 = vld [vmem:[%s2600 + $0x124] sm:$0xff]
      %v3176 = vld [vmem:[%s2600 + $0x12c] sm:$0xff]
      %v3177 = vld [vmem:[%s2600 + $0x13c] sm:$0xff]
      %v3178 = vld [vmem:[%s2600 + $0x144] sm:$0xff]
      %v3179 = vld [vmem:[%s2600 + $0x154] sm:$0xff]
      %v3180 = vld [vmem:[%s2600 + $0x15c] sm:$0xff]
      %v3181 = vld [vmem:[%s2600 + $0x16c] sm:$0xff]
      %v3182 = vld [vmem:[%s2600 + $0x174] sm:$0xff]
      %s3183 = scalar_lea.vmem [#allocation3], 96
      %v3184 = vld [vmem:[%s3183] sm:$0xff]
      %v3185 = vld [vmem:[%s3183 + $0x8] sm:$0xff]
      %v3186 = vld [vmem:[%s3183 + $0x18] sm:$0xff]
      %v3187 = vld [vmem:[%s3183 + $0x20] sm:$0xff]
      %v3188 = vld [vmem:[%s3183 + $0x30] sm:$0xff]
      %v3189 = vld [vmem:[%s3183 + $0x38] sm:$0xff]
      %v3190 = vld [vmem:[%s3183 + $0x48] sm:$0xff]
      %v3191 = vld [vmem:[%s3183 + $0x50] sm:$0xff]
      %v3192 = vld [vmem:[%s3183 + $0x60] sm:$0xff]
      %v3193 = vld [vmem:[%s3183 + $0x68] sm:$0xff]
      %v3194 = vld [vmem:[%s3183 + $0x78] sm:$0xff]
      %v3195 = vld [vmem:[%s3183 + $0x80] sm:$0xff]
      %v3196 = vld [vmem:[%s3183 + $0x90] sm:$0xff]
      %v3197 = vld [vmem:[%s3183 + $0x98] sm:$0xff]
      %v3198 = vld [vmem:[%s3183 + $0xa8] sm:$0xff]
      %v3199 = vld [vmem:[%s3183 + $0xb0] sm:$0xff]
      %v3200 = vld [vmem:[%s3183 + $0xc0] sm:$0xff]
      %v3201 = vld [vmem:[%s3183 + $0xc8] sm:$0xff]
      %v3202 = vld [vmem:[%s3183 + $0xd8] sm:$0xff]
      %v3203 = vld [vmem:[%s3183 + $0xe0] sm:$0xff]
      %v3204 = vld [vmem:[%s3183 + $0xf0] sm:$0xff]
      %v3205 = vld [vmem:[%s3183 + $0xf8] sm:$0xff]
      %v3206 = vld [vmem:[%s3183 + $0x108] sm:$0xff]
      %v3207 = vld [vmem:[%s3183 + $0x110] sm:$0xff]
      %v3208 = vld [vmem:[%s3183 + $0x120] sm:$0xff]
      %v3209 = vld [vmem:[%s3183 + $0x128] sm:$0xff]
      %v3210 = vld [vmem:[%s3183 + $0x138] sm:$0xff]
      %v3211 = vld [vmem:[%s3183 + $0x140] sm:$0xff]
      %v3212 = vld [vmem:[%s3183 + $0x150] sm:$0xff]
      %v3213 = vld [vmem:[%s3183 + $0x158] sm:$0xff]
      %v3214 = vld [vmem:[%s3183 + $0x168] sm:$0xff]
      %v3215 = vld [vmem:[%s3183 + $0x170] sm:$0xff]
      %v3216 = vld [vmem:[%s3183 + $0x2] sm:$0xff]
      %v3217 = vld [vmem:[%s3183 + $0xa] sm:$0xff]
      %v3218 = vld [vmem:[%s3183 + $0x1a] sm:$0xff]
      %v3219 = vld [vmem:[%s3183 + $0x22] sm:$0xff]
      %v3220 = vld [vmem:[%s3183 + $0x32] sm:$0xff]
      %v3221 = vld [vmem:[%s3183 + $0x3a] sm:$0xff]
      %v3222 = vld [vmem:[%s3183 + $0x4a] sm:$0xff]
      %v3223 = vld [vmem:[%s3183 + $0x52] sm:$0xff]
      %v3224 = vld [vmem:[%s3183 + $0x62] sm:$0xff]
      %v3225 = vld [vmem:[%s3183 + $0x6a] sm:$0xff]
      %v3226 = vld [vmem:[%s3183 + $0x7a] sm:$0xff]
      %v3227 = vld [vmem:[%s3183 + $0x82] sm:$0xff]
      %v3228 = vld [vmem:[%s3183 + $0x92] sm:$0xff]
      %v3229 = vld [vmem:[%s3183 + $0x9a] sm:$0xff]
      %v3230 = vld [vmem:[%s3183 + $0xaa] sm:$0xff]
      %v3231 = vld [vmem:[%s3183 + $0xb2] sm:$0xff]
      %v3232 = vld [vmem:[%s3183 + $0xc2] sm:$0xff]
      %v3233 = vld [vmem:[%s3183 + $0xca] sm:$0xff]
      %v3234 = vld [vmem:[%s3183 + $0xda] sm:$0xff]
      %v3235 = vld [vmem:[%s3183 + $0xe2] sm:$0xff]
      %v3236 = vld [vmem:[%s3183 + $0xf2] sm:$0xff]
      %v3237 = vld [vmem:[%s3183 + $0xfa] sm:$0xff]
      %v3238 = vld [vmem:[%s3183 + $0x10a] sm:$0xff]
      %v3239 = vld [vmem:[%s3183 + $0x112] sm:$0xff]
      %v3240 = vld [vmem:[%s3183 + $0x122] sm:$0xff]
      %v3241 = vld [vmem:[%s3183 + $0x12a] sm:$0xff]
      %v3242 = vld [vmem:[%s3183 + $0x13a] sm:$0xff]
      %v3243 = vld [vmem:[%s3183 + $0x142] sm:$0xff]
      %v3244 = vld [vmem:[%s3183 + $0x152] sm:$0xff]
      %v3245 = vld [vmem:[%s3183 + $0x15a] sm:$0xff]
      %v3246 = vld [vmem:[%s3183 + $0x16a] sm:$0xff]
      %v3247 = vld [vmem:[%s3183 + $0x172] sm:$0xff]
      %v3248 = vld [vmem:[%s3183 + $0x4] sm:$0xff]
      %v3249 = vld [vmem:[%s3183 + $0xc] sm:$0xff]
      %v3250 = vld [vmem:[%s3183 + $0x1c] sm:$0xff]
      %v3251 = vld [vmem:[%s3183 + $0x24] sm:$0xff]
      %v3252 = vld [vmem:[%s3183 + $0x34] sm:$0xff]
      %v3253 = vld [vmem:[%s3183 + $0x3c] sm:$0xff]
      %v3254 = vld [vmem:[%s3183 + $0x4c] sm:$0xff]
      %v3255 = vld [vmem:[%s3183 + $0x54] sm:$0xff]
      %v3256 = vld [vmem:[%s3183 + $0x64] sm:$0xff]
      %v3257 = vld [vmem:[%s3183 + $0x6c] sm:$0xff]
      %v3258 = vld [vmem:[%s3183 + $0x7c] sm:$0xff]
      %v3259 = vld [vmem:[%s3183 + $0x84] sm:$0xff]
      %v3260 = vld [vmem:[%s3183 + $0x94] sm:$0xff]
      %v3261 = vld [vmem:[%s3183 + $0x9c] sm:$0xff]
      %v3262 = vld [vmem:[%s3183 + $0xac] sm:$0xff]
      %v3263 = vld [vmem:[%s3183 + $0xb4] sm:$0xff]
      %v3264 = vld [vmem:[%s3183 + $0xc4] sm:$0xff]
      %v3265 = vld [vmem:[%s3183 + $0xcc] sm:$0xff]
      %v3266 = vld [vmem:[%s3183 + $0xdc] sm:$0xff]
      %v3267 = vld [vmem:[%s3183 + $0xe4] sm:$0xff]
      %v3268 = vld [vmem:[%s3183 + $0xf4] sm:$0xff]
      %v3269 = vld [vmem:[%s3183 + $0xfc] sm:$0xff]
      %v3270 = vld [vmem:[%s3183 + $0x10c] sm:$0xff]
      %v3271 = vld [vmem:[%s3183 + $0x114] sm:$0xff]
      %v3272 = vld [vmem:[%s3183 + $0x124] sm:$0xff]
      %v3273 = vld [vmem:[%s3183 + $0x12c] sm:$0xff]
      %v3274 = vld [vmem:[%s3183 + $0x13c] sm:$0xff]
      %v3275 = vld [vmem:[%s3183 + $0x144] sm:$0xff]
      %v3276 = vld [vmem:[%s3183 + $0x154] sm:$0xff]
      %v3277 = vld [vmem:[%s3183 + $0x15c] sm:$0xff]
      %v3278 = vld [vmem:[%s3183 + $0x16c] sm:$0xff]
      %v3279 = vld [vmem:[%s3183 + $0x174] sm:$0xff]
      %3312 = vrot.lane.b32.xlu0 %v3023, 8
      %v3313 = vpop.permute.xlu0 %3312
      %3314 = vrot.lane.b32.xlu0 %v3024, 8
      %v3315 = vpop.permute.xlu0 %3314
      %3316 = vrot.lane.b32.xlu0 %v3025, 8
      %v3317 = vpop.permute.xlu0 %3316
      %3318 = vrot.lane.b32.xlu0 %v3026, 8
      %v3319 = vpop.permute.xlu0 %3318
      %3320 = vrot.lane.b32.xlu0 %v3027, 8
      %v3321 = vpop.permute.xlu0 %3320
      %3322 = vrot.lane.b32.xlu0 %v3028, 8
      %v3323 = vpop.permute.xlu0 %3322
      %3324 = vrot.lane.b32.xlu0 %v3029, 8
      %v3325 = vpop.permute.xlu0 %3324
      %3326 = vrot.lane.b32.xlu0 %v3030, 8
      %v3327 = vpop.permute.xlu0 %3326
      %3328 = vrot.lane.b32.xlu0 %v3031, 8
      %v3329 = vpop.permute.xlu0 %3328
      %3330 = vrot.lane.b32.xlu0 %v3032, 8
      %v3331 = vpop.permute.xlu0 %3330
      %3332 = vrot.lane.b32.xlu0 %v3033, 8
      %v3333 = vpop.permute.xlu0 %3332
      %3334 = vrot.lane.b32.xlu0 %v3034, 8
      %v3335 = vpop.permute.xlu0 %3334
      %3336 = vrot.lane.b32.xlu0 %v3035, 8
      %v3337 = vpop.permute.xlu0 %3336
      %3338 = vrot.lane.b32.xlu0 %v3036, 8
      %v3339 = vpop.permute.xlu0 %3338
      %3340 = vrot.lane.b32.xlu0 %v3037, 8
      %v3341 = vpop.permute.xlu0 %3340
      %3342 = vrot.lane.b32.xlu0 %v3038, 8
      %v3343 = vpop.permute.xlu0 %3342
      %3344 = vrot.lane.b32.xlu0 %v3039, 8
      %v3345 = vpop.permute.xlu0 %3344
      %3346 = vrot.lane.b32.xlu0 %v3040, 8
      %v3347 = vpop.permute.xlu0 %3346
      %3348 = vrot.lane.b32.xlu0 %v3041, 8
      %v3349 = vpop.permute.xlu0 %3348
      %3350 = vrot.lane.b32.xlu0 %v3042, 8
      %v3351 = vpop.permute.xlu0 %3350
      %3352 = vrot.lane.b32.xlu0 %v3043, 8
      %v3353 = vpop.permute.xlu0 %3352
      %3354 = vrot.lane.b32.xlu0 %v3044, 8
      %v3355 = vpop.permute.xlu0 %3354
      %3356 = vrot.lane.b32.xlu0 %v3045, 8
      %v3357 = vpop.permute.xlu0 %3356
      %3358 = vrot.lane.b32.xlu0 %v3046, 8
      %v3359 = vpop.permute.xlu0 %3358
      %3360 = vrot.lane.b32.xlu0 %v3047, 8
      %v3361 = vpop.permute.xlu0 %3360
      %3362 = vrot.lane.b32.xlu0 %v3048, 8
      %v3363 = vpop.permute.xlu0 %3362
      %3364 = vrot.lane.b32.xlu0 %v3049, 8
      %v3365 = vpop.permute.xlu0 %3364
      %3366 = vrot.lane.b32.xlu0 %v3050, 8
      %v3367 = vpop.permute.xlu0 %3366
      %3368 = vrot.lane.b32.xlu0 %v3051, 8
      %v3369 = vpop.permute.xlu0 %3368
      %3370 = vrot.lane.b32.xlu0 %v3052, 8
      %v3371 = vpop.permute.xlu0 %3370
      %3372 = vrot.lane.b32.xlu0 %v3053, 8
      %v3373 = vpop.permute.xlu0 %3372
      %3374 = vrot.lane.b32.xlu0 %v3054, 8
      %v3375 = vpop.permute.xlu0 %3374
      %3440 = vrot.lane.b32.xlu0 %v3055, 16
      %v3441 = vpop.permute.xlu0 %3440
      %3442 = vrot.lane.b32.xlu0 %v3056, 16
      %v3443 = vpop.permute.xlu0 %3442
      %3444 = vrot.lane.b32.xlu0 %v3057, 16
      %v3445 = vpop.permute.xlu0 %3444
      %3446 = vrot.lane.b32.xlu0 %v3058, 16
      %v3447 = vpop.permute.xlu0 %3446
      %3448 = vrot.lane.b32.xlu0 %v3059, 16
      %v3449 = vpop.permute.xlu0 %3448
      %3450 = vrot.lane.b32.xlu0 %v3060, 16
      %v3451 = vpop.permute.xlu0 %3450
      %3452 = vrot.lane.b32.xlu0 %v3061, 16
      %v3453 = vpop.permute.xlu0 %3452
      %3454 = vrot.lane.b32.xlu0 %v3062, 16
      %v3455 = vpop.permute.xlu0 %3454
      %3456 = vrot.lane.b32.xlu0 %v3063, 16
      %v3457 = vpop.permute.xlu0 %3456
      %3458 = vrot.lane.b32.xlu0 %v3064, 16
      %v3459 = vpop.permute.xlu0 %3458
      %3460 = vrot.lane.b32.xlu0 %v3065, 16
      %v3461 = vpop.permute.xlu0 %3460
      %3462 = vrot.lane.b32.xlu0 %v3066, 16
      %v3463 = vpop.permute.xlu0 %3462
      %3464 = vrot.lane.b32.xlu0 %v3067, 16
      %v3465 = vpop.permute.xlu0 %3464
      %3466 = vrot.lane.b32.xlu0 %v3068, 16
      %v3467 = vpop.permute.xlu0 %3466
      %3468 = vrot.lane.b32.xlu0 %v3069, 16
      %v3469 = vpop.permute.xlu0 %3468
      %3470 = vrot.lane.b32.xlu0 %v3070, 16
      %v3471 = vpop.permute.xlu0 %3470
      %3472 = vrot.lane.b32.xlu0 %v3071, 16
      %v3473 = vpop.permute.xlu0 %3472
      %3474 = vrot.lane.b32.xlu0 %v3072, 16
      %v3475 = vpop.permute.xlu0 %3474
      %3476 = vrot.lane.b32.xlu0 %v3073, 16
      %v3477 = vpop.permute.xlu0 %3476
      %3478 = vrot.lane.b32.xlu0 %v3074, 16
      %v3479 = vpop.permute.xlu0 %3478
      %3480 = vrot.lane.b32.xlu0 %v3075, 16
      %v3481 = vpop.permute.xlu0 %3480
      %3482 = vrot.lane.b32.xlu0 %v3076, 16
      %v3483 = vpop.permute.xlu0 %3482
      %3484 = vrot.lane.b32.xlu0 %v3077, 16
      %v3485 = vpop.permute.xlu0 %3484
      %3486 = vrot.lane.b32.xlu0 %v3078, 16
      %v3487 = vpop.permute.xlu0 %3486
      %3488 = vrot.lane.b32.xlu0 %v3079, 16
      %v3489 = vpop.permute.xlu0 %3488
      %3490 = vrot.lane.b32.xlu0 %v3080, 16
      %v3491 = vpop.permute.xlu0 %3490
      %3492 = vrot.lane.b32.xlu0 %v3081, 16
      %v3493 = vpop.permute.xlu0 %3492
      %3494 = vrot.lane.b32.xlu0 %v3082, 16
      %v3495 = vpop.permute.xlu0 %3494
      %3496 = vrot.lane.b32.xlu0 %v3083, 16
      %v3497 = vpop.permute.xlu0 %3496
      %3498 = vrot.lane.b32.xlu0 %v3084, 16
      %v3499 = vpop.permute.xlu0 %3498
      %3500 = vrot.lane.b32.xlu0 %v3085, 16
      %v3501 = vpop.permute.xlu0 %3500
      %3502 = vrot.lane.b32.xlu0 %v3086, 16
      %v3503 = vpop.permute.xlu0 %3502
      %3568 = vrot.lane.b32.xlu0 %v3087, 24
      %v3569 = vpop.permute.xlu0 %3568
      %3570 = vrot.lane.b32.xlu0 %v3088, 24
      %v3571 = vpop.permute.xlu0 %3570
      %3572 = vrot.lane.b32.xlu0 %v3089, 24
      %v3573 = vpop.permute.xlu0 %3572
      %3574 = vrot.lane.b32.xlu0 %v3090, 24
      %v3575 = vpop.permute.xlu0 %3574
      %3576 = vrot.lane.b32.xlu0 %v3091, 24
      %v3577 = vpop.permute.xlu0 %3576
      %3578 = vrot.lane.b32.xlu0 %v3092, 24
      %v3579 = vpop.permute.xlu0 %3578
      %3580 = vrot.lane.b32.xlu0 %v3093, 24
      %v3581 = vpop.permute.xlu0 %3580
      %3582 = vrot.lane.b32.xlu0 %v3094, 24
      %v3583 = vpop.permute.xlu0 %3582
      %3584 = vrot.lane.b32.xlu0 %v3095, 24
      %v3585 = vpop.permute.xlu0 %3584
      %3586 = vrot.lane.b32.xlu0 %v3096, 24
      %v3587 = vpop.permute.xlu0 %3586
      %3588 = vrot.lane.b32.xlu0 %v3097, 24
      %v3589 = vpop.permute.xlu0 %3588
      %3590 = vrot.lane.b32.xlu0 %v3098, 24
      %v3591 = vpop.permute.xlu0 %3590
      %3592 = vrot.lane.b32.xlu0 %v3099, 24
      %v3593 = vpop.permute.xlu0 %3592
      %3594 = vrot.lane.b32.xlu0 %v3100, 24
      %v3595 = vpop.permute.xlu0 %3594
      %3596 = vrot.lane.b32.xlu0 %v3101, 24
      %v3597 = vpop.permute.xlu0 %3596
      %3598 = vrot.lane.b32.xlu0 %v3102, 24
      %v3599 = vpop.permute.xlu0 %3598
      %3600 = vrot.lane.b32.xlu0 %v3103, 24
      %v3601 = vpop.permute.xlu0 %3600
      %3602 = vrot.lane.b32.xlu0 %v3104, 24
      %v3603 = vpop.permute.xlu0 %3602
      %3604 = vrot.lane.b32.xlu0 %v3105, 24
      %v3605 = vpop.permute.xlu0 %3604
      %3606 = vrot.lane.b32.xlu0 %v3106, 24
      %v3607 = vpop.permute.xlu0 %3606
      %3608 = vrot.lane.b32.xlu0 %v3107, 24
      %v3609 = vpop.permute.xlu0 %3608
      %3610 = vrot.lane.b32.xlu0 %v3108, 24
      %v3611 = vpop.permute.xlu0 %3610
      %3612 = vrot.lane.b32.xlu0 %v3109, 24
      %v3613 = vpop.permute.xlu0 %3612
      %3614 = vrot.lane.b32.xlu0 %v3110, 24
      %v3615 = vpop.permute.xlu0 %3614
      %3616 = vrot.lane.b32.xlu0 %v3111, 24
      %v3617 = vpop.permute.xlu0 %3616
      %3618 = vrot.lane.b32.xlu0 %v3112, 24
      %v3619 = vpop.permute.xlu0 %3618
      %3620 = vrot.lane.b32.xlu0 %v3113, 24
      %v3621 = vpop.permute.xlu0 %3620
      %3622 = vrot.lane.b32.xlu0 %v3114, 24
      %v3623 = vpop.permute.xlu0 %3622
      %3624 = vrot.lane.b32.xlu0 %v3115, 24
      %v3625 = vpop.permute.xlu0 %3624
      %3626 = vrot.lane.b32.xlu0 %v3116, 24
      %v3627 = vpop.permute.xlu0 %3626
      %3628 = vrot.lane.b32.xlu0 %v3117, 24
      %v3629 = vpop.permute.xlu0 %3628
      %3630 = vrot.lane.b32.xlu0 %v3118, 24
      %v3631 = vpop.permute.xlu0 %3630
      %3696 = vrot.lane.b32.xlu0 %v3119, 32
      %v3697 = vpop.permute.xlu0 %3696
      %3698 = vrot.lane.b32.xlu0 %v3120, 32
      %v3699 = vpop.permute.xlu0 %3698
      %3700 = vrot.lane.b32.xlu0 %v3121, 32
      %v3701 = vpop.permute.xlu0 %3700
      %3702 = vrot.lane.b32.xlu0 %v3122, 32
      %v3703 = vpop.permute.xlu0 %3702
      %3704 = vrot.lane.b32.xlu0 %v3123, 32
      %v3705 = vpop.permute.xlu0 %3704
      %3706 = vrot.lane.b32.xlu0 %v3124, 32
      %v3707 = vpop.permute.xlu0 %3706
      %3708 = vrot.lane.b32.xlu0 %v3125, 32
      %v3709 = vpop.permute.xlu0 %3708
      %3710 = vrot.lane.b32.xlu0 %v3126, 32
      %v3711 = vpop.permute.xlu0 %3710
      %3712 = vrot.lane.b32.xlu0 %v3127, 32
      %v3713 = vpop.permute.xlu0 %3712
      %3714 = vrot.lane.b32.xlu0 %v3128, 32
      %v3715 = vpop.permute.xlu0 %3714
      %3716 = vrot.lane.b32.xlu0 %v3129, 32
      %v3717 = vpop.permute.xlu0 %3716
      %3718 = vrot.lane.b32.xlu0 %v3130, 32
      %v3719 = vpop.permute.xlu0 %3718
      %3720 = vrot.lane.b32.xlu0 %v3131, 32
      %v3721 = vpop.permute.xlu0 %3720
      %3722 = vrot.lane.b32.xlu0 %v3132, 32
      %v3723 = vpop.permute.xlu0 %3722
      %3724 = vrot.lane.b32.xlu0 %v3133, 32
      %v3725 = vpop.permute.xlu0 %3724
      %3726 = vrot.lane.b32.xlu0 %v3134, 32
      %v3727 = vpop.permute.xlu0 %3726
      %3728 = vrot.lane.b32.xlu0 %v3135, 32
      %v3729 = vpop.permute.xlu0 %3728
      %3730 = vrot.lane.b32.xlu0 %v3136, 32
      %v3731 = vpop.permute.xlu0 %3730
      %3732 = vrot.lane.b32.xlu0 %v3137, 32
      %v3733 = vpop.permute.xlu0 %3732
      %3734 = vrot.lane.b32.xlu0 %v3138, 32
      %v3735 = vpop.permute.xlu0 %3734
      %3736 = vrot.lane.b32.xlu0 %v3139, 32
      %v3737 = vpop.permute.xlu0 %3736
      %3738 = vrot.lane.b32.xlu0 %v3140, 32
      %v3739 = vpop.permute.xlu0 %3738
      %3740 = vrot.lane.b32.xlu0 %v3141, 32
      %v3741 = vpop.permute.xlu0 %3740
      %3742 = vrot.lane.b32.xlu0 %v3142, 32
      %v3743 = vpop.permute.xlu0 %3742
      %3744 = vrot.lane.b32.xlu0 %v3143, 32
      %v3745 = vpop.permute.xlu0 %3744
      %3746 = vrot.lane.b32.xlu0 %v3144, 32
      %v3747 = vpop.permute.xlu0 %3746
      %3748 = vrot.lane.b32.xlu0 %v3145, 32
      %v3749 = vpop.permute.xlu0 %3748
      %3750 = vrot.lane.b32.xlu0 %v3146, 32
      %v3751 = vpop.permute.xlu0 %3750
      %3752 = vrot.lane.b32.xlu0 %v3147, 32
      %v3753 = vpop.permute.xlu0 %3752
      %3754 = vrot.lane.b32.xlu0 %v3148, 32
      %v3755 = vpop.permute.xlu0 %3754
      %3756 = vrot.lane.b32.xlu0 %v3149, 32
      %v3757 = vpop.permute.xlu0 %3756
      %3758 = vrot.lane.b32.xlu0 %v3150, 32
      %v3759 = vpop.permute.xlu0 %3758
      %3824 = vrot.lane.b32.xlu0 %v3151, 40
      %v3825 = vpop.permute.xlu0 %3824
      %3826 = vrot.lane.b32.xlu0 %v3152, 40
      %v3827 = vpop.permute.xlu0 %3826
      %3828 = vrot.lane.b32.xlu0 %v3153, 40
      %v3829 = vpop.permute.xlu0 %3828
      %3830 = vrot.lane.b32.xlu0 %v3154, 40
      %v3831 = vpop.permute.xlu0 %3830
      %3832 = vrot.lane.b32.xlu0 %v3155, 40
      %v3833 = vpop.permute.xlu0 %3832
      %3834 = vrot.lane.b32.xlu0 %v3156, 40
      %v3835 = vpop.permute.xlu0 %3834
      %3836 = vrot.lane.b32.xlu0 %v3157, 40
      %v3837 = vpop.permute.xlu0 %3836
      %3838 = vrot.lane.b32.xlu0 %v3158, 40
      %v3839 = vpop.permute.xlu0 %3838
      %3840 = vrot.lane.b32.xlu0 %v3159, 40
      %v3841 = vpop.permute.xlu0 %3840
      %3842 = vrot.lane.b32.xlu0 %v3160, 40
      %v3843 = vpop.permute.xlu0 %3842
      %3844 = vrot.lane.b32.xlu0 %v3161, 40
      %v3845 = vpop.permute.xlu0 %3844
      %3846 = vrot.lane.b32.xlu0 %v3162, 40
      %v3847 = vpop.permute.xlu0 %3846
      %3848 = vrot.lane.b32.xlu0 %v3163, 40
      %v3849 = vpop.permute.xlu0 %3848
      %3850 = vrot.lane.b32.xlu0 %v3164, 40
      %v3851 = vpop.permute.xlu0 %3850
      %3852 = vrot.lane.b32.xlu0 %v3165, 40
      %v3853 = vpop.permute.xlu0 %3852
      %3854 = vrot.lane.b32.xlu0 %v3166, 40
      %v3855 = vpop.permute.xlu0 %3854
      %3856 = vrot.lane.b32.xlu0 %v3167, 40
      %v3857 = vpop.permute.xlu0 %3856
      %3858 = vrot.lane.b32.xlu0 %v3168, 40
      %v3859 = vpop.permute.xlu0 %3858
      %3860 = vrot.lane.b32.xlu0 %v3169, 40
      %v3861 = vpop.permute.xlu0 %3860
      %3862 = vrot.lane.b32.xlu0 %v3170, 40
      %v3863 = vpop.permute.xlu0 %3862
      %3864 = vrot.lane.b32.xlu0 %v3171, 40
      %v3865 = vpop.permute.xlu0 %3864
      %3866 = vrot.lane.b32.xlu0 %v3172, 40
      %v3867 = vpop.permute.xlu0 %3866
      %3868 = vrot.lane.b32.xlu0 %v3173, 40
      %v3869 = vpop.permute.xlu0 %3868
      %3870 = vrot.lane.b32.xlu0 %v3174, 40
      %v3871 = vpop.permute.xlu0 %3870
      %3872 = vrot.lane.b32.xlu0 %v3175, 40
      %v3873 = vpop.permute.xlu0 %3872
      %3874 = vrot.lane.b32.xlu0 %v3176, 40
      %v3875 = vpop.permute.xlu0 %3874
      %3876 = vrot.lane.b32.xlu0 %v3177, 40
      %v3877 = vpop.permute.xlu0 %3876
      %3878 = vrot.lane.b32.xlu0 %v3178, 40
      %v3879 = vpop.permute.xlu0 %3878
      %3880 = vrot.lane.b32.xlu0 %v3179, 40
      %v3881 = vpop.permute.xlu0 %3880
      %3882 = vrot.lane.b32.xlu0 %v3180, 40
      %v3883 = vpop.permute.xlu0 %3882
      %3884 = vrot.lane.b32.xlu0 %v3181, 40
      %v3885 = vpop.permute.xlu0 %3884
      %3886 = vrot.lane.b32.xlu0 %v3182, 40
      %v3887 = vpop.permute.xlu0 %3886
      %3952 = vrot.lane.b32.xlu0 %v3184, 48
      %v3953 = vpop.permute.xlu0 %3952
      %3954 = vrot.lane.b32.xlu0 %v3185, 48
      %v3955 = vpop.permute.xlu0 %3954
      %3956 = vrot.lane.b32.xlu0 %v3186, 48
      %v3957 = vpop.permute.xlu0 %3956
      %3958 = vrot.lane.b32.xlu0 %v3187, 48
      %v3959 = vpop.permute.xlu0 %3958
      %3960 = vrot.lane.b32.xlu0 %v3188, 48
      %v3961 = vpop.permute.xlu0 %3960
      %3962 = vrot.lane.b32.xlu0 %v3189, 48
      %v3963 = vpop.permute.xlu0 %3962
      %3964 = vrot.lane.b32.xlu0 %v3190, 48
      %v3965 = vpop.permute.xlu0 %3964
      %3966 = vrot.lane.b32.xlu0 %v3191, 48
      %v3967 = vpop.permute.xlu0 %3966
      %3968 = vrot.lane.b32.xlu0 %v3192, 48
      %v3969 = vpop.permute.xlu0 %3968
      %3970 = vrot.lane.b32.xlu0 %v3193, 48
      %v3971 = vpop.permute.xlu0 %3970
      %3972 = vrot.lane.b32.xlu0 %v3194, 48
      %v3973 = vpop.permute.xlu0 %3972
      %3974 = vrot.lane.b32.xlu0 %v3195, 48
      %v3975 = vpop.permute.xlu0 %3974
      %3976 = vrot.lane.b32.xlu0 %v3196, 48
      %v3977 = vpop.permute.xlu0 %3976
      %3978 = vrot.lane.b32.xlu0 %v3197, 48
      %v3979 = vpop.permute.xlu0 %3978
      %3980 = vrot.lane.b32.xlu0 %v3198, 48
      %v3981 = vpop.permute.xlu0 %3980
      %3982 = vrot.lane.b32.xlu0 %v3199, 48
      %v3983 = vpop.permute.xlu0 %3982
      %3984 = vrot.lane.b32.xlu0 %v3200, 48
      %v3985 = vpop.permute.xlu0 %3984
      %3986 = vrot.lane.b32.xlu0 %v3201, 48
      %v3987 = vpop.permute.xlu0 %3986
      %3988 = vrot.lane.b32.xlu0 %v3202, 48
      %v3989 = vpop.permute.xlu0 %3988
      %3990 = vrot.lane.b32.xlu0 %v3203, 48
      %v3991 = vpop.permute.xlu0 %3990
      %3992 = vrot.lane.b32.xlu0 %v3204, 48
      %v3993 = vpop.permute.xlu0 %3992
      %3994 = vrot.lane.b32.xlu0 %v3205, 48
      %v3995 = vpop.permute.xlu0 %3994
      %3996 = vrot.lane.b32.xlu0 %v3206, 48
      %v3997 = vpop.permute.xlu0 %3996
      %3998 = vrot.lane.b32.xlu0 %v3207, 48
      %v3999 = vpop.permute.xlu0 %3998
      %4000 = vrot.lane.b32.xlu0 %v3208, 48
      %v4001 = vpop.permute.xlu0 %4000
      %4002 = vrot.lane.b32.xlu0 %v3209, 48
      %v4003 = vpop.permute.xlu0 %4002
      %4004 = vrot.lane.b32.xlu0 %v3210, 48
      %v4005 = vpop.permute.xlu0 %4004
      %4006 = vrot.lane.b32.xlu0 %v3211, 48
      %v4007 = vpop.permute.xlu0 %4006
      %4008 = vrot.lane.b32.xlu0 %v3212, 48
      %v4009 = vpop.permute.xlu0 %4008
      %4010 = vrot.lane.b32.xlu0 %v3213, 48
      %v4011 = vpop.permute.xlu0 %4010
      %4012 = vrot.lane.b32.xlu0 %v3214, 48
      %v4013 = vpop.permute.xlu0 %4012
      %4014 = vrot.lane.b32.xlu0 %v3215, 48
      %v4015 = vpop.permute.xlu0 %4014
      %4080 = vrot.lane.b32.xlu0 %v3216, 56
      %v4081 = vpop.permute.xlu0 %4080
      %4082 = vrot.lane.b32.xlu0 %v3217, 56
      %v4083 = vpop.permute.xlu0 %4082
      %4084 = vrot.lane.b32.xlu0 %v3218, 56
      %v4085 = vpop.permute.xlu0 %4084
      %4086 = vrot.lane.b32.xlu0 %v3219, 56
      %v4087 = vpop.permute.xlu0 %4086
      %4088 = vrot.lane.b32.xlu0 %v3220, 56
      %v4089 = vpop.permute.xlu0 %4088
      %4090 = vrot.lane.b32.xlu0 %v3221, 56
      %v4091 = vpop.permute.xlu0 %4090
      %4092 = vrot.lane.b32.xlu0 %v3222, 56
      %v4093 = vpop.permute.xlu0 %4092
      %4094 = vrot.lane.b32.xlu0 %v3223, 56
      %v4095 = vpop.permute.xlu0 %4094
      %4096 = vrot.lane.b32.xlu0 %v3224, 56
      %v4097 = vpop.permute.xlu0 %4096
      %4098 = vrot.lane.b32.xlu0 %v3225, 56
      %v4099 = vpop.permute.xlu0 %4098
      %4100 = vrot.lane.b32.xlu0 %v3226, 56
      %v4101 = vpop.permute.xlu0 %4100
      %4102 = vrot.lane.b32.xlu0 %v3227, 56
      %v4103 = vpop.permute.xlu0 %4102
      %4104 = vrot.lane.b32.xlu0 %v3228, 56
      %v4105 = vpop.permute.xlu0 %4104
      %4106 = vrot.lane.b32.xlu0 %v3229, 56
      %v4107 = vpop.permute.xlu0 %4106
      %4108 = vrot.lane.b32.xlu0 %v3230, 56
      %v4109 = vpop.permute.xlu0 %4108
      %4110 = vrot.lane.b32.xlu0 %v3231, 56
      %v4111 = vpop.permute.xlu0 %4110
      %4112 = vrot.lane.b32.xlu0 %v3232, 56
      %v4113 = vpop.permute.xlu0 %4112
      %4114 = vrot.lane.b32.xlu0 %v3233, 56
      %v4115 = vpop.permute.xlu0 %4114
      %4116 = vrot.lane.b32.xlu0 %v3234, 56
      %v4117 = vpop.permute.xlu0 %4116
      %4118 = vrot.lane.b32.xlu0 %v3235, 56
      %v4119 = vpop.permute.xlu0 %4118
      %4120 = vrot.lane.b32.xlu0 %v3236, 56
      %v4121 = vpop.permute.xlu0 %4120
      %4122 = vrot.lane.b32.xlu0 %v3237, 56
      %v4123 = vpop.permute.xlu0 %4122
      %4124 = vrot.lane.b32.xlu0 %v3238, 56
      %v4125 = vpop.permute.xlu0 %4124
      %4126 = vrot.lane.b32.xlu0 %v3239, 56
      %v4127 = vpop.permute.xlu0 %4126
      %4128 = vrot.lane.b32.xlu0 %v3240, 56
      %v4129 = vpop.permute.xlu0 %4128
      %4130 = vrot.lane.b32.xlu0 %v3241, 56
      %v4131 = vpop.permute.xlu0 %4130
      %4132 = vrot.lane.b32.xlu0 %v3242, 56
      %v4133 = vpop.permute.xlu0 %4132
      %4134 = vrot.lane.b32.xlu0 %v3243, 56
      %v4135 = vpop.permute.xlu0 %4134
      %4136 = vrot.lane.b32.xlu0 %v3244, 56
      %v4137 = vpop.permute.xlu0 %4136
      %4138 = vrot.lane.b32.xlu0 %v3245, 56
      %v4139 = vpop.permute.xlu0 %4138
      %4140 = vrot.lane.b32.xlu0 %v3246, 56
      %v4141 = vpop.permute.xlu0 %4140
      %4142 = vrot.lane.b32.xlu0 %v3247, 56
      %v4143 = vpop.permute.xlu0 %4142
      %4208 = vrot.lane.b32.xlu0 %v3248, 64
      %v4209 = vpop.permute.xlu0 %4208
      %4210 = vrot.lane.b32.xlu0 %v3249, 64
      %v4211 = vpop.permute.xlu0 %4210
      %4212 = vrot.lane.b32.xlu0 %v3250, 64
      %v4213 = vpop.permute.xlu0 %4212
      %4214 = vrot.lane.b32.xlu0 %v3251, 64
      %v4215 = vpop.permute.xlu0 %4214
      %4216 = vrot.lane.b32.xlu0 %v3252, 64
      %v4217 = vpop.permute.xlu0 %4216
      %4218 = vrot.lane.b32.xlu0 %v3253, 64
      %v4219 = vpop.permute.xlu0 %4218
      %4220 = vrot.lane.b32.xlu0 %v3254, 64
      %v4221 = vpop.permute.xlu0 %4220
      %4222 = vrot.lane.b32.xlu0 %v3255, 64
      %v4223 = vpop.permute.xlu0 %4222
      %4224 = vrot.lane.b32.xlu0 %v3256, 64
      %v4225 = vpop.permute.xlu0 %4224
      %4226 = vrot.lane.b32.xlu0 %v3257, 64
      %v4227 = vpop.permute.xlu0 %4226
      %4228 = vrot.lane.b32.xlu0 %v3258, 64
      %v4229 = vpop.permute.xlu0 %4228
      %4230 = vrot.lane.b32.xlu0 %v3259, 64
      %v4231 = vpop.permute.xlu0 %4230
      %4232 = vrot.lane.b32.xlu0 %v3260, 64
      %v4233 = vpop.permute.xlu0 %4232
      %4234 = vrot.lane.b32.xlu0 %v3261, 64
      %v4235 = vpop.permute.xlu0 %4234
      %4236 = vrot.lane.b32.xlu0 %v3262, 64
      %v4237 = vpop.permute.xlu0 %4236
      %4238 = vrot.lane.b32.xlu0 %v3263, 64
      %v4239 = vpop.permute.xlu0 %4238
      %4240 = vrot.lane.b32.xlu0 %v3264, 64
      %v4241 = vpop.permute.xlu0 %4240
      %4242 = vrot.lane.b32.xlu0 %v3265, 64
      %v4243 = vpop.permute.xlu0 %4242
      %4244 = vrot.lane.b32.xlu0 %v3266, 64
      %v4245 = vpop.permute.xlu0 %4244
      %4246 = vrot.lane.b32.xlu0 %v3267, 64
      %v4247 = vpop.permute.xlu0 %4246
      %4248 = vrot.lane.b32.xlu0 %v3268, 64
      %v4249 = vpop.permute.xlu0 %4248
      %4250 = vrot.lane.b32.xlu0 %v3269, 64
      %v4251 = vpop.permute.xlu0 %4250
      %4252 = vrot.lane.b32.xlu0 %v3270, 64
      %v4253 = vpop.permute.xlu0 %4252
      %4254 = vrot.lane.b32.xlu0 %v3271, 64
      %v4255 = vpop.permute.xlu0 %4254
      %4256 = vrot.lane.b32.xlu0 %v3272, 64
      %v4257 = vpop.permute.xlu0 %4256
      %4258 = vrot.lane.b32.xlu0 %v3273, 64
      %v4259 = vpop.permute.xlu0 %4258
      %4260 = vrot.lane.b32.xlu0 %v3274, 64
      %v4261 = vpop.permute.xlu0 %4260
      %4262 = vrot.lane.b32.xlu0 %v3275, 64
      %v4263 = vpop.permute.xlu0 %4262
      %4264 = vrot.lane.b32.xlu0 %v3276, 64
      %v4265 = vpop.permute.xlu0 %4264
      %4266 = vrot.lane.b32.xlu0 %v3277, 64
      %v4267 = vpop.permute.xlu0 %4266
      %4268 = vrot.lane.b32.xlu0 %v3278, 64
      %v4269 = vpop.permute.xlu0 %4268
      %4270 = vrot.lane.b32.xlu0 %v3279, 64
      %v4271 = vpop.permute.xlu0 %4270
      %v4304 = vsel %vm1873, %v2991, %v3313
      %v4305 = vsel %vm1873, %v2992, %v3315
      %v4306 = vsel %vm1873, %v2993, %v3317
      %v4307 = vsel %vm1873, %v2994, %v3319
      %v4308 = vsel %vm1873, %v2995, %v3321
      %v4309 = vsel %vm1873, %v2996, %v3323
      %v4310 = vsel %vm1873, %v2997, %v3325
      %v4311 = vsel %vm1873, %v2998, %v3327
      %v4312 = vsel %vm1873, %v2999, %v3329
      %v4313 = vsel %vm1873, %v3000, %v3331
      %v4314 = vsel %vm1873, %v3001, %v3333
      %v4315 = vsel %vm1873, %v3002, %v3335
      %v4316 = vsel %vm1873, %v3003, %v3337
      %v4317 = vsel %vm1873, %v3004, %v3339
      %v4318 = vsel %vm1873, %v3005, %v3341
      %v4319 = vsel %vm1873, %v3006, %v3343
      %v4320 = vsel %vm1873, %v3007, %v3345
      %v4321 = vsel %vm1873, %v3008, %v3347
      %v4322 = vsel %vm1873, %v3009, %v3349
      %v4323 = vsel %vm1873, %v3010, %v3351
      %v4324 = vsel %vm1873, %v3011, %v3353
      %v4325 = vsel %vm1873, %v3012, %v3355
      %v4326 = vsel %vm1873, %v3013, %v3357
      %v4327 = vsel %vm1873, %v3014, %v3359
      %v4328 = vsel %vm1873, %v3015, %v3361
      %v4329 = vsel %vm1873, %v3016, %v3363
      %v4330 = vsel %vm1873, %v3017, %v3365
      %v4331 = vsel %vm1873, %v3018, %v3367
      %v4332 = vsel %vm1873, %v3019, %v3369
      %v4333 = vsel %vm1873, %v3020, %v3371
      %v4334 = vsel %vm1873, %v3021, %v3373
      %v4335 = vsel %vm1873, %v3022, %v3375
      %v4336 = vsel %vm1939, %v4304, %v3441
      %v4337 = vsel %vm1939, %v4305, %v3443
      %v4338 = vsel %vm1939, %v4306, %v3445
      %v4339 = vsel %vm1939, %v4307, %v3447
      %v4340 = vsel %vm1939, %v4308, %v3449
      %v4341 = vsel %vm1939, %v4309, %v3451
      %v4342 = vsel %vm1939, %v4310, %v3453
      %v4343 = vsel %vm1939, %v4311, %v3455
      %v4344 = vsel %vm1939, %v4312, %v3457
      %v4345 = vsel %vm1939, %v4313, %v3459
      %v4346 = vsel %vm1939, %v4314, %v3461
      %v4347 = vsel %vm1939, %v4315, %v3463
      %v4348 = vsel %vm1939, %v4316, %v3465
      %v4349 = vsel %vm1939, %v4317, %v3467
      %v4350 = vsel %vm1939, %v4318, %v3469
      %v4351 = vsel %vm1939, %v4319, %v3471
      %v4352 = vsel %vm1939, %v4320, %v3473
      %v4353 = vsel %vm1939, %v4321, %v3475
      %v4354 = vsel %vm1939, %v4322, %v3477
      %v4355 = vsel %vm1939, %v4323, %v3479
      %v4356 = vsel %vm1939, %v4324, %v3481
      %v4357 = vsel %vm1939, %v4325, %v3483
      %v4358 = vsel %vm1939, %v4326, %v3485
      %v4359 = vsel %vm1939, %v4327, %v3487
      %v4360 = vsel %vm1939, %v4328, %v3489
      %v4361 = vsel %vm1939, %v4329, %v3491
      %v4362 = vsel %vm1939, %v4330, %v3493
      %v4363 = vsel %vm1939, %v4331, %v3495
      %v4364 = vsel %vm1939, %v4332, %v3497
      %v4365 = vsel %vm1939, %v4333, %v3499
      %v4366 = vsel %vm1939, %v4334, %v3501
      %v4367 = vsel %vm1939, %v4335, %v3503
      %v4368 = vsel %vm2005, %v4336, %v3569
      %v4369 = vsel %vm2005, %v4337, %v3571
      %v4370 = vsel %vm2005, %v4338, %v3573
      %v4371 = vsel %vm2005, %v4339, %v3575
      %v4372 = vsel %vm2005, %v4340, %v3577
      %v4373 = vsel %vm2005, %v4341, %v3579
      %v4374 = vsel %vm2005, %v4342, %v3581
      %v4375 = vsel %vm2005, %v4343, %v3583
      %v4376 = vsel %vm2005, %v4344, %v3585
      %v4377 = vsel %vm2005, %v4345, %v3587
      %v4378 = vsel %vm2005, %v4346, %v3589
      %v4379 = vsel %vm2005, %v4347, %v3591
      %v4380 = vsel %vm2005, %v4348, %v3593
      %v4381 = vsel %vm2005, %v4349, %v3595
      %v4382 = vsel %vm2005, %v4350, %v3597
      %v4383 = vsel %vm2005, %v4351, %v3599
      %v4384 = vsel %vm2005, %v4352, %v3601
      %v4385 = vsel %vm2005, %v4353, %v3603
      %v4386 = vsel %vm2005, %v4354, %v3605
      %v4387 = vsel %vm2005, %v4355, %v3607
      %v4388 = vsel %vm2005, %v4356, %v3609
      %v4389 = vsel %vm2005, %v4357, %v3611
      %v4390 = vsel %vm2005, %v4358, %v3613
      %v4391 = vsel %vm2005, %v4359, %v3615
      %v4392 = vsel %vm2005, %v4360, %v3617
      %v4393 = vsel %vm2005, %v4361, %v3619
      %v4394 = vsel %vm2005, %v4362, %v3621
      %v4395 = vsel %vm2005, %v4363, %v3623
      %v4396 = vsel %vm2005, %v4364, %v3625
      %v4397 = vsel %vm2005, %v4365, %v3627
      %v4398 = vsel %vm2005, %v4366, %v3629
      %v4399 = vsel %vm2005, %v4367, %v3631
      %v4400 = vsel %vm2071, %v4368, %v3697
      %v4401 = vsel %vm2071, %v4369, %v3699
      %v4402 = vsel %vm2071, %v4370, %v3701
      %v4403 = vsel %vm2071, %v4371, %v3703
      %v4404 = vsel %vm2071, %v4372, %v3705
      %v4405 = vsel %vm2071, %v4373, %v3707
      %v4406 = vsel %vm2071, %v4374, %v3709
      %v4407 = vsel %vm2071, %v4375, %v3711
      %v4408 = vsel %vm2071, %v4376, %v3713
      %v4409 = vsel %vm2071, %v4377, %v3715
      %v4410 = vsel %vm2071, %v4378, %v3717
      %v4411 = vsel %vm2071, %v4379, %v3719
      %v4412 = vsel %vm2071, %v4380, %v3721
      %v4413 = vsel %vm2071, %v4381, %v3723
      %v4414 = vsel %vm2071, %v4382, %v3725
      %v4415 = vsel %vm2071, %v4383, %v3727
      %v4416 = vsel %vm2071, %v4384, %v3729
      %v4417 = vsel %vm2071, %v4385, %v3731
      %v4418 = vsel %vm2071, %v4386, %v3733
      %v4419 = vsel %vm2071, %v4387, %v3735
      %v4420 = vsel %vm2071, %v4388, %v3737
      %v4421 = vsel %vm2071, %v4389, %v3739
      %v4422 = vsel %vm2071, %v4390, %v3741
      %v4423 = vsel %vm2071, %v4391, %v3743
      %v4424 = vsel %vm2071, %v4392, %v3745
      %v4425 = vsel %vm2071, %v4393, %v3747
      %v4426 = vsel %vm2071, %v4394, %v3749
      %v4427 = vsel %vm2071, %v4395, %v3751
      %v4428 = vsel %vm2071, %v4396, %v3753
      %v4429 = vsel %vm2071, %v4397, %v3755
      %v4430 = vsel %vm2071, %v4398, %v3757
      %v4431 = vsel %vm2071, %v4399, %v3759
      %vm4432 = vcmask 326656
      %v4433 = vsel %vm4432, %v4400, %v3825
      %v4434 = vsel %vm4432, %v4401, %v3827
      %v4435 = vsel %vm4432, %v4402, %v3829
      %v4436 = vsel %vm4432, %v4403, %v3831
      %v4437 = vsel %vm4432, %v4404, %v3833
      %v4438 = vsel %vm4432, %v4405, %v3835
      %v4439 = vsel %vm4432, %v4406, %v3837
      %v4440 = vsel %vm4432, %v4407, %v3839
      %v4441 = vsel %vm4432, %v4408, %v3841
      %v4442 = vsel %vm4432, %v4409, %v3843
      %v4443 = vsel %vm4432, %v4410, %v3845
      %v4444 = vsel %vm4432, %v4411, %v3847
      %v4445 = vsel %vm4432, %v4412, %v3849
      %v4446 = vsel %vm4432, %v4413, %v3851
      %v4447 = vsel %vm4432, %v4414, %v3853
      %v4448 = vsel %vm4432, %v4415, %v3855
      %v4449 = vsel %vm4432, %v4416, %v3857
      %v4450 = vsel %vm4432, %v4417, %v3859
      %v4451 = vsel %vm4432, %v4418, %v3861
      %v4452 = vsel %vm4432, %v4419, %v3863
      %v4453 = vsel %vm4432, %v4420, %v3865
      %v4454 = vsel %vm4432, %v4421, %v3867
      %v4455 = vsel %vm4432, %v4422, %v3869
      %v4456 = vsel %vm4432, %v4423, %v3871
      %v4457 = vsel %vm4432, %v4424, %v3873
      %v4458 = vsel %vm4432, %v4425, %v3875
      %v4459 = vsel %vm4432, %v4426, %v3877
      %v4460 = vsel %vm4432, %v4427, %v3879
      %v4461 = vsel %vm4432, %v4428, %v3881
      %v4462 = vsel %vm4432, %v4429, %v3883
      %v4463 = vsel %vm4432, %v4430, %v3885
      %v4464 = vsel %vm4432, %v4431, %v3887
      %vm4465 = vcmask 392192
      %v4466 = vsel %vm4465, %v4433, %v3953
      %v4467 = vsel %vm4465, %v4434, %v3955
      %v4468 = vsel %vm4465, %v4435, %v3957
      %v4469 = vsel %vm4465, %v4436, %v3959
      %v4470 = vsel %vm4465, %v4437, %v3961
      %v4471 = vsel %vm4465, %v4438, %v3963
      %v4472 = vsel %vm4465, %v4439, %v3965
      %v4473 = vsel %vm4465, %v4440, %v3967
      %v4474 = vsel %vm4465, %v4441, %v3969
      %v4475 = vsel %vm4465, %v4442, %v3971
      %v4476 = vsel %vm4465, %v4443, %v3973
      %v4477 = vsel %vm4465, %v4444, %v3975
      %v4478 = vsel %vm4465, %v4445, %v3977
      %v4479 = vsel %vm4465, %v4446, %v3979
      %v4480 = vsel %vm4465, %v4447, %v3981
      %v4481 = vsel %vm4465, %v4448, %v3983
      %v4482 = vsel %vm4465, %v4449, %v3985
      %v4483 = vsel %vm4465, %v4450, %v3987
      %v4484 = vsel %vm4465, %v4451, %v3989
      %v4485 = vsel %vm4465, %v4452, %v3991
      %v4486 = vsel %vm4465, %v4453, %v3993
      %v4487 = vsel %vm4465, %v4454, %v3995
      %v4488 = vsel %vm4465, %v4455, %v3997
      %v4489 = vsel %vm4465, %v4456, %v3999
      %v4490 = vsel %vm4465, %v4457, %v4001
      %v4491 = vsel %vm4465, %v4458, %v4003
      %v4492 = vsel %vm4465, %v4459, %v4005
      %v4493 = vsel %vm4465, %v4460, %v4007
      %v4494 = vsel %vm4465, %v4461, %v4009
      %v4495 = vsel %vm4465, %v4462, %v4011
      %v4496 = vsel %vm4465, %v4463, %v4013
      %v4497 = vsel %vm4465, %v4464, %v4015
      %vm4498 = vcmask 457728
      %v4499 = vsel %vm4498, %v4466, %v4081
      %v4500 = vsel %vm4498, %v4467, %v4083
      %v4501 = vsel %vm4498, %v4468, %v4085
      %v4502 = vsel %vm4498, %v4469, %v4087
      %v4503 = vsel %vm4498, %v4470, %v4089
      %v4504 = vsel %vm4498, %v4471, %v4091
      %v4505 = vsel %vm4498, %v4472, %v4093
      %v4506 = vsel %vm4498, %v4473, %v4095
      %v4507 = vsel %vm4498, %v4474, %v4097
      %v4508 = vsel %vm4498, %v4475, %v4099
      %v4509 = vsel %vm4498, %v4476, %v4101
      %v4510 = vsel %vm4498, %v4477, %v4103
      %v4511 = vsel %vm4498, %v4478, %v4105
      %v4512 = vsel %vm4498, %v4479, %v4107
      %v4513 = vsel %vm4498, %v4480, %v4109
      %v4514 = vsel %vm4498, %v4481, %v4111
      %v4515 = vsel %vm4498, %v4482, %v4113
      %v4516 = vsel %vm4498, %v4483, %v4115
      %v4517 = vsel %vm4498, %v4484, %v4117
      %v4518 = vsel %vm4498, %v4485, %v4119
      %v4519 = vsel %vm4498, %v4486, %v4121
      %v4520 = vsel %vm4498, %v4487, %v4123
      %v4521 = vsel %vm4498, %v4488, %v4125
      %v4522 = vsel %vm4498, %v4489, %v4127
      %v4523 = vsel %vm4498, %v4490, %v4129
      %v4524 = vsel %vm4498, %v4491, %v4131
      %v4525 = vsel %vm4498, %v4492, %v4133
      %v4526 = vsel %vm4498, %v4493, %v4135
      %v4527 = vsel %vm4498, %v4494, %v4137
      %v4528 = vsel %vm4498, %v4495, %v4139
      %v4529 = vsel %vm4498, %v4496, %v4141
      %v4530 = vsel %vm4498, %v4497, %v4143
      %vm4531 = vcmask 523264
      %v4532 = vsel %vm4531, %v4499, %v4209
      %v4533 = vsel %vm4531, %v4500, %v4211
      %v4534 = vsel %vm4531, %v4501, %v4213
      %v4535 = vsel %vm4531, %v4502, %v4215
      %v4536 = vsel %vm4531, %v4503, %v4217
      %v4537 = vsel %vm4531, %v4504, %v4219
      %v4538 = vsel %vm4531, %v4505, %v4221
      %v4539 = vsel %vm4531, %v4506, %v4223
      %v4540 = vsel %vm4531, %v4507, %v4225
      %v4541 = vsel %vm4531, %v4508, %v4227
      %v4542 = vsel %vm4531, %v4509, %v4229
      %v4543 = vsel %vm4531, %v4510, %v4231
      %v4544 = vsel %vm4531, %v4511, %v4233
      %v4545 = vsel %vm4531, %v4512, %v4235
      %v4546 = vsel %vm4531, %v4513, %v4237
      %v4547 = vsel %vm4531, %v4514, %v4239
      %v4548 = vsel %vm4531, %v4515, %v4241
      %v4549 = vsel %vm4531, %v4516, %v4243
      %v4550 = vsel %vm4531, %v4517, %v4245
      %v4551 = vsel %vm4531, %v4518, %v4247
      %v4552 = vsel %vm4531, %v4519, %v4249
      %v4553 = vsel %vm4531, %v4520, %v4251
      %v4554 = vsel %vm4531, %v4521, %v4253
      %v4555 = vsel %vm4531, %v4522, %v4255
      %v4556 = vsel %vm4531, %v4523, %v4257
      %v4557 = vsel %vm4531, %v4524, %v4259
      %v4558 = vsel %vm4531, %v4525, %v4261
      %v4559 = vsel %vm4531, %v4526, %v4263
      %v4560 = vsel %vm4531, %v4527, %v4265
      %v4561 = vsel %vm4531, %v4528, %v4267
      %v4562 = vsel %vm4531, %v4529, %v4269
      %v4563 = vsel %vm4531, %v4530, %v4271
      %v4564 = vld [vmem:[%s3] sm:$0xff]
      %v4565 = vld [vmem:[%s3 + $0x8] sm:$0xff]
      %v4566 = vld [vmem:[%s3 + $0x10] sm:$0xff]
      %v4567 = vld [vmem:[%s3 + $0x18] sm:$0xff]
      %v4568 = vld [vmem:[%s3 + $0x20] sm:$0xff]
      %v4569 = vld [vmem:[%s3 + $0x28] sm:$0xff]
      %v4570 = vld [vmem:[%s3 + $0x30] sm:$0xff]
      %v4571 = vld [vmem:[%s3 + $0x38] sm:$0xff]
      %v4572 = vld [vmem:[%s3 + $0x40] sm:$0xff]
      %v4573 = vlaneseq
      %v4574 = vshrl.u32 %v4573, 7
      %v4575 = vsub.s32 3, %v4574
      %v4576 = vrot.slane %v400, %v4575
      %vm4577 = vcmask 588800
      %v4579 = vsel %vm4577, %v4532, 0
      %v4582 = vsel %vm4577, %v4533, 0
      %v4585 = vsel %vm4577, %v4534, 0
      %v4588 = vsel %vm4577, %v4535, 0
      %v4591 = vsel %vm4577, %v4536, 0
      %v4594 = vsel %vm4577, %v4537, 0
      %v4597 = vsel %vm4577, %v4538, 0
      %v4600 = vsel %vm4577, %v4539, 0
      %v4603 = vsel %vm4577, %v4540, 0
      %v4606 = vsel %vm4577, %v4541, 0
      %v4609 = vsel %vm4577, %v4542, 0
      %v4612 = vsel %vm4577, %v4543, 0
      %v4615 = vsel %vm4577, %v4544, 0
      %v4618 = vsel %vm4577, %v4545, 0
      %v4621 = vsel %vm4577, %v4546, 0
      %v4624 = vsel %vm4577, %v4547, 0
      %v4627 = vsel %vm4577, %v4548, 0
      %v4630 = vsel %vm4577, %v4549, 0
      %v4633 = vsel %vm4577, %v4550, 0
      %v4636 = vsel %vm4577, %v4551, 0
      %v4639 = vsel %vm4577, %v4552, 0
      %v4642 = vsel %vm4577, %v4553, 0
      %v4645 = vsel %vm4577, %v4554, 0
      %v4648 = vsel %vm4577, %v4555, 0
      %v4651 = vsel %vm4577, %v4556, 0
      %v4654 = vsel %vm4577, %v4557, 0
      %v4657 = vsel %vm4577, %v4558, 0
      %v4660 = vsel %vm4577, %v4559, 0
      %v4663 = vsel %vm4577, %v4560, 0
      %v4666 = vsel %vm4577, %v4561, 0
      %v4669 = vsel %vm4577, %v4562, 0
      %v4672 = vsel %vm4577, %v4563, 0
      %4674 = vmatprep.subr.mxu0 0.0
      %4675 = vmatpush1.msra.mxu0 %v4564
      %4676 = vmatprep.subr.mxu0 0.0
      %4677 = vmatpush1.msra.mxu0 %v4565
      %4678 = vmatprep.subr.mxu0 0.0
      %4679 = vmatpush1.msra.mxu0 %v4566
      %4680 = vmatprep.subr.mxu0 0.0
      %4681 = vmatpush1.msra.mxu0 %v4567
      %4682 = vmatprep.subr.mxu0 0.0
      %4683 = vmatpush1.msra.mxu0 %v4568
      %4684 = vmatprep.subr.mxu0 0.0
      %4685 = vmatpush1.msra.mxu0 %v4569
      %4686 = vmatprep.subr.mxu0 0.0
      %4687 = vmatpush1.msra.mxu0 %v4570
      %4688 = vmatprep.subr.mxu0 0.0
      %4689 = vmatpush1.msra.mxu0 %v4571
      %4690 = vmatprep.subr.mxu0 0.0
      %4691 = vmatpush1.msra.mxu0 %v4572
      %4692 = vmatprep.subr.mxu0 0.0
      %4693 = vmatpush1.msra.mxu0 0.0
      %4694 = vmatprep.subr.mxu0 0.0
      %4695 = vmatpush1.msra.mxu0 0.0
      %4696 = vmatprep.subr.mxu0 0.0
      %4697 = vmatpush1.msra.mxu0 0.0
      %4698 = vmatprep.subr.mxu0 0.0
      %4699 = vmatpush1.msra.mxu0 0.0
      %4700 = vmatprep.subr.mxu0 0.0
      %4701 = vmatpush1.msra.mxu0 0.0
      %4702 = vmatprep.subr.mxu0 0.0
      %4703 = vmatpush1.msra.mxu0 0.0
      %4704 = vmatprep.subr.mxu0 0.0
      %4705 = vmatpush1.msra.mxu0 0.0
      %4706 = vmatprep.subr.mxu0 0.0
      %4707 = vmatpush1.msra.mxu0 0.0
      %4708 = vmatprep.subr.mxu0 0.0
      %4709 = vmatpush1.msra.mxu0 0.0
      %4710 = vmatprep.subr.mxu0 0.0
      %4711 = vmatpush1.msra.mxu0 0.0
      %4712 = vmatprep.subr.mxu0 0.0
      %4713 = vmatpush1.msra.mxu0 0.0
      %4714 = vmatprep.subr.mxu0 0.0
      %4715 = vmatpush1.msra.mxu0 0.0
      %4716 = vmatprep.subr.mxu0 0.0
      %4717 = vmatpush1.msra.mxu0 0.0
      %4718 = vmatprep.subr.mxu0 0.0
      %4719 = vmatpush1.msra.mxu0 0.0
      %4720 = vmatprep.subr.mxu0 0.0
      %4721 = vmatpush1.msra.mxu0 0.0
      %4722 = vmatprep.subr.mxu0 0.0
      %4723 = vmatpush1.msra.mxu0 0.0
      %4724 = vmatprep.subr.mxu0 0.0
      %4725 = vmatpush1.msra.mxu0 0.0
      %4726 = vmatprep.subr.mxu0 0.0
      %4727 = vmatpush1.msra.mxu0 0.0
      %4728 = vmatprep.subr.mxu0 0.0
      %4729 = vmatpush1.msra.mxu0 0.0
      %4730 = vmatprep.subr.mxu0 0.0
      %4731 = vmatpush1.msra.mxu0 0.0
      %4732 = vmatprep.subr.mxu0 0.0
      %4733 = vmatpush1.msra.mxu0 0.0
      %4734 = vmatprep.subr.mxu0 0.0
      %4735 = vmatpush1.msra.mxu0 0.0
      %4736 = vmatprep.subr.mxu0 0.0
      %4737 = vmatpush1.msra.mxu0 0.0
      %4738 = vmatprep.mubr.f32.mxu0 0.0
      %4739 = vmatmul.mubr.f32.gmra.mrb[0].mxu0 %v4579
      %v4740 = vpop.f32.mrb[0].mxu0
      %v4741 = vadd.f32 %v4576, %v4740
      %v4742 = vpop.f32.mrb[0].mxu0
      %4743 = vmatprep.mubr.f32.mxu0 0.0
      %4744 = vmatmul.mubr.f32.gmra.mrb[0].mxu0 %v4582
      %v4745 = vpop.f32.mrb[0].mxu0
      %v4746 = vadd.f32 %v4576, %v4745
      %v4747 = vpop.f32.mrb[0].mxu0
      %4748 = vmatprep.mubr.f32.mxu0 0.0
      %4749 = vmatmul.mubr.f32.gmra.mrb[0].mxu0 %v4585
      %v4750 = vpop.f32.mrb[0].mxu0
      %v4751 = vadd.f32 %v4576, %v4750
      %v4752 = vpop.f32.mrb[0].mxu0
      %4753 = vmatprep.mubr.f32.mxu0 0.0
      %4754 = vmatmul.mubr.f32.gmra.mrb[0].mxu0 %v4588
      %v4755 = vpop.f32.mrb[0].mxu0
      %v4756 = vadd.f32 %v4576, %v4755
      %v4757 = vpop.f32.mrb[0].mxu0
      %4758 = vmatprep.mubr.f32.mxu0 0.0
      %4759 = vmatmul.mubr.f32.gmra.mrb[0].mxu0 %v4591
      %v4760 = vpop.f32.mrb[0].mxu0
      %v4761 = vadd.f32 %v4576, %v4760
      %v4762 = vpop.f32.mrb[0].mxu0
      %4763 = vmatprep.mubr.f32.mxu0 0.0
      %4764 = vmatmul.mubr.f32.gmra.mrb[0].mxu0 %v4594
      %v4765 = vpop.f32.mrb[0].mxu0
      %v4766 = vadd.f32 %v4576, %v4765
      %v4767 = vpop.f32.mrb[0].mxu0
      %4768 = vmatprep.mubr.f32.mxu0 0.0
      %4769 = vmatmul.mubr.f32.gmra.mrb[0].mxu0 %v4597
      %v4770 = vpop.f32.mrb[0].mxu0
      %v4771 = vadd.f32 %v4576, %v4770
      %v4772 = vpop.f32.mrb[0].mxu0
      %4773 = vmatprep.mubr.f32.mxu0 0.0
      %4774 = vmatmul.mubr.f32.gmra.mrb[0].mxu0 %v4600
      %v4775 = vpop.f32.mrb[0].mxu0
      %v4776 = vadd.f32 %v4576, %v4775
      %v4777 = vpop.f32.mrb[0].mxu0
      %4778 = vmatprep.mubr.f32.mxu0 0.0
      %4779 = vmatmul.mubr.f32.gmra.mrb[0].mxu0 %v4603
      %v4780 = vpop.f32.mrb[0].mxu0
      %v4781 = vadd.f32 %v4576, %v4780
      %v4782 = vpop.f32.mrb[0].mxu0
      %4783 = vmatprep.mubr.f32.mxu0 0.0
      %4784 = vmatmul.mubr.f32.gmra.mrb[0].mxu0 %v4606
      %v4785 = vpop.f32.mrb[0].mxu0
      %v4786 = vadd.f32 %v4576, %v4785
      %v4787 = vpop.f32.mrb[0].mxu0
      %4788 = vmatprep.mubr.f32.mxu0 0.0
      %4789 = vmatmul.mubr.f32.gmra.mrb[0].mxu0 %v4609
      %v4790 = vpop.f32.mrb[0].mxu0
      %v4791 = vadd.f32 %v4576, %v4790
      %v4792 = vpop.f32.mrb[0].mxu0
      %4793 = vmatprep.mubr.f32.mxu0 0.0
      %4794 = vmatmul.mubr.f32.gmra.mrb[0].mxu0 %v4612
      %v4795 = vpop.f32.mrb[0].mxu0
      %v4796 = vadd.f32 %v4576, %v4795
      %v4797 = vpop.f32.mrb[0].mxu0
      %4798 = vmatprep.mubr.f32.mxu0 0.0
      %4799 = vmatmul.mubr.f32.gmra.mrb[0].mxu0 %v4615
      %v4800 = vpop.f32.mrb[0].mxu0
      %v4801 = vadd.f32 %v4576, %v4800
      %v4802 = vpop.f32.mrb[0].mxu0
      %4803 = vmatprep.mubr.f32.mxu0 0.0
      %4804 = vmatmul.mubr.f32.gmra.mrb[0].mxu0 %v4618
      %v4805 = vpop.f32.mrb[0].mxu0
      %v4806 = vadd.f32 %v4576, %v4805
      %v4807 = vpop.f32.mrb[0].mxu0
      %4808 = vmatprep.mubr.f32.mxu0 0.0
      %4809 = vmatmul.mubr.f32.gmra.mrb[0].mxu0 %v4621
      %v4810 = vpop.f32.mrb[0].mxu0
      %v4811 = vadd.f32 %v4576, %v4810
      %v4812 = vpop.f32.mrb[0].mxu0
      %4813 = vmatprep.mubr.f32.mxu0 0.0
      %4814 = vmatmul.mubr.f32.gmra.mrb[0].mxu0 %v4624
      %v4815 = vpop.f32.mrb[0].mxu0
      %v4816 = vadd.f32 %v4576, %v4815
      %v4817 = vpop.f32.mrb[0].mxu0
      %4818 = vmatprep.mubr.f32.mxu0 0.0
      %4819 = vmatmul.mubr.f32.gmra.mrb[0].mxu0 %v4627
      %v4820 = vpop.f32.mrb[0].mxu0
      %v4821 = vadd.f32 %v4576, %v4820
      %v4822 = vpop.f32.mrb[0].mxu0
      %4823 = vmatprep.mubr.f32.mxu0 0.0
      %4824 = vmatmul.mubr.f32.gmra.mrb[0].mxu0 %v4630
      %v4825 = vpop.f32.mrb[0].mxu0
      %v4826 = vadd.f32 %v4576, %v4825
      %v4827 = vpop.f32.mrb[0].mxu0
      %4828 = vmatprep.mubr.f32.mxu0 0.0
      %4829 = vmatmul.mubr.f32.gmra.mrb[0].mxu0 %v4633
      %v4830 = vpop.f32.mrb[0].mxu0
      %v4831 = vadd.f32 %v4576, %v4830
      %v4832 = vpop.f32.mrb[0].mxu0
      %4833 = vmatprep.mubr.f32.mxu0 0.0
      %4834 = vmatmul.mubr.f32.gmra.mrb[0].mxu0 %v4636
      %v4835 = vpop.f32.mrb[0].mxu0
      %v4836 = vadd.f32 %v4576, %v4835
      %v4837 = vpop.f32.mrb[0].mxu0
      %4838 = vmatprep.mubr.f32.mxu0 0.0
      %4839 = vmatmul.mubr.f32.gmra.mrb[0].mxu0 %v4639
      %v4840 = vpop.f32.mrb[0].mxu0
      %v4841 = vadd.f32 %v4576, %v4840
      %v4842 = vpop.f32.mrb[0].mxu0
      %4843 = vmatprep.mubr.f32.mxu0 0.0
      %4844 = vmatmul.mubr.f32.gmra.mrb[0].mxu0 %v4642
      %v4845 = vpop.f32.mrb[0].mxu0
      %v4846 = vadd.f32 %v4576, %v4845
      %v4847 = vpop.f32.mrb[0].mxu0
      %4848 = vmatprep.mubr.f32.mxu0 0.0
      %4849 = vmatmul.mubr.f32.gmra.mrb[0].mxu0 %v4645
      %v4850 = vpop.f32.mrb[0].mxu0
      %v4851 = vadd.f32 %v4576, %v4850
      %v4852 = vpop.f32.mrb[0].mxu0
      %4853 = vmatprep.mubr.f32.mxu0 0.0
      %4854 = vmatmul.mubr.f32.gmra.mrb[0].mxu0 %v4648
      %v4855 = vpop.f32.mrb[0].mxu0
      %v4856 = vadd.f32 %v4576, %v4855
      %v4857 = vpop.f32.mrb[0].mxu0
      %4858 = vmatprep.mubr.f32.mxu0 0.0
      %4859 = vmatmul.mubr.f32.gmra.mrb[0].mxu0 %v4651
      %v4860 = vpop.f32.mrb[0].mxu0
      %v4861 = vadd.f32 %v4576, %v4860
      %v4862 = vpop.f32.mrb[0].mxu0
      %4863 = vmatprep.mubr.f32.mxu0 0.0
      %4864 = vmatmul.mubr.f32.gmra.mrb[0].mxu0 %v4654
      %v4865 = vpop.f32.mrb[0].mxu0
      %v4866 = vadd.f32 %v4576, %v4865
      %v4867 = vpop.f32.mrb[0].mxu0
      %4868 = vmatprep.mubr.f32.mxu0 0.0
      %4869 = vmatmul.mubr.f32.gmra.mrb[0].mxu0 %v4657
      %v4870 = vpop.f32.mrb[0].mxu0
      %v4871 = vadd.f32 %v4576, %v4870
      %v4872 = vpop.f32.mrb[0].mxu0
      %4873 = vmatprep.mubr.f32.mxu0 0.0
      %4874 = vmatmul.mubr.f32.gmra.mrb[0].mxu0 %v4660
      %v4875 = vpop.f32.mrb[0].mxu0
      %v4876 = vadd.f32 %v4576, %v4875
      %v4877 = vpop.f32.mrb[0].mxu0
      %4878 = vmatprep.mubr.f32.mxu0 0.0
      %4879 = vmatmul.mubr.f32.gmra.mrb[0].mxu0 %v4663
      %v4880 = vpop.f32.mrb[0].mxu0
      %v4881 = vadd.f32 %v4576, %v4880
      %v4882 = vpop.f32.mrb[0].mxu0
      %4883 = vmatprep.mubr.f32.mxu0 0.0
      %4884 = vmatmul.mubr.f32.gmra.mrb[0].mxu0 %v4666
      %v4885 = vpop.f32.mrb[0].mxu0
      %v4886 = vadd.f32 %v4576, %v4885
      %v4887 = vpop.f32.mrb[0].mxu0
      %4888 = vmatprep.mubr.f32.mxu0 0.0
      %4889 = vmatmul.mubr.f32.gmra.mrb[0].mxu0 %v4669
      %v4890 = vpop.f32.mrb[0].mxu0
      %v4891 = vadd.f32 %v4576, %v4890
      %v4892 = vpop.f32.mrb[0].mxu0
      %4893 = vmatprep.mubr.f32.mxu0 0.0
      %4894 = vmatmul.mubr.f32.gmra.mrb[0].mxu0 %v4672
      %v4895 = vpop.f32.mrb[0].mxu0
      %v4896 = vadd.f32 %v4576, %v4895
      %v4897 = vpop.f32.mrb[0].mxu0
      %4898 = vdwg.mxu0
      %v4899 = vmax.f32 %v4741, 0.0
      %v4900 = vmax.f32 %v4746, 0.0
      %v4901 = vmax.f32 %v4751, 0.0
      %v4902 = vmax.f32 %v4756, 0.0
      %v4903 = vmax.f32 %v4761, 0.0
      %v4904 = vmax.f32 %v4766, 0.0
      %v4905 = vmax.f32 %v4771, 0.0
      %v4906 = vmax.f32 %v4776, 0.0
      %v4907 = vmax.f32 %v4781, 0.0
      %v4908 = vmax.f32 %v4786, 0.0
      %v4909 = vmax.f32 %v4791, 0.0
      %v4910 = vmax.f32 %v4796, 0.0
      %v4911 = vmax.f32 %v4801, 0.0
      %v4912 = vmax.f32 %v4806, 0.0
      %v4913 = vmax.f32 %v4811, 0.0
      %v4914 = vmax.f32 %v4816, 0.0
      %v4915 = vmax.f32 %v4821, 0.0
      %v4916 = vmax.f32 %v4826, 0.0
      %v4917 = vmax.f32 %v4831, 0.0
      %v4918 = vmax.f32 %v4836, 0.0
      %v4919 = vmax.f32 %v4841, 0.0
      %v4920 = vmax.f32 %v4846, 0.0
      %v4921 = vmax.f32 %v4851, 0.0
      %v4922 = vmax.f32 %v4856, 0.0
      %v4923 = vmax.f32 %v4861, 0.0
      %v4924 = vmax.f32 %v4866, 0.0
      %v4925 = vmax.f32 %v4871, 0.0
      %v4926 = vmax.f32 %v4876, 0.0
      %v4927 = vmax.f32 %v4881, 0.0
      %v4928 = vmax.f32 %v4886, 0.0
      %v4929 = vmax.f32 %v4891, 0.0
      %v4930 = vmax.f32 %v4896, 0.0
      %v4931 = vld [vmem:[%s4] sm:$0xff]
      %v4932 = vld [vmem:[%s4 + $0x8] sm:$0xff]
      %v4933 = vld [vmem:[%s4 + $0x10] sm:$0xff]
      %v4934 = vld [vmem:[%s4 + $0x18] sm:$0xff]
      %v4935 = vld [vmem:[%s4 + $0x20] sm:$0xff]
      %v4936 = vld [vmem:[%s4 + $0x28] sm:$0xff]
      %v4937 = vld [vmem:[%s4 + $0x30] sm:$0xff]
      %v4938 = vld [vmem:[%s4 + $0x38] sm:$0xff]
      %v4939 = vld [vmem:[%s4 + $0x40] sm:$0xff]
      %v4940 = vlaneseq
      %v4941 = vshrl.u32 %v4940, 7
      %v4942 = vsub.s32 4, %v4941
      %v4943 = vrot.slane %v400, %v4942
      %4944 = vmatprep.subr.mxu0 0.0
      %4945 = vmatpush1.msra.mxu0 %v4931
      %4946 = vmatprep.subr.mxu0 0.0
      %4947 = vmatpush1.msra.mxu0 %v4932
      %4948 = vmatprep.subr.mxu0 0.0
      %4949 = vmatpush1.msra.mxu0 %v4933
      %4950 = vmatprep.subr.mxu0 0.0
      %4951 = vmatpush1.msra.mxu0 %v4934
      %4952 = vmatprep.subr.mxu0 0.0
      %4953 = vmatpush1.msra.mxu0 %v4935
      %4954 = vmatprep.subr.mxu0 0.0
      %4955 = vmatpush1.msra.mxu0 %v4936
      %4956 = vmatprep.subr.mxu0 0.0
      %4957 = vmatpush1.msra.mxu0 %v4937
      %4958 = vmatprep.subr.mxu0 0.0
      %4959 = vmatpush1.msra.mxu0 %v4938
      %4960 = vmatprep.subr.mxu0 0.0
      %4961 = vmatpush1.msra.mxu0 %v4939
      %4962 = vmatprep.subr.mxu0 0.0
      %4963 = vmatpush1.msra.mxu0 0.0
      %4964 = vmatprep.subr.mxu0 0.0
      %4965 = vmatpush1.msra.mxu0 0.0
      %4966 = vmatprep.subr.mxu0 0.0
      %4967 = vmatpush1.msra.mxu0 0.0
      %4968 = vmatprep.subr.mxu0 0.0
      %4969 = vmatpush1.msra.mxu0 0.0
      %4970 = vmatprep.subr.mxu0 0.0
      %4971 = vmatpush1.msra.mxu0 0.0
      %4972 = vmatprep.subr.mxu0 0.0
      %4973 = vmatpush1.msra.mxu0 0.0
      %4974 = vmatprep.subr.mxu0 0.0
      %4975 = vmatpush1.msra.mxu0 0.0
      %4976 = vmatprep.subr.mxu0 0.0
      %4977 = vmatpush1.msra.mxu0 0.0
      %4978 = vmatprep.subr.mxu0 0.0
      %4979 = vmatpush1.msra.mxu0 0.0
      %4980 = vmatprep.subr.mxu0 0.0
      %4981 = vmatpush1.msra.mxu0 0.0
      %4982 = vmatprep.subr.mxu0 0.0
      %4983 = vmatpush1.msra.mxu0 0.0
      %4984 = vmatprep.subr.mxu0 0.0
      %4985 = vmatpush1.msra.mxu0 0.0
      %4986 = vmatprep.subr.mxu0 0.0
      %4987 = vmatpush1.msra.mxu0 0.0
      %4988 = vmatprep.subr.mxu0 0.0
      %4989 = vmatpush1.msra.mxu0 0.0
      %4990 = vmatprep.subr.mxu0 0.0
      %4991 = vmatpush1.msra.mxu0 0.0
      %4992 = vmatprep.subr.mxu0 0.0
      %4993 = vmatpush1.msra.mxu0 0.0
      %4994 = vmatprep.subr.mxu0 0.0
      %4995 = vmatpush1.msra.mxu0 0.0
      %4996 = vmatprep.subr.mxu0 0.0
      %4997 = vmatpush1.msra.mxu0 0.0
      %4998 = vmatprep.subr.mxu0 0.0
      %4999 = vmatpush1.msra.mxu0 0.0
      %5000 = vmatprep.subr.mxu0 0.0
      %5001 = vmatpush1.msra.mxu0 0.0
      %5002 = vmatprep.subr.mxu0 0.0
      %5003 = vmatpush1.msra.mxu0 0.0
      %5004 = vmatprep.subr.mxu0 0.0
      %5005 = vmatpush1.msra.mxu0 0.0
      %5006 = vmatprep.subr.mxu0 0.0
      %5007 = vmatpush1.msra.mxu0 0.0
      %5008 = vmatprep.mubr.f32.mxu0 0.0
      %5009 = vmatmul.mubr.f32.gmra.mrb[0].mxu0 %v4579
      %v5010 = vpop.f32.mrb[0].mxu0
      %v5011 = vadd.f32 %v4943, %v5010
      %v5012 = vpop.f32.mrb[0].mxu0
      %5013 = vmatprep.mubr.f32.mxu0 0.0
      %5014 = vmatmul.mubr.f32.gmra.mrb[0].mxu0 %v4582
      %v5015 = vpop.f32.mrb[0].mxu0
      %v5016 = vadd.f32 %v4943, %v5015
      %v5017 = vpop.f32.mrb[0].mxu0
      %5018 = vmatprep.mubr.f32.mxu0 0.0
      %5019 = vmatmul.mubr.f32.gmra.mrb[0].mxu0 %v4585
      %v5020 = vpop.f32.mrb[0].mxu0
      %v5021 = vadd.f32 %v4943, %v5020
      %v5022 = vpop.f32.mrb[0].mxu0
      %5023 = vmatprep.mubr.f32.mxu0 0.0
      %5024 = vmatmul.mubr.f32.gmra.mrb[0].mxu0 %v4588
      %v5025 = vpop.f32.mrb[0].mxu0
      %v5026 = vadd.f32 %v4943, %v5025
      %v5027 = vpop.f32.mrb[0].mxu0
      %5028 = vmatprep.mubr.f32.mxu0 0.0
      %5029 = vmatmul.mubr.f32.gmra.mrb[0].mxu0 %v4591
      %v5030 = vpop.f32.mrb[0].mxu0
      %v5031 = vadd.f32 %v4943, %v5030
      %v5032 = vpop.f32.mrb[0].mxu0
      %5033 = vmatprep.mubr.f32.mxu0 0.0
      %5034 = vmatmul.mubr.f32.gmra.mrb[0].mxu0 %v4594
      %v5035 = vpop.f32.mrb[0].mxu0
      %v5036 = vadd.f32 %v4943, %v5035
      %v5037 = vpop.f32.mrb[0].mxu0
      %5038 = vmatprep.mubr.f32.mxu0 0.0
      %5039 = vmatmul.mubr.f32.gmra.mrb[0].mxu0 %v4597
      %v5040 = vpop.f32.mrb[0].mxu0
      %v5041 = vadd.f32 %v4943, %v5040
      %v5042 = vpop.f32.mrb[0].mxu0
      %5043 = vmatprep.mubr.f32.mxu0 0.0
      %5044 = vmatmul.mubr.f32.gmra.mrb[0].mxu0 %v4600
      %v5045 = vpop.f32.mrb[0].mxu0
      %v5046 = vadd.f32 %v4943, %v5045
      %v5047 = vpop.f32.mrb[0].mxu0
      %5048 = vmatprep.mubr.f32.mxu0 0.0
      %5049 = vmatmul.mubr.f32.gmra.mrb[0].mxu0 %v4603
      %v5050 = vpop.f32.mrb[0].mxu0
      %v5051 = vadd.f32 %v4943, %v5050
      %v5052 = vpop.f32.mrb[0].mxu0
      %5053 = vmatprep.mubr.f32.mxu0 0.0
      %5054 = vmatmul.mubr.f32.gmra.mrb[0].mxu0 %v4606
      %v5055 = vpop.f32.mrb[0].mxu0
      %v5056 = vadd.f32 %v4943, %v5055
      %v5057 = vpop.f32.mrb[0].mxu0
      %5058 = vmatprep.mubr.f32.mxu0 0.0
      %5059 = vmatmul.mubr.f32.gmra.mrb[0].mxu0 %v4609
      %v5060 = vpop.f32.mrb[0].mxu0
      %v5061 = vadd.f32 %v4943, %v5060
      %v5062 = vpop.f32.mrb[0].mxu0
      %5063 = vmatprep.mubr.f32.mxu0 0.0
      %5064 = vmatmul.mubr.f32.gmra.mrb[0].mxu0 %v4612
      %v5065 = vpop.f32.mrb[0].mxu0
      %v5066 = vadd.f32 %v4943, %v5065
      %v5067 = vpop.f32.mrb[0].mxu0
      %5068 = vmatprep.mubr.f32.mxu0 0.0
      %5069 = vmatmul.mubr.f32.gmra.mrb[0].mxu0 %v4615
      %v5070 = vpop.f32.mrb[0].mxu0
      %v5071 = vadd.f32 %v4943, %v5070
      %v5072 = vpop.f32.mrb[0].mxu0
      %5073 = vmatprep.mubr.f32.mxu0 0.0
      %5074 = vmatmul.mubr.f32.gmra.mrb[0].mxu0 %v4618
      %v5075 = vpop.f32.mrb[0].mxu0
      %v5076 = vadd.f32 %v4943, %v5075
      %v5077 = vpop.f32.mrb[0].mxu0
      %5078 = vmatprep.mubr.f32.mxu0 0.0
      %5079 = vmatmul.mubr.f32.gmra.mrb[0].mxu0 %v4621
      %v5080 = vpop.f32.mrb[0].mxu0
      %v5081 = vadd.f32 %v4943, %v5080
      %v5082 = vpop.f32.mrb[0].mxu0
      %5083 = vmatprep.mubr.f32.mxu0 0.0
      %5084 = vmatmul.mubr.f32.gmra.mrb[0].mxu0 %v4624
      %v5085 = vpop.f32.mrb[0].mxu0
      %v5086 = vadd.f32 %v4943, %v5085
      %v5087 = vpop.f32.mrb[0].mxu0
      %5088 = vmatprep.mubr.f32.mxu0 0.0
      %5089 = vmatmul.mubr.f32.gmra.mrb[0].mxu0 %v4627
      %v5090 = vpop.f32.mrb[0].mxu0
      %v5091 = vadd.f32 %v4943, %v5090
      %v5092 = vpop.f32.mrb[0].mxu0
      %5093 = vmatprep.mubr.f32.mxu0 0.0
      %5094 = vmatmul.mubr.f32.gmra.mrb[0].mxu0 %v4630
      %v5095 = vpop.f32.mrb[0].mxu0
      %v5096 = vadd.f32 %v4943, %v5095
      %v5097 = vpop.f32.mrb[0].mxu0
      %5098 = vmatprep.mubr.f32.mxu0 0.0
      %5099 = vmatmul.mubr.f32.gmra.mrb[0].mxu0 %v4633
      %v5100 = vpop.f32.mrb[0].mxu0
      %v5101 = vadd.f32 %v4943, %v5100
      %v5102 = vpop.f32.mrb[0].mxu0
      %5103 = vmatprep.mubr.f32.mxu0 0.0
      %5104 = vmatmul.mubr.f32.gmra.mrb[0].mxu0 %v4636
      %v5105 = vpop.f32.mrb[0].mxu0
      %v5106 = vadd.f32 %v4943, %v5105
      %v5107 = vpop.f32.mrb[0].mxu0
      %5108 = vmatprep.mubr.f32.mxu0 0.0
      %5109 = vmatmul.mubr.f32.gmra.mrb[0].mxu0 %v4639
      %v5110 = vpop.f32.mrb[0].mxu0
      %v5111 = vadd.f32 %v4943, %v5110
      %v5112 = vpop.f32.mrb[0].mxu0
      %5113 = vmatprep.mubr.f32.mxu0 0.0
      %5114 = vmatmul.mubr.f32.gmra.mrb[0].mxu0 %v4642
      %v5115 = vpop.f32.mrb[0].mxu0
      %v5116 = vadd.f32 %v4943, %v5115
      %v5117 = vpop.f32.mrb[0].mxu0
      %5118 = vmatprep.mubr.f32.mxu0 0.0
      %5119 = vmatmul.mubr.f32.gmra.mrb[0].mxu0 %v4645
      %v5120 = vpop.f32.mrb[0].mxu0
      %v5121 = vadd.f32 %v4943, %v5120
      %v5122 = vpop.f32.mrb[0].mxu0
      %5123 = vmatprep.mubr.f32.mxu0 0.0
      %5124 = vmatmul.mubr.f32.gmra.mrb[0].mxu0 %v4648
      %v5125 = vpop.f32.mrb[0].mxu0
      %v5126 = vadd.f32 %v4943, %v5125
      %v5127 = vpop.f32.mrb[0].mxu0
      %5128 = vmatprep.mubr.f32.mxu0 0.0
      %5129 = vmatmul.mubr.f32.gmra.mrb[0].mxu0 %v4651
      %v5130 = vpop.f32.mrb[0].mxu0
      %v5131 = vadd.f32 %v4943, %v5130
      %v5132 = vpop.f32.mrb[0].mxu0
      %5133 = vmatprep.mubr.f32.mxu0 0.0
      %5134 = vmatmul.mubr.f32.gmra.mrb[0].mxu0 %v4654
      %v5135 = vpop.f32.mrb[0].mxu0
      %v5136 = vadd.f32 %v4943, %v5135
      %v5137 = vpop.f32.mrb[0].mxu0
      %5138 = vmatprep.mubr.f32.mxu0 0.0
      %5139 = vmatmul.mubr.f32.gmra.mrb[0].mxu0 %v4657
      %v5140 = vpop.f32.mrb[0].mxu0
      %v5141 = vadd.f32 %v4943, %v5140
      %v5142 = vpop.f32.mrb[0].mxu0
      %5143 = vmatprep.mubr.f32.mxu0 0.0
      %5144 = vmatmul.mubr.f32.gmra.mrb[0].mxu0 %v4660
      %v5145 = vpop.f32.mrb[0].mxu0
      %v5146 = vadd.f32 %v4943, %v5145
      %v5147 = vpop.f32.mrb[0].mxu0
      %5148 = vmatprep.mubr.f32.mxu0 0.0
      %5149 = vmatmul.mubr.f32.gmra.mrb[0].mxu0 %v4663
      %v5150 = vpop.f32.mrb[0].mxu0
      %v5151 = vadd.f32 %v4943, %v5150
      %v5152 = vpop.f32.mrb[0].mxu0
      %5153 = vmatprep.mubr.f32.mxu0 0.0
      %5154 = vmatmul.mubr.f32.gmra.mrb[0].mxu0 %v4666
      %v5155 = vpop.f32.mrb[0].mxu0
      %v5156 = vadd.f32 %v4943, %v5155
      %v5157 = vpop.f32.mrb[0].mxu0
      %5158 = vmatprep.mubr.f32.mxu0 0.0
      %5159 = vmatmul.mubr.f32.gmra.mrb[0].mxu0 %v4669
      %v5160 = vpop.f32.mrb[0].mxu0
      %v5161 = vadd.f32 %v4943, %v5160
      %v5162 = vpop.f32.mrb[0].mxu0
      %5163 = vmatprep.mubr.f32.mxu0 0.0
      %5164 = vmatmul.mubr.f32.gmra.mrb[0].mxu0 %v4672
      %v5165 = vpop.f32.mrb[0].mxu0
      %v5166 = vadd.f32 %v4943, %v5165
      %v5167 = vpop.f32.mrb[0].mxu0
      %5168 = vdwg.mxu0
      %v5169 = vmax.f32 %v5011, 0.0
      %v5170 = vmax.f32 %v5016, 0.0
      %v5171 = vmax.f32 %v5021, 0.0
      %v5172 = vmax.f32 %v5026, 0.0
      %v5173 = vmax.f32 %v5031, 0.0
      %v5174 = vmax.f32 %v5036, 0.0
      %v5175 = vmax.f32 %v5041, 0.0
      %v5176 = vmax.f32 %v5046, 0.0
      %v5177 = vmax.f32 %v5051, 0.0
      %v5178 = vmax.f32 %v5056, 0.0
      %v5179 = vmax.f32 %v5061, 0.0
      %v5180 = vmax.f32 %v5066, 0.0
      %v5181 = vmax.f32 %v5071, 0.0
      %v5182 = vmax.f32 %v5076, 0.0
      %v5183 = vmax.f32 %v5081, 0.0
      %v5184 = vmax.f32 %v5086, 0.0
      %v5185 = vmax.f32 %v5091, 0.0
      %v5186 = vmax.f32 %v5096, 0.0
      %v5187 = vmax.f32 %v5101, 0.0
      %v5188 = vmax.f32 %v5106, 0.0
      %v5189 = vmax.f32 %v5111, 0.0
      %v5190 = vmax.f32 %v5116, 0.0
      %v5191 = vmax.f32 %v5121, 0.0
      %v5192 = vmax.f32 %v5126, 0.0
      %v5193 = vmax.f32 %v5131, 0.0
      %v5194 = vmax.f32 %v5136, 0.0
      %v5195 = vmax.f32 %v5141, 0.0
      %v5196 = vmax.f32 %v5146, 0.0
      %v5197 = vmax.f32 %v5151, 0.0
      %v5198 = vmax.f32 %v5156, 0.0
      %v5199 = vmax.f32 %v5161, 0.0
      %v5200 = vmax.f32 %v5166, 0.0
      %5201 = vst.msk [vmem:[#allocation4] sm:$0xff] %vm1873, 0.0
      %5202 = vst.msk [vmem:[#allocation4 + $0x8] sm:$0xff] %vm1873, 0.0
      %5203 = vst.msk [vmem:[#allocation4 + $0x10] sm:$0xf] %vm2541, 0.0
      %5204 = vst.msk [vmem:[#allocation4 + $0x18] sm:$0xff] %vm1873, 0.0
      %5205 = vst.msk [vmem:[#allocation4 + $0x20] sm:$0xff] %vm1873, 0.0
      %5206 = vst.msk [vmem:[#allocation4 + $0x28] sm:$0xf] %vm2541, 0.0
      %5207 = vst.msk [vmem:[#allocation4 + $0x30] sm:$0xff] %vm1873, 0.0
      %5208 = vst.msk [vmem:[#allocation4 + $0x38] sm:$0xff] %vm1873, 0.0
      %5209 = vst.msk [vmem:[#allocation4 + $0x40] sm:$0xf] %vm2541, 0.0
      %5210 = vst.msk [vmem:[#allocation4 + $0x48] sm:$0xff] %vm1873, 0.0
      %5211 = vst.msk [vmem:[#allocation4 + $0x50] sm:$0xff] %vm1873, 0.0
      %5212 = vst.msk [vmem:[#allocation4 + $0x58] sm:$0xf] %vm2541, 0.0
      %5213 = vst.msk [vmem:[#allocation4 + $0x60] sm:$0xff] %vm1873, 0.0
      %5214 = vst.msk [vmem:[#allocation4 + $0x68] sm:$0xff] %vm1873, 0.0
      %5215 = vst.msk [vmem:[#allocation4 + $0x70] sm:$0xf] %vm2541, 0.0
      %5216 = vst.msk [vmem:[#allocation4 + $0x78] sm:$0xff] %vm1873, 0.0
      %5217 = vst.msk [vmem:[#allocation4 + $0x80] sm:$0xff] %vm1873, 0.0
      %5218 = vst.msk [vmem:[#allocation4 + $0x88] sm:$0xf] %vm2541, 0.0
      %5219 = vst.msk [vmem:[#allocation4 + $0x90] sm:$0xff] %vm1873, 0.0
      %5220 = vst.msk [vmem:[#allocation4 + $0x98] sm:$0xff] %vm1873, 0.0
      %5221 = vst.msk [vmem:[#allocation4 + $0xa0] sm:$0xf] %vm2541, 0.0
      %5222 = vst.msk [vmem:[#allocation4 + $0xa8] sm:$0xff] %vm1873, 0.0
      %5223 = vst.msk [vmem:[#allocation4 + $0xb0] sm:$0xff] %vm1873, 0.0
      %5224 = vst.msk [vmem:[#allocation4 + $0xb8] sm:$0xf] %vm2541, 0.0
      %5225 = vst.msk [vmem:[#allocation4 + $0xc0] sm:$0xff] %vm1873, 0.0
      %5226 = vst.msk [vmem:[#allocation4 + $0xc8] sm:$0xff] %vm1873, 0.0
      %5227 = vst.msk [vmem:[#allocation4 + $0xd0] sm:$0xf] %vm2541, 0.0
      %5228 = vst.msk [vmem:[#allocation4 + $0xd8] sm:$0xff] %vm1873, 0.0
      %5229 = vst.msk [vmem:[#allocation4 + $0xe0] sm:$0xff] %vm1873, 0.0
      %5230 = vst.msk [vmem:[#allocation4 + $0xe8] sm:$0xf] %vm2541, 0.0
      %5231 = vst.msk [vmem:[#allocation4 + $0xf0] sm:$0xff] %vm1873, 0.0
      %5232 = vst.msk [vmem:[#allocation4 + $0xf8] sm:$0xff] %vm1873, 0.0
      %5233 = vst.msk [vmem:[#allocation4 + $0x100] sm:$0xf] %vm2541, 0.0
      %5234 = vst.msk [vmem:[#allocation4 + $0x108] sm:$0xff] %vm1873, 0.0
      %5235 = vst.msk [vmem:[#allocation4 + $0x110] sm:$0xff] %vm1873, 0.0
      %5236 = vst.msk [vmem:[#allocation4 + $0x118] sm:$0xf] %vm2541, 0.0
      %5237 = vst.msk [vmem:[#allocation4 + $0x120] sm:$0xff] %vm1873, 0.0
      %5238 = vst.msk [vmem:[#allocation4 + $0x128] sm:$0xff] %vm1873, 0.0
      %5239 = vst.msk [vmem:[#allocation4 + $0x130] sm:$0xf] %vm2541, 0.0
      %5240 = vst.msk [vmem:[#allocation4 + $0x138] sm:$0xff] %vm1873, 0.0
      %5241 = vst.msk [vmem:[#allocation4 + $0x140] sm:$0xff] %vm1873, 0.0
      %5242 = vst.msk [vmem:[#allocation4 + $0x148] sm:$0xf] %vm2541, 0.0
      %5243 = vst.msk [vmem:[#allocation4 + $0x150] sm:$0xff] %vm1873, 0.0
      %5244 = vst.msk [vmem:[#allocation4 + $0x158] sm:$0xff] %vm1873, 0.0
      %5245 = vst.msk [vmem:[#allocation4 + $0x160] sm:$0xf] %vm2541, 0.0
      %5246 = vst.msk [vmem:[#allocation4 + $0x168] sm:$0xff] %vm1873, 0.0
      %5247 = vst.msk [vmem:[#allocation4 + $0x170] sm:$0xff] %vm1873, 0.0
      %5248 = vst.msk [vmem:[#allocation4 + $0x178] sm:$0xf] %vm2541, 0.0
      %5249 = vst.msk [vmem:[#allocation4 + $0x180] sm:$0xff] %vm1873, 0.0
      %5250 = vst.msk [vmem:[#allocation4 + $0x188] sm:$0xff] %vm1873, 0.0
      %5251 = vst.msk [vmem:[#allocation4 + $0x190] sm:$0xf] %vm2541, 0.0
      %5252 = vst.msk [vmem:[#allocation4 + $0x198] sm:$0xff] %vm1873, 0.0
      %5253 = vst.msk [vmem:[#allocation4 + $0x1a0] sm:$0xff] %vm1873, 0.0
      %5254 = vst.msk [vmem:[#allocation4 + $0x1a8] sm:$0xf] %vm2541, 0.0
      %5255 = vst.msk [vmem:[#allocation4 + $0x1b0] sm:$0xff] %vm1873, 0.0
      %5256 = vst.msk [vmem:[#allocation4 + $0x1b8] sm:$0xff] %vm1873, 0.0
      %5257 = vst.msk [vmem:[#allocation4 + $0x1c0] sm:$0xf] %vm2541, 0.0
      %5258 = vst.msk [vmem:[#allocation4 + $0x1c8] sm:$0xff] %vm1873, 0.0
      %5259 = vst.msk [vmem:[#allocation4 + $0x1d0] sm:$0xff] %vm1873, 0.0
      %5260 = vst.msk [vmem:[#allocation4 + $0x1d8] sm:$0xf] %vm2541, 0.0
      %s5261 = scalar_lea.vmem [#allocation4], 48
      %5262 = vst.msk [vmem:[%s5261 + $0x2] sm:$0xff] %vm1873, %v5169
      %5263 = vst.msk [vmem:[%s5261 + $0xa] sm:$0xff] %vm1873, %v5170
      %5264 = vst.msk [vmem:[%s5261 + $0x1a] sm:$0xff] %vm1873, %v5171
      %5265 = vst.msk [vmem:[%s5261 + $0x22] sm:$0xff] %vm1873, %v5172
      %5266 = vst.msk [vmem:[%s5261 + $0x32] sm:$0xff] %vm1873, %v5173
      %5267 = vst.msk [vmem:[%s5261 + $0x3a] sm:$0xff] %vm1873, %v5174
      %5268 = vst.msk [vmem:[%s5261 + $0x4a] sm:$0xff] %vm1873, %v5175
      %5269 = vst.msk [vmem:[%s5261 + $0x52] sm:$0xff] %vm1873, %v5176
      %5270 = vst.msk [vmem:[%s5261 + $0x62] sm:$0xff] %vm1873, %v5177
      %5271 = vst.msk [vmem:[%s5261 + $0x6a] sm:$0xff] %vm1873, %v5178
      %5272 = vst.msk [vmem:[%s5261 + $0x7a] sm:$0xff] %vm1873, %v5179
      %5273 = vst.msk [vmem:[%s5261 + $0x82] sm:$0xff] %vm1873, %v5180
      %5274 = vst.msk [vmem:[%s5261 + $0x92] sm:$0xff] %vm1873, %v5181
      %5275 = vst.msk [vmem:[%s5261 + $0x9a] sm:$0xff] %vm1873, %v5182
      %5276 = vst.msk [vmem:[%s5261 + $0xaa] sm:$0xff] %vm1873, %v5183
      %5277 = vst.msk [vmem:[%s5261 + $0xb2] sm:$0xff] %vm1873, %v5184
      %5278 = vst.msk [vmem:[%s5261 + $0xc2] sm:$0xff] %vm1873, %v5185
      %5279 = vst.msk [vmem:[%s5261 + $0xca] sm:$0xff] %vm1873, %v5186
      %5280 = vst.msk [vmem:[%s5261 + $0xda] sm:$0xff] %vm1873, %v5187
      %5281 = vst.msk [vmem:[%s5261 + $0xe2] sm:$0xff] %vm1873, %v5188
      %5282 = vst.msk [vmem:[%s5261 + $0xf2] sm:$0xff] %vm1873, %v5189
      %5283 = vst.msk [vmem:[%s5261 + $0xfa] sm:$0xff] %vm1873, %v5190
      %5284 = vst.msk [vmem:[%s5261 + $0x10a] sm:$0xff] %vm1873, %v5191
      %5285 = vst.msk [vmem:[%s5261 + $0x112] sm:$0xff] %vm1873, %v5192
      %5286 = vst.msk [vmem:[%s5261 + $0x122] sm:$0xff] %vm1873, %v5193
      %5287 = vst.msk [vmem:[%s5261 + $0x12a] sm:$0xff] %vm1873, %v5194
      %5288 = vst.msk [vmem:[%s5261 + $0x13a] sm:$0xff] %vm1873, %v5195
      %5289 = vst.msk [vmem:[%s5261 + $0x142] sm:$0xff] %vm1873, %v5196
      %5290 = vst.msk [vmem:[%s5261 + $0x152] sm:$0xff] %vm1873, %v5197
      %5291 = vst.msk [vmem:[%s5261 + $0x15a] sm:$0xff] %vm1873, %v5198
      %5292 = vst.msk [vmem:[%s5261 + $0x16a] sm:$0xff] %vm1873, %v5199
      %5293 = vst.msk [vmem:[%s5261 + $0x172] sm:$0xff] %vm1873, %v5200
      %v5294 = vld [vmem:[#allocation4] sm:$0xff]
      %v5295 = vld [vmem:[#allocation4 + $0x8] sm:$0xff]
      %v5296 = vld [vmem:[#allocation4 + $0x18] sm:$0xff]
      %v5297 = vld [vmem:[#allocation4 + $0x20] sm:$0xff]
      %v5298 = vld [vmem:[#allocation4 + $0x30] sm:$0xff]
      %v5299 = vld [vmem:[#allocation4 + $0x38] sm:$0xff]
      %v5300 = vld [vmem:[#allocation4 + $0x48] sm:$0xff]
      %v5301 = vld [vmem:[#allocation4 + $0x50] sm:$0xff]
      %v5302 = vld [vmem:[#allocation4 + $0x60] sm:$0xff]
      %v5303 = vld [vmem:[#allocation4 + $0x68] sm:$0xff]
      %v5304 = vld [vmem:[#allocation4 + $0x78] sm:$0xff]
      %v5305 = vld [vmem:[#allocation4 + $0x80] sm:$0xff]
      %v5306 = vld [vmem:[#allocation4 + $0x90] sm:$0xff]
      %v5307 = vld [vmem:[#allocation4 + $0x98] sm:$0xff]
      %v5308 = vld [vmem:[#allocation4 + $0xa8] sm:$0xff]
      %v5309 = vld [vmem:[#allocation4 + $0xb0] sm:$0xff]
      %v5310 = vld [vmem:[#allocation4 + $0xc0] sm:$0xff]
      %v5311 = vld [vmem:[#allocation4 + $0xc8] sm:$0xff]
      %v5312 = vld [vmem:[#allocation4 + $0xd8] sm:$0xff]
      %v5313 = vld [vmem:[#allocation4 + $0xe0] sm:$0xff]
      %v5314 = vld [vmem:[#allocation4 + $0xf0] sm:$0xff]
      %v5315 = vld [vmem:[#allocation4 + $0xf8] sm:$0xff]
      %v5316 = vld [vmem:[#allocation4 + $0x108] sm:$0xff]
      %v5317 = vld [vmem:[#allocation4 + $0x110] sm:$0xff]
      %v5318 = vld [vmem:[#allocation4 + $0x120] sm:$0xff]
      %v5319 = vld [vmem:[#allocation4 + $0x128] sm:$0xff]
      %v5320 = vld [vmem:[#allocation4 + $0x138] sm:$0xff]
      %v5321 = vld [vmem:[#allocation4 + $0x140] sm:$0xff]
      %v5322 = vld [vmem:[#allocation4 + $0x150] sm:$0xff]
      %v5323 = vld [vmem:[#allocation4 + $0x158] sm:$0xff]
      %v5324 = vld [vmem:[#allocation4 + $0x168] sm:$0xff]
      %v5325 = vld [vmem:[#allocation4 + $0x170] sm:$0xff]
      %v5326 = vld [vmem:[#allocation4 + $0x2] sm:$0xff]
      %v5327 = vld [vmem:[#allocation4 + $0xa] sm:$0xff]
      %v5328 = vld [vmem:[#allocation4 + $0x1a] sm:$0xff]
      %v5329 = vld [vmem:[#allocation4 + $0x22] sm:$0xff]
      %v5330 = vld [vmem:[#allocation4 + $0x32] sm:$0xff]
      %v5331 = vld [vmem:[#allocation4 + $0x3a] sm:$0xff]
      %v5332 = vld [vmem:[#allocation4 + $0x4a] sm:$0xff]
      %v5333 = vld [vmem:[#allocation4 + $0x52] sm:$0xff]
      %v5334 = vld [vmem:[#allocation4 + $0x62] sm:$0xff]
      %v5335 = vld [vmem:[#allocation4 + $0x6a] sm:$0xff]
      %v5336 = vld [vmem:[#allocation4 + $0x7a] sm:$0xff]
      %v5337 = vld [vmem:[#allocation4 + $0x82] sm:$0xff]
      %v5338 = vld [vmem:[#allocation4 + $0x92] sm:$0xff]
      %v5339 = vld [vmem:[#allocation4 + $0x9a] sm:$0xff]
      %v5340 = vld [vmem:[#allocation4 + $0xaa] sm:$0xff]
      %v5341 = vld [vmem:[#allocation4 + $0xb2] sm:$0xff]
      %v5342 = vld [vmem:[#allocation4 + $0xc2] sm:$0xff]
      %v5343 = vld [vmem:[#allocation4 + $0xca] sm:$0xff]
      %v5344 = vld [vmem:[#allocation4 + $0xda] sm:$0xff]
      %v5345 = vld [vmem:[#allocation4 + $0xe2] sm:$0xff]
      %v5346 = vld [vmem:[#allocation4 + $0xf2] sm:$0xff]
      %v5347 = vld [vmem:[#allocation4 + $0xfa] sm:$0xff]
      %v5348 = vld [vmem:[#allocation4 + $0x10a] sm:$0xff]
      %v5349 = vld [vmem:[#allocation4 + $0x112] sm:$0xff]
      %v5350 = vld [vmem:[#allocation4 + $0x122] sm:$0xff]
      %v5351 = vld [vmem:[#allocation4 + $0x12a] sm:$0xff]
      %v5352 = vld [vmem:[#allocation4 + $0x13a] sm:$0xff]
      %v5353 = vld [vmem:[#allocation4 + $0x142] sm:$0xff]
      %v5354 = vld [vmem:[#allocation4 + $0x152] sm:$0xff]
      %v5355 = vld [vmem:[#allocation4 + $0x15a] sm:$0xff]
      %v5356 = vld [vmem:[#allocation4 + $0x16a] sm:$0xff]
      %v5357 = vld [vmem:[#allocation4 + $0x172] sm:$0xff]
      %v5358 = vld [vmem:[#allocation4 + $0x4] sm:$0xff]
      %v5359 = vld [vmem:[#allocation4 + $0xc] sm:$0xff]
      %v5360 = vld [vmem:[#allocation4 + $0x1c] sm:$0xff]
      %v5361 = vld [vmem:[#allocation4 + $0x24] sm:$0xff]
      %v5362 = vld [vmem:[#allocation4 + $0x34] sm:$0xff]
      %v5363 = vld [vmem:[#allocation4 + $0x3c] sm:$0xff]
      %v5364 = vld [vmem:[#allocation4 + $0x4c] sm:$0xff]
      %v5365 = vld [vmem:[#allocation4 + $0x54] sm:$0xff]
      %v5366 = vld [vmem:[#allocation4 + $0x64] sm:$0xff]
      %v5367 = vld [vmem:[#allocation4 + $0x6c] sm:$0xff]
      %v5368 = vld [vmem:[#allocation4 + $0x7c] sm:$0xff]
      %v5369 = vld [vmem:[#allocation4 + $0x84] sm:$0xff]
      %v5370 = vld [vmem:[#allocation4 + $0x94] sm:$0xff]
      %v5371 = vld [vmem:[#allocation4 + $0x9c] sm:$0xff]
      %v5372 = vld [vmem:[#allocation4 + $0xac] sm:$0xff]
      %v5373 = vld [vmem:[#allocation4 + $0xb4] sm:$0xff]
      %v5374 = vld [vmem:[#allocation4 + $0xc4] sm:$0xff]
      %v5375 = vld [vmem:[#allocation4 + $0xcc] sm:$0xff]
      %v5376 = vld [vmem:[#allocation4 + $0xdc] sm:$0xff]
      %v5377 = vld [vmem:[#allocation4 + $0xe4] sm:$0xff]
      %v5378 = vld [vmem:[#allocation4 + $0xf4] sm:$0xff]
      %v5379 = vld [vmem:[#allocation4 + $0xfc] sm:$0xff]
      %v5380 = vld [vmem:[#allocation4 + $0x10c] sm:$0xff]
      %v5381 = vld [vmem:[#allocation4 + $0x114] sm:$0xff]
      %v5382 = vld [vmem:[#allocation4 + $0x124] sm:$0xff]
      %v5383 = vld [vmem:[#allocation4 + $0x12c] sm:$0xff]
      %v5384 = vld [vmem:[#allocation4 + $0x13c] sm:$0xff]
      %v5385 = vld [vmem:[#allocation4 + $0x144] sm:$0xff]
      %v5386 = vld [vmem:[#allocation4 + $0x154] sm:$0xff]
      %v5387 = vld [vmem:[#allocation4 + $0x15c] sm:$0xff]
      %v5388 = vld [vmem:[#allocation4 + $0x16c] sm:$0xff]
      %v5389 = vld [vmem:[#allocation4 + $0x174] sm:$0xff]
      %v5390 = vld [vmem:[%s5261] sm:$0xff]
      %v5391 = vld [vmem:[%s5261 + $0x8] sm:$0xff]
      %v5392 = vld [vmem:[%s5261 + $0x18] sm:$0xff]
      %v5393 = vld [vmem:[%s5261 + $0x20] sm:$0xff]
      %v5394 = vld [vmem:[%s5261 + $0x30] sm:$0xff]
      %v5395 = vld [vmem:[%s5261 + $0x38] sm:$0xff]
      %v5396 = vld [vmem:[%s5261 + $0x48] sm:$0xff]
      %v5397 = vld [vmem:[%s5261 + $0x50] sm:$0xff]
      %v5398 = vld [vmem:[%s5261 + $0x60] sm:$0xff]
      %v5399 = vld [vmem:[%s5261 + $0x68] sm:$0xff]
      %v5400 = vld [vmem:[%s5261 + $0x78] sm:$0xff]
      %v5401 = vld [vmem:[%s5261 + $0x80] sm:$0xff]
      %v5402 = vld [vmem:[%s5261 + $0x90] sm:$0xff]
      %v5403 = vld [vmem:[%s5261 + $0x98] sm:$0xff]
      %v5404 = vld [vmem:[%s5261 + $0xa8] sm:$0xff]
      %v5405 = vld [vmem:[%s5261 + $0xb0] sm:$0xff]
      %v5406 = vld [vmem:[%s5261 + $0xc0] sm:$0xff]
      %v5407 = vld [vmem:[%s5261 + $0xc8] sm:$0xff]
      %v5408 = vld [vmem:[%s5261 + $0xd8] sm:$0xff]
      %v5409 = vld [vmem:[%s5261 + $0xe0] sm:$0xff]
      %v5410 = vld [vmem:[%s5261 + $0xf0] sm:$0xff]
      %v5411 = vld [vmem:[%s5261 + $0xf8] sm:$0xff]
      %v5412 = vld [vmem:[%s5261 + $0x108] sm:$0xff]
      %v5413 = vld [vmem:[%s5261 + $0x110] sm:$0xff]
      %v5414 = vld [vmem:[%s5261 + $0x120] sm:$0xff]
      %v5415 = vld [vmem:[%s5261 + $0x128] sm:$0xff]
      %v5416 = vld [vmem:[%s5261 + $0x138] sm:$0xff]
      %v5417 = vld [vmem:[%s5261 + $0x140] sm:$0xff]
      %v5418 = vld [vmem:[%s5261 + $0x150] sm:$0xff]
      %v5419 = vld [vmem:[%s5261 + $0x158] sm:$0xff]
      %v5420 = vld [vmem:[%s5261 + $0x168] sm:$0xff]
      %v5421 = vld [vmem:[%s5261 + $0x170] sm:$0xff]
      %v5422 = vld [vmem:[%s5261 + $0x2] sm:$0xff]
      %v5423 = vld [vmem:[%s5261 + $0xa] sm:$0xff]
      %v5424 = vld [vmem:[%s5261 + $0x1a] sm:$0xff]
      %v5425 = vld [vmem:[%s5261 + $0x22] sm:$0xff]
      %v5426 = vld [vmem:[%s5261 + $0x32] sm:$0xff]
      %v5427 = vld [vmem:[%s5261 + $0x3a] sm:$0xff]
      %v5428 = vld [vmem:[%s5261 + $0x4a] sm:$0xff]
      %v5429 = vld [vmem:[%s5261 + $0x52] sm:$0xff]
      %v5430 = vld [vmem:[%s5261 + $0x62] sm:$0xff]
      %v5431 = vld [vmem:[%s5261 + $0x6a] sm:$0xff]
      %v5432 = vld [vmem:[%s5261 + $0x7a] sm:$0xff]
      %v5433 = vld [vmem:[%s5261 + $0x82] sm:$0xff]
      %v5434 = vld [vmem:[%s5261 + $0x92] sm:$0xff]
      %v5435 = vld [vmem:[%s5261 + $0x9a] sm:$0xff]
      %v5436 = vld [vmem:[%s5261 + $0xaa] sm:$0xff]
      %v5437 = vld [vmem:[%s5261 + $0xb2] sm:$0xff]
      %v5438 = vld [vmem:[%s5261 + $0xc2] sm:$0xff]
      %v5439 = vld [vmem:[%s5261 + $0xca] sm:$0xff]
      %v5440 = vld [vmem:[%s5261 + $0xda] sm:$0xff]
      %v5441 = vld [vmem:[%s5261 + $0xe2] sm:$0xff]
      %v5442 = vld [vmem:[%s5261 + $0xf2] sm:$0xff]
      %v5443 = vld [vmem:[%s5261 + $0xfa] sm:$0xff]
      %v5444 = vld [vmem:[%s5261 + $0x10a] sm:$0xff]
      %v5445 = vld [vmem:[%s5261 + $0x112] sm:$0xff]
      %v5446 = vld [vmem:[%s5261 + $0x122] sm:$0xff]
      %v5447 = vld [vmem:[%s5261 + $0x12a] sm:$0xff]
      %v5448 = vld [vmem:[%s5261 + $0x13a] sm:$0xff]
      %v5449 = vld [vmem:[%s5261 + $0x142] sm:$0xff]
      %v5450 = vld [vmem:[%s5261 + $0x152] sm:$0xff]
      %v5451 = vld [vmem:[%s5261 + $0x15a] sm:$0xff]
      %v5452 = vld [vmem:[%s5261 + $0x16a] sm:$0xff]
      %v5453 = vld [vmem:[%s5261 + $0x172] sm:$0xff]
      %v5454 = vld [vmem:[%s5261 + $0x4] sm:$0xff]
      %v5455 = vld [vmem:[%s5261 + $0xc] sm:$0xff]
      %v5456 = vld [vmem:[%s5261 + $0x1c] sm:$0xff]
      %v5457 = vld [vmem:[%s5261 + $0x24] sm:$0xff]
      %v5458 = vld [vmem:[%s5261 + $0x34] sm:$0xff]
      %v5459 = vld [vmem:[%s5261 + $0x3c] sm:$0xff]
      %v5460 = vld [vmem:[%s5261 + $0x4c] sm:$0xff]
      %v5461 = vld [vmem:[%s5261 + $0x54] sm:$0xff]
      %v5462 = vld [vmem:[%s5261 + $0x64] sm:$0xff]
      %v5463 = vld [vmem:[%s5261 + $0x6c] sm:$0xff]
      %v5464 = vld [vmem:[%s5261 + $0x7c] sm:$0xff]
      %v5465 = vld [vmem:[%s5261 + $0x84] sm:$0xff]
      %v5466 = vld [vmem:[%s5261 + $0x94] sm:$0xff]
      %v5467 = vld [vmem:[%s5261 + $0x9c] sm:$0xff]
      %v5468 = vld [vmem:[%s5261 + $0xac] sm:$0xff]
      %v5469 = vld [vmem:[%s5261 + $0xb4] sm:$0xff]
      %v5470 = vld [vmem:[%s5261 + $0xc4] sm:$0xff]
      %v5471 = vld [vmem:[%s5261 + $0xcc] sm:$0xff]
      %v5472 = vld [vmem:[%s5261 + $0xdc] sm:$0xff]
      %v5473 = vld [vmem:[%s5261 + $0xe4] sm:$0xff]
      %v5474 = vld [vmem:[%s5261 + $0xf4] sm:$0xff]
      %v5475 = vld [vmem:[%s5261 + $0xfc] sm:$0xff]
      %v5476 = vld [vmem:[%s5261 + $0x10c] sm:$0xff]
      %v5477 = vld [vmem:[%s5261 + $0x114] sm:$0xff]
      %v5478 = vld [vmem:[%s5261 + $0x124] sm:$0xff]
      %v5479 = vld [vmem:[%s5261 + $0x12c] sm:$0xff]
      %v5480 = vld [vmem:[%s5261 + $0x13c] sm:$0xff]
      %v5481 = vld [vmem:[%s5261 + $0x144] sm:$0xff]
      %v5482 = vld [vmem:[%s5261 + $0x154] sm:$0xff]
      %v5483 = vld [vmem:[%s5261 + $0x15c] sm:$0xff]
      %v5484 = vld [vmem:[%s5261 + $0x16c] sm:$0xff]
      %v5485 = vld [vmem:[%s5261 + $0x174] sm:$0xff]
      %s5486 = scalar_lea.vmem [#allocation4], 96
      %v5487 = vld [vmem:[%s5486] sm:$0xff]
      %v5488 = vld [vmem:[%s5486 + $0x8] sm:$0xff]
      %v5489 = vld [vmem:[%s5486 + $0x18] sm:$0xff]
      %v5490 = vld [vmem:[%s5486 + $0x20] sm:$0xff]
      %v5491 = vld [vmem:[%s5486 + $0x30] sm:$0xff]
      %v5492 = vld [vmem:[%s5486 + $0x38] sm:$0xff]
      %v5493 = vld [vmem:[%s5486 + $0x48] sm:$0xff]
      %v5494 = vld [vmem:[%s5486 + $0x50] sm:$0xff]
      %v5495 = vld [vmem:[%s5486 + $0x60] sm:$0xff]
      %v5496 = vld [vmem:[%s5486 + $0x68] sm:$0xff]
      %v5497 = vld [vmem:[%s5486 + $0x78] sm:$0xff]
      %v5498 = vld [vmem:[%s5486 + $0x80] sm:$0xff]
      %v5499 = vld [vmem:[%s5486 + $0x90] sm:$0xff]
      %v5500 = vld [vmem:[%s5486 + $0x98] sm:$0xff]
      %v5501 = vld [vmem:[%s5486 + $0xa8] sm:$0xff]
      %v5502 = vld [vmem:[%s5486 + $0xb0] sm:$0xff]
      %v5503 = vld [vmem:[%s5486 + $0xc0] sm:$0xff]
      %v5504 = vld [vmem:[%s5486 + $0xc8] sm:$0xff]
      %v5505 = vld [vmem:[%s5486 + $0xd8] sm:$0xff]
      %v5506 = vld [vmem:[%s5486 + $0xe0] sm:$0xff]
      %v5507 = vld [vmem:[%s5486 + $0xf0] sm:$0xff]
      %v5508 = vld [vmem:[%s5486 + $0xf8] sm:$0xff]
      %v5509 = vld [vmem:[%s5486 + $0x108] sm:$0xff]
      %v5510 = vld [vmem:[%s5486 + $0x110] sm:$0xff]
      %v5511 = vld [vmem:[%s5486 + $0x120] sm:$0xff]
      %v5512 = vld [vmem:[%s5486 + $0x128] sm:$0xff]
      %v5513 = vld [vmem:[%s5486 + $0x138] sm:$0xff]
      %v5514 = vld [vmem:[%s5486 + $0x140] sm:$0xff]
      %v5515 = vld [vmem:[%s5486 + $0x150] sm:$0xff]
      %v5516 = vld [vmem:[%s5486 + $0x158] sm:$0xff]
      %v5517 = vld [vmem:[%s5486 + $0x168] sm:$0xff]
      %v5518 = vld [vmem:[%s5486 + $0x170] sm:$0xff]
      %v5519 = vld [vmem:[%s5486 + $0x2] sm:$0xff]
      %v5520 = vld [vmem:[%s5486 + $0xa] sm:$0xff]
      %v5521 = vld [vmem:[%s5486 + $0x1a] sm:$0xff]
      %v5522 = vld [vmem:[%s5486 + $0x22] sm:$0xff]
      %v5523 = vld [vmem:[%s5486 + $0x32] sm:$0xff]
      %v5524 = vld [vmem:[%s5486 + $0x3a] sm:$0xff]
      %v5525 = vld [vmem:[%s5486 + $0x4a] sm:$0xff]
      %v5526 = vld [vmem:[%s5486 + $0x52] sm:$0xff]
      %v5527 = vld [vmem:[%s5486 + $0x62] sm:$0xff]
      %v5528 = vld [vmem:[%s5486 + $0x6a] sm:$0xff]
      %v5529 = vld [vmem:[%s5486 + $0x7a] sm:$0xff]
      %v5530 = vld [vmem:[%s5486 + $0x82] sm:$0xff]
      %v5531 = vld [vmem:[%s5486 + $0x92] sm:$0xff]
      %v5532 = vld [vmem:[%s5486 + $0x9a] sm:$0xff]
      %v5533 = vld [vmem:[%s5486 + $0xaa] sm:$0xff]
      %v5534 = vld [vmem:[%s5486 + $0xb2] sm:$0xff]
      %v5535 = vld [vmem:[%s5486 + $0xc2] sm:$0xff]
      %v5536 = vld [vmem:[%s5486 + $0xca] sm:$0xff]
      %v5537 = vld [vmem:[%s5486 + $0xda] sm:$0xff]
      %v5538 = vld [vmem:[%s5486 + $0xe2] sm:$0xff]
      %v5539 = vld [vmem:[%s5486 + $0xf2] sm:$0xff]
      %v5540 = vld [vmem:[%s5486 + $0xfa] sm:$0xff]
      %v5541 = vld [vmem:[%s5486 + $0x10a] sm:$0xff]
      %v5542 = vld [vmem:[%s5486 + $0x112] sm:$0xff]
      %v5543 = vld [vmem:[%s5486 + $0x122] sm:$0xff]
      %v5544 = vld [vmem:[%s5486 + $0x12a] sm:$0xff]
      %v5545 = vld [vmem:[%s5486 + $0x13a] sm:$0xff]
      %v5546 = vld [vmem:[%s5486 + $0x142] sm:$0xff]
      %v5547 = vld [vmem:[%s5486 + $0x152] sm:$0xff]
      %v5548 = vld [vmem:[%s5486 + $0x15a] sm:$0xff]
      %v5549 = vld [vmem:[%s5486 + $0x16a] sm:$0xff]
      %v5550 = vld [vmem:[%s5486 + $0x172] sm:$0xff]
      %v5551 = vld [vmem:[%s5486 + $0x4] sm:$0xff]
      %v5552 = vld [vmem:[%s5486 + $0xc] sm:$0xff]
      %v5553 = vld [vmem:[%s5486 + $0x1c] sm:$0xff]
      %v5554 = vld [vmem:[%s5486 + $0x24] sm:$0xff]
      %v5555 = vld [vmem:[%s5486 + $0x34] sm:$0xff]
      %v5556 = vld [vmem:[%s5486 + $0x3c] sm:$0xff]
      %v5557 = vld [vmem:[%s5486 + $0x4c] sm:$0xff]
      %v5558 = vld [vmem:[%s5486 + $0x54] sm:$0xff]
      %v5559 = vld [vmem:[%s5486 + $0x64] sm:$0xff]
      %v5560 = vld [vmem:[%s5486 + $0x6c] sm:$0xff]
      %v5561 = vld [vmem:[%s5486 + $0x7c] sm:$0xff]
      %v5562 = vld [vmem:[%s5486 + $0x84] sm:$0xff]
      %v5563 = vld [vmem:[%s5486 + $0x94] sm:$0xff]
      %v5564 = vld [vmem:[%s5486 + $0x9c] sm:$0xff]
      %v5565 = vld [vmem:[%s5486 + $0xac] sm:$0xff]
      %v5566 = vld [vmem:[%s5486 + $0xb4] sm:$0xff]
      %v5567 = vld [vmem:[%s5486 + $0xc4] sm:$0xff]
      %v5568 = vld [vmem:[%s5486 + $0xcc] sm:$0xff]
      %v5569 = vld [vmem:[%s5486 + $0xdc] sm:$0xff]
      %v5570 = vld [vmem:[%s5486 + $0xe4] sm:$0xff]
      %v5571 = vld [vmem:[%s5486 + $0xf4] sm:$0xff]
      %v5572 = vld [vmem:[%s5486 + $0xfc] sm:$0xff]
      %v5573 = vld [vmem:[%s5486 + $0x10c] sm:$0xff]
      %v5574 = vld [vmem:[%s5486 + $0x114] sm:$0xff]
      %v5575 = vld [vmem:[%s5486 + $0x124] sm:$0xff]
      %v5576 = vld [vmem:[%s5486 + $0x12c] sm:$0xff]
      %v5577 = vld [vmem:[%s5486 + $0x13c] sm:$0xff]
      %v5578 = vld [vmem:[%s5486 + $0x144] sm:$0xff]
      %v5579 = vld [vmem:[%s5486 + $0x154] sm:$0xff]
      %v5580 = vld [vmem:[%s5486 + $0x15c] sm:$0xff]
      %v5581 = vld [vmem:[%s5486 + $0x16c] sm:$0xff]
      %v5582 = vld [vmem:[%s5486 + $0x174] sm:$0xff]
      %5615 = vrot.lane.b32.xlu0 %v5326, 8
      %v5616 = vpop.permute.xlu0 %5615
      %5617 = vrot.lane.b32.xlu0 %v5327, 8
      %v5618 = vpop.permute.xlu0 %5617
      %5619 = vrot.lane.b32.xlu0 %v5328, 8
      %v5620 = vpop.permute.xlu0 %5619
      %5621 = vrot.lane.b32.xlu0 %v5329, 8
      %v5622 = vpop.permute.xlu0 %5621
      %5623 = vrot.lane.b32.xlu0 %v5330, 8
      %v5624 = vpop.permute.xlu0 %5623
      %5625 = vrot.lane.b32.xlu0 %v5331, 8
      %v5626 = vpop.permute.xlu0 %5625
      %5627 = vrot.lane.b32.xlu0 %v5332, 8
      %v5628 = vpop.permute.xlu0 %5627
      %5629 = vrot.lane.b32.xlu0 %v5333, 8
      %v5630 = vpop.permute.xlu0 %5629
      %5631 = vrot.lane.b32.xlu0 %v5334, 8
      %v5632 = vpop.permute.xlu0 %5631
      %5633 = vrot.lane.b32.xlu0 %v5335, 8
      %v5634 = vpop.permute.xlu0 %5633
      %5635 = vrot.lane.b32.xlu0 %v5336, 8
      %v5636 = vpop.permute.xlu0 %5635
      %5637 = vrot.lane.b32.xlu0 %v5337, 8
      %v5638 = vpop.permute.xlu0 %5637
      %5639 = vrot.lane.b32.xlu0 %v5338, 8
      %v5640 = vpop.permute.xlu0 %5639
      %5641 = vrot.lane.b32.xlu0 %v5339, 8
      %v5642 = vpop.permute.xlu0 %5641
      %5643 = vrot.lane.b32.xlu0 %v5340, 8
      %v5644 = vpop.permute.xlu0 %5643
      %5645 = vrot.lane.b32.xlu0 %v5341, 8
      %v5646 = vpop.permute.xlu0 %5645
      %5647 = vrot.lane.b32.xlu0 %v5342, 8
      %v5648 = vpop.permute.xlu0 %5647
      %5649 = vrot.lane.b32.xlu0 %v5343, 8
      %v5650 = vpop.permute.xlu0 %5649
      %5651 = vrot.lane.b32.xlu0 %v5344, 8
      %v5652 = vpop.permute.xlu0 %5651
      %5653 = vrot.lane.b32.xlu0 %v5345, 8
      %v5654 = vpop.permute.xlu0 %5653
      %5655 = vrot.lane.b32.xlu0 %v5346, 8
      %v5656 = vpop.permute.xlu0 %5655
      %5657 = vrot.lane.b32.xlu0 %v5347, 8
      %v5658 = vpop.permute.xlu0 %5657
      %5659 = vrot.lane.b32.xlu0 %v5348, 8
      %v5660 = vpop.permute.xlu0 %5659
      %5661 = vrot.lane.b32.xlu0 %v5349, 8
      %v5662 = vpop.permute.xlu0 %5661
      %5663 = vrot.lane.b32.xlu0 %v5350, 8
      %v5664 = vpop.permute.xlu0 %5663
      %5665 = vrot.lane.b32.xlu0 %v5351, 8
      %v5666 = vpop.permute.xlu0 %5665
      %5667 = vrot.lane.b32.xlu0 %v5352, 8
      %v5668 = vpop.permute.xlu0 %5667
      %5669 = vrot.lane.b32.xlu0 %v5353, 8
      %v5670 = vpop.permute.xlu0 %5669
      %5671 = vrot.lane.b32.xlu0 %v5354, 8
      %v5672 = vpop.permute.xlu0 %5671
      %5673 = vrot.lane.b32.xlu0 %v5355, 8
      %v5674 = vpop.permute.xlu0 %5673
      %5675 = vrot.lane.b32.xlu0 %v5356, 8
      %v5676 = vpop.permute.xlu0 %5675
      %5677 = vrot.lane.b32.xlu0 %v5357, 8
      %v5678 = vpop.permute.xlu0 %5677
      %5743 = vrot.lane.b32.xlu0 %v5358, 16
      %v5744 = vpop.permute.xlu0 %5743
      %5745 = vrot.lane.b32.xlu0 %v5359, 16
      %v5746 = vpop.permute.xlu0 %5745
      %5747 = vrot.lane.b32.xlu0 %v5360, 16
      %v5748 = vpop.permute.xlu0 %5747
      %5749 = vrot.lane.b32.xlu0 %v5361, 16
      %v5750 = vpop.permute.xlu0 %5749
      %5751 = vrot.lane.b32.xlu0 %v5362, 16
      %v5752 = vpop.permute.xlu0 %5751
      %5753 = vrot.lane.b32.xlu0 %v5363, 16
      %v5754 = vpop.permute.xlu0 %5753
      %5755 = vrot.lane.b32.xlu0 %v5364, 16
      %v5756 = vpop.permute.xlu0 %5755
      %5757 = vrot.lane.b32.xlu0 %v5365, 16
      %v5758 = vpop.permute.xlu0 %5757
      %5759 = vrot.lane.b32.xlu0 %v5366, 16
      %v5760 = vpop.permute.xlu0 %5759
      %5761 = vrot.lane.b32.xlu0 %v5367, 16
      %v5762 = vpop.permute.xlu0 %5761
      %5763 = vrot.lane.b32.xlu0 %v5368, 16
      %v5764 = vpop.permute.xlu0 %5763
      %5765 = vrot.lane.b32.xlu0 %v5369, 16
      %v5766 = vpop.permute.xlu0 %5765
      %5767 = vrot.lane.b32.xlu0 %v5370, 16
      %v5768 = vpop.permute.xlu0 %5767
      %5769 = vrot.lane.b32.xlu0 %v5371, 16
      %v5770 = vpop.permute.xlu0 %5769
      %5771 = vrot.lane.b32.xlu0 %v5372, 16
      %v5772 = vpop.permute.xlu0 %5771
      %5773 = vrot.lane.b32.xlu0 %v5373, 16
      %v5774 = vpop.permute.xlu0 %5773
      %5775 = vrot.lane.b32.xlu0 %v5374, 16
      %v5776 = vpop.permute.xlu0 %5775
      %5777 = vrot.lane.b32.xlu0 %v5375, 16
      %v5778 = vpop.permute.xlu0 %5777
      %5779 = vrot.lane.b32.xlu0 %v5376, 16
      %v5780 = vpop.permute.xlu0 %5779
      %5781 = vrot.lane.b32.xlu0 %v5377, 16
      %v5782 = vpop.permute.xlu0 %5781
      %5783 = vrot.lane.b32.xlu0 %v5378, 16
      %v5784 = vpop.permute.xlu0 %5783
      %5785 = vrot.lane.b32.xlu0 %v5379, 16
      %v5786 = vpop.permute.xlu0 %5785
      %5787 = vrot.lane.b32.xlu0 %v5380, 16
      %v5788 = vpop.permute.xlu0 %5787
      %5789 = vrot.lane.b32.xlu0 %v5381, 16
      %v5790 = vpop.permute.xlu0 %5789
      %5791 = vrot.lane.b32.xlu0 %v5382, 16
      %v5792 = vpop.permute.xlu0 %5791
      %5793 = vrot.lane.b32.xlu0 %v5383, 16
      %v5794 = vpop.permute.xlu0 %5793
      %5795 = vrot.lane.b32.xlu0 %v5384, 16
      %v5796 = vpop.permute.xlu0 %5795
      %5797 = vrot.lane.b32.xlu0 %v5385, 16
      %v5798 = vpop.permute.xlu0 %5797
      %5799 = vrot.lane.b32.xlu0 %v5386, 16
      %v5800 = vpop.permute.xlu0 %5799
      %5801 = vrot.lane.b32.xlu0 %v5387, 16
      %v5802 = vpop.permute.xlu0 %5801
      %5803 = vrot.lane.b32.xlu0 %v5388, 16
      %v5804 = vpop.permute.xlu0 %5803
      %5805 = vrot.lane.b32.xlu0 %v5389, 16
      %v5806 = vpop.permute.xlu0 %5805
      %5871 = vrot.lane.b32.xlu0 %v5390, 24
      %v5872 = vpop.permute.xlu0 %5871
      %5873 = vrot.lane.b32.xlu0 %v5391, 24
      %v5874 = vpop.permute.xlu0 %5873
      %5875 = vrot.lane.b32.xlu0 %v5392, 24
      %v5876 = vpop.permute.xlu0 %5875
      %5877 = vrot.lane.b32.xlu0 %v5393, 24
      %v5878 = vpop.permute.xlu0 %5877
      %5879 = vrot.lane.b32.xlu0 %v5394, 24
      %v5880 = vpop.permute.xlu0 %5879
      %5881 = vrot.lane.b32.xlu0 %v5395, 24
      %v5882 = vpop.permute.xlu0 %5881
      %5883 = vrot.lane.b32.xlu0 %v5396, 24
      %v5884 = vpop.permute.xlu0 %5883
      %5885 = vrot.lane.b32.xlu0 %v5397, 24
      %v5886 = vpop.permute.xlu0 %5885
      %5887 = vrot.lane.b32.xlu0 %v5398, 24
      %v5888 = vpop.permute.xlu0 %5887
      %5889 = vrot.lane.b32.xlu0 %v5399, 24
      %v5890 = vpop.permute.xlu0 %5889
      %5891 = vrot.lane.b32.xlu0 %v5400, 24
      %v5892 = vpop.permute.xlu0 %5891
      %5893 = vrot.lane.b32.xlu0 %v5401, 24
      %v5894 = vpop.permute.xlu0 %5893
      %5895 = vrot.lane.b32.xlu0 %v5402, 24
      %v5896 = vpop.permute.xlu0 %5895
      %5897 = vrot.lane.b32.xlu0 %v5403, 24
      %v5898 = vpop.permute.xlu0 %5897
      %5899 = vrot.lane.b32.xlu0 %v5404, 24
      %v5900 = vpop.permute.xlu0 %5899
      %5901 = vrot.lane.b32.xlu0 %v5405, 24
      %v5902 = vpop.permute.xlu0 %5901
      %5903 = vrot.lane.b32.xlu0 %v5406, 24
      %v5904 = vpop.permute.xlu0 %5903
      %5905 = vrot.lane.b32.xlu0 %v5407, 24
      %v5906 = vpop.permute.xlu0 %5905
      %5907 = vrot.lane.b32.xlu0 %v5408, 24
      %v5908 = vpop.permute.xlu0 %5907
      %5909 = vrot.lane.b32.xlu0 %v5409, 24
      %v5910 = vpop.permute.xlu0 %5909
      %5911 = vrot.lane.b32.xlu0 %v5410, 24
      %v5912 = vpop.permute.xlu0 %5911
      %5913 = vrot.lane.b32.xlu0 %v5411, 24
      %v5914 = vpop.permute.xlu0 %5913
      %5915 = vrot.lane.b32.xlu0 %v5412, 24
      %v5916 = vpop.permute.xlu0 %5915
      %5917 = vrot.lane.b32.xlu0 %v5413, 24
      %v5918 = vpop.permute.xlu0 %5917
      %5919 = vrot.lane.b32.xlu0 %v5414, 24
      %v5920 = vpop.permute.xlu0 %5919
      %5921 = vrot.lane.b32.xlu0 %v5415, 24
      %v5922 = vpop.permute.xlu0 %5921
      %5923 = vrot.lane.b32.xlu0 %v5416, 24
      %v5924 = vpop.permute.xlu0 %5923
      %5925 = vrot.lane.b32.xlu0 %v5417, 24
      %v5926 = vpop.permute.xlu0 %5925
      %5927 = vrot.lane.b32.xlu0 %v5418, 24
      %v5928 = vpop.permute.xlu0 %5927
      %5929 = vrot.lane.b32.xlu0 %v5419, 24
      %v5930 = vpop.permute.xlu0 %5929
      %5931 = vrot.lane.b32.xlu0 %v5420, 24
      %v5932 = vpop.permute.xlu0 %5931
      %5933 = vrot.lane.b32.xlu0 %v5421, 24
      %v5934 = vpop.permute.xlu0 %5933
      %5999 = vrot.lane.b32.xlu0 %v5422, 32
      %v6000 = vpop.permute.xlu0 %5999
      %6001 = vrot.lane.b32.xlu0 %v5423, 32
      %v6002 = vpop.permute.xlu0 %6001
      %6003 = vrot.lane.b32.xlu0 %v5424, 32
      %v6004 = vpop.permute.xlu0 %6003
      %6005 = vrot.lane.b32.xlu0 %v5425, 32
      %v6006 = vpop.permute.xlu0 %6005
      %6007 = vrot.lane.b32.xlu0 %v5426, 32
      %v6008 = vpop.permute.xlu0 %6007
      %6009 = vrot.lane.b32.xlu0 %v5427, 32
      %v6010 = vpop.permute.xlu0 %6009
      %6011 = vrot.lane.b32.xlu0 %v5428, 32
      %v6012 = vpop.permute.xlu0 %6011
      %6013 = vrot.lane.b32.xlu0 %v5429, 32
      %v6014 = vpop.permute.xlu0 %6013
      %6015 = vrot.lane.b32.xlu0 %v5430, 32
      %v6016 = vpop.permute.xlu0 %6015
      %6017 = vrot.lane.b32.xlu0 %v5431, 32
      %v6018 = vpop.permute.xlu0 %6017
      %6019 = vrot.lane.b32.xlu0 %v5432, 32
      %v6020 = vpop.permute.xlu0 %6019
      %6021 = vrot.lane.b32.xlu0 %v5433, 32
      %v6022 = vpop.permute.xlu0 %6021
      %6023 = vrot.lane.b32.xlu0 %v5434, 32
      %v6024 = vpop.permute.xlu0 %6023
      %6025 = vrot.lane.b32.xlu0 %v5435, 32
      %v6026 = vpop.permute.xlu0 %6025
      %6027 = vrot.lane.b32.xlu0 %v5436, 32
      %v6028 = vpop.permute.xlu0 %6027
      %6029 = vrot.lane.b32.xlu0 %v5437, 32
      %v6030 = vpop.permute.xlu0 %6029
      %6031 = vrot.lane.b32.xlu0 %v5438, 32
      %v6032 = vpop.permute.xlu0 %6031
      %6033 = vrot.lane.b32.xlu0 %v5439, 32
      %v6034 = vpop.permute.xlu0 %6033
      %6035 = vrot.lane.b32.xlu0 %v5440, 32
      %v6036 = vpop.permute.xlu0 %6035
      %6037 = vrot.lane.b32.xlu0 %v5441, 32
      %v6038 = vpop.permute.xlu0 %6037
      %6039 = vrot.lane.b32.xlu0 %v5442, 32
      %v6040 = vpop.permute.xlu0 %6039
      %6041 = vrot.lane.b32.xlu0 %v5443, 32
      %v6042 = vpop.permute.xlu0 %6041
      %6043 = vrot.lane.b32.xlu0 %v5444, 32
      %v6044 = vpop.permute.xlu0 %6043
      %6045 = vrot.lane.b32.xlu0 %v5445, 32
      %v6046 = vpop.permute.xlu0 %6045
      %6047 = vrot.lane.b32.xlu0 %v5446, 32
      %v6048 = vpop.permute.xlu0 %6047
      %6049 = vrot.lane.b32.xlu0 %v5447, 32
      %v6050 = vpop.permute.xlu0 %6049
      %6051 = vrot.lane.b32.xlu0 %v5448, 32
      %v6052 = vpop.permute.xlu0 %6051
      %6053 = vrot.lane.b32.xlu0 %v5449, 32
      %v6054 = vpop.permute.xlu0 %6053
      %6055 = vrot.lane.b32.xlu0 %v5450, 32
      %v6056 = vpop.permute.xlu0 %6055
      %6057 = vrot.lane.b32.xlu0 %v5451, 32
      %v6058 = vpop.permute.xlu0 %6057
      %6059 = vrot.lane.b32.xlu0 %v5452, 32
      %v6060 = vpop.permute.xlu0 %6059
      %6061 = vrot.lane.b32.xlu0 %v5453, 32
      %v6062 = vpop.permute.xlu0 %6061
      %6127 = vrot.lane.b32.xlu0 %v5454, 40
      %v6128 = vpop.permute.xlu0 %6127
      %6129 = vrot.lane.b32.xlu0 %v5455, 40
      %v6130 = vpop.permute.xlu0 %6129
      %6131 = vrot.lane.b32.xlu0 %v5456, 40
      %v6132 = vpop.permute.xlu0 %6131
      %6133 = vrot.lane.b32.xlu0 %v5457, 40
      %v6134 = vpop.permute.xlu0 %6133
      %6135 = vrot.lane.b32.xlu0 %v5458, 40
      %v6136 = vpop.permute.xlu0 %6135
      %6137 = vrot.lane.b32.xlu0 %v5459, 40
      %v6138 = vpop.permute.xlu0 %6137
      %6139 = vrot.lane.b32.xlu0 %v5460, 40
      %v6140 = vpop.permute.xlu0 %6139
      %6141 = vrot.lane.b32.xlu0 %v5461, 40
      %v6142 = vpop.permute.xlu0 %6141
      %6143 = vrot.lane.b32.xlu0 %v5462, 40
      %v6144 = vpop.permute.xlu0 %6143
      %6145 = vrot.lane.b32.xlu0 %v5463, 40
      %v6146 = vpop.permute.xlu0 %6145
      %6147 = vrot.lane.b32.xlu0 %v5464, 40
      %v6148 = vpop.permute.xlu0 %6147
      %6149 = vrot.lane.b32.xlu0 %v5465, 40
      %v6150 = vpop.permute.xlu0 %6149
      %6151 = vrot.lane.b32.xlu0 %v5466, 40
      %v6152 = vpop.permute.xlu0 %6151
      %6153 = vrot.lane.b32.xlu0 %v5467, 40
      %v6154 = vpop.permute.xlu0 %6153
      %6155 = vrot.lane.b32.xlu0 %v5468, 40
      %v6156 = vpop.permute.xlu0 %6155
      %6157 = vrot.lane.b32.xlu0 %v5469, 40
      %v6158 = vpop.permute.xlu0 %6157
      %6159 = vrot.lane.b32.xlu0 %v5470, 40
      %v6160 = vpop.permute.xlu0 %6159
      %6161 = vrot.lane.b32.xlu0 %v5471, 40
      %v6162 = vpop.permute.xlu0 %6161
      %6163 = vrot.lane.b32.xlu0 %v5472, 40
      %v6164 = vpop.permute.xlu0 %6163
      %6165 = vrot.lane.b32.xlu0 %v5473, 40
      %v6166 = vpop.permute.xlu0 %6165
      %6167 = vrot.lane.b32.xlu0 %v5474, 40
      %v6168 = vpop.permute.xlu0 %6167
      %6169 = vrot.lane.b32.xlu0 %v5475, 40
      %v6170 = vpop.permute.xlu0 %6169
      %6171 = vrot.lane.b32.xlu0 %v5476, 40
      %v6172 = vpop.permute.xlu0 %6171
      %6173 = vrot.lane.b32.xlu0 %v5477, 40
      %v6174 = vpop.permute.xlu0 %6173
      %6175 = vrot.lane.b32.xlu0 %v5478, 40
      %v6176 = vpop.permute.xlu0 %6175
      %6177 = vrot.lane.b32.xlu0 %v5479, 40
      %v6178 = vpop.permute.xlu0 %6177
      %6179 = vrot.lane.b32.xlu0 %v5480, 40
      %v6180 = vpop.permute.xlu0 %6179
      %6181 = vrot.lane.b32.xlu0 %v5481, 40
      %v6182 = vpop.permute.xlu0 %6181
      %6183 = vrot.lane.b32.xlu0 %v5482, 40
      %v6184 = vpop.permute.xlu0 %6183
      %6185 = vrot.lane.b32.xlu0 %v5483, 40
      %v6186 = vpop.permute.xlu0 %6185
      %6187 = vrot.lane.b32.xlu0 %v5484, 40
      %v6188 = vpop.permute.xlu0 %6187
      %6189 = vrot.lane.b32.xlu0 %v5485, 40
      %v6190 = vpop.permute.xlu0 %6189
      %6255 = vrot.lane.b32.xlu0 %v5487, 48
      %v6256 = vpop.permute.xlu0 %6255
      %6257 = vrot.lane.b32.xlu0 %v5488, 48
      %v6258 = vpop.permute.xlu0 %6257
      %6259 = vrot.lane.b32.xlu0 %v5489, 48
      %v6260 = vpop.permute.xlu0 %6259
      %6261 = vrot.lane.b32.xlu0 %v5490, 48
      %v6262 = vpop.permute.xlu0 %6261
      %6263 = vrot.lane.b32.xlu0 %v5491, 48
      %v6264 = vpop.permute.xlu0 %6263
      %6265 = vrot.lane.b32.xlu0 %v5492, 48
      %v6266 = vpop.permute.xlu0 %6265
      %6267 = vrot.lane.b32.xlu0 %v5493, 48
      %v6268 = vpop.permute.xlu0 %6267
      %6269 = vrot.lane.b32.xlu0 %v5494, 48
      %v6270 = vpop.permute.xlu0 %6269
      %6271 = vrot.lane.b32.xlu0 %v5495, 48
      %v6272 = vpop.permute.xlu0 %6271
      %6273 = vrot.lane.b32.xlu0 %v5496, 48
      %v6274 = vpop.permute.xlu0 %6273
      %6275 = vrot.lane.b32.xlu0 %v5497, 48
      %v6276 = vpop.permute.xlu0 %6275
      %6277 = vrot.lane.b32.xlu0 %v5498, 48
      %v6278 = vpop.permute.xlu0 %6277
      %6279 = vrot.lane.b32.xlu0 %v5499, 48
      %v6280 = vpop.permute.xlu0 %6279
      %6281 = vrot.lane.b32.xlu0 %v5500, 48
      %v6282 = vpop.permute.xlu0 %6281
      %6283 = vrot.lane.b32.xlu0 %v5501, 48
      %v6284 = vpop.permute.xlu0 %6283
      %6285 = vrot.lane.b32.xlu0 %v5502, 48
      %v6286 = vpop.permute.xlu0 %6285
      %6287 = vrot.lane.b32.xlu0 %v5503, 48
      %v6288 = vpop.permute.xlu0 %6287
      %6289 = vrot.lane.b32.xlu0 %v5504, 48
      %v6290 = vpop.permute.xlu0 %6289
      %6291 = vrot.lane.b32.xlu0 %v5505, 48
      %v6292 = vpop.permute.xlu0 %6291
      %6293 = vrot.lane.b32.xlu0 %v5506, 48
      %v6294 = vpop.permute.xlu0 %6293
      %6295 = vrot.lane.b32.xlu0 %v5507, 48
      %v6296 = vpop.permute.xlu0 %6295
      %6297 = vrot.lane.b32.xlu0 %v5508, 48
      %v6298 = vpop.permute.xlu0 %6297
      %6299 = vrot.lane.b32.xlu0 %v5509, 48
      %v6300 = vpop.permute.xlu0 %6299
      %6301 = vrot.lane.b32.xlu0 %v5510, 48
      %v6302 = vpop.permute.xlu0 %6301
      %6303 = vrot.lane.b32.xlu0 %v5511, 48
      %v6304 = vpop.permute.xlu0 %6303
      %6305 = vrot.lane.b32.xlu0 %v5512, 48
      %v6306 = vpop.permute.xlu0 %6305
      %6307 = vrot.lane.b32.xlu0 %v5513, 48
      %v6308 = vpop.permute.xlu0 %6307
      %6309 = vrot.lane.b32.xlu0 %v5514, 48
      %v6310 = vpop.permute.xlu0 %6309
      %6311 = vrot.lane.b32.xlu0 %v5515, 48
      %v6312 = vpop.permute.xlu0 %6311
      %6313 = vrot.lane.b32.xlu0 %v5516, 48
      %v6314 = vpop.permute.xlu0 %6313
      %6315 = vrot.lane.b32.xlu0 %v5517, 48
      %v6316 = vpop.permute.xlu0 %6315
      %6317 = vrot.lane.b32.xlu0 %v5518, 48
      %v6318 = vpop.permute.xlu0 %6317
      %6383 = vrot.lane.b32.xlu0 %v5519, 56
      %v6384 = vpop.permute.xlu0 %6383
      %6385 = vrot.lane.b32.xlu0 %v5520, 56
      %v6386 = vpop.permute.xlu0 %6385
      %6387 = vrot.lane.b32.xlu0 %v5521, 56
      %v6388 = vpop.permute.xlu0 %6387
      %6389 = vrot.lane.b32.xlu0 %v5522, 56
      %v6390 = vpop.permute.xlu0 %6389
      %6391 = vrot.lane.b32.xlu0 %v5523, 56
      %v6392 = vpop.permute.xlu0 %6391
      %6393 = vrot.lane.b32.xlu0 %v5524, 56
      %v6394 = vpop.permute.xlu0 %6393
      %6395 = vrot.lane.b32.xlu0 %v5525, 56
      %v6396 = vpop.permute.xlu0 %6395
      %6397 = vrot.lane.b32.xlu0 %v5526, 56
      %v6398 = vpop.permute.xlu0 %6397
      %6399 = vrot.lane.b32.xlu0 %v5527, 56
      %v6400 = vpop.permute.xlu0 %6399
      %6401 = vrot.lane.b32.xlu0 %v5528, 56
      %v6402 = vpop.permute.xlu0 %6401
      %6403 = vrot.lane.b32.xlu0 %v5529, 56
      %v6404 = vpop.permute.xlu0 %6403
      %6405 = vrot.lane.b32.xlu0 %v5530, 56
      %v6406 = vpop.permute.xlu0 %6405
      %6407 = vrot.lane.b32.xlu0 %v5531, 56
      %v6408 = vpop.permute.xlu0 %6407
      %6409 = vrot.lane.b32.xlu0 %v5532, 56
      %v6410 = vpop.permute.xlu0 %6409
      %6411 = vrot.lane.b32.xlu0 %v5533, 56
      %v6412 = vpop.permute.xlu0 %6411
      %6413 = vrot.lane.b32.xlu0 %v5534, 56
      %v6414 = vpop.permute.xlu0 %6413
      %6415 = vrot.lane.b32.xlu0 %v5535, 56
      %v6416 = vpop.permute.xlu0 %6415
      %6417 = vrot.lane.b32.xlu0 %v5536, 56
      %v6418 = vpop.permute.xlu0 %6417
      %6419 = vrot.lane.b32.xlu0 %v5537, 56
      %v6420 = vpop.permute.xlu0 %6419
      %6421 = vrot.lane.b32.xlu0 %v5538, 56
      %v6422 = vpop.permute.xlu0 %6421
      %6423 = vrot.lane.b32.xlu0 %v5539, 56
      %v6424 = vpop.permute.xlu0 %6423
      %6425 = vrot.lane.b32.xlu0 %v5540, 56
      %v6426 = vpop.permute.xlu0 %6425
      %6427 = vrot.lane.b32.xlu0 %v5541, 56
      %v6428 = vpop.permute.xlu0 %6427
      %6429 = vrot.lane.b32.xlu0 %v5542, 56
      %v6430 = vpop.permute.xlu0 %6429
      %6431 = vrot.lane.b32.xlu0 %v5543, 56
      %v6432 = vpop.permute.xlu0 %6431
      %6433 = vrot.lane.b32.xlu0 %v5544, 56
      %v6434 = vpop.permute.xlu0 %6433
      %6435 = vrot.lane.b32.xlu0 %v5545, 56
      %v6436 = vpop.permute.xlu0 %6435
      %6437 = vrot.lane.b32.xlu0 %v5546, 56
      %v6438 = vpop.permute.xlu0 %6437
      %6439 = vrot.lane.b32.xlu0 %v5547, 56
      %v6440 = vpop.permute.xlu0 %6439
      %6441 = vrot.lane.b32.xlu0 %v5548, 56
      %v6442 = vpop.permute.xlu0 %6441
      %6443 = vrot.lane.b32.xlu0 %v5549, 56
      %v6444 = vpop.permute.xlu0 %6443
      %6445 = vrot.lane.b32.xlu0 %v5550, 56
      %v6446 = vpop.permute.xlu0 %6445
      %6511 = vrot.lane.b32.xlu0 %v5551, 64
      %v6512 = vpop.permute.xlu0 %6511
      %6513 = vrot.lane.b32.xlu0 %v5552, 64
      %v6514 = vpop.permute.xlu0 %6513
      %6515 = vrot.lane.b32.xlu0 %v5553, 64
      %v6516 = vpop.permute.xlu0 %6515
      %6517 = vrot.lane.b32.xlu0 %v5554, 64
      %v6518 = vpop.permute.xlu0 %6517
      %6519 = vrot.lane.b32.xlu0 %v5555, 64
      %v6520 = vpop.permute.xlu0 %6519
      %6521 = vrot.lane.b32.xlu0 %v5556, 64
      %v6522 = vpop.permute.xlu0 %6521
      %6523 = vrot.lane.b32.xlu0 %v5557, 64
      %v6524 = vpop.permute.xlu0 %6523
      %6525 = vrot.lane.b32.xlu0 %v5558, 64
      %v6526 = vpop.permute.xlu0 %6525
      %6527 = vrot.lane.b32.xlu0 %v5559, 64
      %v6528 = vpop.permute.xlu0 %6527
      %6529 = vrot.lane.b32.xlu0 %v5560, 64
      %v6530 = vpop.permute.xlu0 %6529
      %6531 = vrot.lane.b32.xlu0 %v5561, 64
      %v6532 = vpop.permute.xlu0 %6531
      %6533 = vrot.lane.b32.xlu0 %v5562, 64
      %v6534 = vpop.permute.xlu0 %6533
      %6535 = vrot.lane.b32.xlu0 %v5563, 64
      %v6536 = vpop.permute.xlu0 %6535
      %6537 = vrot.lane.b32.xlu0 %v5564, 64
      %v6538 = vpop.permute.xlu0 %6537
      %6539 = vrot.lane.b32.xlu0 %v5565, 64
      %v6540 = vpop.permute.xlu0 %6539
      %6541 = vrot.lane.b32.xlu0 %v5566, 64
      %v6542 = vpop.permute.xlu0 %6541
      %6543 = vrot.lane.b32.xlu0 %v5567, 64
      %v6544 = vpop.permute.xlu0 %6543
      %6545 = vrot.lane.b32.xlu0 %v5568, 64
      %v6546 = vpop.permute.xlu0 %6545
      %6547 = vrot.lane.b32.xlu0 %v5569, 64
      %v6548 = vpop.permute.xlu0 %6547
      %6549 = vrot.lane.b32.xlu0 %v5570, 64
      %v6550 = vpop.permute.xlu0 %6549
      %6551 = vrot.lane.b32.xlu0 %v5571, 64
      %v6552 = vpop.permute.xlu0 %6551
      %6553 = vrot.lane.b32.xlu0 %v5572, 64
      %v6554 = vpop.permute.xlu0 %6553
      %6555 = vrot.lane.b32.xlu0 %v5573, 64
      %v6556 = vpop.permute.xlu0 %6555
      %6557 = vrot.lane.b32.xlu0 %v5574, 64
      %v6558 = vpop.permute.xlu0 %6557
      %6559 = vrot.lane.b32.xlu0 %v5575, 64
      %v6560 = vpop.permute.xlu0 %6559
      %6561 = vrot.lane.b32.xlu0 %v5576, 64
      %v6562 = vpop.permute.xlu0 %6561
      %6563 = vrot.lane.b32.xlu0 %v5577, 64
      %v6564 = vpop.permute.xlu0 %6563
      %6565 = vrot.lane.b32.xlu0 %v5578, 64
      %v6566 = vpop.permute.xlu0 %6565
      %6567 = vrot.lane.b32.xlu0 %v5579, 64
      %v6568 = vpop.permute.xlu0 %6567
      %6569 = vrot.lane.b32.xlu0 %v5580, 64
      %v6570 = vpop.permute.xlu0 %6569
      %6571 = vrot.lane.b32.xlu0 %v5581, 64
      %v6572 = vpop.permute.xlu0 %6571
      %6573 = vrot.lane.b32.xlu0 %v5582, 64
      %v6574 = vpop.permute.xlu0 %6573
      %v6607 = vsel %vm1873, %v5294, %v5616
      %v6608 = vsel %vm1873, %v5295, %v5618
      %v6609 = vsel %vm1873, %v5296, %v5620
      %v6610 = vsel %vm1873, %v5297, %v5622
      %v6611 = vsel %vm1873, %v5298, %v5624
      %v6612 = vsel %vm1873, %v5299, %v5626
      %v6613 = vsel %vm1873, %v5300, %v5628
      %v6614 = vsel %vm1873, %v5301, %v5630
      %v6615 = vsel %vm1873, %v5302, %v5632
      %v6616 = vsel %vm1873, %v5303, %v5634
      %v6617 = vsel %vm1873, %v5304, %v5636
      %v6618 = vsel %vm1873, %v5305, %v5638
      %v6619 = vsel %vm1873, %v5306, %v5640
      %v6620 = vsel %vm1873, %v5307, %v5642
      %v6621 = vsel %vm1873, %v5308, %v5644
      %v6622 = vsel %vm1873, %v5309, %v5646
      %v6623 = vsel %vm1873, %v5310, %v5648
      %v6624 = vsel %vm1873, %v5311, %v5650
      %v6625 = vsel %vm1873, %v5312, %v5652
      %v6626 = vsel %vm1873, %v5313, %v5654
      %v6627 = vsel %vm1873, %v5314, %v5656
      %v6628 = vsel %vm1873, %v5315, %v5658
      %v6629 = vsel %vm1873, %v5316, %v5660
      %v6630 = vsel %vm1873, %v5317, %v5662
      %v6631 = vsel %vm1873, %v5318, %v5664
      %v6632 = vsel %vm1873, %v5319, %v5666
      %v6633 = vsel %vm1873, %v5320, %v5668
      %v6634 = vsel %vm1873, %v5321, %v5670
      %v6635 = vsel %vm1873, %v5322, %v5672
      %v6636 = vsel %vm1873, %v5323, %v5674
      %v6637 = vsel %vm1873, %v5324, %v5676
      %v6638 = vsel %vm1873, %v5325, %v5678
      %v6639 = vsel %vm1939, %v6607, %v5744
      %v6640 = vsel %vm1939, %v6608, %v5746
      %v6641 = vsel %vm1939, %v6609, %v5748
      %v6642 = vsel %vm1939, %v6610, %v5750
      %v6643 = vsel %vm1939, %v6611, %v5752
      %v6644 = vsel %vm1939, %v6612, %v5754
      %v6645 = vsel %vm1939, %v6613, %v5756
      %v6646 = vsel %vm1939, %v6614, %v5758
      %v6647 = vsel %vm1939, %v6615, %v5760
      %v6648 = vsel %vm1939, %v6616, %v5762
      %v6649 = vsel %vm1939, %v6617, %v5764
      %v6650 = vsel %vm1939, %v6618, %v5766
      %v6651 = vsel %vm1939, %v6619, %v5768
      %v6652 = vsel %vm1939, %v6620, %v5770
      %v6653 = vsel %vm1939, %v6621, %v5772
      %v6654 = vsel %vm1939, %v6622, %v5774
      %v6655 = vsel %vm1939, %v6623, %v5776
      %v6656 = vsel %vm1939, %v6624, %v5778
      %v6657 = vsel %vm1939, %v6625, %v5780
      %v6658 = vsel %vm1939, %v6626, %v5782
      %v6659 = vsel %vm1939, %v6627, %v5784
      %v6660 = vsel %vm1939, %v6628, %v5786
      %v6661 = vsel %vm1939, %v6629, %v5788
      %v6662 = vsel %vm1939, %v6630, %v5790
      %v6663 = vsel %vm1939, %v6631, %v5792
      %v6664 = vsel %vm1939, %v6632, %v5794
      %v6665 = vsel %vm1939, %v6633, %v5796
      %v6666 = vsel %vm1939, %v6634, %v5798
      %v6667 = vsel %vm1939, %v6635, %v5800
      %v6668 = vsel %vm1939, %v6636, %v5802
      %v6669 = vsel %vm1939, %v6637, %v5804
      %v6670 = vsel %vm1939, %v6638, %v5806
      %v6671 = vsel %vm2005, %v6639, %v5872
      %v6672 = vsel %vm2005, %v6640, %v5874
      %v6673 = vsel %vm2005, %v6641, %v5876
      %v6674 = vsel %vm2005, %v6642, %v5878
      %v6675 = vsel %vm2005, %v6643, %v5880
      %v6676 = vsel %vm2005, %v6644, %v5882
      %v6677 = vsel %vm2005, %v6645, %v5884
      %v6678 = vsel %vm2005, %v6646, %v5886
      %v6679 = vsel %vm2005, %v6647, %v5888
      %v6680 = vsel %vm2005, %v6648, %v5890
      %v6681 = vsel %vm2005, %v6649, %v5892
      %v6682 = vsel %vm2005, %v6650, %v5894
      %v6683 = vsel %vm2005, %v6651, %v5896
      %v6684 = vsel %vm2005, %v6652, %v5898
      %v6685 = vsel %vm2005, %v6653, %v5900
      %v6686 = vsel %vm2005, %v6654, %v5902
      %v6687 = vsel %vm2005, %v6655, %v5904
      %v6688 = vsel %vm2005, %v6656, %v5906
      %v6689 = vsel %vm2005, %v6657, %v5908
      %v6690 = vsel %vm2005, %v6658, %v5910
      %v6691 = vsel %vm2005, %v6659, %v5912
      %v6692 = vsel %vm2005, %v6660, %v5914
      %v6693 = vsel %vm2005, %v6661, %v5916
      %v6694 = vsel %vm2005, %v6662, %v5918
      %v6695 = vsel %vm2005, %v6663, %v5920
      %v6696 = vsel %vm2005, %v6664, %v5922
      %v6697 = vsel %vm2005, %v6665, %v5924
      %v6698 = vsel %vm2005, %v6666, %v5926
      %v6699 = vsel %vm2005, %v6667, %v5928
      %v6700 = vsel %vm2005, %v6668, %v5930
      %v6701 = vsel %vm2005, %v6669, %v5932
      %v6702 = vsel %vm2005, %v6670, %v5934
      %v6703 = vsel %vm2071, %v6671, %v6000
      %v6704 = vsel %vm2071, %v6672, %v6002
      %v6705 = vsel %vm2071, %v6673, %v6004
      %v6706 = vsel %vm2071, %v6674, %v6006
      %v6707 = vsel %vm2071, %v6675, %v6008
      %v6708 = vsel %vm2071, %v6676, %v6010
      %v6709 = vsel %vm2071, %v6677, %v6012
      %v6710 = vsel %vm2071, %v6678, %v6014
      %v6711 = vsel %vm2071, %v6679, %v6016
      %v6712 = vsel %vm2071, %v6680, %v6018
      %v6713 = vsel %vm2071, %v6681, %v6020
      %v6714 = vsel %vm2071, %v6682, %v6022
      %v6715 = vsel %vm2071, %v6683, %v6024
      %v6716 = vsel %vm2071, %v6684, %v6026
      %v6717 = vsel %vm2071, %v6685, %v6028
      %v6718 = vsel %vm2071, %v6686, %v6030
      %v6719 = vsel %vm2071, %v6687, %v6032
      %v6720 = vsel %vm2071, %v6688, %v6034
      %v6721 = vsel %vm2071, %v6689, %v6036
      %v6722 = vsel %vm2071, %v6690, %v6038
      %v6723 = vsel %vm2071, %v6691, %v6040
      %v6724 = vsel %vm2071, %v6692, %v6042
      %v6725 = vsel %vm2071, %v6693, %v6044
      %v6726 = vsel %vm2071, %v6694, %v6046
      %v6727 = vsel %vm2071, %v6695, %v6048
      %v6728 = vsel %vm2071, %v6696, %v6050
      %v6729 = vsel %vm2071, %v6697, %v6052
      %v6730 = vsel %vm2071, %v6698, %v6054
      %v6731 = vsel %vm2071, %v6699, %v6056
      %v6732 = vsel %vm2071, %v6700, %v6058
      %v6733 = vsel %vm2071, %v6701, %v6060
      %v6734 = vsel %vm2071, %v6702, %v6062
      %v6735 = vsel %vm4432, %v6703, %v6128
      %v6736 = vsel %vm4432, %v6704, %v6130
      %v6737 = vsel %vm4432, %v6705, %v6132
      %v6738 = vsel %vm4432, %v6706, %v6134
      %v6739 = vsel %vm4432, %v6707, %v6136
      %v6740 = vsel %vm4432, %v6708, %v6138
      %v6741 = vsel %vm4432, %v6709, %v6140
      %v6742 = vsel %vm4432, %v6710, %v6142
      %v6743 = vsel %vm4432, %v6711, %v6144
      %v6744 = vsel %vm4432, %v6712, %v6146
      %v6745 = vsel %vm4432, %v6713, %v6148
      %v6746 = vsel %vm4432, %v6714, %v6150
      %v6747 = vsel %vm4432, %v6715, %v6152
      %v6748 = vsel %vm4432, %v6716, %v6154
      %v6749 = vsel %vm4432, %v6717, %v6156
      %v6750 = vsel %vm4432, %v6718, %v6158
      %v6751 = vsel %vm4432, %v6719, %v6160
      %v6752 = vsel %vm4432, %v6720, %v6162
      %v6753 = vsel %vm4432, %v6721, %v6164
      %v6754 = vsel %vm4432, %v6722, %v6166
      %v6755 = vsel %vm4432, %v6723, %v6168
      %v6756 = vsel %vm4432, %v6724, %v6170
      %v6757 = vsel %vm4432, %v6725, %v6172
      %v6758 = vsel %vm4432, %v6726, %v6174
      %v6759 = vsel %vm4432, %v6727, %v6176
      %v6760 = vsel %vm4432, %v6728, %v6178
      %v6761 = vsel %vm4432, %v6729, %v6180
      %v6762 = vsel %vm4432, %v6730, %v6182
      %v6763 = vsel %vm4432, %v6731, %v6184
      %v6764 = vsel %vm4432, %v6732, %v6186
      %v6765 = vsel %vm4432, %v6733, %v6188
      %v6766 = vsel %vm4432, %v6734, %v6190
      %v6767 = vsel %vm4465, %v6735, %v6256
      %v6768 = vsel %vm4465, %v6736, %v6258
      %v6769 = vsel %vm4465, %v6737, %v6260
      %v6770 = vsel %vm4465, %v6738, %v6262
      %v6771 = vsel %vm4465, %v6739, %v6264
      %v6772 = vsel %vm4465, %v6740, %v6266
      %v6773 = vsel %vm4465, %v6741, %v6268
      %v6774 = vsel %vm4465, %v6742, %v6270
      %v6775 = vsel %vm4465, %v6743, %v6272
      %v6776 = vsel %vm4465, %v6744, %v6274
      %v6777 = vsel %vm4465, %v6745, %v6276
      %v6778 = vsel %vm4465, %v6746, %v6278
      %v6779 = vsel %vm4465, %v6747, %v6280
      %v6780 = vsel %vm4465, %v6748, %v6282
      %v6781 = vsel %vm4465, %v6749, %v6284
      %v6782 = vsel %vm4465, %v6750, %v6286
      %v6783 = vsel %vm4465, %v6751, %v6288
      %v6784 = vsel %vm4465, %v6752, %v6290
      %v6785 = vsel %vm4465, %v6753, %v6292
      %v6786 = vsel %vm4465, %v6754, %v6294
      %v6787 = vsel %vm4465, %v6755, %v6296
      %v6788 = vsel %vm4465, %v6756, %v6298
      %v6789 = vsel %vm4465, %v6757, %v6300
      %v6790 = vsel %vm4465, %v6758, %v6302
      %v6791 = vsel %vm4465, %v6759, %v6304
      %v6792 = vsel %vm4465, %v6760, %v6306
      %v6793 = vsel %vm4465, %v6761, %v6308
      %v6794 = vsel %vm4465, %v6762, %v6310
      %v6795 = vsel %vm4465, %v6763, %v6312
      %v6796 = vsel %vm4465, %v6764, %v6314
      %v6797 = vsel %vm4465, %v6765, %v6316
      %v6798 = vsel %vm4465, %v6766, %v6318
      %v6799 = vsel %vm4498, %v6767, %v6384
      %v6800 = vsel %vm4498, %v6768, %v6386
      %v6801 = vsel %vm4498, %v6769, %v6388
      %v6802 = vsel %vm4498, %v6770, %v6390
      %v6803 = vsel %vm4498, %v6771, %v6392
      %v6804 = vsel %vm4498, %v6772, %v6394
      %v6805 = vsel %vm4498, %v6773, %v6396
      %v6806 = vsel %vm4498, %v6774, %v6398
      %v6807 = vsel %vm4498, %v6775, %v6400
      %v6808 = vsel %vm4498, %v6776, %v6402
      %v6809 = vsel %vm4498, %v6777, %v6404
      %v6810 = vsel %vm4498, %v6778, %v6406
      %v6811 = vsel %vm4498, %v6779, %v6408
      %v6812 = vsel %vm4498, %v6780, %v6410
      %v6813 = vsel %vm4498, %v6781, %v6412
      %v6814 = vsel %vm4498, %v6782, %v6414
      %v6815 = vsel %vm4498, %v6783, %v6416
      %v6816 = vsel %vm4498, %v6784, %v6418
      %v6817 = vsel %vm4498, %v6785, %v6420
      %v6818 = vsel %vm4498, %v6786, %v6422
      %v6819 = vsel %vm4498, %v6787, %v6424
      %v6820 = vsel %vm4498, %v6788, %v6426
      %v6821 = vsel %vm4498, %v6789, %v6428
      %v6822 = vsel %vm4498, %v6790, %v6430
      %v6823 = vsel %vm4498, %v6791, %v6432
      %v6824 = vsel %vm4498, %v6792, %v6434
      %v6825 = vsel %vm4498, %v6793, %v6436
      %v6826 = vsel %vm4498, %v6794, %v6438
      %v6827 = vsel %vm4498, %v6795, %v6440
      %v6828 = vsel %vm4498, %v6796, %v6442
      %v6829 = vsel %vm4498, %v6797, %v6444
      %v6830 = vsel %vm4498, %v6798, %v6446
      %v6831 = vsel %vm4531, %v6799, %v6512
      %v6832 = vsel %vm4531, %v6800, %v6514
      %v6833 = vsel %vm4531, %v6801, %v6516
      %v6834 = vsel %vm4531, %v6802, %v6518
      %v6835 = vsel %vm4531, %v6803, %v6520
      %v6836 = vsel %vm4531, %v6804, %v6522
      %v6837 = vsel %vm4531, %v6805, %v6524
      %v6838 = vsel %vm4531, %v6806, %v6526
      %v6839 = vsel %vm4531, %v6807, %v6528
      %v6840 = vsel %vm4531, %v6808, %v6530
      %v6841 = vsel %vm4531, %v6809, %v6532
      %v6842 = vsel %vm4531, %v6810, %v6534
      %v6843 = vsel %vm4531, %v6811, %v6536
      %v6844 = vsel %vm4531, %v6812, %v6538
      %v6845 = vsel %vm4531, %v6813, %v6540
      %v6846 = vsel %vm4531, %v6814, %v6542
      %v6847 = vsel %vm4531, %v6815, %v6544
      %v6848 = vsel %vm4531, %v6816, %v6546
      %v6849 = vsel %vm4531, %v6817, %v6548
      %v6850 = vsel %vm4531, %v6818, %v6550
      %v6851 = vsel %vm4531, %v6819, %v6552
      %v6852 = vsel %vm4531, %v6820, %v6554
      %v6853 = vsel %vm4531, %v6821, %v6556
      %v6854 = vsel %vm4531, %v6822, %v6558
      %v6855 = vsel %vm4531, %v6823, %v6560
      %v6856 = vsel %vm4531, %v6824, %v6562
      %v6857 = vsel %vm4531, %v6825, %v6564
      %v6858 = vsel %vm4531, %v6826, %v6566
      %v6859 = vsel %vm4531, %v6827, %v6568
      %v6860 = vsel %vm4531, %v6828, %v6570
      %v6861 = vsel %vm4531, %v6829, %v6572
      %v6862 = vsel %vm4531, %v6830, %v6574
      %v6863 = vld [vmem:[%s5] sm:$0xff]
      %v6864 = vld [vmem:[%s5 + $0x8] sm:$0xff]
      %v6865 = vld [vmem:[%s5 + $0x10] sm:$0xff]
      %v6866 = vld [vmem:[%s5 + $0x18] sm:$0xff]
      %v6867 = vld [vmem:[%s5 + $0x20] sm:$0xff]
      %v6868 = vld [vmem:[%s5 + $0x28] sm:$0xff]
      %v6869 = vld [vmem:[%s5 + $0x30] sm:$0xff]
      %v6870 = vld [vmem:[%s5 + $0x38] sm:$0xff]
      %v6871 = vld [vmem:[%s5 + $0x40] sm:$0xff]
      %v6872 = vlaneseq
      %v6873 = vshrl.u32 %v6872, 7
      %v6874 = vsub.s32 5, %v6873
      %v6875 = vrot.slane %v400, %v6874
      %v6877 = vsel %vm4577, %v6831, 0
      %v6880 = vsel %vm4577, %v6832, 0
      %v6883 = vsel %vm4577, %v6833, 0
      %v6886 = vsel %vm4577, %v6834, 0
      %v6889 = vsel %vm4577, %v6835, 0
      %v6892 = vsel %vm4577, %v6836, 0
      %v6895 = vsel %vm4577, %v6837, 0
      %v6898 = vsel %vm4577, %v6838, 0
      %v6901 = vsel %vm4577, %v6839, 0
      %v6904 = vsel %vm4577, %v6840, 0
      %v6907 = vsel %vm4577, %v6841, 0
      %v6910 = vsel %vm4577, %v6842, 0
      %v6913 = vsel %vm4577, %v6843, 0
      %v6916 = vsel %vm4577, %v6844, 0
      %v6919 = vsel %vm4577, %v6845, 0
      %v6922 = vsel %vm4577, %v6846, 0
      %v6925 = vsel %vm4577, %v6847, 0
      %v6928 = vsel %vm4577, %v6848, 0
      %v6931 = vsel %vm4577, %v6849, 0
      %v6934 = vsel %vm4577, %v6850, 0
      %v6937 = vsel %vm4577, %v6851, 0
      %v6940 = vsel %vm4577, %v6852, 0
      %v6943 = vsel %vm4577, %v6853, 0
      %v6946 = vsel %vm4577, %v6854, 0
      %v6949 = vsel %vm4577, %v6855, 0
      %v6952 = vsel %vm4577, %v6856, 0
      %v6955 = vsel %vm4577, %v6857, 0
      %v6958 = vsel %vm4577, %v6858, 0
      %v6961 = vsel %vm4577, %v6859, 0
      %v6964 = vsel %vm4577, %v6860, 0
      %v6967 = vsel %vm4577, %v6861, 0
      %v6970 = vsel %vm4577, %v6862, 0
      %6972 = vmatprep.subr.mxu0 0.0
      %6973 = vmatpush1.msra.mxu0 %v6863
      %6974 = vmatprep.subr.mxu0 0.0
      %6975 = vmatpush1.msra.mxu0 %v6864
      %6976 = vmatprep.subr.mxu0 0.0
      %6977 = vmatpush1.msra.mxu0 %v6865
      %6978 = vmatprep.subr.mxu0 0.0
      %6979 = vmatpush1.msra.mxu0 %v6866
      %6980 = vmatprep.subr.mxu0 0.0
      %6981 = vmatpush1.msra.mxu0 %v6867
      %6982 = vmatprep.subr.mxu0 0.0
      %6983 = vmatpush1.msra.mxu0 %v6868
      %6984 = vmatprep.subr.mxu0 0.0
      %6985 = vmatpush1.msra.mxu0 %v6869
      %6986 = vmatprep.subr.mxu0 0.0
      %6987 = vmatpush1.msra.mxu0 %v6870
      %6988 = vmatprep.subr.mxu0 0.0
      %6989 = vmatpush1.msra.mxu0 %v6871
      %6990 = vmatprep.subr.mxu0 0.0
      %6991 = vmatpush1.msra.mxu0 0.0
      %6992 = vmatprep.subr.mxu0 0.0
      %6993 = vmatpush1.msra.mxu0 0.0
      %6994 = vmatprep.subr.mxu0 0.0
      %6995 = vmatpush1.msra.mxu0 0.0
      %6996 = vmatprep.subr.mxu0 0.0
      %6997 = vmatpush1.msra.mxu0 0.0
      %6998 = vmatprep.subr.mxu0 0.0
      %6999 = vmatpush1.msra.mxu0 0.0
      %7000 = vmatprep.subr.mxu0 0.0
      %7001 = vmatpush1.msra.mxu0 0.0
      %7002 = vmatprep.subr.mxu0 0.0
      %7003 = vmatpush1.msra.mxu0 0.0
      %7004 = vmatprep.subr.mxu0 0.0
      %7005 = vmatpush1.msra.mxu0 0.0
      %7006 = vmatprep.subr.mxu0 0.0
      %7007 = vmatpush1.msra.mxu0 0.0
      %7008 = vmatprep.subr.mxu0 0.0
      %7009 = vmatpush1.msra.mxu0 0.0
      %7010 = vmatprep.subr.mxu0 0.0
      %7011 = vmatpush1.msra.mxu0 0.0
      %7012 = vmatprep.subr.mxu0 0.0
      %7013 = vmatpush1.msra.mxu0 0.0
      %7014 = vmatprep.subr.mxu0 0.0
      %7015 = vmatpush1.msra.mxu0 0.0
      %7016 = vmatprep.subr.mxu0 0.0
      %7017 = vmatpush1.msra.mxu0 0.0
      %7018 = vmatprep.subr.mxu0 0.0
      %7019 = vmatpush1.msra.mxu0 0.0
      %7020 = vmatprep.subr.mxu0 0.0
      %7021 = vmatpush1.msra.mxu0 0.0
      %7022 = vmatprep.subr.mxu0 0.0
      %7023 = vmatpush1.msra.mxu0 0.0
      %7024 = vmatprep.subr.mxu0 0.0
      %7025 = vmatpush1.msra.mxu0 0.0
      %7026 = vmatprep.subr.mxu0 0.0
      %7027 = vmatpush1.msra.mxu0 0.0
      %7028 = vmatprep.subr.mxu0 0.0
      %7029 = vmatpush1.msra.mxu0 0.0
      %7030 = vmatprep.subr.mxu0 0.0
      %7031 = vmatpush1.msra.mxu0 0.0
      %7032 = vmatprep.subr.mxu0 0.0
      %7033 = vmatpush1.msra.mxu0 0.0
      %7034 = vmatprep.subr.mxu0 0.0
      %7035 = vmatpush1.msra.mxu0 0.0
      %7036 = vmatprep.mubr.f32.mxu0 0.0
      %7037 = vmatmul.mubr.f32.gmra.mrb[0].mxu0 %v6877
      %v7038 = vpop.f32.mrb[0].mxu0
      %v7039 = vadd.f32 %v6875, %v7038
      %v7040 = vpop.f32.mrb[0].mxu0
      %7041 = vmatprep.mubr.f32.mxu0 0.0
      %7042 = vmatmul.mubr.f32.gmra.mrb[0].mxu0 %v6880
      %v7043 = vpop.f32.mrb[0].mxu0
      %v7044 = vadd.f32 %v6875, %v7043
      %v7045 = vpop.f32.mrb[0].mxu0
      %7046 = vmatprep.mubr.f32.mxu0 0.0
      %7047 = vmatmul.mubr.f32.gmra.mrb[0].mxu0 %v6883
      %v7048 = vpop.f32.mrb[0].mxu0
      %v7049 = vadd.f32 %v6875, %v7048
      %v7050 = vpop.f32.mrb[0].mxu0
      %7051 = vmatprep.mubr.f32.mxu0 0.0
      %7052 = vmatmul.mubr.f32.gmra.mrb[0].mxu0 %v6886
      %v7053 = vpop.f32.mrb[0].mxu0
      %v7054 = vadd.f32 %v6875, %v7053
      %v7055 = vpop.f32.mrb[0].mxu0
      %7056 = vmatprep.mubr.f32.mxu0 0.0
      %7057 = vmatmul.mubr.f32.gmra.mrb[0].mxu0 %v6889
      %v7058 = vpop.f32.mrb[0].mxu0
      %v7059 = vadd.f32 %v6875, %v7058
      %v7060 = vpop.f32.mrb[0].mxu0
      %7061 = vmatprep.mubr.f32.mxu0 0.0
      %7062 = vmatmul.mubr.f32.gmra.mrb[0].mxu0 %v6892
      %v7063 = vpop.f32.mrb[0].mxu0
      %v7064 = vadd.f32 %v6875, %v7063
      %v7065 = vpop.f32.mrb[0].mxu0
      %7066 = vmatprep.mubr.f32.mxu0 0.0
      %7067 = vmatmul.mubr.f32.gmra.mrb[0].mxu0 %v6895
      %v7068 = vpop.f32.mrb[0].mxu0
      %v7069 = vadd.f32 %v6875, %v7068
      %v7070 = vpop.f32.mrb[0].mxu0
      %7071 = vmatprep.mubr.f32.mxu0 0.0
      %7072 = vmatmul.mubr.f32.gmra.mrb[0].mxu0 %v6898
      %v7073 = vpop.f32.mrb[0].mxu0
      %v7074 = vadd.f32 %v6875, %v7073
      %v7075 = vpop.f32.mrb[0].mxu0
      %7076 = vmatprep.mubr.f32.mxu0 0.0
      %7077 = vmatmul.mubr.f32.gmra.mrb[0].mxu0 %v6901
      %v7078 = vpop.f32.mrb[0].mxu0
      %v7079 = vadd.f32 %v6875, %v7078
      %v7080 = vpop.f32.mrb[0].mxu0
      %7081 = vmatprep.mubr.f32.mxu0 0.0
      %7082 = vmatmul.mubr.f32.gmra.mrb[0].mxu0 %v6904
      %v7083 = vpop.f32.mrb[0].mxu0
      %v7084 = vadd.f32 %v6875, %v7083
      %v7085 = vpop.f32.mrb[0].mxu0
      %7086 = vmatprep.mubr.f32.mxu0 0.0
      %7087 = vmatmul.mubr.f32.gmra.mrb[0].mxu0 %v6907
      %v7088 = vpop.f32.mrb[0].mxu0
      %v7089 = vadd.f32 %v6875, %v7088
      %v7090 = vpop.f32.mrb[0].mxu0
      %7091 = vmatprep.mubr.f32.mxu0 0.0
      %7092 = vmatmul.mubr.f32.gmra.mrb[0].mxu0 %v6910
      %v7093 = vpop.f32.mrb[0].mxu0
      %v7094 = vadd.f32 %v6875, %v7093
      %v7095 = vpop.f32.mrb[0].mxu0
      %7096 = vmatprep.mubr.f32.mxu0 0.0
      %7097 = vmatmul.mubr.f32.gmra.mrb[0].mxu0 %v6913
      %v7098 = vpop.f32.mrb[0].mxu0
      %v7099 = vadd.f32 %v6875, %v7098
      %v7100 = vpop.f32.mrb[0].mxu0
      %7101 = vmatprep.mubr.f32.mxu0 0.0
      %7102 = vmatmul.mubr.f32.gmra.mrb[0].mxu0 %v6916
      %v7103 = vpop.f32.mrb[0].mxu0
      %v7104 = vadd.f32 %v6875, %v7103
      %v7105 = vpop.f32.mrb[0].mxu0
      %7106 = vmatprep.mubr.f32.mxu0 0.0
      %7107 = vmatmul.mubr.f32.gmra.mrb[0].mxu0 %v6919
      %v7108 = vpop.f32.mrb[0].mxu0
      %v7109 = vadd.f32 %v6875, %v7108
      %v7110 = vpop.f32.mrb[0].mxu0
      %7111 = vmatprep.mubr.f32.mxu0 0.0
      %7112 = vmatmul.mubr.f32.gmra.mrb[0].mxu0 %v6922
      %v7113 = vpop.f32.mrb[0].mxu0
      %v7114 = vadd.f32 %v6875, %v7113
      %v7115 = vpop.f32.mrb[0].mxu0
      %7116 = vmatprep.mubr.f32.mxu0 0.0
      %7117 = vmatmul.mubr.f32.gmra.mrb[0].mxu0 %v6925
      %v7118 = vpop.f32.mrb[0].mxu0
      %v7119 = vadd.f32 %v6875, %v7118
      %v7120 = vpop.f32.mrb[0].mxu0
      %7121 = vmatprep.mubr.f32.mxu0 0.0
      %7122 = vmatmul.mubr.f32.gmra.mrb[0].mxu0 %v6928
      %v7123 = vpop.f32.mrb[0].mxu0
      %v7124 = vadd.f32 %v6875, %v7123
      %v7125 = vpop.f32.mrb[0].mxu0
      %7126 = vmatprep.mubr.f32.mxu0 0.0
      %7127 = vmatmul.mubr.f32.gmra.mrb[0].mxu0 %v6931
      %v7128 = vpop.f32.mrb[0].mxu0
      %v7129 = vadd.f32 %v6875, %v7128
      %v7130 = vpop.f32.mrb[0].mxu0
      %7131 = vmatprep.mubr.f32.mxu0 0.0
      %7132 = vmatmul.mubr.f32.gmra.mrb[0].mxu0 %v6934
      %v7133 = vpop.f32.mrb[0].mxu0
      %v7134 = vadd.f32 %v6875, %v7133
      %v7135 = vpop.f32.mrb[0].mxu0
      %7136 = vmatprep.mubr.f32.mxu0 0.0
      %7137 = vmatmul.mubr.f32.gmra.mrb[0].mxu0 %v6937
      %v7138 = vpop.f32.mrb[0].mxu0
      %v7139 = vadd.f32 %v6875, %v7138
      %v7140 = vpop.f32.mrb[0].mxu0
      %7141 = vmatprep.mubr.f32.mxu0 0.0
      %7142 = vmatmul.mubr.f32.gmra.mrb[0].mxu0 %v6940
      %v7143 = vpop.f32.mrb[0].mxu0
      %v7144 = vadd.f32 %v6875, %v7143
      %v7145 = vpop.f32.mrb[0].mxu0
      %7146 = vmatprep.mubr.f32.mxu0 0.0
      %7147 = vmatmul.mubr.f32.gmra.mrb[0].mxu0 %v6943
      %v7148 = vpop.f32.mrb[0].mxu0
      %v7149 = vadd.f32 %v6875, %v7148
      %v7150 = vpop.f32.mrb[0].mxu0
      %7151 = vmatprep.mubr.f32.mxu0 0.0
      %7152 = vmatmul.mubr.f32.gmra.mrb[0].mxu0 %v6946
      %v7153 = vpop.f32.mrb[0].mxu0
      %v7154 = vadd.f32 %v6875, %v7153
      %v7155 = vpop.f32.mrb[0].mxu0
      %7156 = vmatprep.mubr.f32.mxu0 0.0
      %7157 = vmatmul.mubr.f32.gmra.mrb[0].mxu0 %v6949
      %v7158 = vpop.f32.mrb[0].mxu0
      %v7159 = vadd.f32 %v6875, %v7158
      %v7160 = vpop.f32.mrb[0].mxu0
      %7161 = vmatprep.mubr.f32.mxu0 0.0
      %7162 = vmatmul.mubr.f32.gmra.mrb[0].mxu0 %v6952
      %v7163 = vpop.f32.mrb[0].mxu0
      %v7164 = vadd.f32 %v6875, %v7163
      %v7165 = vpop.f32.mrb[0].mxu0
      %7166 = vmatprep.mubr.f32.mxu0 0.0
      %7167 = vmatmul.mubr.f32.gmra.mrb[0].mxu0 %v6955
      %v7168 = vpop.f32.mrb[0].mxu0
      %v7169 = vadd.f32 %v6875, %v7168
      %v7170 = vpop.f32.mrb[0].mxu0
      %7171 = vmatprep.mubr.f32.mxu0 0.0
      %7172 = vmatmul.mubr.f32.gmra.mrb[0].mxu0 %v6958
      %v7173 = vpop.f32.mrb[0].mxu0
      %v7174 = vadd.f32 %v6875, %v7173
      %v7175 = vpop.f32.mrb[0].mxu0
      %7176 = vmatprep.mubr.f32.mxu0 0.0
      %7177 = vmatmul.mubr.f32.gmra.mrb[0].mxu0 %v6961
      %v7178 = vpop.f32.mrb[0].mxu0
      %v7179 = vadd.f32 %v6875, %v7178
      %v7180 = vpop.f32.mrb[0].mxu0
      %7181 = vmatprep.mubr.f32.mxu0 0.0
      %7182 = vmatmul.mubr.f32.gmra.mrb[0].mxu0 %v6964
      %v7183 = vpop.f32.mrb[0].mxu0
      %v7184 = vadd.f32 %v6875, %v7183
      %v7185 = vpop.f32.mrb[0].mxu0
      %7186 = vmatprep.mubr.f32.mxu0 0.0
      %7187 = vmatmul.mubr.f32.gmra.mrb[0].mxu0 %v6967
      %v7188 = vpop.f32.mrb[0].mxu0
      %v7189 = vadd.f32 %v6875, %v7188
      %v7190 = vpop.f32.mrb[0].mxu0
      %7191 = vmatprep.mubr.f32.mxu0 0.0
      %7192 = vmatmul.mubr.f32.gmra.mrb[0].mxu0 %v6970
      %v7193 = vpop.f32.mrb[0].mxu0
      %v7194 = vadd.f32 %v6875, %v7193
      %v7195 = vpop.f32.mrb[0].mxu0
      %7196 = vdwg.mxu0
      %v7197 = vmax.f32 %v7039, 0.0
      %v7198 = vmax.f32 %v7044, 0.0
      %v7199 = vmax.f32 %v7049, 0.0
      %v7200 = vmax.f32 %v7054, 0.0
      %v7201 = vmax.f32 %v7059, 0.0
      %v7202 = vmax.f32 %v7064, 0.0
      %v7203 = vmax.f32 %v7069, 0.0
      %v7204 = vmax.f32 %v7074, 0.0
      %v7205 = vmax.f32 %v7079, 0.0
      %v7206 = vmax.f32 %v7084, 0.0
      %v7207 = vmax.f32 %v7089, 0.0
      %v7208 = vmax.f32 %v7094, 0.0
      %v7209 = vmax.f32 %v7099, 0.0
      %v7210 = vmax.f32 %v7104, 0.0
      %v7211 = vmax.f32 %v7109, 0.0
      %v7212 = vmax.f32 %v7114, 0.0
      %v7213 = vmax.f32 %v7119, 0.0
      %v7214 = vmax.f32 %v7124, 0.0
      %v7215 = vmax.f32 %v7129, 0.0
      %v7216 = vmax.f32 %v7134, 0.0
      %v7217 = vmax.f32 %v7139, 0.0
      %v7218 = vmax.f32 %v7144, 0.0
      %v7219 = vmax.f32 %v7149, 0.0
      %v7220 = vmax.f32 %v7154, 0.0
      %v7221 = vmax.f32 %v7159, 0.0
      %v7222 = vmax.f32 %v7164, 0.0
      %v7223 = vmax.f32 %v7169, 0.0
      %v7224 = vmax.f32 %v7174, 0.0
      %v7225 = vmax.f32 %v7179, 0.0
      %v7226 = vmax.f32 %v7184, 0.0
      %v7227 = vmax.f32 %v7189, 0.0
      %v7228 = vmax.f32 %v7194, 0.0
      %v7229 = vld [vmem:[%s6] sm:$0xff]
      %v7230 = vld [vmem:[%s7] sm:$0xff]
      %v7232 = vsel %vm1873, %v4899, 0
      %v7235 = vsel %vm1873, %v4900, 0
      %v7238 = vsel %vm1873, %v4901, 0
      %v7241 = vsel %vm1873, %v4902, 0
      %v7244 = vsel %vm1873, %v4903, 0
      %v7247 = vsel %vm1873, %v4904, 0
      %v7250 = vsel %vm1873, %v4905, 0
      %v7253 = vsel %vm1873, %v4906, 0
      %v7256 = vsel %vm1873, %v4907, 0
      %v7259 = vsel %vm1873, %v4908, 0
      %v7262 = vsel %vm1873, %v4909, 0
      %v7265 = vsel %vm1873, %v4910, 0
      %v7268 = vsel %vm1873, %v4911, 0
      %v7271 = vsel %vm1873, %v4912, 0
      %v7274 = vsel %vm1873, %v4913, 0
      %v7277 = vsel %vm1873, %v4914, 0
      %v7280 = vsel %vm1873, %v4915, 0
      %v7283 = vsel %vm1873, %v4916, 0
      %v7286 = vsel %vm1873, %v4917, 0
      %v7289 = vsel %vm1873, %v4918, 0
      %v7292 = vsel %vm1873, %v4919, 0
      %v7295 = vsel %vm1873, %v4920, 0
      %v7298 = vsel %vm1873, %v4921, 0
      %v7301 = vsel %vm1873, %v4922, 0
      %v7304 = vsel %vm1873, %v4923, 0
      %v7307 = vsel %vm1873, %v4924, 0
      %v7310 = vsel %vm1873, %v4925, 0
      %v7313 = vsel %vm1873, %v4926, 0
      %v7316 = vsel %vm1873, %v4927, 0
      %v7319 = vsel %vm1873, %v4928, 0
      %v7322 = vsel %vm1873, %v4929, 0
      %v7325 = vsel %vm1873, %v4930, 0
      %7327 = vmatprep.subr.mxu0 0.0
      %7328 = vmatpush1.msra.mxu0 %v7230
      %7329 = vmatprep.subr.mxu0 0.0
      %7330 = vmatpush1.msra.mxu0 0.0
      %7331 = vmatprep.subr.mxu0 0.0
      %7332 = vmatpush1.msra.mxu0 0.0
      %7333 = vmatprep.subr.mxu0 0.0
      %7334 = vmatpush1.msra.mxu0 0.0
      %7335 = vmatprep.subr.mxu0 0.0
      %7336 = vmatpush1.msra.mxu0 0.0
      %7337 = vmatprep.subr.mxu0 0.0
      %7338 = vmatpush1.msra.mxu0 0.0
      %7339 = vmatprep.subr.mxu0 0.0
      %7340 = vmatpush1.msra.mxu0 0.0
      %7341 = vmatprep.subr.mxu0 0.0
      %7342 = vmatpush1.msra.mxu0 0.0
      %7343 = vmatprep.subr.mxu0 0.0
      %7344 = vmatpush1.msra.mxu0 0.0
      %7345 = vmatprep.subr.mxu0 0.0
      %7346 = vmatpush1.msra.mxu0 0.0
      %7347 = vmatprep.subr.mxu0 0.0
      %7348 = vmatpush1.msra.mxu0 0.0
      %7349 = vmatprep.subr.mxu0 0.0
      %7350 = vmatpush1.msra.mxu0 0.0
      %7351 = vmatprep.subr.mxu0 0.0
      %7352 = vmatpush1.msra.mxu0 0.0
      %7353 = vmatprep.subr.mxu0 0.0
      %7354 = vmatpush1.msra.mxu0 0.0
      %7355 = vmatprep.subr.mxu0 0.0
      %7356 = vmatpush1.msra.mxu0 0.0
      %7357 = vmatprep.subr.mxu0 0.0
      %7358 = vmatpush1.msra.mxu0 0.0
      %7359 = vmatprep.subr.mxu0 0.0
      %7360 = vmatpush1.msra.mxu0 0.0
      %7361 = vmatprep.subr.mxu0 0.0
      %7362 = vmatpush1.msra.mxu0 0.0
      %7363 = vmatprep.subr.mxu0 0.0
      %7364 = vmatpush1.msra.mxu0 0.0
      %7365 = vmatprep.subr.mxu0 0.0
      %7366 = vmatpush1.msra.mxu0 0.0
      %7367 = vmatprep.subr.mxu0 0.0
      %7368 = vmatpush1.msra.mxu0 0.0
      %7369 = vmatprep.subr.mxu0 0.0
      %7370 = vmatpush1.msra.mxu0 0.0
      %7371 = vmatprep.subr.mxu0 0.0
      %7372 = vmatpush1.msra.mxu0 0.0
      %7373 = vmatprep.subr.mxu0 0.0
      %7374 = vmatpush1.msra.mxu0 0.0
      %7375 = vmatprep.subr.mxu0 0.0
      %7376 = vmatpush1.msra.mxu0 0.0
      %7377 = vmatprep.subr.mxu0 0.0
      %7378 = vmatpush1.msra.mxu0 0.0
      %7379 = vmatprep.subr.mxu0 0.0
      %7380 = vmatpush1.msra.mxu0 0.0
      %7381 = vmatprep.subr.mxu0 0.0
      %7382 = vmatpush1.msra.mxu0 0.0
      %7383 = vmatprep.subr.mxu0 0.0
      %7384 = vmatpush1.msra.mxu0 0.0
      %7385 = vmatprep.subr.mxu0 0.0
      %7386 = vmatpush1.msra.mxu0 0.0
      %7387 = vmatprep.subr.mxu0 0.0
      %7388 = vmatpush1.msra.mxu0 0.0
      %7389 = vmatprep.subr.mxu0 0.0
      %7390 = vmatpush1.msra.mxu0 0.0
      %7391 = vmatprep.mubr.f32.mxu0 0.0
      %7392 = vmatmul.mubr.f32.gmra.mrb[0].mxu0 %v7232
      %v7393 = vpop.f32.mrb[0].mxu0
      %v7394 = vadd.f32 0.0, %v7393
      %v7395 = vpop.f32.mrb[0].mxu0
      %7396 = vmatprep.mubr.f32.mxu0 0.0
      %7397 = vmatmul.mubr.f32.gmra.mrb[0].mxu0 %v7235
      %v7398 = vpop.f32.mrb[0].mxu0
      %v7399 = vadd.f32 0.0, %v7398
      %v7400 = vpop.f32.mrb[0].mxu0
      %7401 = vmatprep.mubr.f32.mxu0 0.0
      %7402 = vmatmul.mubr.f32.gmra.mrb[0].mxu0 %v7238
      %v7403 = vpop.f32.mrb[0].mxu0
      %v7404 = vadd.f32 0.0, %v7403
      %v7405 = vpop.f32.mrb[0].mxu0
      %7406 = vmatprep.mubr.f32.mxu0 0.0
      %7407 = vmatmul.mubr.f32.gmra.mrb[0].mxu0 %v7241
      %v7408 = vpop.f32.mrb[0].mxu0
      %v7409 = vadd.f32 0.0, %v7408
      %v7410 = vpop.f32.mrb[0].mxu0
      %7411 = vmatprep.mubr.f32.mxu0 0.0
      %7412 = vmatmul.mubr.f32.gmra.mrb[0].mxu0 %v7244
      %v7413 = vpop.f32.mrb[0].mxu0
      %v7414 = vadd.f32 0.0, %v7413
      %v7415 = vpop.f32.mrb[0].mxu0
      %7416 = vmatprep.mubr.f32.mxu0 0.0
      %7417 = vmatmul.mubr.f32.gmra.mrb[0].mxu0 %v7247
      %v7418 = vpop.f32.mrb[0].mxu0
      %v7419 = vadd.f32 0.0, %v7418
      %v7420 = vpop.f32.mrb[0].mxu0
      %7421 = vmatprep.mubr.f32.mxu0 0.0
      %7422 = vmatmul.mubr.f32.gmra.mrb[0].mxu0 %v7250
      %v7423 = vpop.f32.mrb[0].mxu0
      %v7424 = vadd.f32 0.0, %v7423
      %v7425 = vpop.f32.mrb[0].mxu0
      %7426 = vmatprep.mubr.f32.mxu0 0.0
      %7427 = vmatmul.mubr.f32.gmra.mrb[0].mxu0 %v7253
      %v7428 = vpop.f32.mrb[0].mxu0
      %v7429 = vadd.f32 0.0, %v7428
      %v7430 = vpop.f32.mrb[0].mxu0
      %7431 = vmatprep.mubr.f32.mxu0 0.0
      %7432 = vmatmul.mubr.f32.gmra.mrb[0].mxu0 %v7256
      %v7433 = vpop.f32.mrb[0].mxu0
      %v7434 = vadd.f32 0.0, %v7433
      %v7435 = vpop.f32.mrb[0].mxu0
      %7436 = vmatprep.mubr.f32.mxu0 0.0
      %7437 = vmatmul.mubr.f32.gmra.mrb[0].mxu0 %v7259
      %v7438 = vpop.f32.mrb[0].mxu0
      %v7439 = vadd.f32 0.0, %v7438
      %v7440 = vpop.f32.mrb[0].mxu0
      %7441 = vmatprep.mubr.f32.mxu0 0.0
      %7442 = vmatmul.mubr.f32.gmra.mrb[0].mxu0 %v7262
      %v7443 = vpop.f32.mrb[0].mxu0
      %v7444 = vadd.f32 0.0, %v7443
      %v7445 = vpop.f32.mrb[0].mxu0
      %7446 = vmatprep.mubr.f32.mxu0 0.0
      %7447 = vmatmul.mubr.f32.gmra.mrb[0].mxu0 %v7265
      %v7448 = vpop.f32.mrb[0].mxu0
      %v7449 = vadd.f32 0.0, %v7448
      %v7450 = vpop.f32.mrb[0].mxu0
      %7451 = vmatprep.mubr.f32.mxu0 0.0
      %7452 = vmatmul.mubr.f32.gmra.mrb[0].mxu0 %v7268
      %v7453 = vpop.f32.mrb[0].mxu0
      %v7454 = vadd.f32 0.0, %v7453
      %v7455 = vpop.f32.mrb[0].mxu0
      %7456 = vmatprep.mubr.f32.mxu0 0.0
      %7457 = vmatmul.mubr.f32.gmra.mrb[0].mxu0 %v7271
      %v7458 = vpop.f32.mrb[0].mxu0
      %v7459 = vadd.f32 0.0, %v7458
      %v7460 = vpop.f32.mrb[0].mxu0
      %7461 = vmatprep.mubr.f32.mxu0 0.0
      %7462 = vmatmul.mubr.f32.gmra.mrb[0].mxu0 %v7274
      %v7463 = vpop.f32.mrb[0].mxu0
      %v7464 = vadd.f32 0.0, %v7463
      %v7465 = vpop.f32.mrb[0].mxu0
      %7466 = vmatprep.mubr.f32.mxu0 0.0
      %7467 = vmatmul.mubr.f32.gmra.mrb[0].mxu0 %v7277
      %v7468 = vpop.f32.mrb[0].mxu0
      %v7469 = vadd.f32 0.0, %v7468
      %v7470 = vpop.f32.mrb[0].mxu0
      %7471 = vmatprep.mubr.f32.mxu0 0.0
      %7472 = vmatmul.mubr.f32.gmra.mrb[0].mxu0 %v7280
      %v7473 = vpop.f32.mrb[0].mxu0
      %v7474 = vadd.f32 0.0, %v7473
      %v7475 = vpop.f32.mrb[0].mxu0
      %7476 = vmatprep.mubr.f32.mxu0 0.0
      %7477 = vmatmul.mubr.f32.gmra.mrb[0].mxu0 %v7283
      %v7478 = vpop.f32.mrb[0].mxu0
      %v7479 = vadd.f32 0.0, %v7478
      %v7480 = vpop.f32.mrb[0].mxu0
      %7481 = vmatprep.mubr.f32.mxu0 0.0
      %7482 = vmatmul.mubr.f32.gmra.mrb[0].mxu0 %v7286
      %v7483 = vpop.f32.mrb[0].mxu0
      %v7484 = vadd.f32 0.0, %v7483
      %v7485 = vpop.f32.mrb[0].mxu0
      %7486 = vmatprep.mubr.f32.mxu0 0.0
      %7487 = vmatmul.mubr.f32.gmra.mrb[0].mxu0 %v7289
      %v7488 = vpop.f32.mrb[0].mxu0
      %v7489 = vadd.f32 0.0, %v7488
      %v7490 = vpop.f32.mrb[0].mxu0
      %7491 = vmatprep.mubr.f32.mxu0 0.0
      %7492 = vmatmul.mubr.f32.gmra.mrb[0].mxu0 %v7292
      %v7493 = vpop.f32.mrb[0].mxu0
      %v7494 = vadd.f32 0.0, %v7493
      %v7495 = vpop.f32.mrb[0].mxu0
      %7496 = vmatprep.mubr.f32.mxu0 0.0
      %7497 = vmatmul.mubr.f32.gmra.mrb[0].mxu0 %v7295
      %v7498 = vpop.f32.mrb[0].mxu0
      %v7499 = vadd.f32 0.0, %v7498
      %v7500 = vpop.f32.mrb[0].mxu0
      %7501 = vmatprep.mubr.f32.mxu0 0.0
      %7502 = vmatmul.mubr.f32.gmra.mrb[0].mxu0 %v7298
      %v7503 = vpop.f32.mrb[0].mxu0
      %v7504 = vadd.f32 0.0, %v7503
      %v7505 = vpop.f32.mrb[0].mxu0
      %7506 = vmatprep.mubr.f32.mxu0 0.0
      %7507 = vmatmul.mubr.f32.gmra.mrb[0].mxu0 %v7301
      %v7508 = vpop.f32.mrb[0].mxu0
      %v7509 = vadd.f32 0.0, %v7508
      %v7510 = vpop.f32.mrb[0].mxu0
      %7511 = vmatprep.mubr.f32.mxu0 0.0
      %7512 = vmatmul.mubr.f32.gmra.mrb[0].mxu0 %v7304
      %v7513 = vpop.f32.mrb[0].mxu0
      %v7514 = vadd.f32 0.0, %v7513
      %v7515 = vpop.f32.mrb[0].mxu0
      %7516 = vmatprep.mubr.f32.mxu0 0.0
      %7517 = vmatmul.mubr.f32.gmra.mrb[0].mxu0 %v7307
      %v7518 = vpop.f32.mrb[0].mxu0
      %v7519 = vadd.f32 0.0, %v7518
      %v7520 = vpop.f32.mrb[0].mxu0
      %7521 = vmatprep.mubr.f32.mxu0 0.0
      %7522 = vmatmul.mubr.f32.gmra.mrb[0].mxu0 %v7310
      %v7523 = vpop.f32.mrb[0].mxu0
      %v7524 = vadd.f32 0.0, %v7523
      %v7525 = vpop.f32.mrb[0].mxu0
      %7526 = vmatprep.mubr.f32.mxu0 0.0
      %7527 = vmatmul.mubr.f32.gmra.mrb[0].mxu0 %v7313
      %v7528 = vpop.f32.mrb[0].mxu0
      %v7529 = vadd.f32 0.0, %v7528
      %v7530 = vpop.f32.mrb[0].mxu0
      %7531 = vmatprep.mubr.f32.mxu0 0.0
      %7532 = vmatmul.mubr.f32.gmra.mrb[0].mxu0 %v7316
      %v7533 = vpop.f32.mrb[0].mxu0
      %v7534 = vadd.f32 0.0, %v7533
      %v7535 = vpop.f32.mrb[0].mxu0
      %7536 = vmatprep.mubr.f32.mxu0 0.0
      %7537 = vmatmul.mubr.f32.gmra.mrb[0].mxu0 %v7319
      %v7538 = vpop.f32.mrb[0].mxu0
      %v7539 = vadd.f32 0.0, %v7538
      %v7540 = vpop.f32.mrb[0].mxu0
      %7541 = vmatprep.mubr.f32.mxu0 0.0
      %7542 = vmatmul.mubr.f32.gmra.mrb[0].mxu0 %v7322
      %v7543 = vpop.f32.mrb[0].mxu0
      %v7544 = vadd.f32 0.0, %v7543
      %v7545 = vpop.f32.mrb[0].mxu0
      %7546 = vmatprep.mubr.f32.mxu0 0.0
      %7547 = vmatmul.mubr.f32.gmra.mrb[0].mxu0 %v7325
      %v7548 = vpop.f32.mrb[0].mxu0
      %v7549 = vadd.f32 0.0, %v7548
      %v7550 = vpop.f32.mrb[0].mxu0
      %7551 = vdwg.mxu0
      %v7553 = vsel %vm1873, %v2959, 0
      %v7556 = vsel %vm1873, %v2960, 0
      %v7559 = vsel %vm1873, %v2961, 0
      %v7562 = vsel %vm1873, %v2962, 0
      %v7565 = vsel %vm1873, %v2963, 0
      %v7568 = vsel %vm1873, %v2964, 0
      %v7571 = vsel %vm1873, %v2965, 0
      %v7574 = vsel %vm1873, %v2966, 0
      %v7577 = vsel %vm1873, %v2967, 0
      %v7580 = vsel %vm1873, %v2968, 0
      %v7583 = vsel %vm1873, %v2969, 0
      %v7586 = vsel %vm1873, %v2970, 0
      %v7589 = vsel %vm1873, %v2971, 0
      %v7592 = vsel %vm1873, %v2972, 0
      %v7595 = vsel %vm1873, %v2973, 0
      %v7598 = vsel %vm1873, %v2974, 0
      %v7601 = vsel %vm1873, %v2975, 0
      %v7604 = vsel %vm1873, %v2976, 0
      %v7607 = vsel %vm1873, %v2977, 0
      %v7610 = vsel %vm1873, %v2978, 0
      %v7613 = vsel %vm1873, %v2979, 0
      %v7616 = vsel %vm1873, %v2980, 0
      %v7619 = vsel %vm1873, %v2981, 0
      %v7622 = vsel %vm1873, %v2982, 0
      %v7625 = vsel %vm1873, %v2983, 0
      %v7628 = vsel %vm1873, %v2984, 0
      %v7631 = vsel %vm1873, %v2985, 0
      %v7634 = vsel %vm1873, %v2986, 0
      %v7637 = vsel %vm1873, %v2987, 0
      %v7640 = vsel %vm1873, %v2988, 0
      %v7643 = vsel %vm1873, %v2989, 0
      %v7646 = vsel %vm1873, %v2990, 0
      %7648 = vmatprep.subr.mxu0 0.0
      %7649 = vmatpush1.msra.mxu0 %v7229
      %7650 = vmatprep.subr.mxu0 0.0
      %7651 = vmatpush1.msra.mxu0 0.0
      %7652 = vmatprep.subr.mxu0 0.0
      %7653 = vmatpush1.msra.mxu0 0.0
      %7654 = vmatprep.subr.mxu0 0.0
      %7655 = vmatpush1.msra.mxu0 0.0
      %7656 = vmatprep.subr.mxu0 0.0
      %7657 = vmatpush1.msra.mxu0 0.0
      %7658 = vmatprep.subr.mxu0 0.0
      %7659 = vmatpush1.msra.mxu0 0.0
      %7660 = vmatprep.subr.mxu0 0.0
      %7661 = vmatpush1.msra.mxu0 0.0
      %7662 = vmatprep.subr.mxu0 0.0
      %7663 = vmatpush1.msra.mxu0 0.0
      %7664 = vmatprep.subr.mxu0 0.0
      %7665 = vmatpush1.msra.mxu0 0.0
      %7666 = vmatprep.subr.mxu0 0.0
      %7667 = vmatpush1.msra.mxu0 0.0
      %7668 = vmatprep.subr.mxu0 0.0
      %7669 = vmatpush1.msra.mxu0 0.0
      %7670 = vmatprep.subr.mxu0 0.0
      %7671 = vmatpush1.msra.mxu0 0.0
      %7672 = vmatprep.subr.mxu0 0.0
      %7673 = vmatpush1.msra.mxu0 0.0
      %7674 = vmatprep.subr.mxu0 0.0
      %7675 = vmatpush1.msra.mxu0 0.0
      %7676 = vmatprep.subr.mxu0 0.0
      %7677 = vmatpush1.msra.mxu0 0.0
      %7678 = vmatprep.subr.mxu0 0.0
      %7679 = vmatpush1.msra.mxu0 0.0
      %7680 = vmatprep.subr.mxu0 0.0
      %7681 = vmatpush1.msra.mxu0 0.0
      %7682 = vmatprep.subr.mxu0 0.0
      %7683 = vmatpush1.msra.mxu0 0.0
      %7684 = vmatprep.subr.mxu0 0.0
      %7685 = vmatpush1.msra.mxu0 0.0
      %7686 = vmatprep.subr.mxu0 0.0
      %7687 = vmatpush1.msra.mxu0 0.0
      %7688 = vmatprep.subr.mxu0 0.0
      %7689 = vmatpush1.msra.mxu0 0.0
      %7690 = vmatprep.subr.mxu0 0.0
      %7691 = vmatpush1.msra.mxu0 0.0
      %7692 = vmatprep.subr.mxu0 0.0
      %7693 = vmatpush1.msra.mxu0 0.0
      %7694 = vmatprep.subr.mxu0 0.0
      %7695 = vmatpush1.msra.mxu0 0.0
      %7696 = vmatprep.subr.mxu0 0.0
      %7697 = vmatpush1.msra.mxu0 0.0
      %7698 = vmatprep.subr.mxu0 0.0
      %7699 = vmatpush1.msra.mxu0 0.0
      %7700 = vmatprep.subr.mxu0 0.0
      %7701 = vmatpush1.msra.mxu0 0.0
      %7702 = vmatprep.subr.mxu0 0.0
      %7703 = vmatpush1.msra.mxu0 0.0
      %7704 = vmatprep.subr.mxu0 0.0
      %7705 = vmatpush1.msra.mxu0 0.0
      %7706 = vmatprep.subr.mxu0 0.0
      %7707 = vmatpush1.msra.mxu0 0.0
      %7708 = vmatprep.subr.mxu0 0.0
      %7709 = vmatpush1.msra.mxu0 0.0
      %7710 = vmatprep.subr.mxu0 0.0
      %7711 = vmatpush1.msra.mxu0 0.0
      %7712 = vmatprep.mubr.f32.mxu0 0.0
      %7713 = vmatmul.mubr.f32.gmra.mrb[0].mxu0 %v7553
      %v7714 = vpop.f32.mrb[0].mxu0
      %v7715 = vadd.f32 %v7394, %v7714
      %v7716 = vpop.f32.mrb[0].mxu0
      %7717 = vmatprep.mubr.f32.mxu0 0.0
      %7718 = vmatmul.mubr.f32.gmra.mrb[0].mxu0 %v7556
      %v7719 = vpop.f32.mrb[0].mxu0
      %v7720 = vadd.f32 %v7399, %v7719
      %v7721 = vpop.f32.mrb[0].mxu0
      %7722 = vmatprep.mubr.f32.mxu0 0.0
      %7723 = vmatmul.mubr.f32.gmra.mrb[0].mxu0 %v7559
      %v7724 = vpop.f32.mrb[0].mxu0
      %v7725 = vadd.f32 %v7404, %v7724
      %v7726 = vpop.f32.mrb[0].mxu0
      %7727 = vmatprep.mubr.f32.mxu0 0.0
      %7728 = vmatmul.mubr.f32.gmra.mrb[0].mxu0 %v7562
      %v7729 = vpop.f32.mrb[0].mxu0
      %v7730 = vadd.f32 %v7409, %v7729
      %v7731 = vpop.f32.mrb[0].mxu0
      %7732 = vmatprep.mubr.f32.mxu0 0.0
      %7733 = vmatmul.mubr.f32.gmra.mrb[0].mxu0 %v7565
      %v7734 = vpop.f32.mrb[0].mxu0
      %v7735 = vadd.f32 %v7414, %v7734
      %v7736 = vpop.f32.mrb[0].mxu0
      %7737 = vmatprep.mubr.f32.mxu0 0.0
      %7738 = vmatmul.mubr.f32.gmra.mrb[0].mxu0 %v7568
      %v7739 = vpop.f32.mrb[0].mxu0
      %v7740 = vadd.f32 %v7419, %v7739
      %v7741 = vpop.f32.mrb[0].mxu0
      %7742 = vmatprep.mubr.f32.mxu0 0.0
      %7743 = vmatmul.mubr.f32.gmra.mrb[0].mxu0 %v7571
      %v7744 = vpop.f32.mrb[0].mxu0
      %v7745 = vadd.f32 %v7424, %v7744
      %v7746 = vpop.f32.mrb[0].mxu0
      %7747 = vmatprep.mubr.f32.mxu0 0.0
      %7748 = vmatmul.mubr.f32.gmra.mrb[0].mxu0 %v7574
      %v7749 = vpop.f32.mrb[0].mxu0
      %v7750 = vadd.f32 %v7429, %v7749
      %v7751 = vpop.f32.mrb[0].mxu0
      %7752 = vmatprep.mubr.f32.mxu0 0.0
      %7753 = vmatmul.mubr.f32.gmra.mrb[0].mxu0 %v7577
      %v7754 = vpop.f32.mrb[0].mxu0
      %v7755 = vadd.f32 %v7434, %v7754
      %v7756 = vpop.f32.mrb[0].mxu0
      %7757 = vmatprep.mubr.f32.mxu0 0.0
      %7758 = vmatmul.mubr.f32.gmra.mrb[0].mxu0 %v7580
      %v7759 = vpop.f32.mrb[0].mxu0
      %v7760 = vadd.f32 %v7439, %v7759
      %v7761 = vpop.f32.mrb[0].mxu0
      %7762 = vmatprep.mubr.f32.mxu0 0.0
      %7763 = vmatmul.mubr.f32.gmra.mrb[0].mxu0 %v7583
      %v7764 = vpop.f32.mrb[0].mxu0
      %v7765 = vadd.f32 %v7444, %v7764
      %v7766 = vpop.f32.mrb[0].mxu0
      %7767 = vmatprep.mubr.f32.mxu0 0.0
      %7768 = vmatmul.mubr.f32.gmra.mrb[0].mxu0 %v7586
      %v7769 = vpop.f32.mrb[0].mxu0
      %v7770 = vadd.f32 %v7449, %v7769
      %v7771 = vpop.f32.mrb[0].mxu0
      %7772 = vmatprep.mubr.f32.mxu0 0.0
      %7773 = vmatmul.mubr.f32.gmra.mrb[0].mxu0 %v7589
      %v7774 = vpop.f32.mrb[0].mxu0
      %v7775 = vadd.f32 %v7454, %v7774
      %v7776 = vpop.f32.mrb[0].mxu0
      %7777 = vmatprep.mubr.f32.mxu0 0.0
      %7778 = vmatmul.mubr.f32.gmra.mrb[0].mxu0 %v7592
      %v7779 = vpop.f32.mrb[0].mxu0
      %v7780 = vadd.f32 %v7459, %v7779
      %v7781 = vpop.f32.mrb[0].mxu0
      %7782 = vmatprep.mubr.f32.mxu0 0.0
      %7783 = vmatmul.mubr.f32.gmra.mrb[0].mxu0 %v7595
      %v7784 = vpop.f32.mrb[0].mxu0
      %v7785 = vadd.f32 %v7464, %v7784
      %v7786 = vpop.f32.mrb[0].mxu0
      %7787 = vmatprep.mubr.f32.mxu0 0.0
      %7788 = vmatmul.mubr.f32.gmra.mrb[0].mxu0 %v7598
      %v7789 = vpop.f32.mrb[0].mxu0
      %v7790 = vadd.f32 %v7469, %v7789
      %v7791 = vpop.f32.mrb[0].mxu0
      %7792 = vmatprep.mubr.f32.mxu0 0.0
      %7793 = vmatmul.mubr.f32.gmra.mrb[0].mxu0 %v7601
      %v7794 = vpop.f32.mrb[0].mxu0
      %v7795 = vadd.f32 %v7474, %v7794
      %v7796 = vpop.f32.mrb[0].mxu0
      %7797 = vmatprep.mubr.f32.mxu0 0.0
      %7798 = vmatmul.mubr.f32.gmra.mrb[0].mxu0 %v7604
      %v7799 = vpop.f32.mrb[0].mxu0
      %v7800 = vadd.f32 %v7479, %v7799
      %v7801 = vpop.f32.mrb[0].mxu0
      %7802 = vmatprep.mubr.f32.mxu0 0.0
      %7803 = vmatmul.mubr.f32.gmra.mrb[0].mxu0 %v7607
      %v7804 = vpop.f32.mrb[0].mxu0
      %v7805 = vadd.f32 %v7484, %v7804
      %v7806 = vpop.f32.mrb[0].mxu0
      %7807 = vmatprep.mubr.f32.mxu0 0.0
      %7808 = vmatmul.mubr.f32.gmra.mrb[0].mxu0 %v7610
      %v7809 = vpop.f32.mrb[0].mxu0
      %v7810 = vadd.f32 %v7489, %v7809
      %v7811 = vpop.f32.mrb[0].mxu0
      %7812 = vmatprep.mubr.f32.mxu0 0.0
      %7813 = vmatmul.mubr.f32.gmra.mrb[0].mxu0 %v7613
      %v7814 = vpop.f32.mrb[0].mxu0
      %v7815 = vadd.f32 %v7494, %v7814
      %v7816 = vpop.f32.mrb[0].mxu0
      %7817 = vmatprep.mubr.f32.mxu0 0.0
      %7818 = vmatmul.mubr.f32.gmra.mrb[0].mxu0 %v7616
      %v7819 = vpop.f32.mrb[0].mxu0
      %v7820 = vadd.f32 %v7499, %v7819
      %v7821 = vpop.f32.mrb[0].mxu0
      %7822 = vmatprep.mubr.f32.mxu0 0.0
      %7823 = vmatmul.mubr.f32.gmra.mrb[0].mxu0 %v7619
      %v7824 = vpop.f32.mrb[0].mxu0
      %v7825 = vadd.f32 %v7504, %v7824
      %v7826 = vpop.f32.mrb[0].mxu0
      %7827 = vmatprep.mubr.f32.mxu0 0.0
      %7828 = vmatmul.mubr.f32.gmra.mrb[0].mxu0 %v7622
      %v7829 = vpop.f32.mrb[0].mxu0
      %v7830 = vadd.f32 %v7509, %v7829
      %v7831 = vpop.f32.mrb[0].mxu0
      %7832 = vmatprep.mubr.f32.mxu0 0.0
      %7833 = vmatmul.mubr.f32.gmra.mrb[0].mxu0 %v7625
      %v7834 = vpop.f32.mrb[0].mxu0
      %v7835 = vadd.f32 %v7514, %v7834
      %v7836 = vpop.f32.mrb[0].mxu0
      %7837 = vmatprep.mubr.f32.mxu0 0.0
      %7838 = vmatmul.mubr.f32.gmra.mrb[0].mxu0 %v7628
      %v7839 = vpop.f32.mrb[0].mxu0
      %v7840 = vadd.f32 %v7519, %v7839
      %v7841 = vpop.f32.mrb[0].mxu0
      %7842 = vmatprep.mubr.f32.mxu0 0.0
      %7843 = vmatmul.mubr.f32.gmra.mrb[0].mxu0 %v7631
      %v7844 = vpop.f32.mrb[0].mxu0
      %v7845 = vadd.f32 %v7524, %v7844
      %v7846 = vpop.f32.mrb[0].mxu0
      %7847 = vmatprep.mubr.f32.mxu0 0.0
      %7848 = vmatmul.mubr.f32.gmra.mrb[0].mxu0 %v7634
      %v7849 = vpop.f32.mrb[0].mxu0
      %v7850 = vadd.f32 %v7529, %v7849
      %v7851 = vpop.f32.mrb[0].mxu0
      %7852 = vmatprep.mubr.f32.mxu0 0.0
      %7853 = vmatmul.mubr.f32.gmra.mrb[0].mxu0 %v7637
      %v7854 = vpop.f32.mrb[0].mxu0
      %v7855 = vadd.f32 %v7534, %v7854
      %v7856 = vpop.f32.mrb[0].mxu0
      %7857 = vmatprep.mubr.f32.mxu0 0.0
      %7858 = vmatmul.mubr.f32.gmra.mrb[0].mxu0 %v7640
      %v7859 = vpop.f32.mrb[0].mxu0
      %v7860 = vadd.f32 %v7539, %v7859
      %v7861 = vpop.f32.mrb[0].mxu0
      %7862 = vmatprep.mubr.f32.mxu0 0.0
      %7863 = vmatmul.mubr.f32.gmra.mrb[0].mxu0 %v7643
      %v7864 = vpop.f32.mrb[0].mxu0
      %v7865 = vadd.f32 %v7544, %v7864
      %v7866 = vpop.f32.mrb[0].mxu0
      %7867 = vmatprep.mubr.f32.mxu0 0.0
      %7868 = vmatmul.mubr.f32.gmra.mrb[0].mxu0 %v7646
      %v7869 = vpop.f32.mrb[0].mxu0
      %v7870 = vadd.f32 %v7549, %v7869
      %v7871 = vpop.f32.mrb[0].mxu0
      %7872 = vdwg.mxu0
      %v7873 = vld [vmem:[%s8] sm:$0xff]
      %v7875 = vsel %vm1873, %v7197, 0
      %v7878 = vsel %vm1873, %v7198, 0
      %v7881 = vsel %vm1873, %v7199, 0
      %v7884 = vsel %vm1873, %v7200, 0
      %v7887 = vsel %vm1873, %v7201, 0
      %v7890 = vsel %vm1873, %v7202, 0
      %v7893 = vsel %vm1873, %v7203, 0
      %v7896 = vsel %vm1873, %v7204, 0
      %v7899 = vsel %vm1873, %v7205, 0
      %v7902 = vsel %vm1873, %v7206, 0
      %v7905 = vsel %vm1873, %v7207, 0
      %v7908 = vsel %vm1873, %v7208, 0
      %v7911 = vsel %vm1873, %v7209, 0
      %v7914 = vsel %vm1873, %v7210, 0
      %v7917 = vsel %vm1873, %v7211, 0
      %v7920 = vsel %vm1873, %v7212, 0
      %v7923 = vsel %vm1873, %v7213, 0
      %v7926 = vsel %vm1873, %v7214, 0
      %v7929 = vsel %vm1873, %v7215, 0
      %v7932 = vsel %vm1873, %v7216, 0
      %v7935 = vsel %vm1873, %v7217, 0
      %v7938 = vsel %vm1873, %v7218, 0
      %v7941 = vsel %vm1873, %v7219, 0
      %v7944 = vsel %vm1873, %v7220, 0
      %v7947 = vsel %vm1873, %v7221, 0
      %v7950 = vsel %vm1873, %v7222, 0
      %v7953 = vsel %vm1873, %v7223, 0
      %v7956 = vsel %vm1873, %v7224, 0
      %v7959 = vsel %vm1873, %v7225, 0
      %v7962 = vsel %vm1873, %v7226, 0
      %v7965 = vsel %vm1873, %v7227, 0
      %v7968 = vsel %vm1873, %v7228, 0
      %7970 = vmatprep.subr.mxu0 0.0
      %7971 = vmatpush1.msra.mxu0 %v7873
      %7972 = vmatprep.subr.mxu0 0.0
      %7973 = vmatpush1.msra.mxu0 0.0
      %7974 = vmatprep.subr.mxu0 0.0
      %7975 = vmatpush1.msra.mxu0 0.0
      %7976 = vmatprep.subr.mxu0 0.0
      %7977 = vmatpush1.msra.mxu0 0.0
      %7978 = vmatprep.subr.mxu0 0.0
      %7979 = vmatpush1.msra.mxu0 0.0
      %7980 = vmatprep.subr.mxu0 0.0
      %7981 = vmatpush1.msra.mxu0 0.0
      %7982 = vmatprep.subr.mxu0 0.0
      %7983 = vmatpush1.msra.mxu0 0.0
      %7984 = vmatprep.subr.mxu0 0.0
      %7985 = vmatpush1.msra.mxu0 0.0
      %7986 = vmatprep.subr.mxu0 0.0
      %7987 = vmatpush1.msra.mxu0 0.0
      %7988 = vmatprep.subr.mxu0 0.0
      %7989 = vmatpush1.msra.mxu0 0.0
      %7990 = vmatprep.subr.mxu0 0.0
      %7991 = vmatpush1.msra.mxu0 0.0
      %7992 = vmatprep.subr.mxu0 0.0
      %7993 = vmatpush1.msra.mxu0 0.0
      %7994 = vmatprep.subr.mxu0 0.0
      %7995 = vmatpush1.msra.mxu0 0.0
      %7996 = vmatprep.subr.mxu0 0.0
      %7997 = vmatpush1.msra.mxu0 0.0
      %7998 = vmatprep.subr.mxu0 0.0
      %7999 = vmatpush1.msra.mxu0 0.0
      %8000 = vmatprep.subr.mxu0 0.0
      %8001 = vmatpush1.msra.mxu0 0.0
      %8002 = vmatprep.subr.mxu0 0.0
      %8003 = vmatpush1.msra.mxu0 0.0
      %8004 = vmatprep.subr.mxu0 0.0
      %8005 = vmatpush1.msra.mxu0 0.0
      %8006 = vmatprep.subr.mxu0 0.0
      %8007 = vmatpush1.msra.mxu0 0.0
      %8008 = vmatprep.subr.mxu0 0.0
      %8009 = vmatpush1.msra.mxu0 0.0
      %8010 = vmatprep.subr.mxu0 0.0
      %8011 = vmatpush1.msra.mxu0 0.0
      %8012 = vmatprep.subr.mxu0 0.0
      %8013 = vmatpush1.msra.mxu0 0.0
      %8014 = vmatprep.subr.mxu0 0.0
      %8015 = vmatpush1.msra.mxu0 0.0
      %8016 = vmatprep.subr.mxu0 0.0
      %8017 = vmatpush1.msra.mxu0 0.0
      %8018 = vmatprep.subr.mxu0 0.0
      %8019 = vmatpush1.msra.mxu0 0.0
      %8020 = vmatprep.subr.mxu0 0.0
      %8021 = vmatpush1.msra.mxu0 0.0
      %8022 = vmatprep.subr.mxu0 0.0
      %8023 = vmatpush1.msra.mxu0 0.0
      %8024 = vmatprep.subr.mxu0 0.0
      %8025 = vmatpush1.msra.mxu0 0.0
      %8026 = vmatprep.subr.mxu0 0.0
      %8027 = vmatpush1.msra.mxu0 0.0
      %8028 = vmatprep.subr.mxu0 0.0
      %8029 = vmatpush1.msra.mxu0 0.0
      %8030 = vmatprep.subr.mxu0 0.0
      %8031 = vmatpush1.msra.mxu0 0.0
      %8032 = vmatprep.subr.mxu0 0.0
      %8033 = vmatpush1.msra.mxu0 0.0
      %8034 = vmatprep.mubr.f32.mxu0 0.0
      %8035 = vmatmul.mubr.f32.gmra.mrb[0].mxu0 %v7875
      %v8036 = vpop.f32.mrb[0].mxu0
      %v8037 = vadd.f32 0.0, %v8036
      %v8038 = vpop.f32.mrb[0].mxu0
      %8039 = vmatprep.mubr.f32.mxu0 0.0
      %8040 = vmatmul.mubr.f32.gmra.mrb[0].mxu0 %v7878
      %v8041 = vpop.f32.mrb[0].mxu0
      %v8042 = vadd.f32 0.0, %v8041
      %v8043 = vpop.f32.mrb[0].mxu0
      %8044 = vmatprep.mubr.f32.mxu0 0.0
      %8045 = vmatmul.mubr.f32.gmra.mrb[0].mxu0 %v7881
      %v8046 = vpop.f32.mrb[0].mxu0
      %v8047 = vadd.f32 0.0, %v8046
      %v8048 = vpop.f32.mrb[0].mxu0
      %8049 = vmatprep.mubr.f32.mxu0 0.0
      %8050 = vmatmul.mubr.f32.gmra.mrb[0].mxu0 %v7884
      %v8051 = vpop.f32.mrb[0].mxu0
      %v8052 = vadd.f32 0.0, %v8051
      %v8053 = vpop.f32.mrb[0].mxu0
      %8054 = vmatprep.mubr.f32.mxu0 0.0
      %8055 = vmatmul.mubr.f32.gmra.mrb[0].mxu0 %v7887
      %v8056 = vpop.f32.mrb[0].mxu0
      %v8057 = vadd.f32 0.0, %v8056
      %v8058 = vpop.f32.mrb[0].mxu0
      %8059 = vmatprep.mubr.f32.mxu0 0.0
      %8060 = vmatmul.mubr.f32.gmra.mrb[0].mxu0 %v7890
      %v8061 = vpop.f32.mrb[0].mxu0
      %v8062 = vadd.f32 0.0, %v8061
      %v8063 = vpop.f32.mrb[0].mxu0
      %8064 = vmatprep.mubr.f32.mxu0 0.0
      %8065 = vmatmul.mubr.f32.gmra.mrb[0].mxu0 %v7893
      %v8066 = vpop.f32.mrb[0].mxu0
      %v8067 = vadd.f32 0.0, %v8066
      %v8068 = vpop.f32.mrb[0].mxu0
      %8069 = vmatprep.mubr.f32.mxu0 0.0
      %8070 = vmatmul.mubr.f32.gmra.mrb[0].mxu0 %v7896
      %v8071 = vpop.f32.mrb[0].mxu0
      %v8072 = vadd.f32 0.0, %v8071
      %v8073 = vpop.f32.mrb[0].mxu0
      %8074 = vmatprep.mubr.f32.mxu0 0.0
      %8075 = vmatmul.mubr.f32.gmra.mrb[0].mxu0 %v7899
      %v8076 = vpop.f32.mrb[0].mxu0
      %v8077 = vadd.f32 0.0, %v8076
      %v8078 = vpop.f32.mrb[0].mxu0
      %8079 = vmatprep.mubr.f32.mxu0 0.0
      %8080 = vmatmul.mubr.f32.gmra.mrb[0].mxu0 %v7902
      %v8081 = vpop.f32.mrb[0].mxu0
      %v8082 = vadd.f32 0.0, %v8081
      %v8083 = vpop.f32.mrb[0].mxu0
      %8084 = vmatprep.mubr.f32.mxu0 0.0
      %8085 = vmatmul.mubr.f32.gmra.mrb[0].mxu0 %v7905
      %v8086 = vpop.f32.mrb[0].mxu0
      %v8087 = vadd.f32 0.0, %v8086
      %v8088 = vpop.f32.mrb[0].mxu0
      %8089 = vmatprep.mubr.f32.mxu0 0.0
      %8090 = vmatmul.mubr.f32.gmra.mrb[0].mxu0 %v7908
      %v8091 = vpop.f32.mrb[0].mxu0
      %v8092 = vadd.f32 0.0, %v8091
      %v8093 = vpop.f32.mrb[0].mxu0
      %8094 = vmatprep.mubr.f32.mxu0 0.0
      %8095 = vmatmul.mubr.f32.gmra.mrb[0].mxu0 %v7911
      %v8096 = vpop.f32.mrb[0].mxu0
      %v8097 = vadd.f32 0.0, %v8096
      %v8098 = vpop.f32.mrb[0].mxu0
      %8099 = vmatprep.mubr.f32.mxu0 0.0
      %8100 = vmatmul.mubr.f32.gmra.mrb[0].mxu0 %v7914
      %v8101 = vpop.f32.mrb[0].mxu0
      %v8102 = vadd.f32 0.0, %v8101
      %v8103 = vpop.f32.mrb[0].mxu0
      %8104 = vmatprep.mubr.f32.mxu0 0.0
      %8105 = vmatmul.mubr.f32.gmra.mrb[0].mxu0 %v7917
      %v8106 = vpop.f32.mrb[0].mxu0
      %v8107 = vadd.f32 0.0, %v8106
      %v8108 = vpop.f32.mrb[0].mxu0
      %8109 = vmatprep.mubr.f32.mxu0 0.0
      %8110 = vmatmul.mubr.f32.gmra.mrb[0].mxu0 %v7920
      %v8111 = vpop.f32.mrb[0].mxu0
      %v8112 = vadd.f32 0.0, %v8111
      %v8113 = vpop.f32.mrb[0].mxu0
      %8114 = vmatprep.mubr.f32.mxu0 0.0
      %8115 = vmatmul.mubr.f32.gmra.mrb[0].mxu0 %v7923
      %v8116 = vpop.f32.mrb[0].mxu0
      %v8117 = vadd.f32 0.0, %v8116
      %v8118 = vpop.f32.mrb[0].mxu0
      %8119 = vmatprep.mubr.f32.mxu0 0.0
      %8120 = vmatmul.mubr.f32.gmra.mrb[0].mxu0 %v7926
      %v8121 = vpop.f32.mrb[0].mxu0
      %v8122 = vadd.f32 0.0, %v8121
      %v8123 = vpop.f32.mrb[0].mxu0
      %8124 = vmatprep.mubr.f32.mxu0 0.0
      %8125 = vmatmul.mubr.f32.gmra.mrb[0].mxu0 %v7929
      %v8126 = vpop.f32.mrb[0].mxu0
      %v8127 = vadd.f32 0.0, %v8126
      %v8128 = vpop.f32.mrb[0].mxu0
      %8129 = vmatprep.mubr.f32.mxu0 0.0
      %8130 = vmatmul.mubr.f32.gmra.mrb[0].mxu0 %v7932
      %v8131 = vpop.f32.mrb[0].mxu0
      %v8132 = vadd.f32 0.0, %v8131
      %v8133 = vpop.f32.mrb[0].mxu0
      %8134 = vmatprep.mubr.f32.mxu0 0.0
      %8135 = vmatmul.mubr.f32.gmra.mrb[0].mxu0 %v7935
      %v8136 = vpop.f32.mrb[0].mxu0
      %v8137 = vadd.f32 0.0, %v8136
      %v8138 = vpop.f32.mrb[0].mxu0
      %8139 = vmatprep.mubr.f32.mxu0 0.0
      %8140 = vmatmul.mubr.f32.gmra.mrb[0].mxu0 %v7938
      %v8141 = vpop.f32.mrb[0].mxu0
      %v8142 = vadd.f32 0.0, %v8141
      %v8143 = vpop.f32.mrb[0].mxu0
      %8144 = vmatprep.mubr.f32.mxu0 0.0
      %8145 = vmatmul.mubr.f32.gmra.mrb[0].mxu0 %v7941
      %v8146 = vpop.f32.mrb[0].mxu0
      %v8147 = vadd.f32 0.0, %v8146
      %v8148 = vpop.f32.mrb[0].mxu0
      %8149 = vmatprep.mubr.f32.mxu0 0.0
      %8150 = vmatmul.mubr.f32.gmra.mrb[0].mxu0 %v7944
      %v8151 = vpop.f32.mrb[0].mxu0
      %v8152 = vadd.f32 0.0, %v8151
      %v8153 = vpop.f32.mrb[0].mxu0
      %8154 = vmatprep.mubr.f32.mxu0 0.0
      %8155 = vmatmul.mubr.f32.gmra.mrb[0].mxu0 %v7947
      %v8156 = vpop.f32.mrb[0].mxu0
      %v8157 = vadd.f32 0.0, %v8156
      %v8158 = vpop.f32.mrb[0].mxu0
      %8159 = vmatprep.mubr.f32.mxu0 0.0
      %8160 = vmatmul.mubr.f32.gmra.mrb[0].mxu0 %v7950
      %v8161 = vpop.f32.mrb[0].mxu0
      %v8162 = vadd.f32 0.0, %v8161
      %v8163 = vpop.f32.mrb[0].mxu0
      %8164 = vmatprep.mubr.f32.mxu0 0.0
      %8165 = vmatmul.mubr.f32.gmra.mrb[0].mxu0 %v7953
      %v8166 = vpop.f32.mrb[0].mxu0
      %v8167 = vadd.f32 0.0, %v8166
      %v8168 = vpop.f32.mrb[0].mxu0
      %8169 = vmatprep.mubr.f32.mxu0 0.0
      %8170 = vmatmul.mubr.f32.gmra.mrb[0].mxu0 %v7956
      %v8171 = vpop.f32.mrb[0].mxu0
      %v8172 = vadd.f32 0.0, %v8171
      %v8173 = vpop.f32.mrb[0].mxu0
      %8174 = vmatprep.mubr.f32.mxu0 0.0
      %8175 = vmatmul.mubr.f32.gmra.mrb[0].mxu0 %v7959
      %v8176 = vpop.f32.mrb[0].mxu0
      %v8177 = vadd.f32 0.0, %v8176
      %v8178 = vpop.f32.mrb[0].mxu0
      %8179 = vmatprep.mubr.f32.mxu0 0.0
      %8180 = vmatmul.mubr.f32.gmra.mrb[0].mxu0 %v7962
      %v8181 = vpop.f32.mrb[0].mxu0
      %v8182 = vadd.f32 0.0, %v8181
      %v8183 = vpop.f32.mrb[0].mxu0
      %8184 = vmatprep.mubr.f32.mxu0 0.0
      %8185 = vmatmul.mubr.f32.gmra.mrb[0].mxu0 %v7965
      %v8186 = vpop.f32.mrb[0].mxu0
      %v8187 = vadd.f32 0.0, %v8186
      %v8188 = vpop.f32.mrb[0].mxu0
      %8189 = vmatprep.mubr.f32.mxu0 0.0
      %8190 = vmatmul.mubr.f32.gmra.mrb[0].mxu0 %v7968
      %v8191 = vpop.f32.mrb[0].mxu0
      %v8192 = vadd.f32 0.0, %v8191
      %v8193 = vpop.f32.mrb[0].mxu0
      %8194 = vdwg.mxu0
      %v8195 = vadd.f32 %v7715, %v8037
      %v8196 = vadd.f32 %v7720, %v8042
      %v8197 = vadd.f32 %v7725, %v8047
      %v8198 = vadd.f32 %v7730, %v8052
      %v8199 = vadd.f32 %v7735, %v8057
      %v8200 = vadd.f32 %v7740, %v8062
      %v8201 = vadd.f32 %v7745, %v8067
      %v8202 = vadd.f32 %v7750, %v8072
      %v8203 = vadd.f32 %v7755, %v8077
      %v8204 = vadd.f32 %v7760, %v8082
      %v8205 = vadd.f32 %v7765, %v8087
      %v8206 = vadd.f32 %v7770, %v8092
      %v8207 = vadd.f32 %v7775, %v8097
      %v8208 = vadd.f32 %v7780, %v8102
      %v8209 = vadd.f32 %v7785, %v8107
      %v8210 = vadd.f32 %v7790, %v8112
      %v8211 = vadd.f32 %v7795, %v8117
      %v8212 = vadd.f32 %v7800, %v8122
      %v8213 = vadd.f32 %v7805, %v8127
      %v8214 = vadd.f32 %v7810, %v8132
      %v8215 = vadd.f32 %v7815, %v8137
      %v8216 = vadd.f32 %v7820, %v8142
      %v8217 = vadd.f32 %v7825, %v8147
      %v8218 = vadd.f32 %v7830, %v8152
      %v8219 = vadd.f32 %v7835, %v8157
      %v8220 = vadd.f32 %v7840, %v8162
      %v8221 = vadd.f32 %v7845, %v8167
      %v8222 = vadd.f32 %v7850, %v8172
      %v8223 = vadd.f32 %v7855, %v8177
      %v8224 = vadd.f32 %v7860, %v8182
      %v8225 = vadd.f32 %v7865, %v8187
      %v8226 = vadd.f32 %v7870, %v8192
      %v8227 = vlaneseq
      %v8228 = vshrl.u32 %v8227, 7
      %v8229 = vsub.s32 6, %v8228
      %v8230 = vrot.slane %v400, %v8229
      %v8231 = vmul.f32 %v8195, %v8230
      %v8232 = vmul.f32 %v8196, %v8230
      %v8233 = vmul.f32 %v8197, %v8230
      %v8234 = vmul.f32 %v8198, %v8230
      %v8235 = vmul.f32 %v8199, %v8230
      %v8236 = vmul.f32 %v8200, %v8230
      %v8237 = vmul.f32 %v8201, %v8230
      %v8238 = vmul.f32 %v8202, %v8230
      %v8239 = vmul.f32 %v8203, %v8230
      %v8240 = vmul.f32 %v8204, %v8230
      %v8241 = vmul.f32 %v8205, %v8230
      %v8242 = vmul.f32 %v8206, %v8230
      %v8243 = vmul.f32 %v8207, %v8230
      %v8244 = vmul.f32 %v8208, %v8230
      %v8245 = vmul.f32 %v8209, %v8230
      %v8246 = vmul.f32 %v8210, %v8230
      %v8247 = vmul.f32 %v8211, %v8230
      %v8248 = vmul.f32 %v8212, %v8230
      %v8249 = vmul.f32 %v8213, %v8230
      %v8250 = vmul.f32 %v8214, %v8230
      %v8251 = vmul.f32 %v8215, %v8230
      %v8252 = vmul.f32 %v8216, %v8230
      %v8253 = vmul.f32 %v8217, %v8230
      %v8254 = vmul.f32 %v8218, %v8230
      %v8255 = vmul.f32 %v8219, %v8230
      %v8256 = vmul.f32 %v8220, %v8230
      %v8257 = vmul.f32 %v8221, %v8230
      %v8258 = vmul.f32 %v8222, %v8230
      %v8259 = vmul.f32 %v8223, %v8230
      %v8260 = vmul.f32 %v8224, %v8230
      %v8261 = vmul.f32 %v8225, %v8230
      %v8262 = vmul.f32 %v8226, %v8230
      %v8263 = vlaneseq
      %v8264 = vshrl.u32 %v8263, 7
      %v8265 = vsub.s32 7, %v8264
      %v8266 = vrot.slane %v400, %v8265
      %v8267 = vadd.f32 %v8231, %v8266
      %v8268 = vadd.f32 %v8232, %v8266
      %v8269 = vadd.f32 %v8233, %v8266
      %v8270 = vadd.f32 %v8234, %v8266
      %v8271 = vadd.f32 %v8235, %v8266
      %v8272 = vadd.f32 %v8236, %v8266
      %v8273 = vadd.f32 %v8237, %v8266
      %v8274 = vadd.f32 %v8238, %v8266
      %v8275 = vadd.f32 %v8239, %v8266
      %v8276 = vadd.f32 %v8240, %v8266
      %v8277 = vadd.f32 %v8241, %v8266
      %v8278 = vadd.f32 %v8242, %v8266
      %v8279 = vadd.f32 %v8243, %v8266
      %v8280 = vadd.f32 %v8244, %v8266
      %v8281 = vadd.f32 %v8245, %v8266
      %v8282 = vadd.f32 %v8246, %v8266
      %v8283 = vadd.f32 %v8247, %v8266
      %v8284 = vadd.f32 %v8248, %v8266
      %v8285 = vadd.f32 %v8249, %v8266
      %v8286 = vadd.f32 %v8250, %v8266
      %v8287 = vadd.f32 %v8251, %v8266
      %v8288 = vadd.f32 %v8252, %v8266
      %v8289 = vadd.f32 %v8253, %v8266
      %v8290 = vadd.f32 %v8254, %v8266
      %v8291 = vadd.f32 %v8255, %v8266
      %v8292 = vadd.f32 %v8256, %v8266
      %v8293 = vadd.f32 %v8257, %v8266
      %v8294 = vadd.f32 %v8258, %v8266
      %v8295 = vadd.f32 %v8259, %v8266
      %v8296 = vadd.f32 %v8260, %v8266
      %v8297 = vadd.f32 %v8261, %v8266
      %v8298 = vadd.f32 %v8262, %v8266
      %v8299 = vmax.f32 %v8267, 0.0
      %v8300 = vmax.f32 %v8268, 0.0
      %v8301 = vmax.f32 %v8269, 0.0
      %v8302 = vmax.f32 %v8270, 0.0
      %v8303 = vmax.f32 %v8271, 0.0
      %v8304 = vmax.f32 %v8272, 0.0
      %v8305 = vmax.f32 %v8273, 0.0
      %v8306 = vmax.f32 %v8274, 0.0
      %v8307 = vmax.f32 %v8275, 0.0
      %v8308 = vmax.f32 %v8276, 0.0
      %v8309 = vmax.f32 %v8277, 0.0
      %v8310 = vmax.f32 %v8278, 0.0
      %v8311 = vmax.f32 %v8279, 0.0
      %v8312 = vmax.f32 %v8280, 0.0
      %v8313 = vmax.f32 %v8281, 0.0
      %v8314 = vmax.f32 %v8282, 0.0
      %v8315 = vmax.f32 %v8283, 0.0
      %v8316 = vmax.f32 %v8284, 0.0
      %v8317 = vmax.f32 %v8285, 0.0
      %v8318 = vmax.f32 %v8286, 0.0
      %v8319 = vmax.f32 %v8287, 0.0
      %v8320 = vmax.f32 %v8288, 0.0
      %v8321 = vmax.f32 %v8289, 0.0
      %v8322 = vmax.f32 %v8290, 0.0
      %v8323 = vmax.f32 %v8291, 0.0
      %v8324 = vmax.f32 %v8292, 0.0
      %v8325 = vmax.f32 %v8293, 0.0
      %v8326 = vmax.f32 %v8294, 0.0
      %v8327 = vmax.f32 %v8295, 0.0
      %v8328 = vmax.f32 %v8296, 0.0
      %v8329 = vmax.f32 %v8297, 0.0
      %v8330 = vmax.f32 %v8298, 0.0
      %8331 = vst.msk [vmem:[%s394] sm:$0xff] %vm1873, %v8299
      %8332 = vst.msk [vmem:[%s394 + $0x8] sm:$0xff] %vm1873, %v8300
      %8333 = vst.msk [vmem:[%s394 + $0x10] sm:$0xff] %vm1873, %v8301
      %8334 = vst.msk [vmem:[%s394 + $0x18] sm:$0xff] %vm1873, %v8302
      %8335 = vst.msk [vmem:[%s394 + $0x20] sm:$0xff] %vm1873, %v8303
      %8336 = vst.msk [vmem:[%s394 + $0x28] sm:$0xff] %vm1873, %v8304
      %8337 = vst.msk [vmem:[%s394 + $0x30] sm:$0xff] %vm1873, %v8305
      %8338 = vst.msk [vmem:[%s394 + $0x38] sm:$0xff] %vm1873, %v8306
      %8339 = vst.msk [vmem:[%s394 + $0x40] sm:$0xff] %vm1873, %v8307
      %8340 = vst.msk [vmem:[%s394 + $0x48] sm:$0xff] %vm1873, %v8308
      %8341 = vst.msk [vmem:[%s394 + $0x50] sm:$0xff] %vm1873, %v8309
      %8342 = vst.msk [vmem:[%s394 + $0x58] sm:$0xff] %vm1873, %v8310
      %8343 = vst.msk [vmem:[%s394 + $0x60] sm:$0xff] %vm1873, %v8311
      %8344 = vst.msk [vmem:[%s394 + $0x68] sm:$0xff] %vm1873, %v8312
      %8345 = vst.msk [vmem:[%s394 + $0x70] sm:$0xff] %vm1873, %v8313
      %8346 = vst.msk [vmem:[%s394 + $0x78] sm:$0xff] %vm1873, %v8314
      %8347 = vst.msk [vmem:[%s394 + $0x80] sm:$0xff] %vm1873, %v8315
      %8348 = vst.msk [vmem:[%s394 + $0x88] sm:$0xff] %vm1873, %v8316
      %8349 = vst.msk [vmem:[%s394 + $0x90] sm:$0xff] %vm1873, %v8317
      %8350 = vst.msk [vmem:[%s394 + $0x98] sm:$0xff] %vm1873, %v8318
      %8351 = vst.msk [vmem:[%s394 + $0xa0] sm:$0xff] %vm1873, %v8319
      %8352 = vst.msk [vmem:[%s394 + $0xa8] sm:$0xff] %vm1873, %v8320
      %8353 = vst.msk [vmem:[%s394 + $0xb0] sm:$0xff] %vm1873, %v8321
      %8354 = vst.msk [vmem:[%s394 + $0xb8] sm:$0xff] %vm1873, %v8322
      %8355 = vst.msk [vmem:[%s394 + $0xc0] sm:$0xff] %vm1873, %v8323
      %8356 = vst.msk [vmem:[%s394 + $0xc8] sm:$0xff] %vm1873, %v8324
      %8357 = vst.msk [vmem:[%s394 + $0xd0] sm:$0xff] %vm1873, %v8325
      %8358 = vst.msk [vmem:[%s394 + $0xd8] sm:$0xff] %vm1873, %v8326
      %8359 = vst.msk [vmem:[%s394 + $0xe0] sm:$0xff] %vm1873, %v8327
      %8360 = vst.msk [vmem:[%s394 + $0xe8] sm:$0xff] %vm1873, %v8328
      %8361 = vst.msk [vmem:[%s394 + $0xf0] sm:$0xff] %vm1873, %v8329
      %8362 = vst.msk [vmem:[%s394 + $0xf8] sm:$0xff] %vm1873, %v8330
      %v8363 = vadd.f32 %v8299, %v2507
      %v8364 = vadd.f32 %v8300, %v2508
      %v8365 = vadd.f32 %v8301, %v2509
      %v8366 = vadd.f32 %v8302, %v2510
      %v8367 = vadd.f32 %v8303, %v2511
      %v8368 = vadd.f32 %v8304, %v2512
      %v8369 = vadd.f32 %v8305, %v2513
      %v8370 = vadd.f32 %v8306, %v2514
      %v8371 = vadd.f32 %v8307, %v2515
      %v8372 = vadd.f32 %v8308, %v2516
      %v8373 = vadd.f32 %v8309, %v2517
      %v8374 = vadd.f32 %v8310, %v2518
      %v8375 = vadd.f32 %v8311, %v2519
      %v8376 = vadd.f32 %v8312, %v2520
      %v8377 = vadd.f32 %v8313, %v2521
      %v8378 = vadd.f32 %v8314, %v2522
      %v8379 = vadd.f32 %v8315, %v2523
      %v8380 = vadd.f32 %v8316, %v2524
      %v8381 = vadd.f32 %v8317, %v2525
      %v8382 = vadd.f32 %v8318, %v2526
      %v8383 = vadd.f32 %v8319, %v2527
      %v8384 = vadd.f32 %v8320, %v2528
      %v8385 = vadd.f32 %v8321, %v2529
      %v8386 = vadd.f32 %v8322, %v2530
      %v8387 = vadd.f32 %v8323, %v2531
      %v8388 = vadd.f32 %v8324, %v2532
      %v8389 = vadd.f32 %v8325, %v2533
      %v8390 = vadd.f32 %v8326, %v2534
      %v8391 = vadd.f32 %v8327, %v2535
      %v8392 = vadd.f32 %v8328, %v2536
      %v8393 = vadd.f32 %v8329, %v2537
      %v8394 = vadd.f32 %v8330, %v2538
      %8395 = vst.msk [vmem:[%s399] sm:$0xff] %vm1873, %v8363
      %8396 = vst.msk [vmem:[%s399 + $0x8] sm:$0xff] %vm1873, %v8364
      %8397 = vst.msk [vmem:[%s399 + $0x10] sm:$0xff] %vm1873, %v8365
      %8398 = vst.msk [vmem:[%s399 + $0x18] sm:$0xff] %vm1873, %v8366
      %8399 = vst.msk [vmem:[%s399 + $0x20] sm:$0xff] %vm1873, %v8367
      %8400 = vst.msk [vmem:[%s399 + $0x28] sm:$0xff] %vm1873, %v8368
      %8401 = vst.msk [vmem:[%s399 + $0x30] sm:$0xff] %vm1873, %v8369
      %8402 = vst.msk [vmem:[%s399 + $0x38] sm:$0xff] %vm1873, %v8370
      %8403 = vst.msk [vmem:[%s399 + $0x40] sm:$0xff] %vm1873, %v8371
      %8404 = vst.msk [vmem:[%s399 + $0x48] sm:$0xff] %vm1873, %v8372
      %8405 = vst.msk [vmem:[%s399 + $0x50] sm:$0xff] %vm1873, %v8373
      %8406 = vst.msk [vmem:[%s399 + $0x58] sm:$0xff] %vm1873, %v8374
      %8407 = vst.msk [vmem:[%s399 + $0x60] sm:$0xff] %vm1873, %v8375
      %8408 = vst.msk [vmem:[%s399 + $0x68] sm:$0xff] %vm1873, %v8376
      %8409 = vst.msk [vmem:[%s399 + $0x70] sm:$0xff] %vm1873, %v8377
      %8410 = vst.msk [vmem:[%s399 + $0x78] sm:$0xff] %vm1873, %v8378
      %8411 = vst.msk [vmem:[%s399 + $0x80] sm:$0xff] %vm1873, %v8379
      %8412 = vst.msk [vmem:[%s399 + $0x88] sm:$0xff] %vm1873, %v8380
      %8413 = vst.msk [vmem:[%s399 + $0x90] sm:$0xff] %vm1873, %v8381
      %8414 = vst.msk [vmem:[%s399 + $0x98] sm:$0xff] %vm1873, %v8382
      %8415 = vst.msk [vmem:[%s399 + $0xa0] sm:$0xff] %vm1873, %v8383
      %8416 = vst.msk [vmem:[%s399 + $0xa8] sm:$0xff] %vm1873, %v8384
      %8417 = vst.msk [vmem:[%s399 + $0xb0] sm:$0xff] %vm1873, %v8385
      %8418 = vst.msk [vmem:[%s399 + $0xb8] sm:$0xff] %vm1873, %v8386
      %8419 = vst.msk [vmem:[%s399 + $0xc0] sm:$0xff] %vm1873, %v8387
      %8420 = vst.msk [vmem:[%s399 + $0xc8] sm:$0xff] %vm1873, %v8388
      %8421 = vst.msk [vmem:[%s399 + $0xd0] sm:$0xff] %vm1873, %v8389
      %8422 = vst.msk [vmem:[%s399 + $0xd8] sm:$0xff] %vm1873, %v8390
      %8423 = vst.msk [vmem:[%s399 + $0xe0] sm:$0xff] %vm1873, %v8391
      %8424 = vst.msk [vmem:[%s399 + $0xe8] sm:$0xff] %vm1873, %v8392
      %8425 = vst.msk [vmem:[%s399 + $0xf0] sm:$0xff] %vm1873, %v8393
      %8426 = vst.msk [vmem:[%s399 + $0xf8] sm:$0xff] %vm1873, %v8394
      %p8427 = scmp.lt.s32.totalorder %s23, 1
      %s8428 = scalar_select %p8427, %s23, 1
      %s8429 = smul.addr %s8428, 32
      %s8430 = smul.addr %s8429, 8
      %s8431 = scalar_lea.vmem %s10, %s8430
      %p8432 = scmp.lt.s32.totalorder %s23, 1
      %s8433 = scalar_select %p8432, %s23, 1
      %s8434 = smul.addr %s8433, 32
      %s8435 = smul.addr %s8434, 8
      %s8436 = scalar_lea.vmem %s11, %s8435
      // Predicated region
      $region61: #{mfrf_en_dila_forward.1} parent=59 // pred_check
        %p8437 = pneg %p256
      $region62: #{mfrf_en_dila_forward.1} parent=59 // pred_check_branch
        %8439 = sbr.rel (%p8437) target = $region64
      $region63: #{mfrf_en_dila_forward.1} parent=59 // pred_region
        _
      $region64: #{mfrf_en_dila_forward.1} parent=59 // pred_fallthru
        _
      // Predicated region
      $region65: #{mfrf_en_dila_forward.1} parent=59 // pred_check
        %p8440 = pneg %p282
      $region66: #{mfrf_en_dila_forward.1} parent=59 // pred_check_branch
        %8442 = sbr.rel (%p8440) target = $region68
      $region67: #{mfrf_en_dila_forward.1} parent=59 // pred_region
        _
      $region68: #{mfrf_en_dila_forward.1} parent=59 // pred_fallthru
        _
    $region60: #{mfrf_en_dila_forward.1} parent=5 // pred_fallthru
      _
    %p8443 = scmp.le.s32.totalorder 2, %s18
    // Predicated region
    $region69: #{mfrf_en_dila_forward.1} parent=5 // pred_check
      %p8444 = pneg %p8443
    $region70: #{mfrf_en_dila_forward.1} parent=5 // pred_check_branch
      %8446 = sbr.rel (%p8444) target = $region72
    $region71: #{mfrf_en_dila_forward.1} parent=5 // pred_region
      %s8447 = ssub.s32 %s18, 2
      // Predicated region
      $region73: #{mfrf_en_dila_forward.1} parent=71 // pred_check
        %p8448 = pneg %p262
      $region74: #{mfrf_en_dila_forward.1} parent=71 // pred_check_branch
        %8450 = sbr.rel (%p8448) target = $region76
      $region75: #{mfrf_en_dila_forward.1} parent=71 // pred_region
        %p8451 = scmp.lt.s32.totalorder %s24, 1
        %s8452 = scalar_select %p8451, %s24, 1
        %s8453 = smul.addr %s8452, 32
        %s8454 = smul.addr %s8453, 8
        %s8455 = scalar_lea.vmem %s10, %s8454
      $region76: #{mfrf_en_dila_forward.1} parent=71 // pred_fallthru
        _
      // Predicated region
      $region77: #{mfrf_en_dila_forward.1} parent=71 // pred_check
        %p8456 = pneg %p288
      $region78: #{mfrf_en_dila_forward.1} parent=71 // pred_check_branch
        %8458 = sbr.rel (%p8456) target = $region80
      $region79: #{mfrf_en_dila_forward.1} parent=71 // pred_region
        %p8459 = scmp.lt.s32.totalorder %s24, 1
        %s8460 = scalar_select %p8459, %s24, 1
        %s8461 = smul.addr %s8460, 32
        %s8462 = smul.addr %s8461, 8
        %s8463 = scalar_lea.vmem %s11, %s8462
      $region80: #{mfrf_en_dila_forward.1} parent=71 // pred_fallthru
        _
    $region72: #{mfrf_en_dila_forward.1} parent=5 // pred_fallthru
      _
  $region6: #{mfrf_en_dila_forward.1} parent=0 // loop_footer
    %s22 = sadd.s32 1, %s18
  $region7: #{mfrf_en_dila_forward.1} parent=0 // loop_footer_branch
    %17 = sbr.rel target = $region3
  $region8: #{mfrf_en_dila_forward.1} parent=0 // loop_exit
    _

</llo_original>
